<compile_context>
chip_gen: v7x
topology: tpu7x:2x2x1
jax: 0.10.0
libtpu: 0.0.40
codegen_flags: <defaults>
</compile_context>

<pallas_src>
import numpy as np
import jax
import jax.numpy as jnp
from jax import lax
from jax.experimental import pallas as pl
from jax.experimental.pallas import tpu as pltpu

EPS = 1e-5


# ------------------------------ small helpers ------------------------------ #

def _upsample_matrix_1d(k):
    """1-D linear x2 upsample operator matching PyTorch align_corners=False."""
    m = np.zeros((2 * k, k), dtype=np.float32)
    for o in range(2 * k):
        src = max(0.5 * (o + 0.5) - 0.5, 0.0)       # PyTorch clamps negative src to 0
        i0 = int(np.floor(src))
        i1 = min(i0 + 1, k - 1)
        w1 = src - i0
        m[o, i0] += 1.0 - w1
        m[o, i1] += w1
    return m


def _taps_1d(k):
    """Per-output (idx0, w0, idx1, w1) taps of the 1-D x2 linear upsample."""
    taps = []
    for o in range(2 * k):
        src = max(0.5 * (o + 0.5) - 0.5, 0.0)
        i0 = int(np.floor(src))
        i1 = min(i0 + 1, k - 1)
        w1 = float(src - i0)
        taps.append((i0, 1.0 - w1, i1, w1))
    return taps


def _fold_bn(w_conv, bn):
    """Fold inference-mode BatchNorm3d into a bias-free 1x1x1 conv.
    w_conv: (Cout, Cin). Returns (Cout, Cin) weight and (Cout,) bias."""
    gamma, beta, mean, var = bn
    s = gamma / jnp.sqrt(var + EPS)
    return w_conv * s[:, None], beta - mean * s


# ------------------------------ Pallas kernel ------------------------------ #

def _make_kernel(F_g, F_l, F_int, D, H, W, h_taps, cd):
    """Build the fused kernel for one (batch, channel-tile) grid step."""
    n_chunks = D // cd

    def kernel(g_ref, xlo_ref, x_ref, uwt_ref, ud_ref,
               wg_ref, wx_ref, b1_ref, wp_ref, bp_ref,
               o_ref, psi_ref):
        # ---- stage 1: psi = sigmoid(Wp @ relu(Wg@g + Wx@x_lo + b1) + bp) ----
        # Channel dims are tiny: unrolled scalar-weight VPU accumulation (SMEM weights),
        # chunked over D via fori_loop so live vreg tiles stay small at big D*H*W.
        def chunk(i, carry):
            d0 = pl.multiple_of(i * cd, cd)
            dsl = pl.ds(d0, cd)
            acc = jnp.zeros((cd, H, W), jnp.float32)
            for f in range(F_int):
                hid = jnp.zeros((cd, H, W), jnp.float32)
                for c in range(F_g):
                    hid = hid + g_ref[0, c, dsl, :, :] * wg_ref[f, c]
                for c in range(F_l):
                    hid = hid + xlo_ref[0, c, dsl, :, :] * wx_ref[f, c]
                hid = jnp.maximum(hid + b1_ref[f], 0.0)
                acc = acc + hid * wp_ref[f]
            psi_ref[dsl, :, :] = jax.nn.sigmoid(acc + bp_ref[0])
            return carry

        lax.fori_loop(0, n_chunks, chunk, 0)

        # ---- stage 2: separable trilinear x2 upsample (align_corners=False) ----
        # H axis: 2-tap weighted adds; W axis: (W,2W) matmul; D axis: (2D,D) matmul.
        uwt = uwt_ref[...]                                   # (W, 2W)
        pieces = []
        for (i0, w0, i1, w1) in h_taps:                      # 2H output rows along H
            if i1 == i0:
                q = psi_ref[:, i0, :] * (w0 + w1)
            elif w1 == 0.0:
                q = psi_ref[:, i0, :] * w0
            else:
                q = psi_ref[:, i0, :] * w0 + psi_ref[:, i1, :] * w1
            pieces.append(jnp.dot(q, uwt, preferred_element_type=jnp.float32))
        b = jnp.concatenate(pieces, axis=-1)                 # (D, 4*H*W)
        p_up = jnp.dot(ud_ref[...], b,
                       preferred_element_type=jnp.float32)   # (2D, 4*H*W)

        # ---- gating: lane-dense store over this channel tile ----
        o_ref[...] = x_ref[...] * p_up[None, None, :, :]

    return kernel


# --------------------------------- wrapper ---------------------------------- #

def attention_gate(g, x, params, channel_tile=None):
    N, F_g, D, H, W = g.shape
    Nx, F_l, D2, H2, W2 = x.shape
    assert Nx == N and (D2, H2, W2) == (2 * D, 2 * H, 2 * W)
    HW4 = H2 * W2                                   # = 4*H*W, the output lane axis
    F_int = params["wg"].shape[0]

    # Fold inference-mode BN into the 1x1x1 convs; merge the two stage-1 biases.
    wg_f, bg = _fold_bn(params["wg"], params["bn_g"])
    wx_f, bx = _fold_bn(params["wx"], params["bn_x"])
    wp_f, bp = _fold_bn(params["wp"], params["bn_p"])
    b1 = bg + bx                                    # (F_int,)
    wp = wp_f[0]                                    # (F_int,)

    # Stride-2 1x1x1 conv == ::2 subsample (all F_l channels needed for psi).
    # TODO(synk): this is still one wrapper-side strided read of x; BlockSpec cannot
    # express a stride-2 gather, an in-kernel strided DMA would remove it.
    x_lo = x[:, :, ::2, ::2, ::2]                   # (N, F_l, D, H, W)

    # Hi-res x: free reshape only (no transpose of the big tensor), lane = 4*H*W.
    x_hi = x.reshape(N, F_l, D2, HW4)

    # Channel tile: keep each hi-res x block ~<=2 MiB so in+out double buffers fit
    # comfortably under the VMEM budget (v7x: 64 MiB physical).
    if channel_tile is None:
        per_chan_bytes = D2 * HW4 * 4
        channel_tile = max(1, min(F_l, (2 * 1024 * 1024) // max(1, per_chan_bytes)))
    channel_tile = int(channel_tile)
    while F_l % channel_tile:
        channel_tile -= 1
    n_ct = F_l // channel_tile

    # Separable upsample operators (O(k^2) each; no dense HW x 4HW Kronecker).
    uwt = jnp.asarray(_upsample_matrix_1d(W).T)     # (W, 2W)
    ud = jnp.asarray(_upsample_matrix_1d(D))        # (2D, D)
    h_taps = _taps_1d(H)

    # Stage-1 chunk size over D (bounds live vreg tiles to a handful of vregs).
    vregs_per_d = ((H + 7) // 8) * ((W + 127) // 128)
    cd = max(1, min(D, 16 // max(1, vregs_per_d)))
    while D % cd:
        cd -= 1

    kernel = _make_kernel(F_g, F_l, F_int, D, H, W, h_taps, cd)

    out_hi = pl.pallas_call(
        kernel,
        out_shape=jax.ShapeDtypeStruct((N, F_l, D2, HW4), jnp.float32),
        grid=(N, n_ct),
        in_specs=[
            pl.BlockSpec((1, F_g, D, H, W), lambda n, ct: (n, 0, 0, 0, 0)),     # g (lo)
            pl.BlockSpec((1, F_l, D, H, W), lambda n, ct: (n, 0, 0, 0, 0)),     # x_lo
            pl.BlockSpec((1, channel_tile, D2, HW4), lambda n, ct: (n, ct, 0, 0)),  # x hi
            pl.BlockSpec((W, 2 * W), lambda n, ct: (0, 0)),                     # UW^T
            pl.BlockSpec((2 * D, D), lambda n, ct: (0, 0)),                     # UD
            pl.BlockSpec(memory_space=pltpu.MemorySpace.SMEM),                  # wg
            pl.BlockSpec(memory_space=pltpu.MemorySpace.SMEM),                  # wx
            pl.BlockSpec(memory_space=pltpu.MemorySpace.SMEM),                  # b1
            pl.BlockSpec(memory_space=pltpu.MemorySpace.SMEM),                  # wp
            pl.BlockSpec(memory_space=pltpu.MemorySpace.SMEM),                  # bp
        ],
        out_specs=pl.BlockSpec((1, channel_tile, D2, HW4), lambda n, ct: (n, ct, 0, 0)),
        scratch_shapes=[pltpu.VMEM((D, H, W), jnp.float32)],                    # psi
        compiler_params=pltpu.CompilerParams(
            dimension_semantics=("parallel", "parallel"),   # batch & channel tiles
            vmem_limit_bytes=48 * 1024 * 1024),             # explicit v7x-safe budget
    )(g, x_lo, x_hi, uwt, ud, wg_f, wx_f, b1, wp, bp)

    return out_hi.reshape(N, F_l, D2, H2, W2)       # free reshape back to NCDHW


# ---------------------------- pure-JAX reference ---------------------------- #

def attention_gate_reference(g, x, params):
    def convnorm(inp, w_conv, bn, stride):
        gamma, beta, mean, var = bn
        if stride == 2:
            inp = inp[:, :, ::2, ::2, ::2]
        y = jnp.einsum('oc,ncdhw->nodhw', w_conv, inp)
        s = gamma / jnp.sqrt(var + EPS)
        return (y * s[None, :, None, None, None]
                + (beta - mean * s)[None, :, None, None, None])

    g1 = convnorm(g, params["wg"], params["bn_g"], 1)
    x1 = convnorm(x, params["wx"], params["bn_x"], 2)
    h = jnp.maximum(g1 + x1, 0.0)
    psi = jax.nn.sigmoid(convnorm(h, params["wp"], params["bn_p"], 1))
    N, _, D, H, W = psi.shape
    ud = jnp.asarray(_upsample_matrix_1d(D))
    uh = jnp.asarray(_upsample_matrix_1d(H))
    uw = jnp.asarray(_upsample_matrix_1d(W))
    psi_up = jnp.einsum('ad,bh,cw,ndhw->nabc', ud, uh, uw, psi[:, 0])
    return x * psi_up[:, None]


# ----------------------------------- main ----------------------------------- #

if __name__ == "__main__":
    key = jax.random.PRNGKey(0)
    N, F_g, F_l, F_int = 2, 8, 8, 8
    D = H = W = 8                                   # g is low-res 8^3, x is 16^3
    ks = jax.random.split(key, 8)

    g = jax.random.normal(ks[0], (N, F_g, D, H, W), jnp.float32)
    x = jax.random.normal(ks[1], (N, F_l, 2 * D, 2 * H, 2 * W), jnp.float32)

    def bn_params(k, c):
        k1, k2, k3, k4 = jax.random.split(k, 4)
        gamma = 1.0 + 0.1 * jax.random.normal(k1, (c,), jnp.float32)
        beta = 0.1 * jax.random.normal(k2, (c,), jnp.float32)
        mean = 0.1 * jax.random.normal(k3, (c,), jnp.float32)
        var = 0.5 + jax.random.uniform(k4, (c,), jnp.float32)
        return (gamma, beta, mean, var)

    params = {
        "wg": 0.3 * jax.random.normal(ks[2], (F_int, F_g), jnp.float32),
        "wx": 0.3 * jax.random.normal(ks[3], (F_int, F_l), jnp.float32),
        "wp": 0.3 * jax.random.normal(ks[4], (1, F_int), jnp.float32),
        "bn_g": bn_params(ks[5], F_int),
        "bn_x": bn_params(ks[6], F_int),
        "bn_p": bn_params(ks[7], 1),
    }

    # channel_tile=4 exercises the channel-tiled path (grid = (2 batch, 2 tiles)).
    out = jax.block_until_ready(attention_gate(g, x, params, channel_tile=4))
    ref = jax.block_until_ready(attention_gate_reference(g, x, params))
    assert out.shape == x.shape
    np.testing.assert_allclose(np.asarray(out), np.asarray(ref),
                               atol=2e-3, rtol=2e-3)
    print("KERNEL_OK")
</pallas_src>

<mosaic_0001>
module attributes {stable_mosaic.version = 11 : i64} {
  func.func @kernel(%arg0: i32, %arg1: i32, %arg2: memref<1x8x8x8x8xf32, #tpu.memory_space<vmem>>, %arg3: memref<1x8x8x8x8xf32, #tpu.memory_space<vmem>>, %arg4: memref<1x4x16x256xf32, #tpu.memory_space<vmem>>, %arg5: memref<8x16xf32, #tpu.memory_space<vmem>>, %arg6: memref<16x8xf32, #tpu.memory_space<vmem>>, %arg7: memref<8x8xf32, #tpu.memory_space<smem>>, %arg8: memref<8x8xf32, #tpu.memory_space<smem>>, %arg9: memref<8xf32, #tpu.memory_space<smem>>, %arg10: memref<8xf32, #tpu.memory_space<smem>>, %arg11: memref<1xf32, #tpu.memory_space<smem>>, %arg12: memref<1x4x16x256xf32, #tpu.memory_space<vmem>>, %arg13: memref<8x8x8xf32, #tpu.memory_space<vmem>>) attributes {dimension_semantics = [#tpu.dimension_semantics<parallel>, #tpu.dimension_semantics<parallel>], iteration_bounds = array<i64: 2, 2>, scalar_prefetch = 0 : i64, scratch_operands = 1 : i64, tpu.core_type = #tpu.core_type<tc>, window_params = [{transform_indices = @transform_0, window_bounds = array<i64: 1, 8, 8, 8, 8>}, {transform_indices = @transform_1, window_bounds = array<i64: 1, 8, 8, 8, 8>}, {transform_indices = @transform_2, window_bounds = array<i64: 1, 4, 16, 256>}, {pipeline_mode = #tpu.pipeline_mode<synchronous>, transform_indices = @transform_3, window_bounds = array<i64: 8, 16>}, {pipeline_mode = #tpu.pipeline_mode<synchronous>, transform_indices = @transform_4, window_bounds = array<i64: 16, 8>}, {transform_indices = @transform_5, window_bounds = array<i64: 8, 8>}, {transform_indices = @transform_6, window_bounds = array<i64: 8, 8>}, {transform_indices = @transform_7, window_bounds = array<i64: 8>}, {transform_indices = @transform_8, window_bounds = array<i64: 8>}, {transform_indices = @transform_9, window_bounds = array<i64: 1>}, {transform_indices = @transform_10, window_bounds = array<i64: 1, 4, 16, 256>}]} {
    %c0_i32 = arith.constant 0 : i32
    %c8_i32 = arith.constant 8 : i32
    %0 = arith.muli %c0_i32, %c8_i32 : i32
    %1 = tpu.assume_multiple %0, 8 : i32
    %cst = arith.constant 0.000000e+00 : f32
    %2 = vector.broadcast %cst : f32 to vector<8x8x8xf32>
    %cst_0 = arith.constant 0.000000e+00 : f32
    %3 = vector.broadcast %cst_0 : f32 to vector<8x8x8xf32>
    %c0 = arith.constant 0 : index
    %c0_1 = arith.constant 0 : index
    %4 = arith.index_cast %1 : i32 to index
    %c0_2 = arith.constant 0 : index
    %c0_3 = arith.constant 0 : index
    %5 = vector.load %arg2[%c0, %c0_1, %4, %c0_2, %c0_3] : memref<1x8x8x8x8xf32, #tpu.memory_space<vmem>>, vector<1x1x8x8x8xf32>
    %6 = vector.shape_cast %5 : vector<1x1x8x8x8xf32> to vector<8x8x8xf32>
    %c0_4 = arith.constant 0 : index
    %c0_5 = arith.constant 0 : index
    %7 = memref.load %arg7[%c0_4, %c0_5] : memref<8x8xf32, #tpu.memory_space<smem>>
    %8 = vector.broadcast %7 : f32 to vector<8x8x8xf32>
    %9 = arith.mulf %6, %8 : vector<8x8x8xf32>
    %10 = arith.addf %3, %9 : vector<8x8x8xf32>
    %c0_6 = arith.constant 0 : index
    %c1 = arith.constant 1 : index
    %11 = arith.index_cast %1 : i32 to index
    %c0_7 = arith.constant 0 : index
    %c0_8 = arith.constant 0 : index
    %12 = vector.load %arg2[%c0_6, %c1, %11, %c0_7, %c0_8] : memref<1x8x8x8x8xf32, #tpu.memory_space<vmem>>, vector<1x1x8x8x8xf32>
    %13 = vector.shape_cast %12 : vector<1x1x8x8x8xf32> to vector<8x8x8xf32>
    %c0_9 = arith.constant 0 : index
    %c1_10 = arith.constant 1 : index
    %14 = memref.load %arg7[%c0_9, %c1_10] : memref<8x8xf32, #tpu.memory_space<smem>>
    %15 = vector.broadcast %14 : f32 to vector<8x8x8xf32>
    %16 = arith.mulf %13, %15 : vector<8x8x8xf32>
    %17 = arith.addf %10, %16 : vector<8x8x8xf32>
    %c0_11 = arith.constant 0 : index
    %c2 = arith.constant 2 : index
    %18 = arith.index_cast %1 : i32 to index
    %c0_12 = arith.constant 0 : index
    %c0_13 = arith.constant 0 : index
    %19 = vector.load %arg2[%c0_11, %c2, %18, %c0_12, %c0_13] : memref<1x8x8x8x8xf32, #tpu.memory_space<vmem>>, vector<1x1x8x8x8xf32>
    %20 = vector.shape_cast %19 : vector<1x1x8x8x8xf32> to vector<8x8x8xf32>
    %c0_14 = arith.constant 0 : index
    %c2_15 = arith.constant 2 : index
    %21 = memref.load %arg7[%c0_14, %c2_15] : memref<8x8xf32, #tpu.memory_space<smem>>
    %22 = vector.broadcast %21 : f32 to vector<8x8x8xf32>
    %23 = arith.mulf %20, %22 : vector<8x8x8xf32>
    %24 = arith.addf %17, %23 : vector<8x8x8xf32>
    %c0_16 = arith.constant 0 : index
    %c3 = arith.constant 3 : index
    %25 = arith.index_cast %1 : i32 to index
    %c0_17 = arith.constant 0 : index
    %c0_18 = arith.constant 0 : index
    %26 = vector.load %arg2[%c0_16, %c3, %25, %c0_17, %c0_18] : memref<1x8x8x8x8xf32, #tpu.memory_space<vmem>>, vector<1x1x8x8x8xf32>
    %27 = vector.shape_cast %26 : vector<1x1x8x8x8xf32> to vector<8x8x8xf32>
    %c0_19 = arith.constant 0 : index
    %c3_20 = arith.constant 3 : index
    %28 = memref.load %arg7[%c0_19, %c3_20] : memref<8x8xf32, #tpu.memory_space<smem>>
    %29 = vector.broadcast %28 : f32 to vector<8x8x8xf32>
    %30 = arith.mulf %27, %29 : vector<8x8x8xf32>
    %31 = arith.addf %24, %30 : vector<8x8x8xf32>
    %c0_21 = arith.constant 0 : index
    %c4 = arith.constant 4 : index
    %32 = arith.index_cast %1 : i32 to index
    %c0_22 = arith.constant 0 : index
    %c0_23 = arith.constant 0 : index
    %33 = vector.load %arg2[%c0_21, %c4, %32, %c0_22, %c0_23] : memref<1x8x8x8x8xf32, #tpu.memory_space<vmem>>, vector<1x1x8x8x8xf32>
    %34 = vector.shape_cast %33 : vector<1x1x8x8x8xf32> to vector<8x8x8xf32>
    %c0_24 = arith.constant 0 : index
    %c4_25 = arith.constant 4 : index
    %35 = memref.load %arg7[%c0_24, %c4_25] : memref<8x8xf32, #tpu.memory_space<smem>>
    %36 = vector.broadcast %35 : f32 to vector<8x8x8xf32>
    %37 = arith.mulf %34, %36 : vector<8x8x8xf32>
    %38 = arith.addf %31, %37 : vector<8x8x8xf32>
    %c0_26 = arith.constant 0 : index
    %c5 = arith.constant 5 : index
    %39 = arith.index_cast %1 : i32 to index
    %c0_27 = arith.constant 0 : index
    %c0_28 = arith.constant 0 : index
    %40 = vector.load %arg2[%c0_26, %c5, %39, %c0_27, %c0_28] : memref<1x8x8x8x8xf32, #tpu.memory_space<vmem>>, vector<1x1x8x8x8xf32>
    %41 = vector.shape_cast %40 : vector<1x1x8x8x8xf32> to vector<8x8x8xf32>
    %c0_29 = arith.constant 0 : index
    %c5_30 = arith.constant 5 : index
    %42 = memref.load %arg7[%c0_29, %c5_30] : memref<8x8xf32, #tpu.memory_space<smem>>
    %43 = vector.broadcast %42 : f32 to vector<8x8x8xf32>
    %44 = arith.mulf %41, %43 : vector<8x8x8xf32>
    %45 = arith.addf %38, %44 : vector<8x8x8xf32>
    %c0_31 = arith.constant 0 : index
    %c6 = arith.constant 6 : index
    %46 = arith.index_cast %1 : i32 to index
    %c0_32 = arith.constant 0 : index
    %c0_33 = arith.constant 0 : index
    %47 = vector.load %arg2[%c0_31, %c6, %46, %c0_32, %c0_33] : memref<1x8x8x8x8xf32, #tpu.memory_space<vmem>>, vector<1x1x8x8x8xf32>
    %48 = vector.shape_cast %47 : vector<1x1x8x8x8xf32> to vector<8x8x8xf32>
    %c0_34 = arith.constant 0 : index
    %c6_35 = arith.constant 6 : index
    %49 = memref.load %arg7[%c0_34, %c6_35] : memref<8x8xf32, #tpu.memory_space<smem>>
    %50 = vector.broadcast %49 : f32 to vector<8x8x8xf32>
    %51 = arith.mulf %48, %50 : vector<8x8x8xf32>
    %52 = arith.addf %45, %51 : vector<8x8x8xf32>
    %c0_36 = arith.constant 0 : index
    %c7 = arith.constant 7 : index
    %53 = arith.index_cast %1 : i32 to index
    %c0_37 = arith.constant 0 : index
    %c0_38 = arith.constant 0 : index
    %54 = vector.load %arg2[%c0_36, %c7, %53, %c0_37, %c0_38] : memref<1x8x8x8x8xf32, #tpu.memory_space<vmem>>, vector<1x1x8x8x8xf32>
    %55 = vector.shape_cast %54 : vector<1x1x8x8x8xf32> to vector<8x8x8xf32>
    %c0_39 = arith.constant 0 : index
    %c7_40 = arith.constant 7 : index
    %56 = memref.load %arg7[%c0_39, %c7_40] : memref<8x8xf32, #tpu.memory_space<smem>>
    %57 = vector.broadcast %56 : f32 to vector<8x8x8xf32>
    %58 = arith.mulf %55, %57 : vector<8x8x8xf32>
    %59 = arith.addf %52, %58 : vector<8x8x8xf32>
    %c0_41 = arith.constant 0 : index
    %c0_42 = arith.constant 0 : index
    %60 = arith.index_cast %1 : i32 to index
    %c0_43 = arith.constant 0 : index
    %c0_44 = arith.constant 0 : index
    %61 = vector.load %arg3[%c0_41, %c0_42, %60, %c0_43, %c0_44] : memref<1x8x8x8x8xf32, #tpu.memory_space<vmem>>, vector<1x1x8x8x8xf32>
    %62 = vector.shape_cast %61 : vector<1x1x8x8x8xf32> to vector<8x8x8xf32>
    %c0_45 = arith.constant 0 : index
    %c0_46 = arith.constant 0 : index
    %63 = memref.load %arg8[%c0_45, %c0_46] : memref<8x8xf32, #tpu.memory_space<smem>>
    %64 = vector.broadcast %63 : f32 to vector<8x8x8xf32>
    %65 = arith.mulf %62, %64 : vector<8x8x8xf32>
    %66 = arith.addf %59, %65 : vector<8x8x8xf32>
    %c0_47 = arith.constant 0 : index
    %c1_48 = arith.constant 1 : index
    %67 = arith.index_cast %1 : i32 to index
    %c0_49 = arith.constant 0 : index
    %c0_50 = arith.constant 0 : index
    %68 = vector.load %arg3[%c0_47, %c1_48, %67, %c0_49, %c0_50] : memref<1x8x8x8x8xf32, #tpu.memory_space<vmem>>, vector<1x1x8x8x8xf32>
    %69 = vector.shape_cast %68 : vector<1x1x8x8x8xf32> to vector<8x8x8xf32>
    %c0_51 = arith.constant 0 : index
    %c1_52 = arith.constant 1 : index
    %70 = memref.load %arg8[%c0_51, %c1_52] : memref<8x8xf32, #tpu.memory_space<smem>>
    %71 = vector.broadcast %70 : f32 to vector<8x8x8xf32>
    %72 = arith.mulf %69, %71 : vector<8x8x8xf32>
    %73 = arith.addf %66, %72 : vector<8x8x8xf32>
    %c0_53 = arith.constant 0 : index
    %c2_54 = arith.constant 2 : index
    %74 = arith.index_cast %1 : i32 to index
    %c0_55 = arith.constant 0 : index
    %c0_56 = arith.constant 0 : index
    %75 = vector.load %arg3[%c0_53, %c2_54, %74, %c0_55, %c0_56] : memref<1x8x8x8x8xf32, #tpu.memory_space<vmem>>, vector<1x1x8x8x8xf32>
    %76 = vector.shape_cast %75 : vector<1x1x8x8x8xf32> to vector<8x8x8xf32>
    %c0_57 = arith.constant 0 : index
    %c2_58 = arith.constant 2 : index
    %77 = memref.load %arg8[%c0_57, %c2_58] : memref<8x8xf32, #tpu.memory_space<smem>>
    %78 = vector.broadcast %77 : f32 to vector<8x8x8xf32>
    %79 = arith.mulf %76, %78 : vector<8x8x8xf32>
    %80 = arith.addf %73, %79 : vector<8x8x8xf32>
    %c0_59 = arith.constant 0 : index
    %c3_60 = arith.constant 3 : index
    %81 = arith.index_cast %1 : i32 to index
    %c0_61 = arith.constant 0 : index
    %c0_62 = arith.constant 0 : index
    %82 = vector.load %arg3[%c0_59, %c3_60, %81, %c0_61, %c0_62] : memref<1x8x8x8x8xf32, #tpu.memory_space<vmem>>, vector<1x1x8x8x8xf32>
    %83 = vector.shape_cast %82 : vector<1x1x8x8x8xf32> to vector<8x8x8xf32>
    %c0_63 = arith.constant 0 : index
    %c3_64 = arith.constant 3 : index
    %84 = memref.load %arg8[%c0_63, %c3_64] : memref<8x8xf32, #tpu.memory_space<smem>>
    %85 = vector.broadcast %84 : f32 to vector<8x8x8xf32>
    %86 = arith.mulf %83, %85 : vector<8x8x8xf32>
    %87 = arith.addf %80, %86 : vector<8x8x8xf32>
    %c0_65 = arith.constant 0 : index
    %c4_66 = arith.constant 4 : index
    %88 = arith.index_cast %1 : i32 to index
    %c0_67 = arith.constant 0 : index
    %c0_68 = arith.constant 0 : index
    %89 = vector.load %arg3[%c0_65, %c4_66, %88, %c0_67, %c0_68] : memref<1x8x8x8x8xf32, #tpu.memory_space<vmem>>, vector<1x1x8x8x8xf32>
    %90 = vector.shape_cast %89 : vector<1x1x8x8x8xf32> to vector<8x8x8xf32>
    %c0_69 = arith.constant 0 : index
    %c4_70 = arith.constant 4 : index
    %91 = memref.load %arg8[%c0_69, %c4_70] : memref<8x8xf32, #tpu.memory_space<smem>>
    %92 = vector.broadcast %91 : f32 to vector<8x8x8xf32>
    %93 = arith.mulf %90, %92 : vector<8x8x8xf32>
    %94 = arith.addf %87, %93 : vector<8x8x8xf32>
    %c0_71 = arith.constant 0 : index
    %c5_72 = arith.constant 5 : index
    %95 = arith.index_cast %1 : i32 to index
    %c0_73 = arith.constant 0 : index
    %c0_74 = arith.constant 0 : index
    %96 = vector.load %arg3[%c0_71, %c5_72, %95, %c0_73, %c0_74] : memref<1x8x8x8x8xf32, #tpu.memory_space<vmem>>, vector<1x1x8x8x8xf32>
    %97 = vector.shape_cast %96 : vector<1x1x8x8x8xf32> to vector<8x8x8xf32>
    %c0_75 = arith.constant 0 : index
    %c5_76 = arith.constant 5 : index
    %98 = memref.load %arg8[%c0_75, %c5_76] : memref<8x8xf32, #tpu.memory_space<smem>>
    %99 = vector.broadcast %98 : f32 to vector<8x8x8xf32>
    %100 = arith.mulf %97, %99 : vector<8x8x8xf32>
    %101 = arith.addf %94, %100 : vector<8x8x8xf32>
    %c0_77 = arith.constant 0 : index
    %c6_78 = arith.constant 6 : index
    %102 = arith.index_cast %1 : i32 to index
    %c0_79 = arith.constant 0 : index
    %c0_80 = arith.constant 0 : index
    %103 = vector.load %arg3[%c0_77, %c6_78, %102, %c0_79, %c0_80] : memref<1x8x8x8x8xf32, #tpu.memory_space<vmem>>, vector<1x1x8x8x8xf32>
    %104 = vector.shape_cast %103 : vector<1x1x8x8x8xf32> to vector<8x8x8xf32>
    %c0_81 = arith.constant 0 : index
    %c6_82 = arith.constant 6 : index
    %105 = memref.load %arg8[%c0_81, %c6_82] : memref<8x8xf32, #tpu.memory_space<smem>>
    %106 = vector.broadcast %105 : f32 to vector<8x8x8xf32>
    %107 = arith.mulf %104, %106 : vector<8x8x8xf32>
    %108 = arith.addf %101, %107 : vector<8x8x8xf32>
    %c0_83 = arith.constant 0 : index
    %c7_84 = arith.constant 7 : index
    %109 = arith.index_cast %1 : i32 to index
    %c0_85 = arith.constant 0 : index
    %c0_86 = arith.constant 0 : index
    %110 = vector.load %arg3[%c0_83, %c7_84, %109, %c0_85, %c0_86] : memref<1x8x8x8x8xf32, #tpu.memory_space<vmem>>, vector<1x1x8x8x8xf32>
    %111 = vector.shape_cast %110 : vector<1x1x8x8x8xf32> to vector<8x8x8xf32>
    %c0_87 = arith.constant 0 : index
    %c7_88 = arith.constant 7 : index
    %112 = memref.load %arg8[%c0_87, %c7_88] : memref<8x8xf32, #tpu.memory_space<smem>>
    %113 = vector.broadcast %112 : f32 to vector<8x8x8xf32>
    %114 = arith.mulf %111, %113 : vector<8x8x8xf32>
    %115 = arith.addf %108, %114 : vector<8x8x8xf32>
    %c0_89 = arith.constant 0 : index
    %116 = memref.load %arg9[%c0_89] : memref<8xf32, #tpu.memory_space<smem>>
    %117 = vector.broadcast %116 : f32 to vector<8x8x8xf32>
    %118 = arith.addf %115, %117 : vector<8x8x8xf32>
    %cst_90 = arith.constant 0.000000e+00 : f32
    %119 = vector.broadcast %cst_90 : f32 to vector<8x8x8xf32>
    %120 = arith.maximumf %118, %119 : vector<8x8x8xf32>
    %c0_91 = arith.constant 0 : index
    %121 = memref.load %arg10[%c0_91] : memref<8xf32, #tpu.memory_space<smem>>
    %122 = vector.broadcast %121 : f32 to vector<8x8x8xf32>
    %123 = arith.mulf %120, %122 : vector<8x8x8xf32>
    %124 = arith.addf %2, %123 : vector<8x8x8xf32>
    %cst_92 = arith.constant 0.000000e+00 : f32
    %125 = vector.broadcast %cst_92 : f32 to vector<8x8x8xf32>
    %c0_93 = arith.constant 0 : index
    %c0_94 = arith.constant 0 : index
    %126 = arith.index_cast %1 : i32 to index
    %c0_95 = arith.constant 0 : index
    %c0_96 = arith.constant 0 : index
    %127 = vector.load %arg2[%c0_93, %c0_94, %126, %c0_95, %c0_96] : memref<1x8x8x8x8xf32, #tpu.memory_space<vmem>>, vector<1x1x8x8x8xf32>
    %128 = vector.shape_cast %127 : vector<1x1x8x8x8xf32> to vector<8x8x8xf32>
    %c1_97 = arith.constant 1 : index
    %c0_98 = arith.constant 0 : index
    %129 = memref.load %arg7[%c1_97, %c0_98] : memref<8x8xf32, #tpu.memory_space<smem>>
    %130 = vector.broadcast %129 : f32 to vector<8x8x8xf32>
    %131 = arith.mulf %128, %130 : vector<8x8x8xf32>
    %132 = arith.addf %125, %131 : vector<8x8x8xf32>
    %c0_99 = arith.constant 0 : index
    %c1_100 = arith.constant 1 : index
    %133 = arith.index_cast %1 : i32 to index
    %c0_101 = arith.constant 0 : index
    %c0_102 = arith.constant 0 : index
    %134 = vector.load %arg2[%c0_99, %c1_100, %133, %c0_101, %c0_102] : memref<1x8x8x8x8xf32, #tpu.memory_space<vmem>>, vector<1x1x8x8x8xf32>
    %135 = vector.shape_cast %134 : vector<1x1x8x8x8xf32> to vector<8x8x8xf32>
    %c1_103 = arith.constant 1 : index
    %c1_104 = arith.constant 1 : index
    %136 = memref.load %arg7[%c1_103, %c1_104] : memref<8x8xf32, #tpu.memory_space<smem>>
    %137 = vector.broadcast %136 : f32 to vector<8x8x8xf32>
    %138 = arith.mulf %135, %137 : vector<8x8x8xf32>
    %139 = arith.addf %132, %138 : vector<8x8x8xf32>
    %c0_105 = arith.constant 0 : index
    %c2_106 = arith.constant 2 : index
    %140 = arith.index_cast %1 : i32 to index
    %c0_107 = arith.constant 0 : index
    %c0_108 = arith.constant 0 : index
    %141 = vector.load %arg2[%c0_105, %c2_106, %140, %c0_107, %c0_108] : memref<1x8x8x8x8xf32, #tpu.memory_space<vmem>>, vector<1x1x8x8x8xf32>
    %142 = vector.shape_cast %141 : vector<1x1x8x8x8xf32> to vector<8x8x8xf32>
    %c1_109 = arith.constant 1 : index
    %c2_110 = arith.constant 2 : index
    %143 = memref.load %arg7[%c1_109, %c2_110] : memref<8x8xf32, #tpu.memory_space<smem>>
    %144 = vector.broadcast %143 : f32 to vector<8x8x8xf32>
    %145 = arith.mulf %142, %144 : vector<8x8x8xf32>
    %146 = arith.addf %139, %145 : vector<8x8x8xf32>
    %c0_111 = arith.constant 0 : index
    %c3_112 = arith.constant 3 : index
    %147 = arith.index_cast %1 : i32 to index
    %c0_113 = arith.constant 0 : index
    %c0_114 = arith.constant 0 : index
    %148 = vector.load %arg2[%c0_111, %c3_112, %147, %c0_113, %c0_114] : memref<1x8x8x8x8xf32, #tpu.memory_space<vmem>>, vector<1x1x8x8x8xf32>
    %149 = vector.shape_cast %148 : vector<1x1x8x8x8xf32> to vector<8x8x8xf32>
    %c1_115 = arith.constant 1 : index
    %c3_116 = arith.constant 3 : index
    %150 = memref.load %arg7[%c1_115, %c3_116] : memref<8x8xf32, #tpu.memory_space<smem>>
    %151 = vector.broadcast %150 : f32 to vector<8x8x8xf32>
    %152 = arith.mulf %149, %151 : vector<8x8x8xf32>
    %153 = arith.addf %146, %152 : vector<8x8x8xf32>
    %c0_117 = arith.constant 0 : index
    %c4_118 = arith.constant 4 : index
    %154 = arith.index_cast %1 : i32 to index
    %c0_119 = arith.constant 0 : index
    %c0_120 = arith.constant 0 : index
    %155 = vector.load %arg2[%c0_117, %c4_118, %154, %c0_119, %c0_120] : memref<1x8x8x8x8xf32, #tpu.memory_space<vmem>>, vector<1x1x8x8x8xf32>
    %156 = vector.shape_cast %155 : vector<1x1x8x8x8xf32> to vector<8x8x8xf32>
    %c1_121 = arith.constant 1 : index
    %c4_122 = arith.constant 4 : index
    %157 = memref.load %arg7[%c1_121, %c4_122] : memref<8x8xf32, #tpu.memory_space<smem>>
    %158 = vector.broadcast %157 : f32 to vector<8x8x8xf32>
    %159 = arith.mulf %156, %158 : vector<8x8x8xf32>
    %160 = arith.addf %153, %159 : vector<8x8x8xf32>
    %c0_123 = arith.constant 0 : index
    %c5_124 = arith.constant 5 : index
    %161 = arith.index_cast %1 : i32 to index
    %c0_125 = arith.constant 0 : index
    %c0_126 = arith.constant 0 : index
    %162 = vector.load %arg2[%c0_123, %c5_124, %161, %c0_125, %c0_126] : memref<1x8x8x8x8xf32, #tpu.memory_space<vmem>>, vector<1x1x8x8x8xf32>
    %163 = vector.shape_cast %162 : vector<1x1x8x8x8xf32> to vector<8x8x8xf32>
    %c1_127 = arith.constant 1 : index
    %c5_128 = arith.constant 5 : index
    %164 = memref.load %arg7[%c1_127, %c5_128] : memref<8x8xf32, #tpu.memory_space<smem>>
    %165 = vector.broadcast %164 : f32 to vector<8x8x8xf32>
    %166 = arith.mulf %163, %165 : vector<8x8x8xf32>
    %167 = arith.addf %160, %166 : vector<8x8x8xf32>
    %c0_129 = arith.constant 0 : index
    %c6_130 = arith.constant 6 : index
    %168 = arith.index_cast %1 : i32 to index
    %c0_131 = arith.constant 0 : index
    %c0_132 = arith.constant 0 : index
    %169 = vector.load %arg2[%c0_129, %c6_130, %168, %c0_131, %c0_132] : memref<1x8x8x8x8xf32, #tpu.memory_space<vmem>>, vector<1x1x8x8x8xf32>
    %170 = vector.shape_cast %169 : vector<1x1x8x8x8xf32> to vector<8x8x8xf32>
    %c1_133 = arith.constant 1 : index
    %c6_134 = arith.constant 6 : index
    %171 = memref.load %arg7[%c1_133, %c6_134] : memref<8x8xf32, #tpu.memory_space<smem>>
    %172 = vector.broadcast %171 : f32 to vector<8x8x8xf32>
    %173 = arith.mulf %170, %172 : vector<8x8x8xf32>
    %174 = arith.addf %167, %173 : vector<8x8x8xf32>
    %c0_135 = arith.constant 0 : index
    %c7_136 = arith.constant 7 : index
    %175 = arith.index_cast %1 : i32 to index
    %c0_137 = arith.constant 0 : index
    %c0_138 = arith.constant 0 : index
    %176 = vector.load %arg2[%c0_135, %c7_136, %175, %c0_137, %c0_138] : memref<1x8x8x8x8xf32, #tpu.memory_space<vmem>>, vector<1x1x8x8x8xf32>
    %177 = vector.shape_cast %176 : vector<1x1x8x8x8xf32> to vector<8x8x8xf32>
    %c1_139 = arith.constant 1 : index
    %c7_140 = arith.constant 7 : index
    %178 = memref.load %arg7[%c1_139, %c7_140] : memref<8x8xf32, #tpu.memory_space<smem>>
    %179 = vector.broadcast %178 : f32 to vector<8x8x8xf32>
    %180 = arith.mulf %177, %179 : vector<8x8x8xf32>
    %181 = arith.addf %174, %180 : vector<8x8x8xf32>
    %c0_141 = arith.constant 0 : index
    %c0_142 = arith.constant 0 : index
    %182 = arith.index_cast %1 : i32 to index
    %c0_143 = arith.constant 0 : index
    %c0_144 = arith.constant 0 : index
    %183 = vector.load %arg3[%c0_141, %c0_142, %182, %c0_143, %c0_144] : memref<1x8x8x8x8xf32, #tpu.memory_space<vmem>>, vector<1x1x8x8x8xf32>
    %184 = vector.shape_cast %183 : vector<1x1x8x8x8xf32> to vector<8x8x8xf32>
    %c1_145 = arith.constant 1 : index
    %c0_146 = arith.constant 0 : index
    %185 = memref.load %arg8[%c1_145, %c0_146] : memref<8x8xf32, #tpu.memory_space<smem>>
    %186 = vector.broadcast %185 : f32 to vector<8x8x8xf32>
    %187 = arith.mulf %184, %186 : vector<8x8x8xf32>
    %188 = arith.addf %181, %187 : vector<8x8x8xf32>
    %c0_147 = arith.constant 0 : index
    %c1_148 = arith.constant 1 : index
    %189 = arith.index_cast %1 : i32 to index
    %c0_149 = arith.constant 0 : index
    %c0_150 = arith.constant 0 : index
    %190 = vector.load %arg3[%c0_147, %c1_148, %189, %c0_149, %c0_150] : memref<1x8x8x8x8xf32, #tpu.memory_space<vmem>>, vector<1x1x8x8x8xf32>
    %191 = vector.shape_cast %190 : vector<1x1x8x8x8xf32> to vector<8x8x8xf32>
    %c1_151 = arith.constant 1 : index
    %c1_152 = arith.constant 1 : index
    %192 = memref.load %arg8[%c1_151, %c1_152] : memref<8x8xf32, #tpu.memory_space<smem>>
    %193 = vector.broadcast %192 : f32 to vector<8x8x8xf32>
    %194 = arith.mulf %191, %193 : vector<8x8x8xf32>
    %195 = arith.addf %188, %194 : vector<8x8x8xf32>
    %c0_153 = arith.constant 0 : index
    %c2_154 = arith.constant 2 : index
    %196 = arith.index_cast %1 : i32 to index
    %c0_155 = arith.constant 0 : index
    %c0_156 = arith.constant 0 : index
    %197 = vector.load %arg3[%c0_153, %c2_154, %196, %c0_155, %c0_156] : memref<1x8x8x8x8xf32, #tpu.memory_space<vmem>>, vector<1x1x8x8x8xf32>
    %198 = vector.shape_cast %197 : vector<1x1x8x8x8xf32> to vector<8x8x8xf32>
    %c1_157 = arith.constant 1 : index
    %c2_158 = arith.constant 2 : index
    %199 = memref.load %arg8[%c1_157, %c2_158] : memref<8x8xf32, #tpu.memory_space<smem>>
    %200 = vector.broadcast %199 : f32 to vector<8x8x8xf32>
    %201 = arith.mulf %198, %200 : vector<8x8x8xf32>
    %202 = arith.addf %195, %201 : vector<8x8x8xf32>
    %c0_159 = arith.constant 0 : index
    %c3_160 = arith.constant 3 : index
    %203 = arith.index_cast %1 : i32 to index
    %c0_161 = arith.constant 0 : index
    %c0_162 = arith.constant 0 : index
    %204 = vector.load %arg3[%c0_159, %c3_160, %203, %c0_161, %c0_162] : memref<1x8x8x8x8xf32, #tpu.memory_space<vmem>>, vector<1x1x8x8x8xf32>
    %205 = vector.shape_cast %204 : vector<1x1x8x8x8xf32> to vector<8x8x8xf32>
    %c1_163 = arith.constant 1 : index
    %c3_164 = arith.constant 3 : index
    %206 = memref.load %arg8[%c1_163, %c3_164] : memref<8x8xf32, #tpu.memory_space<smem>>
    %207 = vector.broadcast %206 : f32 to vector<8x8x8xf32>
    %208 = arith.mulf %205, %207 : vector<8x8x8xf32>
    %209 = arith.addf %202, %208 : vector<8x8x8xf32>
    %c0_165 = arith.constant 0 : index
    %c4_166 = arith.constant 4 : index
    %210 = arith.index_cast %1 : i32 to index
    %c0_167 = arith.constant 0 : index
    %c0_168 = arith.constant 0 : index
    %211 = vector.load %arg3[%c0_165, %c4_166, %210, %c0_167, %c0_168] : memref<1x8x8x8x8xf32, #tpu.memory_space<vmem>>, vector<1x1x8x8x8xf32>
    %212 = vector.shape_cast %211 : vector<1x1x8x8x8xf32> to vector<8x8x8xf32>
    %c1_169 = arith.constant 1 : index
    %c4_170 = arith.constant 4 : index
    %213 = memref.load %arg8[%c1_169, %c4_170] : memref<8x8xf32, #tpu.memory_space<smem>>
    %214 = vector.broadcast %213 : f32 to vector<8x8x8xf32>
    %215 = arith.mulf %212, %214 : vector<8x8x8xf32>
    %216 = arith.addf %209, %215 : vector<8x8x8xf32>
    %c0_171 = arith.constant 0 : index
    %c5_172 = arith.constant 5 : index
    %217 = arith.index_cast %1 : i32 to index
    %c0_173 = arith.constant 0 : index
    %c0_174 = arith.constant 0 : index
    %218 = vector.load %arg3[%c0_171, %c5_172, %217, %c0_173, %c0_174] : memref<1x8x8x8x8xf32, #tpu.memory_space<vmem>>, vector<1x1x8x8x8xf32>
    %219 = vector.shape_cast %218 : vector<1x1x8x8x8xf32> to vector<8x8x8xf32>
    %c1_175 = arith.constant 1 : index
    %c5_176 = arith.constant 5 : index
    %220 = memref.load %arg8[%c1_175, %c5_176] : memref<8x8xf32, #tpu.memory_space<smem>>
    %221 = vector.broadcast %220 : f32 to vector<8x8x8xf32>
    %222 = arith.mulf %219, %221 : vector<8x8x8xf32>
    %223 = arith.addf %216, %222 : vector<8x8x8xf32>
    %c0_177 = arith.constant 0 : index
    %c6_178 = arith.constant 6 : index
    %224 = arith.index_cast %1 : i32 to index
    %c0_179 = arith.constant 0 : index
    %c0_180 = arith.constant 0 : index
    %225 = vector.load %arg3[%c0_177, %c6_178, %224, %c0_179, %c0_180] : memref<1x8x8x8x8xf32, #tpu.memory_space<vmem>>, vector<1x1x8x8x8xf32>
    %226 = vector.shape_cast %225 : vector<1x1x8x8x8xf32> to vector<8x8x8xf32>
    %c1_181 = arith.constant 1 : index
    %c6_182 = arith.constant 6 : index
    %227 = memref.load %arg8[%c1_181, %c6_182] : memref<8x8xf32, #tpu.memory_space<smem>>
    %228 = vector.broadcast %227 : f32 to vector<8x8x8xf32>
    %229 = arith.mulf %226, %228 : vector<8x8x8xf32>
    %230 = arith.addf %223, %229 : vector<8x8x8xf32>
    %c0_183 = arith.constant 0 : index
    %c7_184 = arith.constant 7 : index
    %231 = arith.index_cast %1 : i32 to index
    %c0_185 = arith.constant 0 : index
    %c0_186 = arith.constant 0 : index
    %232 = vector.load %arg3[%c0_183, %c7_184, %231, %c0_185, %c0_186] : memref<1x8x8x8x8xf32, #tpu.memory_space<vmem>>, vector<1x1x8x8x8xf32>
    %233 = vector.shape_cast %232 : vector<1x1x8x8x8xf32> to vector<8x8x8xf32>
    %c1_187 = arith.constant 1 : index
    %c7_188 = arith.constant 7 : index
    %234 = memref.load %arg8[%c1_187, %c7_188] : memref<8x8xf32, #tpu.memory_space<smem>>
    %235 = vector.broadcast %234 : f32 to vector<8x8x8xf32>
    %236 = arith.mulf %233, %235 : vector<8x8x8xf32>
    %237 = arith.addf %230, %236 : vector<8x8x8xf32>
    %c1_189 = arith.constant 1 : index
    %238 = memref.load %arg9[%c1_189] : memref<8xf32, #tpu.memory_space<smem>>
    %239 = vector.broadcast %238 : f32 to vector<8x8x8xf32>
    %240 = arith.addf %237, %239 : vector<8x8x8xf32>
    %cst_190 = arith.constant 0.000000e+00 : f32
    %241 = vector.broadcast %cst_190 : f32 to vector<8x8x8xf32>
    %242 = arith.maximumf %240, %241 : vector<8x8x8xf32>
    %c1_191 = arith.constant 1 : index
    %243 = memref.load %arg10[%c1_191] : memref<8xf32, #tpu.memory_space<smem>>
    %244 = vector.broadcast %243 : f32 to vector<8x8x8xf32>
    %245 = arith.mulf %242, %244 : vector<8x8x8xf32>
    %246 = arith.addf %124, %245 : vector<8x8x8xf32>
    %cst_192 = arith.constant 0.000000e+00 : f32
    %247 = vector.broadcast %cst_192 : f32 to vector<8x8x8xf32>
    %c0_193 = arith.constant 0 : index
    %c0_194 = arith.constant 0 : index
    %248 = arith.index_cast %1 : i32 to index
    %c0_195 = arith.constant 0 : index
    %c0_196 = arith.constant 0 : index
    %249 = vector.load %arg2[%c0_193, %c0_194, %248, %c0_195, %c0_196] : memref<1x8x8x8x8xf32, #tpu.memory_space<vmem>>, vector<1x1x8x8x8xf32>
    %250 = vector.shape_cast %249 : vector<1x1x8x8x8xf32> to vector<8x8x8xf32>
    %c2_197 = arith.constant 2 : index
    %c0_198 = arith.constant 0 : index
    %251 = memref.load %arg7[%c2_197, %c0_198] : memref<8x8xf32, #tpu.memory_space<smem>>
    %252 = vector.broadcast %251 : f32 to vector<8x8x8xf32>
    %253 = arith.mulf %250, %252 : vector<8x8x8xf32>
    %254 = arith.addf %247, %253 : vector<8x8x8xf32>
    %c0_199 = arith.constant 0 : index
    %c1_200 = arith.constant 1 : index
    %255 = arith.index_cast %1 : i32 to index
    %c0_201 = arith.constant 0 : index
    %c0_202 = arith.constant 0 : index
    %256 = vector.load %arg2[%c0_199, %c1_200, %255, %c0_201, %c0_202] : memref<1x8x8x8x8xf32, #tpu.memory_space<vmem>>, vector<1x1x8x8x8xf32>
    %257 = vector.shape_cast %256 : vector<1x1x8x8x8xf32> to vector<8x8x8xf32>
    %c2_203 = arith.constant 2 : index
    %c1_204 = arith.constant 1 : index
    %258 = memref.load %arg7[%c2_203, %c1_204] : memref<8x8xf32, #tpu.memory_space<smem>>
    %259 = vector.broadcast %258 : f32 to vector<8x8x8xf32>
    %260 = arith.mulf %257, %259 : vector<8x8x8xf32>
    %261 = arith.addf %254, %260 : vector<8x8x8xf32>
    %c0_205 = arith.constant 0 : index
    %c2_206 = arith.constant 2 : index
    %262 = arith.index_cast %1 : i32 to index
    %c0_207 = arith.constant 0 : index
    %c0_208 = arith.constant 0 : index
    %263 = vector.load %arg2[%c0_205, %c2_206, %262, %c0_207, %c0_208] : memref<1x8x8x8x8xf32, #tpu.memory_space<vmem>>, vector<1x1x8x8x8xf32>
    %264 = vector.shape_cast %263 : vector<1x1x8x8x8xf32> to vector<8x8x8xf32>
    %c2_209 = arith.constant 2 : index
    %c2_210 = arith.constant 2 : index
    %265 = memref.load %arg7[%c2_209, %c2_210] : memref<8x8xf32, #tpu.memory_space<smem>>
    %266 = vector.broadcast %265 : f32 to vector<8x8x8xf32>
    %267 = arith.mulf %264, %266 : vector<8x8x8xf32>
    %268 = arith.addf %261, %267 : vector<8x8x8xf32>
    %c0_211 = arith.constant 0 : index
    %c3_212 = arith.constant 3 : index
    %269 = arith.index_cast %1 : i32 to index
    %c0_213 = arith.constant 0 : index
    %c0_214 = arith.constant 0 : index
    %270 = vector.load %arg2[%c0_211, %c3_212, %269, %c0_213, %c0_214] : memref<1x8x8x8x8xf32, #tpu.memory_space<vmem>>, vector<1x1x8x8x8xf32>
    %271 = vector.shape_cast %270 : vector<1x1x8x8x8xf32> to vector<8x8x8xf32>
    %c2_215 = arith.constant 2 : index
    %c3_216 = arith.constant 3 : index
    %272 = memref.load %arg7[%c2_215, %c3_216] : memref<8x8xf32, #tpu.memory_space<smem>>
    %273 = vector.broadcast %272 : f32 to vector<8x8x8xf32>
    %274 = arith.mulf %271, %273 : vector<8x8x8xf32>
    %275 = arith.addf %268, %274 : vector<8x8x8xf32>
    %c0_217 = arith.constant 0 : index
    %c4_218 = arith.constant 4 : index
    %276 = arith.index_cast %1 : i32 to index
    %c0_219 = arith.constant 0 : index
    %c0_220 = arith.constant 0 : index
    %277 = vector.load %arg2[%c0_217, %c4_218, %276, %c0_219, %c0_220] : memref<1x8x8x8x8xf32, #tpu.memory_space<vmem>>, vector<1x1x8x8x8xf32>
    %278 = vector.shape_cast %277 : vector<1x1x8x8x8xf32> to vector<8x8x8xf32>
    %c2_221 = arith.constant 2 : index
    %c4_222 = arith.constant 4 : index
    %279 = memref.load %arg7[%c2_221, %c4_222] : memref<8x8xf32, #tpu.memory_space<smem>>
    %280 = vector.broadcast %279 : f32 to vector<8x8x8xf32>
    %281 = arith.mulf %278, %280 : vector<8x8x8xf32>
    %282 = arith.addf %275, %281 : vector<8x8x8xf32>
    %c0_223 = arith.constant 0 : index
    %c5_224 = arith.constant 5 : index
    %283 = arith.index_cast %1 : i32 to index
    %c0_225 = arith.constant 0 : index
    %c0_226 = arith.constant 0 : index
    %284 = vector.load %arg2[%c0_223, %c5_224, %283, %c0_225, %c0_226] : memref<1x8x8x8x8xf32, #tpu.memory_space<vmem>>, vector<1x1x8x8x8xf32>
    %285 = vector.shape_cast %284 : vector<1x1x8x8x8xf32> to vector<8x8x8xf32>
    %c2_227 = arith.constant 2 : index
    %c5_228 = arith.constant 5 : index
    %286 = memref.load %arg7[%c2_227, %c5_228] : memref<8x8xf32, #tpu.memory_space<smem>>
    %287 = vector.broadcast %286 : f32 to vector<8x8x8xf32>
    %288 = arith.mulf %285, %287 : vector<8x8x8xf32>
    %289 = arith.addf %282, %288 : vector<8x8x8xf32>
    %c0_229 = arith.constant 0 : index
    %c6_230 = arith.constant 6 : index
    %290 = arith.index_cast %1 : i32 to index
    %c0_231 = arith.constant 0 : index
    %c0_232 = arith.constant 0 : index
    %291 = vector.load %arg2[%c0_229, %c6_230, %290, %c0_231, %c0_232] : memref<1x8x8x8x8xf32, #tpu.memory_space<vmem>>, vector<1x1x8x8x8xf32>
    %292 = vector.shape_cast %291 : vector<1x1x8x8x8xf32> to vector<8x8x8xf32>
    %c2_233 = arith.constant 2 : index
    %c6_234 = arith.constant 6 : index
    %293 = memref.load %arg7[%c2_233, %c6_234] : memref<8x8xf32, #tpu.memory_space<smem>>
    %294 = vector.broadcast %293 : f32 to vector<8x8x8xf32>
    %295 = arith.mulf %292, %294 : vector<8x8x8xf32>
    %296 = arith.addf %289, %295 : vector<8x8x8xf32>
    %c0_235 = arith.constant 0 : index
    %c7_236 = arith.constant 7 : index
    %297 = arith.index_cast %1 : i32 to index
    %c0_237 = arith.constant 0 : index
    %c0_238 = arith.constant 0 : index
    %298 = vector.load %arg2[%c0_235, %c7_236, %297, %c0_237, %c0_238] : memref<1x8x8x8x8xf32, #tpu.memory_space<vmem>>, vector<1x1x8x8x8xf32>
    %299 = vector.shape_cast %298 : vector<1x1x8x8x8xf32> to vector<8x8x8xf32>
    %c2_239 = arith.constant 2 : index
    %c7_240 = arith.constant 7 : index
    %300 = memref.load %arg7[%c2_239, %c7_240] : memref<8x8xf32, #tpu.memory_space<smem>>
    %301 = vector.broadcast %300 : f32 to vector<8x8x8xf32>
    %302 = arith.mulf %299, %301 : vector<8x8x8xf32>
    %303 = arith.addf %296, %302 : vector<8x8x8xf32>
    %c0_241 = arith.constant 0 : index
    %c0_242 = arith.constant 0 : index
    %304 = arith.index_cast %1 : i32 to index
    %c0_243 = arith.constant 0 : index
    %c0_244 = arith.constant 0 : index
    %305 = vector.load %arg3[%c0_241, %c0_242, %304, %c0_243, %c0_244] : memref<1x8x8x8x8xf32, #tpu.memory_space<vmem>>, vector<1x1x8x8x8xf32>
    %306 = vector.shape_cast %305 : vector<1x1x8x8x8xf32> to vector<8x8x8xf32>
    %c2_245 = arith.constant 2 : index
    %c0_246 = arith.constant 0 : index
    %307 = memref.load %arg8[%c2_245, %c0_246] : memref<8x8xf32, #tpu.memory_space<smem>>
    %308 = vector.broadcast %307 : f32 to vector<8x8x8xf32>
    %309 = arith.mulf %306, %308 : vector<8x8x8xf32>
    %310 = arith.addf %303, %309 : vector<8x8x8xf32>
    %c0_247 = arith.constant 0 : index
    %c1_248 = arith.constant 1 : index
    %311 = arith.index_cast %1 : i32 to index
    %c0_249 = arith.constant 0 : index
    %c0_250 = arith.constant 0 : index
    %312 = vector.load %arg3[%c0_247, %c1_248, %311, %c0_249, %c0_250] : memref<1x8x8x8x8xf32, #tpu.memory_space<vmem>>, vector<1x1x8x8x8xf32>
    %313 = vector.shape_cast %312 : vector<1x1x8x8x8xf32> to vector<8x8x8xf32>
    %c2_251 = arith.constant 2 : index
    %c1_252 = arith.constant 1 : index
    %314 = memref.load %arg8[%c2_251, %c1_252] : memref<8x8xf32, #tpu.memory_space<smem>>
    %315 = vector.broadcast %314 : f32 to vector<8x8x8xf32>
    %316 = arith.mulf %313, %315 : vector<8x8x8xf32>
    %317 = arith.addf %310, %316 : vector<8x8x8xf32>
    %c0_253 = arith.constant 0 : index
    %c2_254 = arith.constant 2 : index
    %318 = arith.index_cast %1 : i32 to index
    %c0_255 = arith.constant 0 : index
    %c0_256 = arith.constant 0 : index
    %319 = vector.load %arg3[%c0_253, %c2_254, %318, %c0_255, %c0_256] : memref<1x8x8x8x8xf32, #tpu.memory_space<vmem>>, vector<1x1x8x8x8xf32>
    %320 = vector.shape_cast %319 : vector<1x1x8x8x8xf32> to vector<8x8x8xf32>
    %c2_257 = arith.constant 2 : index
    %c2_258 = arith.constant 2 : index
    %321 = memref.load %arg8[%c2_257, %c2_258] : memref<8x8xf32, #tpu.memory_space<smem>>
    %322 = vector.broadcast %321 : f32 to vector<8x8x8xf32>
    %323 = arith.mulf %320, %322 : vector<8x8x8xf32>
    %324 = arith.addf %317, %323 : vector<8x8x8xf32>
    %c0_259 = arith.constant 0 : index
    %c3_260 = arith.constant 3 : index
    %325 = arith.index_cast %1 : i32 to index
    %c0_261 = arith.constant 0 : index
    %c0_262 = arith.constant 0 : index
    %326 = vector.load %arg3[%c0_259, %c3_260, %325, %c0_261, %c0_262] : memref<1x8x8x8x8xf32, #tpu.memory_space<vmem>>, vector<1x1x8x8x8xf32>
    %327 = vector.shape_cast %326 : vector<1x1x8x8x8xf32> to vector<8x8x8xf32>
    %c2_263 = arith.constant 2 : index
    %c3_264 = arith.constant 3 : index
    %328 = memref.load %arg8[%c2_263, %c3_264] : memref<8x8xf32, #tpu.memory_space<smem>>
    %329 = vector.broadcast %328 : f32 to vector<8x8x8xf32>
    %330 = arith.mulf %327, %329 : vector<8x8x8xf32>
    %331 = arith.addf %324, %330 : vector<8x8x8xf32>
    %c0_265 = arith.constant 0 : index
    %c4_266 = arith.constant 4 : index
    %332 = arith.index_cast %1 : i32 to index
    %c0_267 = arith.constant 0 : index
    %c0_268 = arith.constant 0 : index
    %333 = vector.load %arg3[%c0_265, %c4_266, %332, %c0_267, %c0_268] : memref<1x8x8x8x8xf32, #tpu.memory_space<vmem>>, vector<1x1x8x8x8xf32>
    %334 = vector.shape_cast %333 : vector<1x1x8x8x8xf32> to vector<8x8x8xf32>
    %c2_269 = arith.constant 2 : index
    %c4_270 = arith.constant 4 : index
    %335 = memref.load %arg8[%c2_269, %c4_270] : memref<8x8xf32, #tpu.memory_space<smem>>
    %336 = vector.broadcast %335 : f32 to vector<8x8x8xf32>
    %337 = arith.mulf %334, %336 : vector<8x8x8xf32>
    %338 = arith.addf %331, %337 : vector<8x8x8xf32>
    %c0_271 = arith.constant 0 : index
    %c5_272 = arith.constant 5 : index
    %339 = arith.index_cast %1 : i32 to index
    %c0_273 = arith.constant 0 : index
    %c0_274 = arith.constant 0 : index
    %340 = vector.load %arg3[%c0_271, %c5_272, %339, %c0_273, %c0_274] : memref<1x8x8x8x8xf32, #tpu.memory_space<vmem>>, vector<1x1x8x8x8xf32>
    %341 = vector.shape_cast %340 : vector<1x1x8x8x8xf32> to vector<8x8x8xf32>
    %c2_275 = arith.constant 2 : index
    %c5_276 = arith.constant 5 : index
    %342 = memref.load %arg8[%c2_275, %c5_276] : memref<8x8xf32, #tpu.memory_space<smem>>
    %343 = vector.broadcast %342 : f32 to vector<8x8x8xf32>
    %344 = arith.mulf %341, %343 : vector<8x8x8xf32>
    %345 = arith.addf %338, %344 : vector<8x8x8xf32>
    %c0_277 = arith.constant 0 : index
    %c6_278 = arith.constant 6 : index
    %346 = arith.index_cast %1 : i32 to index
    %c0_279 = arith.constant 0 : index
    %c0_280 = arith.constant 0 : index
    %347 = vector.load %arg3[%c0_277, %c6_278, %346, %c0_279, %c0_280] : memref<1x8x8x8x8xf32, #tpu.memory_space<vmem>>, vector<1x1x8x8x8xf32>
    %348 = vector.shape_cast %347 : vector<1x1x8x8x8xf32> to vector<8x8x8xf32>
    %c2_281 = arith.constant 2 : index
    %c6_282 = arith.constant 6 : index
    %349 = memref.load %arg8[%c2_281, %c6_282] : memref<8x8xf32, #tpu.memory_space<smem>>
    %350 = vector.broadcast %349 : f32 to vector<8x8x8xf32>
    %351 = arith.mulf %348, %350 : vector<8x8x8xf32>
    %352 = arith.addf %345, %351 : vector<8x8x8xf32>
    %c0_283 = arith.constant 0 : index
    %c7_284 = arith.constant 7 : index
    %353 = arith.index_cast %1 : i32 to index
    %c0_285 = arith.constant 0 : index
    %c0_286 = arith.constant 0 : index
    %354 = vector.load %arg3[%c0_283, %c7_284, %353, %c0_285, %c0_286] : memref<1x8x8x8x8xf32, #tpu.memory_space<vmem>>, vector<1x1x8x8x8xf32>
    %355 = vector.shape_cast %354 : vector<1x1x8x8x8xf32> to vector<8x8x8xf32>
    %c2_287 = arith.constant 2 : index
    %c7_288 = arith.constant 7 : index
    %356 = memref.load %arg8[%c2_287, %c7_288] : memref<8x8xf32, #tpu.memory_space<smem>>
    %357 = vector.broadcast %356 : f32 to vector<8x8x8xf32>
    %358 = arith.mulf %355, %357 : vector<8x8x8xf32>
    %359 = arith.addf %352, %358 : vector<8x8x8xf32>
    %c2_289 = arith.constant 2 : index
    %360 = memref.load %arg9[%c2_289] : memref<8xf32, #tpu.memory_space<smem>>
    %361 = vector.broadcast %360 : f32 to vector<8x8x8xf32>
    %362 = arith.addf %359, %361 : vector<8x8x8xf32>
    %cst_290 = arith.constant 0.000000e+00 : f32
    %363 = vector.broadcast %cst_290 : f32 to vector<8x8x8xf32>
    %364 = arith.maximumf %362, %363 : vector<8x8x8xf32>
    %c2_291 = arith.constant 2 : index
    %365 = memref.load %arg10[%c2_291] : memref<8xf32, #tpu.memory_space<smem>>
    %366 = vector.broadcast %365 : f32 to vector<8x8x8xf32>
    %367 = arith.mulf %364, %366 : vector<8x8x8xf32>
    %368 = arith.addf %246, %367 : vector<8x8x8xf32>
    %cst_292 = arith.constant 0.000000e+00 : f32
    %369 = vector.broadcast %cst_292 : f32 to vector<8x8x8xf32>
    %c0_293 = arith.constant 0 : index
    %c0_294 = arith.constant 0 : index
    %370 = arith.index_cast %1 : i32 to index
    %c0_295 = arith.constant 0 : index
    %c0_296 = arith.constant 0 : index
    %371 = vector.load %arg2[%c0_293, %c0_294, %370, %c0_295, %c0_296] : memref<1x8x8x8x8xf32, #tpu.memory_space<vmem>>, vector<1x1x8x8x8xf32>
    %372 = vector.shape_cast %371 : vector<1x1x8x8x8xf32> to vector<8x8x8xf32>
    %c3_297 = arith.constant 3 : index
    %c0_298 = arith.constant 0 : index
    %373 = memref.load %arg7[%c3_297, %c0_298] : memref<8x8xf32, #tpu.memory_space<smem>>
    %374 = vector.broadcast %373 : f32 to vector<8x8x8xf32>
    %375 = arith.mulf %372, %374 : vector<8x8x8xf32>
    %376 = arith.addf %369, %375 : vector<8x8x8xf32>
    %c0_299 = arith.constant 0 : index
    %c1_300 = arith.constant 1 : index
    %377 = arith.index_cast %1 : i32 to index
    %c0_301 = arith.constant 0 : index
    %c0_302 = arith.constant 0 : index
    %378 = vector.load %arg2[%c0_299, %c1_300, %377, %c0_301, %c0_302] : memref<1x8x8x8x8xf32, #tpu.memory_space<vmem>>, vector<1x1x8x8x8xf32>
    %379 = vector.shape_cast %378 : vector<1x1x8x8x8xf32> to vector<8x8x8xf32>
    %c3_303 = arith.constant 3 : index
    %c1_304 = arith.constant 1 : index
    %380 = memref.load %arg7[%c3_303, %c1_304] : memref<8x8xf32, #tpu.memory_space<smem>>
    %381 = vector.broadcast %380 : f32 to vector<8x8x8xf32>
    %382 = arith.mulf %379, %381 : vector<8x8x8xf32>
    %383 = arith.addf %376, %382 : vector<8x8x8xf32>
    %c0_305 = arith.constant 0 : index
    %c2_306 = arith.constant 2 : index
    %384 = arith.index_cast %1 : i32 to index
    %c0_307 = arith.constant 0 : index
    %c0_308 = arith.constant 0 : index
    %385 = vector.load %arg2[%c0_305, %c2_306, %384, %c0_307, %c0_308] : memref<1x8x8x8x8xf32, #tpu.memory_space<vmem>>, vector<1x1x8x8x8xf32>
    %386 = vector.shape_cast %385 : vector<1x1x8x8x8xf32> to vector<8x8x8xf32>
    %c3_309 = arith.constant 3 : index
    %c2_310 = arith.constant 2 : index
    %387 = memref.load %arg7[%c3_309, %c2_310] : memref<8x8xf32, #tpu.memory_space<smem>>
    %388 = vector.broadcast %387 : f32 to vector<8x8x8xf32>
    %389 = arith.mulf %386, %388 : vector<8x8x8xf32>
    %390 = arith.addf %383, %389 : vector<8x8x8xf32>
    %c0_311 = arith.constant 0 : index
    %c3_312 = arith.constant 3 : index
    %391 = arith.index_cast %1 : i32 to index
    %c0_313 = arith.constant 0 : index
    %c0_314 = arith.constant 0 : index
    %392 = vector.load %arg2[%c0_311, %c3_312, %391, %c0_313, %c0_314] : memref<1x8x8x8x8xf32, #tpu.memory_space<vmem>>, vector<1x1x8x8x8xf32>
    %393 = vector.shape_cast %392 : vector<1x1x8x8x8xf32> to vector<8x8x8xf32>
    %c3_315 = arith.constant 3 : index
    %c3_316 = arith.constant 3 : index
    %394 = memref.load %arg7[%c3_315, %c3_316] : memref<8x8xf32, #tpu.memory_space<smem>>
    %395 = vector.broadcast %394 : f32 to vector<8x8x8xf32>
    %396 = arith.mulf %393, %395 : vector<8x8x8xf32>
    %397 = arith.addf %390, %396 : vector<8x8x8xf32>
    %c0_317 = arith.constant 0 : index
    %c4_318 = arith.constant 4 : index
    %398 = arith.index_cast %1 : i32 to index
    %c0_319 = arith.constant 0 : index
    %c0_320 = arith.constant 0 : index
    %399 = vector.load %arg2[%c0_317, %c4_318, %398, %c0_319, %c0_320] : memref<1x8x8x8x8xf32, #tpu.memory_space<vmem>>, vector<1x1x8x8x8xf32>
    %400 = vector.shape_cast %399 : vector<1x1x8x8x8xf32> to vector<8x8x8xf32>
    %c3_321 = arith.constant 3 : index
    %c4_322 = arith.constant 4 : index
    %401 = memref.load %arg7[%c3_321, %c4_322] : memref<8x8xf32, #tpu.memory_space<smem>>
    %402 = vector.broadcast %401 : f32 to vector<8x8x8xf32>
    %403 = arith.mulf %400, %402 : vector<8x8x8xf32>
    %404 = arith.addf %397, %403 : vector<8x8x8xf32>
    %c0_323 = arith.constant 0 : index
    %c5_324 = arith.constant 5 : index
    %405 = arith.index_cast %1 : i32 to index
    %c0_325 = arith.constant 0 : index
    %c0_326 = arith.constant 0 : index
    %406 = vector.load %arg2[%c0_323, %c5_324, %405, %c0_325, %c0_326] : memref<1x8x8x8x8xf32, #tpu.memory_space<vmem>>, vector<1x1x8x8x8xf32>
    %407 = vector.shape_cast %406 : vector<1x1x8x8x8xf32> to vector<8x8x8xf32>
    %c3_327 = arith.constant 3 : index
    %c5_328 = arith.constant 5 : index
    %408 = memref.load %arg7[%c3_327, %c5_328] : memref<8x8xf32, #tpu.memory_space<smem>>
    %409 = vector.broadcast %408 : f32 to vector<8x8x8xf32>
    %410 = arith.mulf %407, %409 : vector<8x8x8xf32>
    %411 = arith.addf %404, %410 : vector<8x8x8xf32>
    %c0_329 = arith.constant 0 : index
    %c6_330 = arith.constant 6 : index
    %412 = arith.index_cast %1 : i32 to index
    %c0_331 = arith.constant 0 : index
    %c0_332 = arith.constant 0 : index
    %413 = vector.load %arg2[%c0_329, %c6_330, %412, %c0_331, %c0_332] : memref<1x8x8x8x8xf32, #tpu.memory_space<vmem>>, vector<1x1x8x8x8xf32>
    %414 = vector.shape_cast %413 : vector<1x1x8x8x8xf32> to vector<8x8x8xf32>
    %c3_333 = arith.constant 3 : index
    %c6_334 = arith.constant 6 : index
    %415 = memref.load %arg7[%c3_333, %c6_334] : memref<8x8xf32, #tpu.memory_space<smem>>
    %416 = vector.broadcast %415 : f32 to vector<8x8x8xf32>
    %417 = arith.mulf %414, %416 : vector<8x8x8xf32>
    %418 = arith.addf %411, %417 : vector<8x8x8xf32>
    %c0_335 = arith.constant 0 : index
    %c7_336 = arith.constant 7 : index
    %419 = arith.index_cast %1 : i32 to index
    %c0_337 = arith.constant 0 : index
    %c0_338 = arith.constant 0 : index
    %420 = vector.load %arg2[%c0_335, %c7_336, %419, %c0_337, %c0_338] : memref<1x8x8x8x8xf32, #tpu.memory_space<vmem>>, vector<1x1x8x8x8xf32>
    %421 = vector.shape_cast %420 : vector<1x1x8x8x8xf32> to vector<8x8x8xf32>
    %c3_339 = arith.constant 3 : index
    %c7_340 = arith.constant 7 : index
    %422 = memref.load %arg7[%c3_339, %c7_340] : memref<8x8xf32, #tpu.memory_space<smem>>
    %423 = vector.broadcast %422 : f32 to vector<8x8x8xf32>
    %424 = arith.mulf %421, %423 : vector<8x8x8xf32>
    %425 = arith.addf %418, %424 : vector<8x8x8xf32>
    %c0_341 = arith.constant 0 : index
    %c0_342 = arith.constant 0 : index
    %426 = arith.index_cast %1 : i32 to index
    %c0_343 = arith.constant 0 : index
    %c0_344 = arith.constant 0 : index
    %427 = vector.load %arg3[%c0_341, %c0_342, %426, %c0_343, %c0_344] : memref<1x8x8x8x8xf32, #tpu.memory_space<vmem>>, vector<1x1x8x8x8xf32>
    %428 = vector.shape_cast %427 : vector<1x1x8x8x8xf32> to vector<8x8x8xf32>
    %c3_345 = arith.constant 3 : index
    %c0_346 = arith.constant 0 : index
    %429 = memref.load %arg8[%c3_345, %c0_346] : memref<8x8xf32, #tpu.memory_space<smem>>
    %430 = vector.broadcast %429 : f32 to vector<8x8x8xf32>
    %431 = arith.mulf %428, %430 : vector<8x8x8xf32>
    %432 = arith.addf %425, %431 : vector<8x8x8xf32>
    %c0_347 = arith.constant 0 : index
    %c1_348 = arith.constant 1 : index
    %433 = arith.index_cast %1 : i32 to index
    %c0_349 = arith.constant 0 : index
    %c0_350 = arith.constant 0 : index
    %434 = vector.load %arg3[%c0_347, %c1_348, %433, %c0_349, %c0_350] : memref<1x8x8x8x8xf32, #tpu.memory_space<vmem>>, vector<1x1x8x8x8xf32>
    %435 = vector.shape_cast %434 : vector<1x1x8x8x8xf32> to vector<8x8x8xf32>
    %c3_351 = arith.constant 3 : index
    %c1_352 = arith.constant 1 : index
    %436 = memref.load %arg8[%c3_351, %c1_352] : memref<8x8xf32, #tpu.memory_space<smem>>
    %437 = vector.broadcast %436 : f32 to vector<8x8x8xf32>
    %438 = arith.mulf %435, %437 : vector<8x8x8xf32>
    %439 = arith.addf %432, %438 : vector<8x8x8xf32>
    %c0_353 = arith.constant 0 : index
    %c2_354 = arith.constant 2 : index
    %440 = arith.index_cast %1 : i32 to index
    %c0_355 = arith.constant 0 : index
    %c0_356 = arith.constant 0 : index
    %441 = vector.load %arg3[%c0_353, %c2_354, %440, %c0_355, %c0_356] : memref<1x8x8x8x8xf32, #tpu.memory_space<vmem>>, vector<1x1x8x8x8xf32>
    %442 = vector.shape_cast %441 : vector<1x1x8x8x8xf32> to vector<8x8x8xf32>
    %c3_357 = arith.constant 3 : index
    %c2_358 = arith.constant 2 : index
    %443 = memref.load %arg8[%c3_357, %c2_358] : memref<8x8xf32, #tpu.memory_space<smem>>
    %444 = vector.broadcast %443 : f32 to vector<8x8x8xf32>
    %445 = arith.mulf %442, %444 : vector<8x8x8xf32>
    %446 = arith.addf %439, %445 : vector<8x8x8xf32>
    %c0_359 = arith.constant 0 : index
    %c3_360 = arith.constant 3 : index
    %447 = arith.index_cast %1 : i32 to index
    %c0_361 = arith.constant 0 : index
    %c0_362 = arith.constant 0 : index
    %448 = vector.load %arg3[%c0_359, %c3_360, %447, %c0_361, %c0_362] : memref<1x8x8x8x8xf32, #tpu.memory_space<vmem>>, vector<1x1x8x8x8xf32>
    %449 = vector.shape_cast %448 : vector<1x1x8x8x8xf32> to vector<8x8x8xf32>
    %c3_363 = arith.constant 3 : index
    %c3_364 = arith.constant 3 : index
    %450 = memref.load %arg8[%c3_363, %c3_364] : memref<8x8xf32, #tpu.memory_space<smem>>
    %451 = vector.broadcast %450 : f32 to vector<8x8x8xf32>
    %452 = arith.mulf %449, %451 : vector<8x8x8xf32>
    %453 = arith.addf %446, %452 : vector<8x8x8xf32>
    %c0_365 = arith.constant 0 : index
    %c4_366 = arith.constant 4 : index
    %454 = arith.index_cast %1 : i32 to index
    %c0_367 = arith.constant 0 : index
    %c0_368 = arith.constant 0 : index
    %455 = vector.load %arg3[%c0_365, %c4_366, %454, %c0_367, %c0_368] : memref<1x8x8x8x8xf32, #tpu.memory_space<vmem>>, vector<1x1x8x8x8xf32>
    %456 = vector.shape_cast %455 : vector<1x1x8x8x8xf32> to vector<8x8x8xf32>
    %c3_369 = arith.constant 3 : index
    %c4_370 = arith.constant 4 : index
    %457 = memref.load %arg8[%c3_369, %c4_370] : memref<8x8xf32, #tpu.memory_space<smem>>
    %458 = vector.broadcast %457 : f32 to vector<8x8x8xf32>
    %459 = arith.mulf %456, %458 : vector<8x8x8xf32>
    %460 = arith.addf %453, %459 : vector<8x8x8xf32>
    %c0_371 = arith.constant 0 : index
    %c5_372 = arith.constant 5 : index
    %461 = arith.index_cast %1 : i32 to index
    %c0_373 = arith.constant 0 : index
    %c0_374 = arith.constant 0 : index
    %462 = vector.load %arg3[%c0_371, %c5_372, %461, %c0_373, %c0_374] : memref<1x8x8x8x8xf32, #tpu.memory_space<vmem>>, vector<1x1x8x8x8xf32>
    %463 = vector.shape_cast %462 : vector<1x1x8x8x8xf32> to vector<8x8x8xf32>
    %c3_375 = arith.constant 3 : index
    %c5_376 = arith.constant 5 : index
    %464 = memref.load %arg8[%c3_375, %c5_376] : memref<8x8xf32, #tpu.memory_space<smem>>
    %465 = vector.broadcast %464 : f32 to vector<8x8x8xf32>
    %466 = arith.mulf %463, %465 : vector<8x8x8xf32>
    %467 = arith.addf %460, %466 : vector<8x8x8xf32>
    %c0_377 = arith.constant 0 : index
    %c6_378 = arith.constant 6 : index
    %468 = arith.index_cast %1 : i32 to index
    %c0_379 = arith.constant 0 : index
    %c0_380 = arith.constant 0 : index
    %469 = vector.load %arg3[%c0_377, %c6_378, %468, %c0_379, %c0_380] : memref<1x8x8x8x8xf32, #tpu.memory_space<vmem>>, vector<1x1x8x8x8xf32>
    %470 = vector.shape_cast %469 : vector<1x1x8x8x8xf32> to vector<8x8x8xf32>
    %c3_381 = arith.constant 3 : index
    %c6_382 = arith.constant 6 : index
    %471 = memref.load %arg8[%c3_381, %c6_382] : memref<8x8xf32, #tpu.memory_space<smem>>
    %472 = vector.broadcast %471 : f32 to vector<8x8x8xf32>
    %473 = arith.mulf %470, %472 : vector<8x8x8xf32>
    %474 = arith.addf %467, %473 : vector<8x8x8xf32>
    %c0_383 = arith.constant 0 : index
    %c7_384 = arith.constant 7 : index
    %475 = arith.index_cast %1 : i32 to index
    %c0_385 = arith.constant 0 : index
    %c0_386 = arith.constant 0 : index
    %476 = vector.load %arg3[%c0_383, %c7_384, %475, %c0_385, %c0_386] : memref<1x8x8x8x8xf32, #tpu.memory_space<vmem>>, vector<1x1x8x8x8xf32>
    %477 = vector.shape_cast %476 : vector<1x1x8x8x8xf32> to vector<8x8x8xf32>
    %c3_387 = arith.constant 3 : index
    %c7_388 = arith.constant 7 : index
    %478 = memref.load %arg8[%c3_387, %c7_388] : memref<8x8xf32, #tpu.memory_space<smem>>
    %479 = vector.broadcast %478 : f32 to vector<8x8x8xf32>
    %480 = arith.mulf %477, %479 : vector<8x8x8xf32>
    %481 = arith.addf %474, %480 : vector<8x8x8xf32>
    %c3_389 = arith.constant 3 : index
    %482 = memref.load %arg9[%c3_389] : memref<8xf32, #tpu.memory_space<smem>>
    %483 = vector.broadcast %482 : f32 to vector<8x8x8xf32>
    %484 = arith.addf %481, %483 : vector<8x8x8xf32>
    %cst_390 = arith.constant 0.000000e+00 : f32
    %485 = vector.broadcast %cst_390 : f32 to vector<8x8x8xf32>
    %486 = arith.maximumf %484, %485 : vector<8x8x8xf32>
    %c3_391 = arith.constant 3 : index
    %487 = memref.load %arg10[%c3_391] : memref<8xf32, #tpu.memory_space<smem>>
    %488 = vector.broadcast %487 : f32 to vector<8x8x8xf32>
    %489 = arith.mulf %486, %488 : vector<8x8x8xf32>
    %490 = arith.addf %368, %489 : vector<8x8x8xf32>
    %cst_392 = arith.constant 0.000000e+00 : f32
    %491 = vector.broadcast %cst_392 : f32 to vector<8x8x8xf32>
    %c0_393 = arith.constant 0 : index
    %c0_394 = arith.constant 0 : index
    %492 = arith.index_cast %1 : i32 to index
    %c0_395 = arith.constant 0 : index
    %c0_396 = arith.constant 0 : index
    %493 = vector.load %arg2[%c0_393, %c0_394, %492, %c0_395, %c0_396] : memref<1x8x8x8x8xf32, #tpu.memory_space<vmem>>, vector<1x1x8x8x8xf32>
    %494 = vector.shape_cast %493 : vector<1x1x8x8x8xf32> to vector<8x8x8xf32>
    %c4_397 = arith.constant 4 : index
    %c0_398 = arith.constant 0 : index
    %495 = memref.load %arg7[%c4_397, %c0_398] : memref<8x8xf32, #tpu.memory_space<smem>>
    %496 = vector.broadcast %495 : f32 to vector<8x8x8xf32>
    %497 = arith.mulf %494, %496 : vector<8x8x8xf32>
    %498 = arith.addf %491, %497 : vector<8x8x8xf32>
    %c0_399 = arith.constant 0 : index
    %c1_400 = arith.constant 1 : index
    %499 = arith.index_cast %1 : i32 to index
    %c0_401 = arith.constant 0 : index
    %c0_402 = arith.constant 0 : index
    %500 = vector.load %arg2[%c0_399, %c1_400, %499, %c0_401, %c0_402] : memref<1x8x8x8x8xf32, #tpu.memory_space<vmem>>, vector<1x1x8x8x8xf32>
    %501 = vector.shape_cast %500 : vector<1x1x8x8x8xf32> to vector<8x8x8xf32>
    %c4_403 = arith.constant 4 : index
    %c1_404 = arith.constant 1 : index
    %502 = memref.load %arg7[%c4_403, %c1_404] : memref<8x8xf32, #tpu.memory_space<smem>>
    %503 = vector.broadcast %502 : f32 to vector<8x8x8xf32>
    %504 = arith.mulf %501, %503 : vector<8x8x8xf32>
    %505 = arith.addf %498, %504 : vector<8x8x8xf32>
    %c0_405 = arith.constant 0 : index
    %c2_406 = arith.constant 2 : index
    %506 = arith.index_cast %1 : i32 to index
    %c0_407 = arith.constant 0 : index
    %c0_408 = arith.constant 0 : index
    %507 = vector.load %arg2[%c0_405, %c2_406, %506, %c0_407, %c0_408] : memref<1x8x8x8x8xf32, #tpu.memory_space<vmem>>, vector<1x1x8x8x8xf32>
    %508 = vector.shape_cast %507 : vector<1x1x8x8x8xf32> to vector<8x8x8xf32>
    %c4_409 = arith.constant 4 : index
    %c2_410 = arith.constant 2 : index
    %509 = memref.load %arg7[%c4_409, %c2_410] : memref<8x8xf32, #tpu.memory_space<smem>>
    %510 = vector.broadcast %509 : f32 to vector<8x8x8xf32>
    %511 = arith.mulf %508, %510 : vector<8x8x8xf32>
    %512 = arith.addf %505, %511 : vector<8x8x8xf32>
    %c0_411 = arith.constant 0 : index
    %c3_412 = arith.constant 3 : index
    %513 = arith.index_cast %1 : i32 to index
    %c0_413 = arith.constant 0 : index
    %c0_414 = arith.constant 0 : index
    %514 = vector.load %arg2[%c0_411, %c3_412, %513, %c0_413, %c0_414] : memref<1x8x8x8x8xf32, #tpu.memory_space<vmem>>, vector<1x1x8x8x8xf32>
    %515 = vector.shape_cast %514 : vector<1x1x8x8x8xf32> to vector<8x8x8xf32>
    %c4_415 = arith.constant 4 : index
    %c3_416 = arith.constant 3 : index
    %516 = memref.load %arg7[%c4_415, %c3_416] : memref<8x8xf32, #tpu.memory_space<smem>>
    %517 = vector.broadcast %516 : f32 to vector<8x8x8xf32>
    %518 = arith.mulf %515, %517 : vector<8x8x8xf32>
    %519 = arith.addf %512, %518 : vector<8x8x8xf32>
    %c0_417 = arith.constant 0 : index
    %c4_418 = arith.constant 4 : index
    %520 = arith.index_cast %1 : i32 to index
    %c0_419 = arith.constant 0 : index
    %c0_420 = arith.constant 0 : index
    %521 = vector.load %arg2[%c0_417, %c4_418, %520, %c0_419, %c0_420] : memref<1x8x8x8x8xf32, #tpu.memory_space<vmem>>, vector<1x1x8x8x8xf32>
    %522 = vector.shape_cast %521 : vector<1x1x8x8x8xf32> to vector<8x8x8xf32>
    %c4_421 = arith.constant 4 : index
    %c4_422 = arith.constant 4 : index
    %523 = memref.load %arg7[%c4_421, %c4_422] : memref<8x8xf32, #tpu.memory_space<smem>>
    %524 = vector.broadcast %523 : f32 to vector<8x8x8xf32>
    %525 = arith.mulf %522, %524 : vector<8x8x8xf32>
    %526 = arith.addf %519, %525 : vector<8x8x8xf32>
    %c0_423 = arith.constant 0 : index
    %c5_424 = arith.constant 5 : index
    %527 = arith.index_cast %1 : i32 to index
    %c0_425 = arith.constant 0 : index
    %c0_426 = arith.constant 0 : index
    %528 = vector.load %arg2[%c0_423, %c5_424, %527, %c0_425, %c0_426] : memref<1x8x8x8x8xf32, #tpu.memory_space<vmem>>, vector<1x1x8x8x8xf32>
    %529 = vector.shape_cast %528 : vector<1x1x8x8x8xf32> to vector<8x8x8xf32>
    %c4_427 = arith.constant 4 : index
    %c5_428 = arith.constant 5 : index
    %530 = memref.load %arg7[%c4_427, %c5_428] : memref<8x8xf32, #tpu.memory_space<smem>>
    %531 = vector.broadcast %530 : f32 to vector<8x8x8xf32>
    %532 = arith.mulf %529, %531 : vector<8x8x8xf32>
    %533 = arith.addf %526, %532 : vector<8x8x8xf32>
    %c0_429 = arith.constant 0 : index
    %c6_430 = arith.constant 6 : index
    %534 = arith.index_cast %1 : i32 to index
    %c0_431 = arith.constant 0 : index
    %c0_432 = arith.constant 0 : index
    %535 = vector.load %arg2[%c0_429, %c6_430, %534, %c0_431, %c0_432] : memref<1x8x8x8x8xf32, #tpu.memory_space<vmem>>, vector<1x1x8x8x8xf32>
    %536 = vector.shape_cast %535 : vector<1x1x8x8x8xf32> to vector<8x8x8xf32>
    %c4_433 = arith.constant 4 : index
    %c6_434 = arith.constant 6 : index
    %537 = memref.load %arg7[%c4_433, %c6_434] : memref<8x8xf32, #tpu.memory_space<smem>>
    %538 = vector.broadcast %537 : f32 to vector<8x8x8xf32>
    %539 = arith.mulf %536, %538 : vector<8x8x8xf32>
    %540 = arith.addf %533, %539 : vector<8x8x8xf32>
    %c0_435 = arith.constant 0 : index
    %c7_436 = arith.constant 7 : index
    %541 = arith.index_cast %1 : i32 to index
    %c0_437 = arith.constant 0 : index
    %c0_438 = arith.constant 0 : index
    %542 = vector.load %arg2[%c0_435, %c7_436, %541, %c0_437, %c0_438] : memref<1x8x8x8x8xf32, #tpu.memory_space<vmem>>, vector<1x1x8x8x8xf32>
    %543 = vector.shape_cast %542 : vector<1x1x8x8x8xf32> to vector<8x8x8xf32>
    %c4_439 = arith.constant 4 : index
    %c7_440 = arith.constant 7 : index
    %544 = memref.load %arg7[%c4_439, %c7_440] : memref<8x8xf32, #tpu.memory_space<smem>>
    %545 = vector.broadcast %544 : f32 to vector<8x8x8xf32>
    %546 = arith.mulf %543, %545 : vector<8x8x8xf32>
    %547 = arith.addf %540, %546 : vector<8x8x8xf32>
    %c0_441 = arith.constant 0 : index
    %c0_442 = arith.constant 0 : index
    %548 = arith.index_cast %1 : i32 to index
    %c0_443 = arith.constant 0 : index
    %c0_444 = arith.constant 0 : index
    %549 = vector.load %arg3[%c0_441, %c0_442, %548, %c0_443, %c0_444] : memref<1x8x8x8x8xf32, #tpu.memory_space<vmem>>, vector<1x1x8x8x8xf32>
    %550 = vector.shape_cast %549 : vector<1x1x8x8x8xf32> to vector<8x8x8xf32>
    %c4_445 = arith.constant 4 : index
    %c0_446 = arith.constant 0 : index
    %551 = memref.load %arg8[%c4_445, %c0_446] : memref<8x8xf32, #tpu.memory_space<smem>>
    %552 = vector.broadcast %551 : f32 to vector<8x8x8xf32>
    %553 = arith.mulf %550, %552 : vector<8x8x8xf32>
    %554 = arith.addf %547, %553 : vector<8x8x8xf32>
    %c0_447 = arith.constant 0 : index
    %c1_448 = arith.constant 1 : index
    %555 = arith.index_cast %1 : i32 to index
    %c0_449 = arith.constant 0 : index
    %c0_450 = arith.constant 0 : index
    %556 = vector.load %arg3[%c0_447, %c1_448, %555, %c0_449, %c0_450] : memref<1x8x8x8x8xf32, #tpu.memory_space<vmem>>, vector<1x1x8x8x8xf32>
    %557 = vector.shape_cast %556 : vector<1x1x8x8x8xf32> to vector<8x8x8xf32>
    %c4_451 = arith.constant 4 : index
    %c1_452 = arith.constant 1 : index
    %558 = memref.load %arg8[%c4_451, %c1_452] : memref<8x8xf32, #tpu.memory_space<smem>>
    %559 = vector.broadcast %558 : f32 to vector<8x8x8xf32>
    %560 = arith.mulf %557, %559 : vector<8x8x8xf32>
    %561 = arith.addf %554, %560 : vector<8x8x8xf32>
    %c0_453 = arith.constant 0 : index
    %c2_454 = arith.constant 2 : index
    %562 = arith.index_cast %1 : i32 to index
    %c0_455 = arith.constant 0 : index
    %c0_456 = arith.constant 0 : index
    %563 = vector.load %arg3[%c0_453, %c2_454, %562, %c0_455, %c0_456] : memref<1x8x8x8x8xf32, #tpu.memory_space<vmem>>, vector<1x1x8x8x8xf32>
    %564 = vector.shape_cast %563 : vector<1x1x8x8x8xf32> to vector<8x8x8xf32>
    %c4_457 = arith.constant 4 : index
    %c2_458 = arith.constant 2 : index
    %565 = memref.load %arg8[%c4_457, %c2_458] : memref<8x8xf32, #tpu.memory_space<smem>>
    %566 = vector.broadcast %565 : f32 to vector<8x8x8xf32>
    %567 = arith.mulf %564, %566 : vector<8x8x8xf32>
    %568 = arith.addf %561, %567 : vector<8x8x8xf32>
    %c0_459 = arith.constant 0 : index
    %c3_460 = arith.constant 3 : index
    %569 = arith.index_cast %1 : i32 to index
    %c0_461 = arith.constant 0 : index
    %c0_462 = arith.constant 0 : index
    %570 = vector.load %arg3[%c0_459, %c3_460, %569, %c0_461, %c0_462] : memref<1x8x8x8x8xf32, #tpu.memory_space<vmem>>, vector<1x1x8x8x8xf32>
    %571 = vector.shape_cast %570 : vector<1x1x8x8x8xf32> to vector<8x8x8xf32>
    %c4_463 = arith.constant 4 : index
    %c3_464 = arith.constant 3 : index
    %572 = memref.load %arg8[%c4_463, %c3_464] : memref<8x8xf32, #tpu.memory_space<smem>>
    %573 = vector.broadcast %572 : f32 to vector<8x8x8xf32>
    %574 = arith.mulf %571, %573 : vector<8x8x8xf32>
    %575 = arith.addf %568, %574 : vector<8x8x8xf32>
    %c0_465 = arith.constant 0 : index
    %c4_466 = arith.constant 4 : index
    %576 = arith.index_cast %1 : i32 to index
    %c0_467 = arith.constant 0 : index
    %c0_468 = arith.constant 0 : index
    %577 = vector.load %arg3[%c0_465, %c4_466, %576, %c0_467, %c0_468] : memref<1x8x8x8x8xf32, #tpu.memory_space<vmem>>, vector<1x1x8x8x8xf32>
    %578 = vector.shape_cast %577 : vector<1x1x8x8x8xf32> to vector<8x8x8xf32>
    %c4_469 = arith.constant 4 : index
    %c4_470 = arith.constant 4 : index
    %579 = memref.load %arg8[%c4_469, %c4_470] : memref<8x8xf32, #tpu.memory_space<smem>>
    %580 = vector.broadcast %579 : f32 to vector<8x8x8xf32>
    %581 = arith.mulf %578, %580 : vector<8x8x8xf32>
    %582 = arith.addf %575, %581 : vector<8x8x8xf32>
    %c0_471 = arith.constant 0 : index
    %c5_472 = arith.constant 5 : index
    %583 = arith.index_cast %1 : i32 to index
    %c0_473 = arith.constant 0 : index
    %c0_474 = arith.constant 0 : index
    %584 = vector.load %arg3[%c0_471, %c5_472, %583, %c0_473, %c0_474] : memref<1x8x8x8x8xf32, #tpu.memory_space<vmem>>, vector<1x1x8x8x8xf32>
    %585 = vector.shape_cast %584 : vector<1x1x8x8x8xf32> to vector<8x8x8xf32>
    %c4_475 = arith.constant 4 : index
    %c5_476 = arith.constant 5 : index
    %586 = memref.load %arg8[%c4_475, %c5_476] : memref<8x8xf32, #tpu.memory_space<smem>>
    %587 = vector.broadcast %586 : f32 to vector<8x8x8xf32>
    %588 = arith.mulf %585, %587 : vector<8x8x8xf32>
    %589 = arith.addf %582, %588 : vector<8x8x8xf32>
    %c0_477 = arith.constant 0 : index
    %c6_478 = arith.constant 6 : index
    %590 = arith.index_cast %1 : i32 to index
    %c0_479 = arith.constant 0 : index
    %c0_480 = arith.constant 0 : index
    %591 = vector.load %arg3[%c0_477, %c6_478, %590, %c0_479, %c0_480] : memref<1x8x8x8x8xf32, #tpu.memory_space<vmem>>, vector<1x1x8x8x8xf32>
    %592 = vector.shape_cast %591 : vector<1x1x8x8x8xf32> to vector<8x8x8xf32>
    %c4_481 = arith.constant 4 : index
    %c6_482 = arith.constant 6 : index
    %593 = memref.load %arg8[%c4_481, %c6_482] : memref<8x8xf32, #tpu.memory_space<smem>>
    %594 = vector.broadcast %593 : f32 to vector<8x8x8xf32>
    %595 = arith.mulf %592, %594 : vector<8x8x8xf32>
    %596 = arith.addf %589, %595 : vector<8x8x8xf32>
    %c0_483 = arith.constant 0 : index
    %c7_484 = arith.constant 7 : index
    %597 = arith.index_cast %1 : i32 to index
    %c0_485 = arith.constant 0 : index
    %c0_486 = arith.constant 0 : index
    %598 = vector.load %arg3[%c0_483, %c7_484, %597, %c0_485, %c0_486] : memref<1x8x8x8x8xf32, #tpu.memory_space<vmem>>, vector<1x1x8x8x8xf32>
    %599 = vector.shape_cast %598 : vector<1x1x8x8x8xf32> to vector<8x8x8xf32>
    %c4_487 = arith.constant 4 : index
    %c7_488 = arith.constant 7 : index
    %600 = memref.load %arg8[%c4_487, %c7_488] : memref<8x8xf32, #tpu.memory_space<smem>>
    %601 = vector.broadcast %600 : f32 to vector<8x8x8xf32>
    %602 = arith.mulf %599, %601 : vector<8x8x8xf32>
    %603 = arith.addf %596, %602 : vector<8x8x8xf32>
    %c4_489 = arith.constant 4 : index
    %604 = memref.load %arg9[%c4_489] : memref<8xf32, #tpu.memory_space<smem>>
    %605 = vector.broadcast %604 : f32 to vector<8x8x8xf32>
    %606 = arith.addf %603, %605 : vector<8x8x8xf32>
    %cst_490 = arith.constant 0.000000e+00 : f32
    %607 = vector.broadcast %cst_490 : f32 to vector<8x8x8xf32>
    %608 = arith.maximumf %606, %607 : vector<8x8x8xf32>
    %c4_491 = arith.constant 4 : index
    %609 = memref.load %arg10[%c4_491] : memref<8xf32, #tpu.memory_space<smem>>
    %610 = vector.broadcast %609 : f32 to vector<8x8x8xf32>
    %611 = arith.mulf %608, %610 : vector<8x8x8xf32>
    %612 = arith.addf %490, %611 : vector<8x8x8xf32>
    %cst_492 = arith.constant 0.000000e+00 : f32
    %613 = vector.broadcast %cst_492 : f32 to vector<8x8x8xf32>
    %c0_493 = arith.constant 0 : index
    %c0_494 = arith.constant 0 : index
    %614 = arith.index_cast %1 : i32 to index
    %c0_495 = arith.constant 0 : index
    %c0_496 = arith.constant 0 : index
    %615 = vector.load %arg2[%c0_493, %c0_494, %614, %c0_495, %c0_496] : memref<1x8x8x8x8xf32, #tpu.memory_space<vmem>>, vector<1x1x8x8x8xf32>
    %616 = vector.shape_cast %615 : vector<1x1x8x8x8xf32> to vector<8x8x8xf32>
    %c5_497 = arith.constant 5 : index
    %c0_498 = arith.constant 0 : index
    %617 = memref.load %arg7[%c5_497, %c0_498] : memref<8x8xf32, #tpu.memory_space<smem>>
    %618 = vector.broadcast %617 : f32 to vector<8x8x8xf32>
    %619 = arith.mulf %616, %618 : vector<8x8x8xf32>
    %620 = arith.addf %613, %619 : vector<8x8x8xf32>
    %c0_499 = arith.constant 0 : index
    %c1_500 = arith.constant 1 : index
    %621 = arith.index_cast %1 : i32 to index
    %c0_501 = arith.constant 0 : index
    %c0_502 = arith.constant 0 : index
    %622 = vector.load %arg2[%c0_499, %c1_500, %621, %c0_501, %c0_502] : memref<1x8x8x8x8xf32, #tpu.memory_space<vmem>>, vector<1x1x8x8x8xf32>
    %623 = vector.shape_cast %622 : vector<1x1x8x8x8xf32> to vector<8x8x8xf32>
    %c5_503 = arith.constant 5 : index
    %c1_504 = arith.constant 1 : index
    %624 = memref.load %arg7[%c5_503, %c1_504] : memref<8x8xf32, #tpu.memory_space<smem>>
    %625 = vector.broadcast %624 : f32 to vector<8x8x8xf32>
    %626 = arith.mulf %623, %625 : vector<8x8x8xf32>
    %627 = arith.addf %620, %626 : vector<8x8x8xf32>
    %c0_505 = arith.constant 0 : index
    %c2_506 = arith.constant 2 : index
    %628 = arith.index_cast %1 : i32 to index
    %c0_507 = arith.constant 0 : index
    %c0_508 = arith.constant 0 : index
    %629 = vector.load %arg2[%c0_505, %c2_506, %628, %c0_507, %c0_508] : memref<1x8x8x8x8xf32, #tpu.memory_space<vmem>>, vector<1x1x8x8x8xf32>
    %630 = vector.shape_cast %629 : vector<1x1x8x8x8xf32> to vector<8x8x8xf32>
    %c5_509 = arith.constant 5 : index
    %c2_510 = arith.constant 2 : index
    %631 = memref.load %arg7[%c5_509, %c2_510] : memref<8x8xf32, #tpu.memory_space<smem>>
    %632 = vector.broadcast %631 : f32 to vector<8x8x8xf32>
    %633 = arith.mulf %630, %632 : vector<8x8x8xf32>
    %634 = arith.addf %627, %633 : vector<8x8x8xf32>
    %c0_511 = arith.constant 0 : index
    %c3_512 = arith.constant 3 : index
    %635 = arith.index_cast %1 : i32 to index
    %c0_513 = arith.constant 0 : index
    %c0_514 = arith.constant 0 : index
    %636 = vector.load %arg2[%c0_511, %c3_512, %635, %c0_513, %c0_514] : memref<1x8x8x8x8xf32, #tpu.memory_space<vmem>>, vector<1x1x8x8x8xf32>
    %637 = vector.shape_cast %636 : vector<1x1x8x8x8xf32> to vector<8x8x8xf32>
    %c5_515 = arith.constant 5 : index
    %c3_516 = arith.constant 3 : index
    %638 = memref.load %arg7[%c5_515, %c3_516] : memref<8x8xf32, #tpu.memory_space<smem>>
    %639 = vector.broadcast %638 : f32 to vector<8x8x8xf32>
    %640 = arith.mulf %637, %639 : vector<8x8x8xf32>
    %641 = arith.addf %634, %640 : vector<8x8x8xf32>
    %c0_517 = arith.constant 0 : index
    %c4_518 = arith.constant 4 : index
    %642 = arith.index_cast %1 : i32 to index
    %c0_519 = arith.constant 0 : index
    %c0_520 = arith.constant 0 : index
    %643 = vector.load %arg2[%c0_517, %c4_518, %642, %c0_519, %c0_520] : memref<1x8x8x8x8xf32, #tpu.memory_space<vmem>>, vector<1x1x8x8x8xf32>
    %644 = vector.shape_cast %643 : vector<1x1x8x8x8xf32> to vector<8x8x8xf32>
    %c5_521 = arith.constant 5 : index
    %c4_522 = arith.constant 4 : index
    %645 = memref.load %arg7[%c5_521, %c4_522] : memref<8x8xf32, #tpu.memory_space<smem>>
    %646 = vector.broadcast %645 : f32 to vector<8x8x8xf32>
    %647 = arith.mulf %644, %646 : vector<8x8x8xf32>
    %648 = arith.addf %641, %647 : vector<8x8x8xf32>
    %c0_523 = arith.constant 0 : index
    %c5_524 = arith.constant 5 : index
    %649 = arith.index_cast %1 : i32 to index
    %c0_525 = arith.constant 0 : index
    %c0_526 = arith.constant 0 : index
    %650 = vector.load %arg2[%c0_523, %c5_524, %649, %c0_525, %c0_526] : memref<1x8x8x8x8xf32, #tpu.memory_space<vmem>>, vector<1x1x8x8x8xf32>
    %651 = vector.shape_cast %650 : vector<1x1x8x8x8xf32> to vector<8x8x8xf32>
    %c5_527 = arith.constant 5 : index
    %c5_528 = arith.constant 5 : index
    %652 = memref.load %arg7[%c5_527, %c5_528] : memref<8x8xf32, #tpu.memory_space<smem>>
    %653 = vector.broadcast %652 : f32 to vector<8x8x8xf32>
    %654 = arith.mulf %651, %653 : vector<8x8x8xf32>
    %655 = arith.addf %648, %654 : vector<8x8x8xf32>
    %c0_529 = arith.constant 0 : index
    %c6_530 = arith.constant 6 : index
    %656 = arith.index_cast %1 : i32 to index
    %c0_531 = arith.constant 0 : index
    %c0_532 = arith.constant 0 : index
    %657 = vector.load %arg2[%c0_529, %c6_530, %656, %c0_531, %c0_532] : memref<1x8x8x8x8xf32, #tpu.memory_space<vmem>>, vector<1x1x8x8x8xf32>
    %658 = vector.shape_cast %657 : vector<1x1x8x8x8xf32> to vector<8x8x8xf32>
    %c5_533 = arith.constant 5 : index
    %c6_534 = arith.constant 6 : index
    %659 = memref.load %arg7[%c5_533, %c6_534] : memref<8x8xf32, #tpu.memory_space<smem>>
    %660 = vector.broadcast %659 : f32 to vector<8x8x8xf32>
    %661 = arith.mulf %658, %660 : vector<8x8x8xf32>
    %662 = arith.addf %655, %661 : vector<8x8x8xf32>
    %c0_535 = arith.constant 0 : index
    %c7_536 = arith.constant 7 : index
    %663 = arith.index_cast %1 : i32 to index
    %c0_537 = arith.constant 0 : index
    %c0_538 = arith.constant 0 : index
    %664 = vector.load %arg2[%c0_535, %c7_536, %663, %c0_537, %c0_538] : memref<1x8x8x8x8xf32, #tpu.memory_space<vmem>>, vector<1x1x8x8x8xf32>
    %665 = vector.shape_cast %664 : vector<1x1x8x8x8xf32> to vector<8x8x8xf32>
    %c5_539 = arith.constant 5 : index
    %c7_540 = arith.constant 7 : index
    %666 = memref.load %arg7[%c5_539, %c7_540] : memref<8x8xf32, #tpu.memory_space<smem>>
    %667 = vector.broadcast %666 : f32 to vector<8x8x8xf32>
    %668 = arith.mulf %665, %667 : vector<8x8x8xf32>
    %669 = arith.addf %662, %668 : vector<8x8x8xf32>
    %c0_541 = arith.constant 0 : index
    %c0_542 = arith.constant 0 : index
    %670 = arith.index_cast %1 : i32 to index
    %c0_543 = arith.constant 0 : index
    %c0_544 = arith.constant 0 : index
    %671 = vector.load %arg3[%c0_541, %c0_542, %670, %c0_543, %c0_544] : memref<1x8x8x8x8xf32, #tpu.memory_space<vmem>>, vector<1x1x8x8x8xf32>
    %672 = vector.shape_cast %671 : vector<1x1x8x8x8xf32> to vector<8x8x8xf32>
    %c5_545 = arith.constant 5 : index
    %c0_546 = arith.constant 0 : index
    %673 = memref.load %arg8[%c5_545, %c0_546] : memref<8x8xf32, #tpu.memory_space<smem>>
    %674 = vector.broadcast %673 : f32 to vector<8x8x8xf32>
    %675 = arith.mulf %672, %674 : vector<8x8x8xf32>
    %676 = arith.addf %669, %675 : vector<8x8x8xf32>
    %c0_547 = arith.constant 0 : index
    %c1_548 = arith.constant 1 : index
    %677 = arith.index_cast %1 : i32 to index
    %c0_549 = arith.constant 0 : index
    %c0_550 = arith.constant 0 : index
    %678 = vector.load %arg3[%c0_547, %c1_548, %677, %c0_549, %c0_550] : memref<1x8x8x8x8xf32, #tpu.memory_space<vmem>>, vector<1x1x8x8x8xf32>
    %679 = vector.shape_cast %678 : vector<1x1x8x8x8xf32> to vector<8x8x8xf32>
    %c5_551 = arith.constant 5 : index
    %c1_552 = arith.constant 1 : index
    %680 = memref.load %arg8[%c5_551, %c1_552] : memref<8x8xf32, #tpu.memory_space<smem>>
    %681 = vector.broadcast %680 : f32 to vector<8x8x8xf32>
    %682 = arith.mulf %679, %681 : vector<8x8x8xf32>
    %683 = arith.addf %676, %682 : vector<8x8x8xf32>
    %c0_553 = arith.constant 0 : index
    %c2_554 = arith.constant 2 : index
    %684 = arith.index_cast %1 : i32 to index
    %c0_555 = arith.constant 0 : index
    %c0_556 = arith.constant 0 : index
    %685 = vector.load %arg3[%c0_553, %c2_554, %684, %c0_555, %c0_556] : memref<1x8x8x8x8xf32, #tpu.memory_space<vmem>>, vector<1x1x8x8x8xf32>
    %686 = vector.shape_cast %685 : vector<1x1x8x8x8xf32> to vector<8x8x8xf32>
    %c5_557 = arith.constant 5 : index
    %c2_558 = arith.constant 2 : index
    %687 = memref.load %arg8[%c5_557, %c2_558] : memref<8x8xf32, #tpu.memory_space<smem>>
    %688 = vector.broadcast %687 : f32 to vector<8x8x8xf32>
    %689 = arith.mulf %686, %688 : vector<8x8x8xf32>
    %690 = arith.addf %683, %689 : vector<8x8x8xf32>
    %c0_559 = arith.constant 0 : index
    %c3_560 = arith.constant 3 : index
    %691 = arith.index_cast %1 : i32 to index
    %c0_561 = arith.constant 0 : index
    %c0_562 = arith.constant 0 : index
    %692 = vector.load %arg3[%c0_559, %c3_560, %691, %c0_561, %c0_562] : memref<1x8x8x8x8xf32, #tpu.memory_space<vmem>>, vector<1x1x8x8x8xf32>
    %693 = vector.shape_cast %692 : vector<1x1x8x8x8xf32> to vector<8x8x8xf32>
    %c5_563 = arith.constant 5 : index
    %c3_564 = arith.constant 3 : index
    %694 = memref.load %arg8[%c5_563, %c3_564] : memref<8x8xf32, #tpu.memory_space<smem>>
    %695 = vector.broadcast %694 : f32 to vector<8x8x8xf32>
    %696 = arith.mulf %693, %695 : vector<8x8x8xf32>
    %697 = arith.addf %690, %696 : vector<8x8x8xf32>
    %c0_565 = arith.constant 0 : index
    %c4_566 = arith.constant 4 : index
    %698 = arith.index_cast %1 : i32 to index
    %c0_567 = arith.constant 0 : index
    %c0_568 = arith.constant 0 : index
    %699 = vector.load %arg3[%c0_565, %c4_566, %698, %c0_567, %c0_568] : memref<1x8x8x8x8xf32, #tpu.memory_space<vmem>>, vector<1x1x8x8x8xf32>
    %700 = vector.shape_cast %699 : vector<1x1x8x8x8xf32> to vector<8x8x8xf32>
    %c5_569 = arith.constant 5 : index
    %c4_570 = arith.constant 4 : index
    %701 = memref.load %arg8[%c5_569, %c4_570] : memref<8x8xf32, #tpu.memory_space<smem>>
    %702 = vector.broadcast %701 : f32 to vector<8x8x8xf32>
    %703 = arith.mulf %700, %702 : vector<8x8x8xf32>
    %704 = arith.addf %697, %703 : vector<8x8x8xf32>
    %c0_571 = arith.constant 0 : index
    %c5_572 = arith.constant 5 : index
    %705 = arith.index_cast %1 : i32 to index
    %c0_573 = arith.constant 0 : index
    %c0_574 = arith.constant 0 : index
    %706 = vector.load %arg3[%c0_571, %c5_572, %705, %c0_573, %c0_574] : memref<1x8x8x8x8xf32, #tpu.memory_space<vmem>>, vector<1x1x8x8x8xf32>
    %707 = vector.shape_cast %706 : vector<1x1x8x8x8xf32> to vector<8x8x8xf32>
    %c5_575 = arith.constant 5 : index
    %c5_576 = arith.constant 5 : index
    %708 = memref.load %arg8[%c5_575, %c5_576] : memref<8x8xf32, #tpu.memory_space<smem>>
    %709 = vector.broadcast %708 : f32 to vector<8x8x8xf32>
    %710 = arith.mulf %707, %709 : vector<8x8x8xf32>
    %711 = arith.addf %704, %710 : vector<8x8x8xf32>
    %c0_577 = arith.constant 0 : index
    %c6_578 = arith.constant 6 : index
    %712 = arith.index_cast %1 : i32 to index
    %c0_579 = arith.constant 0 : index
    %c0_580 = arith.constant 0 : index
    %713 = vector.load %arg3[%c0_577, %c6_578, %712, %c0_579, %c0_580] : memref<1x8x8x8x8xf32, #tpu.memory_space<vmem>>, vector<1x1x8x8x8xf32>
    %714 = vector.shape_cast %713 : vector<1x1x8x8x8xf32> to vector<8x8x8xf32>
    %c5_581 = arith.constant 5 : index
    %c6_582 = arith.constant 6 : index
    %715 = memref.load %arg8[%c5_581, %c6_582] : memref<8x8xf32, #tpu.memory_space<smem>>
    %716 = vector.broadcast %715 : f32 to vector<8x8x8xf32>
    %717 = arith.mulf %714, %716 : vector<8x8x8xf32>
    %718 = arith.addf %711, %717 : vector<8x8x8xf32>
    %c0_583 = arith.constant 0 : index
    %c7_584 = arith.constant 7 : index
    %719 = arith.index_cast %1 : i32 to index
    %c0_585 = arith.constant 0 : index
    %c0_586 = arith.constant 0 : index
    %720 = vector.load %arg3[%c0_583, %c7_584, %719, %c0_585, %c0_586] : memref<1x8x8x8x8xf32, #tpu.memory_space<vmem>>, vector<1x1x8x8x8xf32>
    %721 = vector.shape_cast %720 : vector<1x1x8x8x8xf32> to vector<8x8x8xf32>
    %c5_587 = arith.constant 5 : index
    %c7_588 = arith.constant 7 : index
    %722 = memref.load %arg8[%c5_587, %c7_588] : memref<8x8xf32, #tpu.memory_space<smem>>
    %723 = vector.broadcast %722 : f32 to vector<8x8x8xf32>
    %724 = arith.mulf %721, %723 : vector<8x8x8xf32>
    %725 = arith.addf %718, %724 : vector<8x8x8xf32>
    %c5_589 = arith.constant 5 : index
    %726 = memref.load %arg9[%c5_589] : memref<8xf32, #tpu.memory_space<smem>>
    %727 = vector.broadcast %726 : f32 to vector<8x8x8xf32>
    %728 = arith.addf %725, %727 : vector<8x8x8xf32>
    %cst_590 = arith.constant 0.000000e+00 : f32
    %729 = vector.broadcast %cst_590 : f32 to vector<8x8x8xf32>
    %730 = arith.maximumf %728, %729 : vector<8x8x8xf32>
    %c5_591 = arith.constant 5 : index
    %731 = memref.load %arg10[%c5_591] : memref<8xf32, #tpu.memory_space<smem>>
    %732 = vector.broadcast %731 : f32 to vector<8x8x8xf32>
    %733 = arith.mulf %730, %732 : vector<8x8x8xf32>
    %734 = arith.addf %612, %733 : vector<8x8x8xf32>
    %cst_592 = arith.constant 0.000000e+00 : f32
    %735 = vector.broadcast %cst_592 : f32 to vector<8x8x8xf32>
    %c0_593 = arith.constant 0 : index
    %c0_594 = arith.constant 0 : index
    %736 = arith.index_cast %1 : i32 to index
    %c0_595 = arith.constant 0 : index
    %c0_596 = arith.constant 0 : index
    %737 = vector.load %arg2[%c0_593, %c0_594, %736, %c0_595, %c0_596] : memref<1x8x8x8x8xf32, #tpu.memory_space<vmem>>, vector<1x1x8x8x8xf32>
    %738 = vector.shape_cast %737 : vector<1x1x8x8x8xf32> to vector<8x8x8xf32>
    %c6_597 = arith.constant 6 : index
    %c0_598 = arith.constant 0 : index
    %739 = memref.load %arg7[%c6_597, %c0_598] : memref<8x8xf32, #tpu.memory_space<smem>>
    %740 = vector.broadcast %739 : f32 to vector<8x8x8xf32>
    %741 = arith.mulf %738, %740 : vector<8x8x8xf32>
    %742 = arith.addf %735, %741 : vector<8x8x8xf32>
    %c0_599 = arith.constant 0 : index
    %c1_600 = arith.constant 1 : index
    %743 = arith.index_cast %1 : i32 to index
    %c0_601 = arith.constant 0 : index
    %c0_602 = arith.constant 0 : index
    %744 = vector.load %arg2[%c0_599, %c1_600, %743, %c0_601, %c0_602] : memref<1x8x8x8x8xf32, #tpu.memory_space<vmem>>, vector<1x1x8x8x8xf32>
    %745 = vector.shape_cast %744 : vector<1x1x8x8x8xf32> to vector<8x8x8xf32>
    %c6_603 = arith.constant 6 : index
    %c1_604 = arith.constant 1 : index
    %746 = memref.load %arg7[%c6_603, %c1_604] : memref<8x8xf32, #tpu.memory_space<smem>>
    %747 = vector.broadcast %746 : f32 to vector<8x8x8xf32>
    %748 = arith.mulf %745, %747 : vector<8x8x8xf32>
    %749 = arith.addf %742, %748 : vector<8x8x8xf32>
    %c0_605 = arith.constant 0 : index
    %c2_606 = arith.constant 2 : index
    %750 = arith.index_cast %1 : i32 to index
    %c0_607 = arith.constant 0 : index
    %c0_608 = arith.constant 0 : index
    %751 = vector.load %arg2[%c0_605, %c2_606, %750, %c0_607, %c0_608] : memref<1x8x8x8x8xf32, #tpu.memory_space<vmem>>, vector<1x1x8x8x8xf32>
    %752 = vector.shape_cast %751 : vector<1x1x8x8x8xf32> to vector<8x8x8xf32>
    %c6_609 = arith.constant 6 : index
    %c2_610 = arith.constant 2 : index
    %753 = memref.load %arg7[%c6_609, %c2_610] : memref<8x8xf32, #tpu.memory_space<smem>>
    %754 = vector.broadcast %753 : f32 to vector<8x8x8xf32>
    %755 = arith.mulf %752, %754 : vector<8x8x8xf32>
    %756 = arith.addf %749, %755 : vector<8x8x8xf32>
    %c0_611 = arith.constant 0 : index
    %c3_612 = arith.constant 3 : index
    %757 = arith.index_cast %1 : i32 to index
    %c0_613 = arith.constant 0 : index
    %c0_614 = arith.constant 0 : index
    %758 = vector.load %arg2[%c0_611, %c3_612, %757, %c0_613, %c0_614] : memref<1x8x8x8x8xf32, #tpu.memory_space<vmem>>, vector<1x1x8x8x8xf32>
    %759 = vector.shape_cast %758 : vector<1x1x8x8x8xf32> to vector<8x8x8xf32>
    %c6_615 = arith.constant 6 : index
    %c3_616 = arith.constant 3 : index
    %760 = memref.load %arg7[%c6_615, %c3_616] : memref<8x8xf32, #tpu.memory_space<smem>>
    %761 = vector.broadcast %760 : f32 to vector<8x8x8xf32>
    %762 = arith.mulf %759, %761 : vector<8x8x8xf32>
    %763 = arith.addf %756, %762 : vector<8x8x8xf32>
    %c0_617 = arith.constant 0 : index
    %c4_618 = arith.constant 4 : index
    %764 = arith.index_cast %1 : i32 to index
    %c0_619 = arith.constant 0 : index
    %c0_620 = arith.constant 0 : index
    %765 = vector.load %arg2[%c0_617, %c4_618, %764, %c0_619, %c0_620] : memref<1x8x8x8x8xf32, #tpu.memory_space<vmem>>, vector<1x1x8x8x8xf32>
    %766 = vector.shape_cast %765 : vector<1x1x8x8x8xf32> to vector<8x8x8xf32>
    %c6_621 = arith.constant 6 : index
    %c4_622 = arith.constant 4 : index
    %767 = memref.load %arg7[%c6_621, %c4_622] : memref<8x8xf32, #tpu.memory_space<smem>>
    %768 = vector.broadcast %767 : f32 to vector<8x8x8xf32>
    %769 = arith.mulf %766, %768 : vector<8x8x8xf32>
    %770 = arith.addf %763, %769 : vector<8x8x8xf32>
    %c0_623 = arith.constant 0 : index
    %c5_624 = arith.constant 5 : index
    %771 = arith.index_cast %1 : i32 to index
    %c0_625 = arith.constant 0 : index
    %c0_626 = arith.constant 0 : index
    %772 = vector.load %arg2[%c0_623, %c5_624, %771, %c0_625, %c0_626] : memref<1x8x8x8x8xf32, #tpu.memory_space<vmem>>, vector<1x1x8x8x8xf32>
    %773 = vector.shape_cast %772 : vector<1x1x8x8x8xf32> to vector<8x8x8xf32>
    %c6_627 = arith.constant 6 : index
    %c5_628 = arith.constant 5 : index
    %774 = memref.load %arg7[%c6_627, %c5_628] : memref<8x8xf32, #tpu.memory_space<smem>>
    %775 = vector.broadcast %774 : f32 to vector<8x8x8xf32>
    %776 = arith.mulf %773, %775 : vector<8x8x8xf32>
    %777 = arith.addf %770, %776 : vector<8x8x8xf32>
    %c0_629 = arith.constant 0 : index
    %c6_630 = arith.constant 6 : index
    %778 = arith.index_cast %1 : i32 to index
    %c0_631 = arith.constant 0 : index
    %c0_632 = arith.constant 0 : index
    %779 = vector.load %arg2[%c0_629, %c6_630, %778, %c0_631, %c0_632] : memref<1x8x8x8x8xf32, #tpu.memory_space<vmem>>, vector<1x1x8x8x8xf32>
    %780 = vector.shape_cast %779 : vector<1x1x8x8x8xf32> to vector<8x8x8xf32>
    %c6_633 = arith.constant 6 : index
    %c6_634 = arith.constant 6 : index
    %781 = memref.load %arg7[%c6_633, %c6_634] : memref<8x8xf32, #tpu.memory_space<smem>>
    %782 = vector.broadcast %781 : f32 to vector<8x8x8xf32>
    %783 = arith.mulf %780, %782 : vector<8x8x8xf32>
    %784 = arith.addf %777, %783 : vector<8x8x8xf32>
    %c0_635 = arith.constant 0 : index
    %c7_636 = arith.constant 7 : index
    %785 = arith.index_cast %1 : i32 to index
    %c0_637 = arith.constant 0 : index
    %c0_638 = arith.constant 0 : index
    %786 = vector.load %arg2[%c0_635, %c7_636, %785, %c0_637, %c0_638] : memref<1x8x8x8x8xf32, #tpu.memory_space<vmem>>, vector<1x1x8x8x8xf32>
    %787 = vector.shape_cast %786 : vector<1x1x8x8x8xf32> to vector<8x8x8xf32>
    %c6_639 = arith.constant 6 : index
    %c7_640 = arith.constant 7 : index
    %788 = memref.load %arg7[%c6_639, %c7_640] : memref<8x8xf32, #tpu.memory_space<smem>>
    %789 = vector.broadcast %788 : f32 to vector<8x8x8xf32>
    %790 = arith.mulf %787, %789 : vector<8x8x8xf32>
    %791 = arith.addf %784, %790 : vector<8x8x8xf32>
    %c0_641 = arith.constant 0 : index
    %c0_642 = arith.constant 0 : index
    %792 = arith.index_cast %1 : i32 to index
    %c0_643 = arith.constant 0 : index
    %c0_644 = arith.constant 0 : index
    %793 = vector.load %arg3[%c0_641, %c0_642, %792, %c0_643, %c0_644] : memref<1x8x8x8x8xf32, #tpu.memory_space<vmem>>, vector<1x1x8x8x8xf32>
    %794 = vector.shape_cast %793 : vector<1x1x8x8x8xf32> to vector<8x8x8xf32>
    %c6_645 = arith.constant 6 : index
    %c0_646 = arith.constant 0 : index
    %795 = memref.load %arg8[%c6_645, %c0_646] : memref<8x8xf32, #tpu.memory_space<smem>>
    %796 = vector.broadcast %795 : f32 to vector<8x8x8xf32>
    %797 = arith.mulf %794, %796 : vector<8x8x8xf32>
    %798 = arith.addf %791, %797 : vector<8x8x8xf32>
    %c0_647 = arith.constant 0 : index
    %c1_648 = arith.constant 1 : index
    %799 = arith.index_cast %1 : i32 to index
    %c0_649 = arith.constant 0 : index
    %c0_650 = arith.constant 0 : index
    %800 = vector.load %arg3[%c0_647, %c1_648, %799, %c0_649, %c0_650] : memref<1x8x8x8x8xf32, #tpu.memory_space<vmem>>, vector<1x1x8x8x8xf32>
    %801 = vector.shape_cast %800 : vector<1x1x8x8x8xf32> to vector<8x8x8xf32>
    %c6_651 = arith.constant 6 : index
    %c1_652 = arith.constant 1 : index
    %802 = memref.load %arg8[%c6_651, %c1_652] : memref<8x8xf32, #tpu.memory_space<smem>>
    %803 = vector.broadcast %802 : f32 to vector<8x8x8xf32>
    %804 = arith.mulf %801, %803 : vector<8x8x8xf32>
    %805 = arith.addf %798, %804 : vector<8x8x8xf32>
    %c0_653 = arith.constant 0 : index
    %c2_654 = arith.constant 2 : index
    %806 = arith.index_cast %1 : i32 to index
    %c0_655 = arith.constant 0 : index
    %c0_656 = arith.constant 0 : index
    %807 = vector.load %arg3[%c0_653, %c2_654, %806, %c0_655, %c0_656] : memref<1x8x8x8x8xf32, #tpu.memory_space<vmem>>, vector<1x1x8x8x8xf32>
    %808 = vector.shape_cast %807 : vector<1x1x8x8x8xf32> to vector<8x8x8xf32>
    %c6_657 = arith.constant 6 : index
    %c2_658 = arith.constant 2 : index
    %809 = memref.load %arg8[%c6_657, %c2_658] : memref<8x8xf32, #tpu.memory_space<smem>>
    %810 = vector.broadcast %809 : f32 to vector<8x8x8xf32>
    %811 = arith.mulf %808, %810 : vector<8x8x8xf32>
    %812 = arith.addf %805, %811 : vector<8x8x8xf32>
    %c0_659 = arith.constant 0 : index
    %c3_660 = arith.constant 3 : index
    %813 = arith.index_cast %1 : i32 to index
    %c0_661 = arith.constant 0 : index
    %c0_662 = arith.constant 0 : index
    %814 = vector.load %arg3[%c0_659, %c3_660, %813, %c0_661, %c0_662] : memref<1x8x8x8x8xf32, #tpu.memory_space<vmem>>, vector<1x1x8x8x8xf32>
    %815 = vector.shape_cast %814 : vector<1x1x8x8x8xf32> to vector<8x8x8xf32>
    %c6_663 = arith.constant 6 : index
    %c3_664 = arith.constant 3 : index
    %816 = memref.load %arg8[%c6_663, %c3_664] : memref<8x8xf32, #tpu.memory_space<smem>>
    %817 = vector.broadcast %816 : f32 to vector<8x8x8xf32>
    %818 = arith.mulf %815, %817 : vector<8x8x8xf32>
    %819 = arith.addf %812, %818 : vector<8x8x8xf32>
    %c0_665 = arith.constant 0 : index
    %c4_666 = arith.constant 4 : index
    %820 = arith.index_cast %1 : i32 to index
    %c0_667 = arith.constant 0 : index
    %c0_668 = arith.constant 0 : index
    %821 = vector.load %arg3[%c0_665, %c4_666, %820, %c0_667, %c0_668] : memref<1x8x8x8x8xf32, #tpu.memory_space<vmem>>, vector<1x1x8x8x8xf32>
    %822 = vector.shape_cast %821 : vector<1x1x8x8x8xf32> to vector<8x8x8xf32>
    %c6_669 = arith.constant 6 : index
    %c4_670 = arith.constant 4 : index
    %823 = memref.load %arg8[%c6_669, %c4_670] : memref<8x8xf32, #tpu.memory_space<smem>>
    %824 = vector.broadcast %823 : f32 to vector<8x8x8xf32>
    %825 = arith.mulf %822, %824 : vector<8x8x8xf32>
    %826 = arith.addf %819, %825 : vector<8x8x8xf32>
    %c0_671 = arith.constant 0 : index
    %c5_672 = arith.constant 5 : index
    %827 = arith.index_cast %1 : i32 to index
    %c0_673 = arith.constant 0 : index
    %c0_674 = arith.constant 0 : index
    %828 = vector.load %arg3[%c0_671, %c5_672, %827, %c0_673, %c0_674] : memref<1x8x8x8x8xf32, #tpu.memory_space<vmem>>, vector<1x1x8x8x8xf32>
    %829 = vector.shape_cast %828 : vector<1x1x8x8x8xf32> to vector<8x8x8xf32>
    %c6_675 = arith.constant 6 : index
    %c5_676 = arith.constant 5 : index
    %830 = memref.load %arg8[%c6_675, %c5_676] : memref<8x8xf32, #tpu.memory_space<smem>>
    %831 = vector.broadcast %830 : f32 to vector<8x8x8xf32>
    %832 = arith.mulf %829, %831 : vector<8x8x8xf32>
    %833 = arith.addf %826, %832 : vector<8x8x8xf32>
    %c0_677 = arith.constant 0 : index
    %c6_678 = arith.constant 6 : index
    %834 = arith.index_cast %1 : i32 to index
    %c0_679 = arith.constant 0 : index
    %c0_680 = arith.constant 0 : index
    %835 = vector.load %arg3[%c0_677, %c6_678, %834, %c0_679, %c0_680] : memref<1x8x8x8x8xf32, #tpu.memory_space<vmem>>, vector<1x1x8x8x8xf32>
    %836 = vector.shape_cast %835 : vector<1x1x8x8x8xf32> to vector<8x8x8xf32>
    %c6_681 = arith.constant 6 : index
    %c6_682 = arith.constant 6 : index
    %837 = memref.load %arg8[%c6_681, %c6_682] : memref<8x8xf32, #tpu.memory_space<smem>>
    %838 = vector.broadcast %837 : f32 to vector<8x8x8xf32>
    %839 = arith.mulf %836, %838 : vector<8x8x8xf32>
    %840 = arith.addf %833, %839 : vector<8x8x8xf32>
    %c0_683 = arith.constant 0 : index
    %c7_684 = arith.constant 7 : index
    %841 = arith.index_cast %1 : i32 to index
    %c0_685 = arith.constant 0 : index
    %c0_686 = arith.constant 0 : index
    %842 = vector.load %arg3[%c0_683, %c7_684, %841, %c0_685, %c0_686] : memref<1x8x8x8x8xf32, #tpu.memory_space<vmem>>, vector<1x1x8x8x8xf32>
    %843 = vector.shape_cast %842 : vector<1x1x8x8x8xf32> to vector<8x8x8xf32>
    %c6_687 = arith.constant 6 : index
    %c7_688 = arith.constant 7 : index
    %844 = memref.load %arg8[%c6_687, %c7_688] : memref<8x8xf32, #tpu.memory_space<smem>>
    %845 = vector.broadcast %844 : f32 to vector<8x8x8xf32>
    %846 = arith.mulf %843, %845 : vector<8x8x8xf32>
    %847 = arith.addf %840, %846 : vector<8x8x8xf32>
    %c6_689 = arith.constant 6 : index
    %848 = memref.load %arg9[%c6_689] : memref<8xf32, #tpu.memory_space<smem>>
    %849 = vector.broadcast %848 : f32 to vector<8x8x8xf32>
    %850 = arith.addf %847, %849 : vector<8x8x8xf32>
    %cst_690 = arith.constant 0.000000e+00 : f32
    %851 = vector.broadcast %cst_690 : f32 to vector<8x8x8xf32>
    %852 = arith.maximumf %850, %851 : vector<8x8x8xf32>
    %c6_691 = arith.constant 6 : index
    %853 = memref.load %arg10[%c6_691] : memref<8xf32, #tpu.memory_space<smem>>
    %854 = vector.broadcast %853 : f32 to vector<8x8x8xf32>
    %855 = arith.mulf %852, %854 : vector<8x8x8xf32>
    %856 = arith.addf %734, %855 : vector<8x8x8xf32>
    %cst_692 = arith.constant 0.000000e+00 : f32
    %857 = vector.broadcast %cst_692 : f32 to vector<8x8x8xf32>
    %c0_693 = arith.constant 0 : index
    %c0_694 = arith.constant 0 : index
    %858 = arith.index_cast %1 : i32 to index
    %c0_695 = arith.constant 0 : index
    %c0_696 = arith.constant 0 : index
    %859 = vector.load %arg2[%c0_693, %c0_694, %858, %c0_695, %c0_696] : memref<1x8x8x8x8xf32, #tpu.memory_space<vmem>>, vector<1x1x8x8x8xf32>
    %860 = vector.shape_cast %859 : vector<1x1x8x8x8xf32> to vector<8x8x8xf32>
    %c7_697 = arith.constant 7 : index
    %c0_698 = arith.constant 0 : index
    %861 = memref.load %arg7[%c7_697, %c0_698] : memref<8x8xf32, #tpu.memory_space<smem>>
    %862 = vector.broadcast %861 : f32 to vector<8x8x8xf32>
    %863 = arith.mulf %860, %862 : vector<8x8x8xf32>
    %864 = arith.addf %857, %863 : vector<8x8x8xf32>
    %c0_699 = arith.constant 0 : index
    %c1_700 = arith.constant 1 : index
    %865 = arith.index_cast %1 : i32 to index
    %c0_701 = arith.constant 0 : index
    %c0_702 = arith.constant 0 : index
    %866 = vector.load %arg2[%c0_699, %c1_700, %865, %c0_701, %c0_702] : memref<1x8x8x8x8xf32, #tpu.memory_space<vmem>>, vector<1x1x8x8x8xf32>
    %867 = vector.shape_cast %866 : vector<1x1x8x8x8xf32> to vector<8x8x8xf32>
    %c7_703 = arith.constant 7 : index
    %c1_704 = arith.constant 1 : index
    %868 = memref.load %arg7[%c7_703, %c1_704] : memref<8x8xf32, #tpu.memory_space<smem>>
    %869 = vector.broadcast %868 : f32 to vector<8x8x8xf32>
    %870 = arith.mulf %867, %869 : vector<8x8x8xf32>
    %871 = arith.addf %864, %870 : vector<8x8x8xf32>
    %c0_705 = arith.constant 0 : index
    %c2_706 = arith.constant 2 : index
    %872 = arith.index_cast %1 : i32 to index
    %c0_707 = arith.constant 0 : index
    %c0_708 = arith.constant 0 : index
    %873 = vector.load %arg2[%c0_705, %c2_706, %872, %c0_707, %c0_708] : memref<1x8x8x8x8xf32, #tpu.memory_space<vmem>>, vector<1x1x8x8x8xf32>
    %874 = vector.shape_cast %873 : vector<1x1x8x8x8xf32> to vector<8x8x8xf32>
    %c7_709 = arith.constant 7 : index
    %c2_710 = arith.constant 2 : index
    %875 = memref.load %arg7[%c7_709, %c2_710] : memref<8x8xf32, #tpu.memory_space<smem>>
    %876 = vector.broadcast %875 : f32 to vector<8x8x8xf32>
    %877 = arith.mulf %874, %876 : vector<8x8x8xf32>
    %878 = arith.addf %871, %877 : vector<8x8x8xf32>
    %c0_711 = arith.constant 0 : index
    %c3_712 = arith.constant 3 : index
    %879 = arith.index_cast %1 : i32 to index
    %c0_713 = arith.constant 0 : index
    %c0_714 = arith.constant 0 : index
    %880 = vector.load %arg2[%c0_711, %c3_712, %879, %c0_713, %c0_714] : memref<1x8x8x8x8xf32, #tpu.memory_space<vmem>>, vector<1x1x8x8x8xf32>
    %881 = vector.shape_cast %880 : vector<1x1x8x8x8xf32> to vector<8x8x8xf32>
    %c7_715 = arith.constant 7 : index
    %c3_716 = arith.constant 3 : index
    %882 = memref.load %arg7[%c7_715, %c3_716] : memref<8x8xf32, #tpu.memory_space<smem>>
    %883 = vector.broadcast %882 : f32 to vector<8x8x8xf32>
    %884 = arith.mulf %881, %883 : vector<8x8x8xf32>
    %885 = arith.addf %878, %884 : vector<8x8x8xf32>
    %c0_717 = arith.constant 0 : index
    %c4_718 = arith.constant 4 : index
    %886 = arith.index_cast %1 : i32 to index
    %c0_719 = arith.constant 0 : index
    %c0_720 = arith.constant 0 : index
    %887 = vector.load %arg2[%c0_717, %c4_718, %886, %c0_719, %c0_720] : memref<1x8x8x8x8xf32, #tpu.memory_space<vmem>>, vector<1x1x8x8x8xf32>
    %888 = vector.shape_cast %887 : vector<1x1x8x8x8xf32> to vector<8x8x8xf32>
    %c7_721 = arith.constant 7 : index
    %c4_722 = arith.constant 4 : index
    %889 = memref.load %arg7[%c7_721, %c4_722] : memref<8x8xf32, #tpu.memory_space<smem>>
    %890 = vector.broadcast %889 : f32 to vector<8x8x8xf32>
    %891 = arith.mulf %888, %890 : vector<8x8x8xf32>
    %892 = arith.addf %885, %891 : vector<8x8x8xf32>
    %c0_723 = arith.constant 0 : index
    %c5_724 = arith.constant 5 : index
    %893 = arith.index_cast %1 : i32 to index
    %c0_725 = arith.constant 0 : index
    %c0_726 = arith.constant 0 : index
    %894 = vector.load %arg2[%c0_723, %c5_724, %893, %c0_725, %c0_726] : memref<1x8x8x8x8xf32, #tpu.memory_space<vmem>>, vector<1x1x8x8x8xf32>
    %895 = vector.shape_cast %894 : vector<1x1x8x8x8xf32> to vector<8x8x8xf32>
    %c7_727 = arith.constant 7 : index
    %c5_728 = arith.constant 5 : index
    %896 = memref.load %arg7[%c7_727, %c5_728] : memref<8x8xf32, #tpu.memory_space<smem>>
    %897 = vector.broadcast %896 : f32 to vector<8x8x8xf32>
    %898 = arith.mulf %895, %897 : vector<8x8x8xf32>
    %899 = arith.addf %892, %898 : vector<8x8x8xf32>
    %c0_729 = arith.constant 0 : index
    %c6_730 = arith.constant 6 : index
    %900 = arith.index_cast %1 : i32 to index
    %c0_731 = arith.constant 0 : index
    %c0_732 = arith.constant 0 : index
    %901 = vector.load %arg2[%c0_729, %c6_730, %900, %c0_731, %c0_732] : memref<1x8x8x8x8xf32, #tpu.memory_space<vmem>>, vector<1x1x8x8x8xf32>
    %902 = vector.shape_cast %901 : vector<1x1x8x8x8xf32> to vector<8x8x8xf32>
    %c7_733 = arith.constant 7 : index
    %c6_734 = arith.constant 6 : index
    %903 = memref.load %arg7[%c7_733, %c6_734] : memref<8x8xf32, #tpu.memory_space<smem>>
    %904 = vector.broadcast %903 : f32 to vector<8x8x8xf32>
    %905 = arith.mulf %902, %904 : vector<8x8x8xf32>
    %906 = arith.addf %899, %905 : vector<8x8x8xf32>
    %c0_735 = arith.constant 0 : index
    %c7_736 = arith.constant 7 : index
    %907 = arith.index_cast %1 : i32 to index
    %c0_737 = arith.constant 0 : index
    %c0_738 = arith.constant 0 : index
    %908 = vector.load %arg2[%c0_735, %c7_736, %907, %c0_737, %c0_738] : memref<1x8x8x8x8xf32, #tpu.memory_space<vmem>>, vector<1x1x8x8x8xf32>
    %909 = vector.shape_cast %908 : vector<1x1x8x8x8xf32> to vector<8x8x8xf32>
    %c7_739 = arith.constant 7 : index
    %c7_740 = arith.constant 7 : index
    %910 = memref.load %arg7[%c7_739, %c7_740] : memref<8x8xf32, #tpu.memory_space<smem>>
    %911 = vector.broadcast %910 : f32 to vector<8x8x8xf32>
    %912 = arith.mulf %909, %911 : vector<8x8x8xf32>
    %913 = arith.addf %906, %912 : vector<8x8x8xf32>
    %c0_741 = arith.constant 0 : index
    %c0_742 = arith.constant 0 : index
    %914 = arith.index_cast %1 : i32 to index
    %c0_743 = arith.constant 0 : index
    %c0_744 = arith.constant 0 : index
    %915 = vector.load %arg3[%c0_741, %c0_742, %914, %c0_743, %c0_744] : memref<1x8x8x8x8xf32, #tpu.memory_space<vmem>>, vector<1x1x8x8x8xf32>
    %916 = vector.shape_cast %915 : vector<1x1x8x8x8xf32> to vector<8x8x8xf32>
    %c7_745 = arith.constant 7 : index
    %c0_746 = arith.constant 0 : index
    %917 = memref.load %arg8[%c7_745, %c0_746] : memref<8x8xf32, #tpu.memory_space<smem>>
    %918 = vector.broadcast %917 : f32 to vector<8x8x8xf32>
    %919 = arith.mulf %916, %918 : vector<8x8x8xf32>
    %920 = arith.addf %913, %919 : vector<8x8x8xf32>
    %c0_747 = arith.constant 0 : index
    %c1_748 = arith.constant 1 : index
    %921 = arith.index_cast %1 : i32 to index
    %c0_749 = arith.constant 0 : index
    %c0_750 = arith.constant 0 : index
    %922 = vector.load %arg3[%c0_747, %c1_748, %921, %c0_749, %c0_750] : memref<1x8x8x8x8xf32, #tpu.memory_space<vmem>>, vector<1x1x8x8x8xf32>
    %923 = vector.shape_cast %922 : vector<1x1x8x8x8xf32> to vector<8x8x8xf32>
    %c7_751 = arith.constant 7 : index
    %c1_752 = arith.constant 1 : index
    %924 = memref.load %arg8[%c7_751, %c1_752] : memref<8x8xf32, #tpu.memory_space<smem>>
    %925 = vector.broadcast %924 : f32 to vector<8x8x8xf32>
    %926 = arith.mulf %923, %925 : vector<8x8x8xf32>
    %927 = arith.addf %920, %926 : vector<8x8x8xf32>
    %c0_753 = arith.constant 0 : index
    %c2_754 = arith.constant 2 : index
    %928 = arith.index_cast %1 : i32 to index
    %c0_755 = arith.constant 0 : index
    %c0_756 = arith.constant 0 : index
    %929 = vector.load %arg3[%c0_753, %c2_754, %928, %c0_755, %c0_756] : memref<1x8x8x8x8xf32, #tpu.memory_space<vmem>>, vector<1x1x8x8x8xf32>
    %930 = vector.shape_cast %929 : vector<1x1x8x8x8xf32> to vector<8x8x8xf32>
    %c7_757 = arith.constant 7 : index
    %c2_758 = arith.constant 2 : index
    %931 = memref.load %arg8[%c7_757, %c2_758] : memref<8x8xf32, #tpu.memory_space<smem>>
    %932 = vector.broadcast %931 : f32 to vector<8x8x8xf32>
    %933 = arith.mulf %930, %932 : vector<8x8x8xf32>
    %934 = arith.addf %927, %933 : vector<8x8x8xf32>
    %c0_759 = arith.constant 0 : index
    %c3_760 = arith.constant 3 : index
    %935 = arith.index_cast %1 : i32 to index
    %c0_761 = arith.constant 0 : index
    %c0_762 = arith.constant 0 : index
    %936 = vector.load %arg3[%c0_759, %c3_760, %935, %c0_761, %c0_762] : memref<1x8x8x8x8xf32, #tpu.memory_space<vmem>>, vector<1x1x8x8x8xf32>
    %937 = vector.shape_cast %936 : vector<1x1x8x8x8xf32> to vector<8x8x8xf32>
    %c7_763 = arith.constant 7 : index
    %c3_764 = arith.constant 3 : index
    %938 = memref.load %arg8[%c7_763, %c3_764] : memref<8x8xf32, #tpu.memory_space<smem>>
    %939 = vector.broadcast %938 : f32 to vector<8x8x8xf32>
    %940 = arith.mulf %937, %939 : vector<8x8x8xf32>
    %941 = arith.addf %934, %940 : vector<8x8x8xf32>
    %c0_765 = arith.constant 0 : index
    %c4_766 = arith.constant 4 : index
    %942 = arith.index_cast %1 : i32 to index
    %c0_767 = arith.constant 0 : index
    %c0_768 = arith.constant 0 : index
    %943 = vector.load %arg3[%c0_765, %c4_766, %942, %c0_767, %c0_768] : memref<1x8x8x8x8xf32, #tpu.memory_space<vmem>>, vector<1x1x8x8x8xf32>
    %944 = vector.shape_cast %943 : vector<1x1x8x8x8xf32> to vector<8x8x8xf32>
    %c7_769 = arith.constant 7 : index
    %c4_770 = arith.constant 4 : index
    %945 = memref.load %arg8[%c7_769, %c4_770] : memref<8x8xf32, #tpu.memory_space<smem>>
    %946 = vector.broadcast %945 : f32 to vector<8x8x8xf32>
    %947 = arith.mulf %944, %946 : vector<8x8x8xf32>
    %948 = arith.addf %941, %947 : vector<8x8x8xf32>
    %c0_771 = arith.constant 0 : index
    %c5_772 = arith.constant 5 : index
    %949 = arith.index_cast %1 : i32 to index
    %c0_773 = arith.constant 0 : index
    %c0_774 = arith.constant 0 : index
    %950 = vector.load %arg3[%c0_771, %c5_772, %949, %c0_773, %c0_774] : memref<1x8x8x8x8xf32, #tpu.memory_space<vmem>>, vector<1x1x8x8x8xf32>
    %951 = vector.shape_cast %950 : vector<1x1x8x8x8xf32> to vector<8x8x8xf32>
    %c7_775 = arith.constant 7 : index
    %c5_776 = arith.constant 5 : index
    %952 = memref.load %arg8[%c7_775, %c5_776] : memref<8x8xf32, #tpu.memory_space<smem>>
    %953 = vector.broadcast %952 : f32 to vector<8x8x8xf32>
    %954 = arith.mulf %951, %953 : vector<8x8x8xf32>
    %955 = arith.addf %948, %954 : vector<8x8x8xf32>
    %c0_777 = arith.constant 0 : index
    %c6_778 = arith.constant 6 : index
    %956 = arith.index_cast %1 : i32 to index
    %c0_779 = arith.constant 0 : index
    %c0_780 = arith.constant 0 : index
    %957 = vector.load %arg3[%c0_777, %c6_778, %956, %c0_779, %c0_780] : memref<1x8x8x8x8xf32, #tpu.memory_space<vmem>>, vector<1x1x8x8x8xf32>
    %958 = vector.shape_cast %957 : vector<1x1x8x8x8xf32> to vector<8x8x8xf32>
    %c7_781 = arith.constant 7 : index
    %c6_782 = arith.constant 6 : index
    %959 = memref.load %arg8[%c7_781, %c6_782] : memref<8x8xf32, #tpu.memory_space<smem>>
    %960 = vector.broadcast %959 : f32 to vector<8x8x8xf32>
    %961 = arith.mulf %958, %960 : vector<8x8x8xf32>
    %962 = arith.addf %955, %961 : vector<8x8x8xf32>
    %c0_783 = arith.constant 0 : index
    %c7_784 = arith.constant 7 : index
    %963 = arith.index_cast %1 : i32 to index
    %c0_785 = arith.constant 0 : index
    %c0_786 = arith.constant 0 : index
    %964 = vector.load %arg3[%c0_783, %c7_784, %963, %c0_785, %c0_786] : memref<1x8x8x8x8xf32, #tpu.memory_space<vmem>>, vector<1x1x8x8x8xf32>
    %965 = vector.shape_cast %964 : vector<1x1x8x8x8xf32> to vector<8x8x8xf32>
    %c7_787 = arith.constant 7 : index
    %c7_788 = arith.constant 7 : index
    %966 = memref.load %arg8[%c7_787, %c7_788] : memref<8x8xf32, #tpu.memory_space<smem>>
    %967 = vector.broadcast %966 : f32 to vector<8x8x8xf32>
    %968 = arith.mulf %965, %967 : vector<8x8x8xf32>
    %969 = arith.addf %962, %968 : vector<8x8x8xf32>
    %c7_789 = arith.constant 7 : index
    %970 = memref.load %arg9[%c7_789] : memref<8xf32, #tpu.memory_space<smem>>
    %971 = vector.broadcast %970 : f32 to vector<8x8x8xf32>
    %972 = arith.addf %969, %971 : vector<8x8x8xf32>
    %cst_790 = arith.constant 0.000000e+00 : f32
    %973 = vector.broadcast %cst_790 : f32 to vector<8x8x8xf32>
    %974 = arith.maximumf %972, %973 : vector<8x8x8xf32>
    %c7_791 = arith.constant 7 : index
    %975 = memref.load %arg10[%c7_791] : memref<8xf32, #tpu.memory_space<smem>>
    %976 = vector.broadcast %975 : f32 to vector<8x8x8xf32>
    %977 = arith.mulf %974, %976 : vector<8x8x8xf32>
    %978 = arith.addf %856, %977 : vector<8x8x8xf32>
    %c0_792 = arith.constant 0 : index
    %979 = memref.load %arg11[%c0_792] : memref<1xf32, #tpu.memory_space<smem>>
    %980 = vector.broadcast %979 : f32 to vector<8x8x8xf32>
    %981 = arith.addf %978, %980 : vector<8x8x8xf32>
    %982 = arith.negf %981 : vector<8x8x8xf32>
    %983 = math.exp %982 : vector<8x8x8xf32>
    %cst_793 = arith.constant 1.000000e+00 : f32
    %984 = vector.broadcast %cst_793 : f32 to vector<8x8x8xf32>
    %985 = arith.addf %984, %983 : vector<8x8x8xf32>
    %986 = arith.divf %984, %985 : vector<8x8x8xf32>
    %987 = arith.index_cast %1 : i32 to index
    %c0_794 = arith.constant 0 : index
    %c0_795 = arith.constant 0 : index
    %988 = vector.load %arg13[%987, %c0_794, %c0_795] : memref<8x8x8xf32, #tpu.memory_space<vmem>>, vector<8x8x8xf32>
    tpu.vector_store %arg13[%987, %c0_794, %c0_795], %986 {strides = array<i32>} : memref<8x8x8xf32, #tpu.memory_space<vmem>>, vector<8x8x8xf32>,
    %c1_i32 = arith.constant 1 : i32
    %c0_796 = arith.constant 0 : index
    %c0_797 = arith.constant 0 : index
    %989 = vector.load %arg5[%c0_796, %c0_797] : memref<8x16xf32, #tpu.memory_space<vmem>>, vector<8x16xf32>
    %c0_798 = arith.constant 0 : index
    %c0_799 = arith.constant 0 : index
    %c0_800 = arith.constant 0 : index
    %990 = vector.load %arg13[%c0_798, %c0_799, %c0_800] : memref<8x8x8xf32, #tpu.memory_space<vmem>>, vector<8x1x8xf32>
    %991 = vector.shape_cast %990 : vector<8x1x8xf32> to vector<8x8xf32>
    %cst_801 = arith.constant 1.000000e+00 : f32
    %992 = vector.broadcast %cst_801 : f32 to vector<8x8xf32>
    %993 = arith.mulf %991, %992 : vector<8x8xf32>
    %cst_802 = arith.constant dense<0.000000e+00> : vector<8x16xf32>
    %994 = tpu.matmul %993, %989, %cst_802 {dimension_numbers = #tpu.dot_dimension_numbers<[1], [0], [0], [1], [0, 0, 1, 1], [], []>} : vector<8x8xf32>, vector<8x16xf32>, vector<8x16xf32> -> vector<8x16xf32>
    %c0_803 = arith.constant 0 : index
    %c0_804 = arith.constant 0 : index
    %c0_805 = arith.constant 0 : index
    %995 = vector.load %arg13[%c0_803, %c0_804, %c0_805] : memref<8x8x8xf32, #tpu.memory_space<vmem>>, vector<8x1x8xf32>
    %996 = vector.shape_cast %995 : vector<8x1x8xf32> to vector<8x8xf32>
    %cst_806 = arith.constant 7.500000e-01 : f32
    %997 = vector.broadcast %cst_806 : f32 to vector<8x8xf32>
    %998 = arith.mulf %996, %997 : vector<8x8xf32>
    %c0_807 = arith.constant 0 : index
    %c1_808 = arith.constant 1 : index
    %c0_809 = arith.constant 0 : index
    %999 = vector.load %arg13[%c0_807, %c1_808, %c0_809] : memref<8x8x8xf32, #tpu.memory_space<vmem>>, vector<8x1x8xf32>
    %1000 = vector.shape_cast %999 : vector<8x1x8xf32> to vector<8x8xf32>
    %cst_810 = arith.constant 2.500000e-01 : f32
    %1001 = vector.broadcast %cst_810 : f32 to vector<8x8xf32>
    %1002 = arith.mulf %1000, %1001 : vector<8x8xf32>
    %1003 = arith.addf %998, %1002 : vector<8x8xf32>
    %cst_811 = arith.constant dense<0.000000e+00> : vector<8x16xf32>
    %1004 = tpu.matmul %1003, %989, %cst_811 {dimension_numbers = #tpu.dot_dimension_numbers<[1], [0], [0], [1], [0, 0, 1, 1], [], []>} : vector<8x8xf32>, vector<8x16xf32>, vector<8x16xf32> -> vector<8x16xf32>
    %c0_812 = arith.constant 0 : index
    %c0_813 = arith.constant 0 : index
    %c0_814 = arith.constant 0 : index
    %1005 = vector.load %arg13[%c0_812, %c0_813, %c0_814] : memref<8x8x8xf32, #tpu.memory_space<vmem>>, vector<8x1x8xf32>
    %1006 = vector.shape_cast %1005 : vector<8x1x8xf32> to vector<8x8xf32>
    %cst_815 = arith.constant 2.500000e-01 : f32
    %1007 = vector.broadcast %cst_815 : f32 to vector<8x8xf32>
    %1008 = arith.mulf %1006, %1007 : vector<8x8xf32>
    %c0_816 = arith.constant 0 : index
    %c1_817 = arith.constant 1 : index
    %c0_818 = arith.constant 0 : index
    %1009 = vector.load %arg13[%c0_816, %c1_817, %c0_818] : memref<8x8x8xf32, #tpu.memory_space<vmem>>, vector<8x1x8xf32>
    %1010 = vector.shape_cast %1009 : vector<8x1x8xf32> to vector<8x8xf32>
    %cst_819 = arith.constant 7.500000e-01 : f32
    %1011 = vector.broadcast %cst_819 : f32 to vector<8x8xf32>
    %1012 = arith.mulf %1010, %1011 : vector<8x8xf32>
    %1013 = arith.addf %1008, %1012 : vector<8x8xf32>
    %cst_820 = arith.constant dense<0.000000e+00> : vector<8x16xf32>
    %1014 = tpu.matmul %1013, %989, %cst_820 {dimension_numbers = #tpu.dot_dimension_numbers<[1], [0], [0], [1], [0, 0, 1, 1], [], []>} : vector<8x8xf32>, vector<8x16xf32>, vector<8x16xf32> -> vector<8x16xf32>
    %c0_821 = arith.constant 0 : index
    %c1_822 = arith.constant 1 : index
    %c0_823 = arith.constant 0 : index
    %1015 = vector.load %arg13[%c0_821, %c1_822, %c0_823] : memref<8x8x8xf32, #tpu.memory_space<vmem>>, vector<8x1x8xf32>
    %1016 = vector.shape_cast %1015 : vector<8x1x8xf32> to vector<8x8xf32>
    %cst_824 = arith.constant 7.500000e-01 : f32
    %1017 = vector.broadcast %cst_824 : f32 to vector<8x8xf32>
    %1018 = arith.mulf %1016, %1017 : vector<8x8xf32>
    %c0_825 = arith.constant 0 : index
    %c2_826 = arith.constant 2 : index
    %c0_827 = arith.constant 0 : index
    %1019 = vector.load %arg13[%c0_825, %c2_826, %c0_827] : memref<8x8x8xf32, #tpu.memory_space<vmem>>, vector<8x1x8xf32>
    %1020 = vector.shape_cast %1019 : vector<8x1x8xf32> to vector<8x8xf32>
    %cst_828 = arith.constant 2.500000e-01 : f32
    %1021 = vector.broadcast %cst_828 : f32 to vector<8x8xf32>
    %1022 = arith.mulf %1020, %1021 : vector<8x8xf32>
    %1023 = arith.addf %1018, %1022 : vector<8x8xf32>
    %cst_829 = arith.constant dense<0.000000e+00> : vector<8x16xf32>
    %1024 = tpu.matmul %1023, %989, %cst_829 {dimension_numbers = #tpu.dot_dimension_numbers<[1], [0], [0], [1], [0, 0, 1, 1], [], []>} : vector<8x8xf32>, vector<8x16xf32>, vector<8x16xf32> -> vector<8x16xf32>
    %c0_830 = arith.constant 0 : index
    %c1_831 = arith.constant 1 : index
    %c0_832 = arith.constant 0 : index
    %1025 = vector.load %arg13[%c0_830, %c1_831, %c0_832] : memref<8x8x8xf32, #tpu.memory_space<vmem>>, vector<8x1x8xf32>
    %1026 = vector.shape_cast %1025 : vector<8x1x8xf32> to vector<8x8xf32>
    %cst_833 = arith.constant 2.500000e-01 : f32
    %1027 = vector.broadcast %cst_833 : f32 to vector<8x8xf32>
    %1028 = arith.mulf %1026, %1027 : vector<8x8xf32>
    %c0_834 = arith.constant 0 : index
    %c2_835 = arith.constant 2 : index
    %c0_836 = arith.constant 0 : index
    %1029 = vector.load %arg13[%c0_834, %c2_835, %c0_836] : memref<8x8x8xf32, #tpu.memory_space<vmem>>, vector<8x1x8xf32>
    %1030 = vector.shape_cast %1029 : vector<8x1x8xf32> to vector<8x8xf32>
    %cst_837 = arith.constant 7.500000e-01 : f32
    %1031 = vector.broadcast %cst_837 : f32 to vector<8x8xf32>
    %1032 = arith.mulf %1030, %1031 : vector<8x8xf32>
    %1033 = arith.addf %1028, %1032 : vector<8x8xf32>
    %cst_838 = arith.constant dense<0.000000e+00> : vector<8x16xf32>
    %1034 = tpu.matmul %1033, %989, %cst_838 {dimension_numbers = #tpu.dot_dimension_numbers<[1], [0], [0], [1], [0, 0, 1, 1], [], []>} : vector<8x8xf32>, vector<8x16xf32>, vector<8x16xf32> -> vector<8x16xf32>
    %c0_839 = arith.constant 0 : index
    %c2_840 = arith.constant 2 : index
    %c0_841 = arith.constant 0 : index
    %1035 = vector.load %arg13[%c0_839, %c2_840, %c0_841] : memref<8x8x8xf32, #tpu.memory_space<vmem>>, vector<8x1x8xf32>
    %1036 = vector.shape_cast %1035 : vector<8x1x8xf32> to vector<8x8xf32>
    %cst_842 = arith.constant 7.500000e-01 : f32
    %1037 = vector.broadcast %cst_842 : f32 to vector<8x8xf32>
    %1038 = arith.mulf %1036, %1037 : vector<8x8xf32>
    %c0_843 = arith.constant 0 : index
    %c3_844 = arith.constant 3 : index
    %c0_845 = arith.constant 0 : index
    %1039 = vector.load %arg13[%c0_843, %c3_844, %c0_845] : memref<8x8x8xf32, #tpu.memory_space<vmem>>, vector<8x1x8xf32>
    %1040 = vector.shape_cast %1039 : vector<8x1x8xf32> to vector<8x8xf32>
    %cst_846 = arith.constant 2.500000e-01 : f32
    %1041 = vector.broadcast %cst_846 : f32 to vector<8x8xf32>
    %1042 = arith.mulf %1040, %1041 : vector<8x8xf32>
    %1043 = arith.addf %1038, %1042 : vector<8x8xf32>
    %cst_847 = arith.constant dense<0.000000e+00> : vector<8x16xf32>
    %1044 = tpu.matmul %1043, %989, %cst_847 {dimension_numbers = #tpu.dot_dimension_numbers<[1], [0], [0], [1], [0, 0, 1, 1], [], []>} : vector<8x8xf32>, vector<8x16xf32>, vector<8x16xf32> -> vector<8x16xf32>
    %c0_848 = arith.constant 0 : index
    %c2_849 = arith.constant 2 : index
    %c0_850 = arith.constant 0 : index
    %1045 = vector.load %arg13[%c0_848, %c2_849, %c0_850] : memref<8x8x8xf32, #tpu.memory_space<vmem>>, vector<8x1x8xf32>
    %1046 = vector.shape_cast %1045 : vector<8x1x8xf32> to vector<8x8xf32>
    %cst_851 = arith.constant 2.500000e-01 : f32
    %1047 = vector.broadcast %cst_851 : f32 to vector<8x8xf32>
    %1048 = arith.mulf %1046, %1047 : vector<8x8xf32>
    %c0_852 = arith.constant 0 : index
    %c3_853 = arith.constant 3 : index
    %c0_854 = arith.constant 0 : index
    %1049 = vector.load %arg13[%c0_852, %c3_853, %c0_854] : memref<8x8x8xf32, #tpu.memory_space<vmem>>, vector<8x1x8xf32>
    %1050 = vector.shape_cast %1049 : vector<8x1x8xf32> to vector<8x8xf32>
    %cst_855 = arith.constant 7.500000e-01 : f32
    %1051 = vector.broadcast %cst_855 : f32 to vector<8x8xf32>
    %1052 = arith.mulf %1050, %1051 : vector<8x8xf32>
    %1053 = arith.addf %1048, %1052 : vector<8x8xf32>
    %cst_856 = arith.constant dense<0.000000e+00> : vector<8x16xf32>
    %1054 = tpu.matmul %1053, %989, %cst_856 {dimension_numbers = #tpu.dot_dimension_numbers<[1], [0], [0], [1], [0, 0, 1, 1], [], []>} : vector<8x8xf32>, vector<8x16xf32>, vector<8x16xf32> -> vector<8x16xf32>
    %c0_857 = arith.constant 0 : index
    %c3_858 = arith.constant 3 : index
    %c0_859 = arith.constant 0 : index
    %1055 = vector.load %arg13[%c0_857, %c3_858, %c0_859] : memref<8x8x8xf32, #tpu.memory_space<vmem>>, vector<8x1x8xf32>
    %1056 = vector.shape_cast %1055 : vector<8x1x8xf32> to vector<8x8xf32>
    %cst_860 = arith.constant 7.500000e-01 : f32
    %1057 = vector.broadcast %cst_860 : f32 to vector<8x8xf32>
    %1058 = arith.mulf %1056, %1057 : vector<8x8xf32>
    %c0_861 = arith.constant 0 : index
    %c4_862 = arith.constant 4 : index
    %c0_863 = arith.constant 0 : index
    %1059 = vector.load %arg13[%c0_861, %c4_862, %c0_863] : memref<8x8x8xf32, #tpu.memory_space<vmem>>, vector<8x1x8xf32>
    %1060 = vector.shape_cast %1059 : vector<8x1x8xf32> to vector<8x8xf32>
    %cst_864 = arith.constant 2.500000e-01 : f32
    %1061 = vector.broadcast %cst_864 : f32 to vector<8x8xf32>
    %1062 = arith.mulf %1060, %1061 : vector<8x8xf32>
    %1063 = arith.addf %1058, %1062 : vector<8x8xf32>
    %cst_865 = arith.constant dense<0.000000e+00> : vector<8x16xf32>
    %1064 = tpu.matmul %1063, %989, %cst_865 {dimension_numbers = #tpu.dot_dimension_numbers<[1], [0], [0], [1], [0, 0, 1, 1], [], []>} : vector<8x8xf32>, vector<8x16xf32>, vector<8x16xf32> -> vector<8x16xf32>
    %c0_866 = arith.constant 0 : index
    %c3_867 = arith.constant 3 : index
    %c0_868 = arith.constant 0 : index
    %1065 = vector.load %arg13[%c0_866, %c3_867, %c0_868] : memref<8x8x8xf32, #tpu.memory_space<vmem>>, vector<8x1x8xf32>
    %1066 = vector.shape_cast %1065 : vector<8x1x8xf32> to vector<8x8xf32>
    %cst_869 = arith.constant 2.500000e-01 : f32
    %1067 = vector.broadcast %cst_869 : f32 to vector<8x8xf32>
    %1068 = arith.mulf %1066, %1067 : vector<8x8xf32>
    %c0_870 = arith.constant 0 : index
    %c4_871 = arith.constant 4 : index
    %c0_872 = arith.constant 0 : index
    %1069 = vector.load %arg13[%c0_870, %c4_871, %c0_872] : memref<8x8x8xf32, #tpu.memory_space<vmem>>, vector<8x1x8xf32>
    %1070 = vector.shape_cast %1069 : vector<8x1x8xf32> to vector<8x8xf32>
    %cst_873 = arith.constant 7.500000e-01 : f32
    %1071 = vector.broadcast %cst_873 : f32 to vector<8x8xf32>
    %1072 = arith.mulf %1070, %1071 : vector<8x8xf32>
    %1073 = arith.addf %1068, %1072 : vector<8x8xf32>
    %cst_874 = arith.constant dense<0.000000e+00> : vector<8x16xf32>
    %1074 = tpu.matmul %1073, %989, %cst_874 {dimension_numbers = #tpu.dot_dimension_numbers<[1], [0], [0], [1], [0, 0, 1, 1], [], []>} : vector<8x8xf32>, vector<8x16xf32>, vector<8x16xf32> -> vector<8x16xf32>
    %c0_875 = arith.constant 0 : index
    %c4_876 = arith.constant 4 : index
    %c0_877 = arith.constant 0 : index
    %1075 = vector.load %arg13[%c0_875, %c4_876, %c0_877] : memref<8x8x8xf32, #tpu.memory_space<vmem>>, vector<8x1x8xf32>
    %1076 = vector.shape_cast %1075 : vector<8x1x8xf32> to vector<8x8xf32>
    %cst_878 = arith.constant 7.500000e-01 : f32
    %1077 = vector.broadcast %cst_878 : f32 to vector<8x8xf32>
    %1078 = arith.mulf %1076, %1077 : vector<8x8xf32>
    %c0_879 = arith.constant 0 : index
    %c5_880 = arith.constant 5 : index
    %c0_881 = arith.constant 0 : index
    %1079 = vector.load %arg13[%c0_879, %c5_880, %c0_881] : memref<8x8x8xf32, #tpu.memory_space<vmem>>, vector<8x1x8xf32>
    %1080 = vector.shape_cast %1079 : vector<8x1x8xf32> to vector<8x8xf32>
    %cst_882 = arith.constant 2.500000e-01 : f32
    %1081 = vector.broadcast %cst_882 : f32 to vector<8x8xf32>
    %1082 = arith.mulf %1080, %1081 : vector<8x8xf32>
    %1083 = arith.addf %1078, %1082 : vector<8x8xf32>
    %cst_883 = arith.constant dense<0.000000e+00> : vector<8x16xf32>
    %1084 = tpu.matmul %1083, %989, %cst_883 {dimension_numbers = #tpu.dot_dimension_numbers<[1], [0], [0], [1], [0, 0, 1, 1], [], []>} : vector<8x8xf32>, vector<8x16xf32>, vector<8x16xf32> -> vector<8x16xf32>
    %c0_884 = arith.constant 0 : index
    %c4_885 = arith.constant 4 : index
    %c0_886 = arith.constant 0 : index
    %1085 = vector.load %arg13[%c0_884, %c4_885, %c0_886] : memref<8x8x8xf32, #tpu.memory_space<vmem>>, vector<8x1x8xf32>
    %1086 = vector.shape_cast %1085 : vector<8x1x8xf32> to vector<8x8xf32>
    %cst_887 = arith.constant 2.500000e-01 : f32
    %1087 = vector.broadcast %cst_887 : f32 to vector<8x8xf32>
    %1088 = arith.mulf %1086, %1087 : vector<8x8xf32>
    %c0_888 = arith.constant 0 : index
    %c5_889 = arith.constant 5 : index
    %c0_890 = arith.constant 0 : index
    %1089 = vector.load %arg13[%c0_888, %c5_889, %c0_890] : memref<8x8x8xf32, #tpu.memory_space<vmem>>, vector<8x1x8xf32>
    %1090 = vector.shape_cast %1089 : vector<8x1x8xf32> to vector<8x8xf32>
    %cst_891 = arith.constant 7.500000e-01 : f32
    %1091 = vector.broadcast %cst_891 : f32 to vector<8x8xf32>
    %1092 = arith.mulf %1090, %1091 : vector<8x8xf32>
    %1093 = arith.addf %1088, %1092 : vector<8x8xf32>
    %cst_892 = arith.constant dense<0.000000e+00> : vector<8x16xf32>
    %1094 = tpu.matmul %1093, %989, %cst_892 {dimension_numbers = #tpu.dot_dimension_numbers<[1], [0], [0], [1], [0, 0, 1, 1], [], []>} : vector<8x8xf32>, vector<8x16xf32>, vector<8x16xf32> -> vector<8x16xf32>
    %c0_893 = arith.constant 0 : index
    %c5_894 = arith.constant 5 : index
    %c0_895 = arith.constant 0 : index
    %1095 = vector.load %arg13[%c0_893, %c5_894, %c0_895] : memref<8x8x8xf32, #tpu.memory_space<vmem>>, vector<8x1x8xf32>
    %1096 = vector.shape_cast %1095 : vector<8x1x8xf32> to vector<8x8xf32>
    %cst_896 = arith.constant 7.500000e-01 : f32
    %1097 = vector.broadcast %cst_896 : f32 to vector<8x8xf32>
    %1098 = arith.mulf %1096, %1097 : vector<8x8xf32>
    %c0_897 = arith.constant 0 : index
    %c6_898 = arith.constant 6 : index
    %c0_899 = arith.constant 0 : index
    %1099 = vector.load %arg13[%c0_897, %c6_898, %c0_899] : memref<8x8x8xf32, #tpu.memory_space<vmem>>, vector<8x1x8xf32>
    %1100 = vector.shape_cast %1099 : vector<8x1x8xf32> to vector<8x8xf32>
    %cst_900 = arith.constant 2.500000e-01 : f32
    %1101 = vector.broadcast %cst_900 : f32 to vector<8x8xf32>
    %1102 = arith.mulf %1100, %1101 : vector<8x8xf32>
    %1103 = arith.addf %1098, %1102 : vector<8x8xf32>
    %cst_901 = arith.constant dense<0.000000e+00> : vector<8x16xf32>
    %1104 = tpu.matmul %1103, %989, %cst_901 {dimension_numbers = #tpu.dot_dimension_numbers<[1], [0], [0], [1], [0, 0, 1, 1], [], []>} : vector<8x8xf32>, vector<8x16xf32>, vector<8x16xf32> -> vector<8x16xf32>
    %c0_902 = arith.constant 0 : index
    %c5_903 = arith.constant 5 : index
    %c0_904 = arith.constant 0 : index
    %1105 = vector.load %arg13[%c0_902, %c5_903, %c0_904] : memref<8x8x8xf32, #tpu.memory_space<vmem>>, vector<8x1x8xf32>
    %1106 = vector.shape_cast %1105 : vector<8x1x8xf32> to vector<8x8xf32>
    %cst_905 = arith.constant 2.500000e-01 : f32
    %1107 = vector.broadcast %cst_905 : f32 to vector<8x8xf32>
    %1108 = arith.mulf %1106, %1107 : vector<8x8xf32>
    %c0_906 = arith.constant 0 : index
    %c6_907 = arith.constant 6 : index
    %c0_908 = arith.constant 0 : index
    %1109 = vector.load %arg13[%c0_906, %c6_907, %c0_908] : memref<8x8x8xf32, #tpu.memory_space<vmem>>, vector<8x1x8xf32>
    %1110 = vector.shape_cast %1109 : vector<8x1x8xf32> to vector<8x8xf32>
    %cst_909 = arith.constant 7.500000e-01 : f32
    %1111 = vector.broadcast %cst_909 : f32 to vector<8x8xf32>
    %1112 = arith.mulf %1110, %1111 : vector<8x8xf32>
    %1113 = arith.addf %1108, %1112 : vector<8x8xf32>
    %cst_910 = arith.constant dense<0.000000e+00> : vector<8x16xf32>
    %1114 = tpu.matmul %1113, %989, %cst_910 {dimension_numbers = #tpu.dot_dimension_numbers<[1], [0], [0], [1], [0, 0, 1, 1], [], []>} : vector<8x8xf32>, vector<8x16xf32>, vector<8x16xf32> -> vector<8x16xf32>
    %c0_911 = arith.constant 0 : index
    %c6_912 = arith.constant 6 : index
    %c0_913 = arith.constant 0 : index
    %1115 = vector.load %arg13[%c0_911, %c6_912, %c0_913] : memref<8x8x8xf32, #tpu.memory_space<vmem>>, vector<8x1x8xf32>
    %1116 = vector.shape_cast %1115 : vector<8x1x8xf32> to vector<8x8xf32>
    %cst_914 = arith.constant 7.500000e-01 : f32
    %1117 = vector.broadcast %cst_914 : f32 to vector<8x8xf32>
    %1118 = arith.mulf %1116, %1117 : vector<8x8xf32>
    %c0_915 = arith.constant 0 : index
    %c7_916 = arith.constant 7 : index
    %c0_917 = arith.constant 0 : index
    %1119 = vector.load %arg13[%c0_915, %c7_916, %c0_917] : memref<8x8x8xf32, #tpu.memory_space<vmem>>, vector<8x1x8xf32>
    %1120 = vector.shape_cast %1119 : vector<8x1x8xf32> to vector<8x8xf32>
    %cst_918 = arith.constant 2.500000e-01 : f32
    %1121 = vector.broadcast %cst_918 : f32 to vector<8x8xf32>
    %1122 = arith.mulf %1120, %1121 : vector<8x8xf32>
    %1123 = arith.addf %1118, %1122 : vector<8x8xf32>
    %cst_919 = arith.constant dense<0.000000e+00> : vector<8x16xf32>
    %1124 = tpu.matmul %1123, %989, %cst_919 {dimension_numbers = #tpu.dot_dimension_numbers<[1], [0], [0], [1], [0, 0, 1, 1], [], []>} : vector<8x8xf32>, vector<8x16xf32>, vector<8x16xf32> -> vector<8x16xf32>
    %c0_920 = arith.constant 0 : index
    %c6_921 = arith.constant 6 : index
    %c0_922 = arith.constant 0 : index
    %1125 = vector.load %arg13[%c0_920, %c6_921, %c0_922] : memref<8x8x8xf32, #tpu.memory_space<vmem>>, vector<8x1x8xf32>
    %1126 = vector.shape_cast %1125 : vector<8x1x8xf32> to vector<8x8xf32>
    %cst_923 = arith.constant 2.500000e-01 : f32
    %1127 = vector.broadcast %cst_923 : f32 to vector<8x8xf32>
    %1128 = arith.mulf %1126, %1127 : vector<8x8xf32>
    %c0_924 = arith.constant 0 : index
    %c7_925 = arith.constant 7 : index
    %c0_926 = arith.constant 0 : index
    %1129 = vector.load %arg13[%c0_924, %c7_925, %c0_926] : memref<8x8x8xf32, #tpu.memory_space<vmem>>, vector<8x1x8xf32>
    %1130 = vector.shape_cast %1129 : vector<8x1x8xf32> to vector<8x8xf32>
    %cst_927 = arith.constant 7.500000e-01 : f32
    %1131 = vector.broadcast %cst_927 : f32 to vector<8x8xf32>
    %1132 = arith.mulf %1130, %1131 : vector<8x8xf32>
    %1133 = arith.addf %1128, %1132 : vector<8x8xf32>
    %cst_928 = arith.constant dense<0.000000e+00> : vector<8x16xf32>
    %1134 = tpu.matmul %1133, %989, %cst_928 {dimension_numbers = #tpu.dot_dimension_numbers<[1], [0], [0], [1], [0, 0, 1, 1], [], []>} : vector<8x8xf32>, vector<8x16xf32>, vector<8x16xf32> -> vector<8x16xf32>
    %c0_929 = arith.constant 0 : index
    %c7_930 = arith.constant 7 : index
    %c0_931 = arith.constant 0 : index
    %1135 = vector.load %arg13[%c0_929, %c7_930, %c0_931] : memref<8x8x8xf32, #tpu.memory_space<vmem>>, vector<8x1x8xf32>
    %1136 = vector.shape_cast %1135 : vector<8x1x8xf32> to vector<8x8xf32>
    %cst_932 = arith.constant 1.000000e+00 : f32
    %1137 = vector.broadcast %cst_932 : f32 to vector<8x8xf32>
    %1138 = arith.mulf %1136, %1137 : vector<8x8xf32>
    %cst_933 = arith.constant dense<0.000000e+00> : vector<8x16xf32>
    %1139 = tpu.matmul %1138, %989, %cst_933 {dimension_numbers = #tpu.dot_dimension_numbers<[1], [0], [0], [1], [0, 0, 1, 1], [], []>} : vector<8x8xf32>, vector<8x16xf32>, vector<8x16xf32> -> vector<8x16xf32>
    %1140 = tpu.concatenate %994, %1004, %1014, %1024, %1034, %1044, %1054, %1064, %1074, %1084, %1094, %1104, %1114, %1124, %1134, %1139 in 1 : vector<8x16xf32>, vector<8x16xf32>, vector<8x16xf32>, vector<8x16xf32>, vector<8x16xf32>, vector<8x16xf32>, vector<8x16xf32>, vector<8x16xf32>, vector<8x16xf32>, vector<8x16xf32>, vector<8x16xf32>, vector<8x16xf32>, vector<8x16xf32>, vector<8x16xf32>, vector<8x16xf32>, vector<8x16xf32> -> vector<8x256xf32>
    %c0_934 = arith.constant 0 : index
    %c0_935 = arith.constant 0 : index
    %1141 = vector.load %arg6[%c0_934, %c0_935] : memref<16x8xf32, #tpu.memory_space<vmem>>, vector<16x8xf32>
    %cst_936 = arith.constant dense<0.000000e+00> : vector<16x256xf32>
    %1142 = tpu.matmul %1141, %1140, %cst_936 {dimension_numbers = #tpu.dot_dimension_numbers<[1], [0], [0], [1], [0, 0, 1, 1], [], []>} : vector<16x8xf32>, vector<8x256xf32>, vector<16x256xf32> -> vector<16x256xf32>
    %c0_937 = arith.constant 0 : index
    %c0_938 = arith.constant 0 : index
    %c0_939 = arith.constant 0 : index
    %c0_940 = arith.constant 0 : index
    %1143 = vector.load %arg4[%c0_937, %c0_938, %c0_939, %c0_940] : memref<1x4x16x256xf32, #tpu.memory_space<vmem>>, vector<1x4x16x256xf32>
    %1144 = vector.shape_cast %1142 : vector<16x256xf32> to vector<1x1x16x256xf32>
    %1145 = vector.broadcast %1144 : vector<1x1x16x256xf32> to vector<1x4x16x256xf32>
    %1146 = arith.mulf %1143, %1145 : vector<1x4x16x256xf32>
    %c0_941 = arith.constant 0 : index
    %c0_942 = arith.constant 0 : index
    %c0_943 = arith.constant 0 : index
    %c0_944 = arith.constant 0 : index
    %1147 = vector.load %arg12[%c0_941, %c0_942, %c0_943, %c0_944] : memref<1x4x16x256xf32, #tpu.memory_space<vmem>>, vector<1x4x16x256xf32>
    tpu.vector_store %arg12[%c0_941, %c0_942, %c0_943, %c0_944], %1146 {strides = array<i32>} : memref<1x4x16x256xf32, #tpu.memory_space<vmem>>, vector<1x4x16x256xf32>,
    return
  }
  func.func @transform_0(%arg0: i32, %arg1: i32) -> (i32, i32, i32, i32, i32) {
    %c0_i32 = arith.constant 0 : i32
    %c0_i32_0 = arith.constant 0 : i32
    %c0_i32_1 = arith.constant 0 : i32
    %c0_i32_2 = arith.constant 0 : i32
    %c0_i32_3 = arith.constant 0 : i32
    return %arg0, %c0_i32, %c0_i32_0, %c0_i32_1, %c0_i32_2 : i32, i32, i32, i32, i32
  }
  func.func @transform_1(%arg0: i32, %arg1: i32) -> (i32, i32, i32, i32, i32) {
    %c0_i32 = arith.constant 0 : i32
    %c0_i32_0 = arith.constant 0 : i32
    %c0_i32_1 = arith.constant 0 : i32
    %c0_i32_2 = arith.constant 0 : i32
    %c0_i32_3 = arith.constant 0 : i32
    return %arg0, %c0_i32, %c0_i32_0, %c0_i32_1, %c0_i32_2 : i32, i32, i32, i32, i32
  }
  func.func @transform_2(%arg0: i32, %arg1: i32) -> (i32, i32, i32, i32) {
    %c0_i32 = arith.constant 0 : i32
    %c0_i32_0 = arith.constant 0 : i32
    %c0_i32_1 = arith.constant 0 : i32
    return %arg0, %arg1, %c0_i32, %c0_i32_0 : i32, i32, i32, i32
  }
  func.func @transform_3(%arg0: i32, %arg1: i32) -> (i32, i32) {
    %c0_i32 = arith.constant 0 : i32
    %c0_i32_0 = arith.constant 0 : i32
    %c0_i32_1 = arith.constant 0 : i32
    return %c0_i32, %c0_i32_0 : i32, i32
  }
  func.func @transform_4(%arg0: i32, %arg1: i32) -> (i32, i32) {
    %c0_i32 = arith.constant 0 : i32
    %c0_i32_0 = arith.constant 0 : i32
    %c0_i32_1 = arith.constant 0 : i32
    return %c0_i32, %c0_i32_0 : i32, i32
  }
  func.func @transform_5(%arg0: i32, %arg1: i32) -> (i32, i32) {
    %c0_i32 = arith.constant 0 : i32
    %c0_i32_0 = arith.constant 0 : i32
    %c0_i32_1 = arith.constant 0 : i32
    return %c0_i32, %c0_i32_0 : i32, i32
  }
  func.func @transform_6(%arg0: i32, %arg1: i32) -> (i32, i32) {
    %c0_i32 = arith.constant 0 : i32
    %c0_i32_0 = arith.constant 0 : i32
    %c0_i32_1 = arith.constant 0 : i32
    return %c0_i32, %c0_i32_0 : i32, i32
  }
  func.func @transform_7(%arg0: i32, %arg1: i32) -> i32 {
    %c0_i32 = arith.constant 0 : i32
    %c0_i32_0 = arith.constant 0 : i32
    return %c0_i32 : i32
  }
  func.func @transform_8(%arg0: i32, %arg1: i32) -> i32 {
    %c0_i32 = arith.constant 0 : i32
    %c0_i32_0 = arith.constant 0 : i32
    return %c0_i32 : i32
  }
  func.func @transform_9(%arg0: i32, %arg1: i32) -> i32 {
    %c0_i32 = arith.constant 0 : i32
    %c0_i32_0 = arith.constant 0 : i32
    return %c0_i32 : i32
  }
  func.func @transform_10(%arg0: i32, %arg1: i32) -> (i32, i32, i32, i32) {
    %c0_i32 = arith.constant 0 : i32
    %c0_i32_0 = arith.constant 0 : i32
    %c0_i32_1 = arith.constant 0 : i32
    return %arg0, %arg1, %c0_i32, %c0_i32_0 : i32, i32, i32, i32
  }
}

</mosaic_0001>

<llo_original>
// kernel: tpu_custom_call.1
$region0: #{tpu_custom_call.1}
  #allocation0 [shape = 'u32[]', space=smem, size = 0x4, offset = 0x4, fixed_abs, tag = 'smem constant byte address 0x4 - core index']
  #allocation1 [shape = 'u32[144,128]{1,0:T(1,128)}', space=vmem, size = 0x12000, scoped, tag = 'internal scratch']
  #allocation2 [shape = 'f32[8,8,8]{2,1,0:T(8,128)}', space=vmem, size = 0x8000, scoped, tag = 'scratch operand']
  #allocation3 [shape = 'f32[1]{0:T(128)S(6)}', space=smem, size = 0x200, scoped, tag = 'scoped memory for tpu_custom_call.1']
  %s0 = inlined_call_operand.hbm [shape: f32[2,8,8,8,8], index: 0, kind: input, shape index: {}]
  %s1 = inlined_call_operand.hbm [shape: f32[2,8,8,8,8], index: 1, kind: input, shape index: {}]
  %s2 = inlined_call_operand.hbm [shape: f32[2,8,16,256], index: 2, kind: input, shape index: {}]
  %s3 = inlined_call_operand.vmem [shape: f32[8,16], index: 3, kind: input, shape index: {}]
  %s4 = inlined_call_operand.vmem [shape: f32[16,8], index: 4, kind: input, shape index: {}]
  %s5 = inlined_call_operand.vmem [shape: f32[8,8], index: 5, kind: input, shape index: {}]
  %s6 = inlined_call_operand.vmem [shape: f32[8,8], index: 6, kind: input, shape index: {}]
  %s7 = inlined_call_operand.vmem [shape: f32[8], index: 7, kind: input, shape index: {}]
  %s8 = inlined_call_operand.vmem [shape: f32[8], index: 8, kind: input, shape index: {}]
  %s9 = inlined_call_operand.<no memory space> [shape: f32[1], index: 9, kind: input, shape index: {}]
  %s10 = inlined_call_operand.hbm [shape: f32[2,8,16,256], index: 10, kind: output, shape index: {}]
  %s11 = sld [smem:[#allocation0]]
  $region101: #{tpu_custom_call.1} parent=0
    _
  %s13 = ssub.s32 1, %s11
  %s14 = scalar_select 0, %s13, %s11
  %15 = sst [smem:[#allocation3]] %s9
  $region1: #{tpu_custom_call.1} parent=0
    #allocation4 [shape = 'u8[524288]{0}', space=vmem, size = 0x80000, scoped, tag = 'input window, operand 0']
    #allocation5 [shape = 's32[2]{0}', space=sflag, size = 0x8, scoped, tag = 'scoped memory for tpu_custom_call.1']
    #allocation6 [shape = 's32[2]{0}', space=sflag, size = 0x8, scoped, tag = 'scoped memory for tpu_custom_call.1']
    #allocation7 [shape = 's32[2]{0}', space=sflag, size = 0x8, scoped, tag = 'scoped memory for tpu_custom_call.1']
    #allocation8 [shape = 'u8[524288]{0}', space=vmem, size = 0x80000, scoped, tag = 'input window, operand 1']
    #allocation9 [shape = 's32[2]{0}', space=sflag, size = 0x8, scoped, tag = 'scoped memory for tpu_custom_call.1']
    #allocation10 [shape = 'u8[131072]{0}', space=vmem, size = 0x20000, scoped, tag = 'input window, operand 2']
    #allocation11 [shape = 'u8[4096]{0}', space=smem, size = 0x1000, scoped, tag = 'input window, operand 5, single buffered']
    #allocation12 [shape = 'u8[4096]{0}', space=smem, size = 0x1000, scoped, tag = 'input window, operand 6, single buffered']
    #allocation13 [shape = 's32[1]{0}', space=sflag, size = 0x4, scoped, tag = 'scoped memory for tpu_custom_call.1']
    #allocation14 [shape = 'u8[512]{0}', space=smem, size = 0x200, scoped, tag = 'input window, operand 7, single buffered']
    #allocation15 [shape = 'u8[512]{0}', space=smem, size = 0x200, scoped, tag = 'input window, operand 8, single buffered']
    #allocation16 [shape = 's32[1]{0}', space=sflag, size = 0x4, scoped, tag = 'scoped memory for tpu_custom_call.1']
    #allocation17 [shape = 'u8[131072]{0}', space=vmem, size = 0x20000, scoped, tag = 'output window, operand 0']
    %16 = vsyncpa [#allocation5], 0
    %s17 = scalar_lea.sflag [#allocation5], 1
    %18 = vsyncpa %s17, 0
    %19 = vsyncpa [#allocation9], 0
    %s20 = scalar_lea.sflag [#allocation9], 1
    %21 = vsyncpa %s20, 0
    %22 = vsyncpa [#allocation7], 0
    %23 = vsyncpa [#allocation13], 0
    %24 = vsyncpa [#allocation16], 0
    %25 = vsyncpa [#allocation6], 0
    %s26 = scalar_lea.sflag [#allocation6], 1
    %27 = vsyncpa %s26, 0
    loop: start=0, step=1, limit=6
    $region2: #{tpu_custom_call.1} parent=1 // loop_pre_header
      _
    $region3: #{tpu_custom_call.1} parent=1 // loop_header
      %s29 = sphi 0, %s33
      %p30 = scmp.ge.s32.totalorder %s29, 6
      %s36 = sphi 0, %s48
      %s37 = sphi 0, %s44
      %s38 = sphi 0, %s36
      %s39 = sphi 0, %s37
      %s40 = sphi 0, %s38
      %s41 = sphi 0, %s39
      %s51 = sphi 0, %s53
      %s54 = sphi 0, %s51
      %s55 = sphi 0, %s54
      %s71 = sphi 0, %s55
      %s77 = sphi 0, %s79
      %s80 = sphi 0, %s77
      %s81 = sphi 0, %s80
      %s97 = sphi 0, %s81
      %s105 = sphi 0, %s107
      %s108 = sphi 0, %s105
      %s109 = sphi 0, %s108
      %s125 = sphi 0, %s109
      %s129 = sphi 0, %s129
      %s131 = sphi 0, %s129
      %s132 = sphi 0, %s131
      %s146 = sphi 0, %s132
      %s150 = sphi 0, %s150
      %s152 = sphi 0, %s150
      %s153 = sphi 0, %s152
      %s167 = sphi 0, %s153
      %s171 = sphi 0, %s171
      %s173 = sphi 0, %s171
      %s174 = sphi 0, %s173
      %s188 = sphi 0, %s174
      %s192 = sphi 0, %s192
      %s194 = sphi 0, %s192
      %s195 = sphi 0, %s194
      %s209 = sphi 0, %s195
      %s213 = sphi 0, %s213
      %s215 = sphi 0, %s213
      %s216 = sphi 0, %s215
      %s230 = sphi 0, %s216
      %s234 = sphi 0, %s234
      %s236 = sphi 0, %s234
      %s237 = sphi 0, %s236
      %s251 = sphi 0, %s237
      %s255 = sphi 0, %s255
      %s257 = sphi 0, %s255
      %s258 = sphi 0, %s257
      %s272 = sphi 0, %s258
      %s280 = sphi 0, %s282
      %s283 = sphi 0, %s280
      %s284 = sphi 0, %s283
      %s300 = sphi 0, %s284
    $region4: #{tpu_custom_call.1} parent=1 // loop_header_branch
      %32 = sbr.rel (%p30) target = $region8
    $region5: #{tpu_custom_call.1} parent=1 // loop_body
      %s34 = ssub.s32 %s29, 1
      %s35 = ssub.s32 %s29, 2
      %s42 = sadd.s32 1, %s37
      %p43 = scmp.ge.s32.totalorder %s42, 2
      %s44 = scalar_select %p43, 0, %s42
      %s45 = sadd.s32 1, %s36
      %s46 = scalar_select %p43, %s45, %s36
      %p47 = scmp.ge.s32.totalorder %s46, 2
      %s48 = scalar_select %p47, 0, %s46
      %s49 = ssub.s32 %s36, %s48
      %p50 = scmp.eq.s32.totalorder %s49, 0
      %s52 = sadd.s32 %s51, 1
      %s53 = scalar_select %p50, %s51, %s52
      %p56 = pneg %p50
      %p57 = scmp.eq.s32.totalorder %s29, 3
      %p58 = por %p56, %p57
      %p59 = scmp.ne.s32.totalorder %s51, %s54
      %p60 = scmp.eq.s32.totalorder %s29, 0
      %p61 = por %p59, %p60
      %p62 = scmp.ne.s32.totalorder %s51, %s54
      %p63 = scmp.eq.s32.totalorder %s34, 3
      %p64 = por %p62, %p63
      %p65 = scmp.ne.s32.totalorder %s54, %s55
      %p66 = scmp.eq.s32.totalorder %s34, 0
      %p67 = por %p65, %p66
      %p68 = scmp.ne.s32.totalorder %s54, %s55
      %p69 = scmp.eq.s32.totalorder %s35, 3
      %p70 = por %p68, %p69
      %p72 = scmp.ne.s32.totalorder %s55, %s71
      %p73 = scmp.eq.s32.totalorder %s35, 0
      %p74 = por %p72, %p73
      %s75 = ssub.s32 %s36, %s48
      %p76 = scmp.eq.s32.totalorder %s75, 0
      %s78 = sadd.s32 %s77, 1
      %s79 = scalar_select %p76, %s77, %s78
      %p82 = pneg %p76
      %p83 = scmp.eq.s32.totalorder %s29, 3
      %p84 = por %p82, %p83
      %p85 = scmp.ne.s32.totalorder %s77, %s80
      %p86 = scmp.eq.s32.totalorder %s29, 0
      %p87 = por %p85, %p86
      %p88 = scmp.ne.s32.totalorder %s77, %s80
      %p89 = scmp.eq.s32.totalorder %s34, 3
      %p90 = por %p88, %p89
      %p91 = scmp.ne.s32.totalorder %s80, %s81
      %p92 = scmp.eq.s32.totalorder %s34, 0
      %p93 = por %p91, %p92
      %p94 = scmp.ne.s32.totalorder %s80, %s81
      %p95 = scmp.eq.s32.totalorder %s35, 3
      %p96 = por %p94, %p95
      %p98 = scmp.ne.s32.totalorder %s81, %s97
      %p99 = scmp.eq.s32.totalorder %s35, 0
      %p100 = por %p98, %p99
      %s101 = ssub.s32 %s36, %s48
      %s102 = ssub.s32 %s37, %s44
      %s103 = sor.u32 %s101, %s102
      %p104 = scmp.eq.s32.totalorder %s103, 0
      %s106 = sadd.s32 %s105, 1
      %s107 = scalar_select %p104, %s105, %s106
      %p110 = pneg %p104
      %p111 = scmp.eq.s32.totalorder %s29, 3
      %p112 = por %p110, %p111
      %p113 = scmp.ne.s32.totalorder %s105, %s108
      %p114 = scmp.eq.s32.totalorder %s29, 0
      %p115 = por %p113, %p114
      %p116 = scmp.ne.s32.totalorder %s105, %s108
      %p117 = scmp.eq.s32.totalorder %s34, 3
      %p118 = por %p116, %p117
      %p119 = scmp.ne.s32.totalorder %s108, %s109
      %p120 = scmp.eq.s32.totalorder %s34, 0
      %p121 = por %p119, %p120
      %p122 = scmp.ne.s32.totalorder %s108, %s109
      %p123 = scmp.eq.s32.totalorder %s35, 3
      %p124 = por %p122, %p123
      %p126 = scmp.ne.s32.totalorder %s109, %s125
      %p127 = scmp.eq.s32.totalorder %s35, 0
      %p128 = por %p126, %p127
      %s130 = sadd.s32 %s129, 1
      %p133 = scmp.eq.s32.totalorder %s29, 3
      %p134 = scmp.ne.s32.totalorder %s129, %s131
      %p135 = scmp.eq.s32.totalorder %s29, 0
      %p136 = por %p134, %p135
      %p137 = scmp.ne.s32.totalorder %s129, %s131
      %p138 = scmp.eq.s32.totalorder %s34, 3
      %p139 = por %p137, %p138
      %p140 = scmp.ne.s32.totalorder %s131, %s132
      %p141 = scmp.eq.s32.totalorder %s34, 0
      %p142 = por %p140, %p141
      %p143 = scmp.ne.s32.totalorder %s131, %s132
      %p144 = scmp.eq.s32.totalorder %s35, 3
      %p145 = por %p143, %p144
      %p147 = scmp.ne.s32.totalorder %s132, %s146
      %p148 = scmp.eq.s32.totalorder %s35, 0
      %p149 = por %p147, %p148
      %s151 = sadd.s32 %s150, 1
      %p154 = scmp.eq.s32.totalorder %s29, 3
      %p155 = scmp.ne.s32.totalorder %s150, %s152
      %p156 = scmp.eq.s32.totalorder %s29, 0
      %p157 = por %p155, %p156
      %p158 = scmp.ne.s32.totalorder %s150, %s152
      %p159 = scmp.eq.s32.totalorder %s34, 3
      %p160 = por %p158, %p159
      %p161 = scmp.ne.s32.totalorder %s152, %s153
      %p162 = scmp.eq.s32.totalorder %s34, 0
      %p163 = por %p161, %p162
      %p164 = scmp.ne.s32.totalorder %s152, %s153
      %p165 = scmp.eq.s32.totalorder %s35, 3
      %p166 = por %p164, %p165
      %p168 = scmp.ne.s32.totalorder %s153, %s167
      %p169 = scmp.eq.s32.totalorder %s35, 0
      %p170 = por %p168, %p169
      %s172 = sadd.s32 %s171, 1
      %p175 = scmp.eq.s32.totalorder %s29, 3
      %p176 = scmp.ne.s32.totalorder %s171, %s173
      %p177 = scmp.eq.s32.totalorder %s29, 0
      %p178 = por %p176, %p177
      %p179 = scmp.ne.s32.totalorder %s171, %s173
      %p180 = scmp.eq.s32.totalorder %s34, 3
      %p181 = por %p179, %p180
      %p182 = scmp.ne.s32.totalorder %s173, %s174
      %p183 = scmp.eq.s32.totalorder %s34, 0
      %p184 = por %p182, %p183
      %p185 = scmp.ne.s32.totalorder %s173, %s174
      %p186 = scmp.eq.s32.totalorder %s35, 3
      %p187 = por %p185, %p186
      %p189 = scmp.ne.s32.totalorder %s174, %s188
      %p190 = scmp.eq.s32.totalorder %s35, 0
      %p191 = por %p189, %p190
      %s193 = sadd.s32 %s192, 1
      %p196 = scmp.eq.s32.totalorder %s29, 3
      %p197 = scmp.ne.s32.totalorder %s192, %s194
      %p198 = scmp.eq.s32.totalorder %s29, 0
      %p199 = por %p197, %p198
      %p200 = scmp.ne.s32.totalorder %s192, %s194
      %p201 = scmp.eq.s32.totalorder %s34, 3
      %p202 = por %p200, %p201
      %p203 = scmp.ne.s32.totalorder %s194, %s195
      %p204 = scmp.eq.s32.totalorder %s34, 0
      %p205 = por %p203, %p204
      %p206 = scmp.ne.s32.totalorder %s194, %s195
      %p207 = scmp.eq.s32.totalorder %s35, 3
      %p208 = por %p206, %p207
      %p210 = scmp.ne.s32.totalorder %s195, %s209
      %p211 = scmp.eq.s32.totalorder %s35, 0
      %p212 = por %p210, %p211
      %s214 = sadd.s32 %s213, 1
      %p217 = scmp.eq.s32.totalorder %s29, 3
      %p218 = scmp.ne.s32.totalorder %s213, %s215
      %p219 = scmp.eq.s32.totalorder %s29, 0
      %p220 = por %p218, %p219
      %p221 = scmp.ne.s32.totalorder %s213, %s215
      %p222 = scmp.eq.s32.totalorder %s34, 3
      %p223 = por %p221, %p222
      %p224 = scmp.ne.s32.totalorder %s215, %s216
      %p225 = scmp.eq.s32.totalorder %s34, 0
      %p226 = por %p224, %p225
      %p227 = scmp.ne.s32.totalorder %s215, %s216
      %p228 = scmp.eq.s32.totalorder %s35, 3
      %p229 = por %p227, %p228
      %p231 = scmp.ne.s32.totalorder %s216, %s230
      %p232 = scmp.eq.s32.totalorder %s35, 0
      %p233 = por %p231, %p232
      %s235 = sadd.s32 %s234, 1
      %p238 = scmp.eq.s32.totalorder %s29, 3
      %p239 = scmp.ne.s32.totalorder %s234, %s236
      %p240 = scmp.eq.s32.totalorder %s29, 0
      %p241 = por %p239, %p240
      %p242 = scmp.ne.s32.totalorder %s234, %s236
      %p243 = scmp.eq.s32.totalorder %s34, 3
      %p244 = por %p242, %p243
      %p245 = scmp.ne.s32.totalorder %s236, %s237
      %p246 = scmp.eq.s32.totalorder %s34, 0
      %p247 = por %p245, %p246
      %p248 = scmp.ne.s32.totalorder %s236, %s237
      %p249 = scmp.eq.s32.totalorder %s35, 3
      %p250 = por %p248, %p249
      %p252 = scmp.ne.s32.totalorder %s237, %s251
      %p253 = scmp.eq.s32.totalorder %s35, 0
      %p254 = por %p252, %p253
      %s256 = sadd.s32 %s255, 1
      %p259 = scmp.eq.s32.totalorder %s29, 3
      %p260 = scmp.ne.s32.totalorder %s255, %s257
      %p261 = scmp.eq.s32.totalorder %s29, 0
      %p262 = por %p260, %p261
      %p263 = scmp.ne.s32.totalorder %s255, %s257
      %p264 = scmp.eq.s32.totalorder %s34, 3
      %p265 = por %p263, %p264
      %p266 = scmp.ne.s32.totalorder %s257, %s258
      %p267 = scmp.eq.s32.totalorder %s34, 0
      %p268 = por %p266, %p267
      %p269 = scmp.ne.s32.totalorder %s257, %s258
      %p270 = scmp.eq.s32.totalorder %s35, 3
      %p271 = por %p269, %p270
      %p273 = scmp.ne.s32.totalorder %s258, %s272
      %p274 = scmp.eq.s32.totalorder %s35, 0
      %p275 = por %p273, %p274
      %s276 = ssub.s32 %s36, %s48
      %s277 = ssub.s32 %s37, %s44
      %s278 = sor.u32 %s276, %s277
      %p279 = scmp.eq.s32.totalorder %s278, 0
      %s281 = sadd.s32 %s280, 1
      %s282 = scalar_select %p279, %s280, %s281
      %p285 = pneg %p279
      %p286 = scmp.eq.s32.totalorder %s29, 3
      %p287 = por %p285, %p286
      %p288 = scmp.ne.s32.totalorder %s280, %s283
      %p289 = scmp.eq.s32.totalorder %s29, 0
      %p290 = por %p288, %p289
      %p291 = scmp.ne.s32.totalorder %s280, %s283
      %p292 = scmp.eq.s32.totalorder %s34, 3
      %p293 = por %p291, %p292
      %p294 = scmp.ne.s32.totalorder %s283, %s284
      %p295 = scmp.eq.s32.totalorder %s34, 0
      %p296 = por %p294, %p295
      %p297 = scmp.ne.s32.totalorder %s283, %s284
      %p298 = scmp.eq.s32.totalorder %s35, 3
      %p299 = por %p297, %p298
      %p301 = scmp.ne.s32.totalorder %s284, %s300
      %p302 = scmp.eq.s32.totalorder %s35, 0
      %p303 = por %p301, %p302
      %p304 = scmp.le.s32.totalorder 1, %s29
      %p305 = scmp.lt.s32.totalorder %s29, 5
      %p306 = pnand %p304, %p305
      %p307 = pneg %p306
      // Predicated region
      $region9: #{tpu_custom_call.1} parent=5 // pred_check
        _
      $region10: #{tpu_custom_call.1} parent=5 // pred_check_branch
        %309 = sbr.rel (%p306) target = $region12
      $region11: #{tpu_custom_call.1} parent=5 // pred_region
        %s310 = ssub.s32 %s29, 1
        // Predicated region
        $region13: #{tpu_custom_call.1} parent=11 // pred_check
          %p311 = pneg %p142
        $region14: #{tpu_custom_call.1} parent=11 // pred_check_branch
          %313 = sbr.rel (%p311) target = $region16
        $region15: #{tpu_custom_call.1} parent=11 // pred_region
          _
        $region16: #{tpu_custom_call.1} parent=11 // pred_fallthru
          _
        // Predicated region
        $region17: #{tpu_custom_call.1} parent=11 // pred_check
          %p314 = pneg %p163
        $region18: #{tpu_custom_call.1} parent=11 // pred_check_branch
          %316 = sbr.rel (%p314) target = $region20
        $region19: #{tpu_custom_call.1} parent=11 // pred_region
          _
        $region20: #{tpu_custom_call.1} parent=11 // pred_fallthru
          _
        // Predicated region
        $region21: #{tpu_custom_call.1} parent=11 // pred_check
          %p317 = pneg %p184
        $region22: #{tpu_custom_call.1} parent=11 // pred_check_branch
          %319 = sbr.rel (%p317) target = $region24
        $region23: #{tpu_custom_call.1} parent=11 // pred_region
          %s321 = ssub.s32 128, 128
          %322 = vsyncadd [#allocation7], %s321
          %s324 = sshll.u32 %s5, 4
          %s325 = int_to_ptr.vmem [resolvable:$true] %s324
          %327 = dma.vmem_to_smem %s325, 128, [#allocation11], [#allocation7]
        $region24: #{tpu_custom_call.1} parent=11 // pred_fallthru
          _
        // Predicated region
        $region25: #{tpu_custom_call.1} parent=11 // pred_check
          %p328 = pneg %p205
        $region26: #{tpu_custom_call.1} parent=11 // pred_check_branch
          %330 = sbr.rel (%p328) target = $region28
        $region27: #{tpu_custom_call.1} parent=11 // pred_region
          %s332 = ssub.s32 128, 128
          %333 = vsyncadd [#allocation13], %s332
          %s335 = sshll.u32 %s6, 4
          %s336 = int_to_ptr.vmem [resolvable:$true] %s335
          %338 = dma.vmem_to_smem %s336, 128, [#allocation12], [#allocation13]
        $region28: #{tpu_custom_call.1} parent=11 // pred_fallthru
          _
        // Predicated region
        $region29: #{tpu_custom_call.1} parent=11 // pred_check
          %p339 = pneg %p226
        $region30: #{tpu_custom_call.1} parent=11 // pred_check_branch
          %341 = sbr.rel (%p339) target = $region32
        $region31: #{tpu_custom_call.1} parent=11 // pred_region
          %s343 = ssub.s32 16, 16
          %344 = vsyncadd [#allocation13], %s343
          %s346 = sshll.u32 %s7, 4
          %s347 = int_to_ptr.vmem [resolvable:$true] %s346
          %349 = dma.vmem_to_smem %s347, 16, [#allocation14], [#allocation13]
        $region32: #{tpu_custom_call.1} parent=11 // pred_fallthru
          _
        // Predicated region
        $region33: #{tpu_custom_call.1} parent=11 // pred_check
          %p350 = pneg %p247
        $region34: #{tpu_custom_call.1} parent=11 // pred_check_branch
          %352 = sbr.rel (%p350) target = $region36
        $region35: #{tpu_custom_call.1} parent=11 // pred_region
          %s354 = ssub.s32 16, 16
          %355 = vsyncadd [#allocation16], %s354
          %s357 = sshll.u32 %s8, 4
          %s358 = int_to_ptr.vmem [resolvable:$true] %s357
          %360 = dma.vmem_to_smem %s358, 16, [#allocation15], [#allocation16]
        $region36: #{tpu_custom_call.1} parent=11 // pred_fallthru
          _
        // Predicated region
        $region37: #{tpu_custom_call.1} parent=11 // pred_check
          %p361 = pneg %p268
        $region38: #{tpu_custom_call.1} parent=11 // pred_check_branch
          %363 = sbr.rel (%p361) target = $region40
        $region39: #{tpu_custom_call.1} parent=11 // pred_region
          _
        $region40: #{tpu_custom_call.1} parent=11 // pred_fallthru
          _
      $region12: #{tpu_custom_call.1} parent=5 // pred_fallthru
        _
      %p364 = scmp.lt.s32.totalorder %s29, 4
      // Predicated region
      $region41: #{tpu_custom_call.1} parent=5 // pred_check
        %p365 = pneg %p364
      $region42: #{tpu_custom_call.1} parent=5 // pred_check_branch
        %367 = sbr.rel (%p365) target = $region44
      $region43: #{tpu_custom_call.1} parent=5 // pred_region
        // Predicated region
        $region45: #{tpu_custom_call.1} parent=43 // pred_check
          %p368 = pneg %p61
        $region46: #{tpu_custom_call.1} parent=43 // pred_check_branch
          %370 = sbr.rel (%p368) target = $region48
        $region47: #{tpu_custom_call.1} parent=43 // pred_region
          %s371 = sand.u32 %s51, 1
          %s372 = scalar_lea.sflag [#allocation5], %s371
          %s373 = sand.u32 %s51, 1
          %s374 = smul.addr %s373, 512
          %s375 = scalar_lea.vmem [#allocation4], %s374
          %s377 = ssub.s32 8192, 8192
          %378 = vsyncadd %s372, %s377
          %s379 = smul.addr %s36, 64
          %s380 = smul.addr %s379, 128
          %s381 = scalar_lea.hbm %s0, %s380
          %s382 = sshll.u32 %s375, 4
          %s383 = int_to_ptr.vmem [resolvable:$true] %s382
          %388 = dma.hbm_to_vmem [thread:$0]  %s381, 8192, %s383, %s372, 128, 128, 8
        $region48: #{tpu_custom_call.1} parent=43 // pred_fallthru
          _
        // Predicated region
        $region49: #{tpu_custom_call.1} parent=43 // pred_check
          %p389 = pneg %p87
        $region50: #{tpu_custom_call.1} parent=43 // pred_check_branch
          %391 = sbr.rel (%p389) target = $region52
        $region51: #{tpu_custom_call.1} parent=43 // pred_region
          %s392 = sand.u32 %s29, 1
          %s393 = scalar_lea.sflag [#allocation9], %s392
          %s394 = sand.u32 %s77, 1
          %s395 = smul.addr %s394, 512
          %s396 = scalar_lea.vmem [#allocation8], %s395
          %s398 = ssub.s32 8192, 8192
          %399 = vsyncadd %s393, %s398
          %s400 = smul.addr %s36, 64
          %s401 = smul.addr %s400, 128
          %s402 = scalar_lea.hbm %s1, %s401
          %s403 = sshll.u32 %s396, 4
          %s404 = int_to_ptr.vmem [resolvable:$true] %s403
          %409 = dma.hbm_to_vmem [thread:$0]  %s402, 8192, %s404, %s393, 128, 128, 8
        $region52: #{tpu_custom_call.1} parent=43 // pred_fallthru
          _
        // Predicated region
        $region53: #{tpu_custom_call.1} parent=43 // pred_check
          %p410 = pneg %p115
        $region54: #{tpu_custom_call.1} parent=43 // pred_check_branch
          %412 = sbr.rel (%p410) target = $region56
        $region55: #{tpu_custom_call.1} parent=43 // pred_region
          %s413 = sand.u32 %s29, 1
          %s414 = scalar_lea.sflag [#allocation9], %s413
          %s415 = sand.u32 %s105, 1
          %s416 = smul.addr %s415, 128
          %s417 = scalar_lea.vmem [#allocation10], %s416
          %s418 = smul.u32 4, %s37
          %s420 = ssub.s32 2048, 2048
          %421 = vsyncadd %s414, %s420
          %s422 = smul.addr %s418, 4
          %s423 = smul.addr %s36, 32
          %s424 = sadd.s32 %s422, %s423
          %s425 = smul.addr %s424, 128
          %s426 = scalar_lea.hbm %s2, %s425
          %s427 = sshll.u32 %s417, 4
          %s428 = int_to_ptr.vmem [resolvable:$true] %s427
          %433 = dma.hbm_to_vmem [thread:$0]  %s426, 2048, %s428, %s414, 256, 256, 16
        $region56: #{tpu_custom_call.1} parent=43 // pred_fallthru
          _
      $region44: #{tpu_custom_call.1} parent=5 // pred_fallthru
        _
      %p434 = scmp.le.s32.totalorder 1, %s29
      %p435 = scmp.lt.s32.totalorder %s29, 5
      %p436 = pnand %p434, %p435
      %p437 = pneg %p436
      // Predicated region
      $region57: #{tpu_custom_call.1} parent=5 // pred_check
        _
      $region58: #{tpu_custom_call.1} parent=5 // pred_check_branch
        %439 = sbr.rel (%p436) target = $region60
      $region59: #{tpu_custom_call.1} parent=5 // pred_region
        %s440 = ssub.s32 %s29, 1
        %s441 = sand.u32 %s54, 1
        %s442 = scalar_lea.sflag [#allocation5], %s441
        %s443 = sand.u32 %s54, 1
        %s444 = smul.addr %s443, 512
        %s445 = scalar_lea.vmem [#allocation4], %s444
        // Predicated region
        $region61: #{tpu_custom_call.1} parent=59 // pred_check
          %p446 = pneg %p67
        $region62: #{tpu_custom_call.1} parent=59 // pred_check_branch
          %448 = sbr.rel (%p446) target = $region64
        $region63: #{tpu_custom_call.1} parent=59 // pred_region
          %449 = dma.done %s442, 8192
        $region64: #{tpu_custom_call.1} parent=59 // pred_fallthru
          _
        %s450 = sand.u32 %s34, 1
        %s451 = scalar_lea.sflag [#allocation9], %s450
        %s452 = sand.u32 %s80, 1
        %s453 = smul.addr %s452, 512
        %s454 = scalar_lea.vmem [#allocation8], %s453
        // Predicated region
        $region65: #{tpu_custom_call.1} parent=59 // pred_check
          %p455 = pneg %p93
        $region66: #{tpu_custom_call.1} parent=59 // pred_check_branch
          %457 = sbr.rel (%p455) target = $region68
        $region67: #{tpu_custom_call.1} parent=59 // pred_region
          %458 = dma.done %s451, 8192
        $region68: #{tpu_custom_call.1} parent=59 // pred_fallthru
          _
        %s459 = sand.u32 %s34, 1
        %s460 = scalar_lea.sflag [#allocation9], %s459
        %s461 = sand.u32 %s108, 1
        %s462 = smul.addr %s461, 128
        %s463 = scalar_lea.vmem [#allocation10], %s462
        // Predicated region
        $region69: #{tpu_custom_call.1} parent=59 // pred_check
          %p464 = pneg %p121
        $region70: #{tpu_custom_call.1} parent=59 // pred_check_branch
          %466 = sbr.rel (%p464) target = $region72
        $region71: #{tpu_custom_call.1} parent=59 // pred_region
          %467 = dma.done %s460, 2048
        $region72: #{tpu_custom_call.1} parent=59 // pred_fallthru
          _
        // Predicated region
        $region73: #{tpu_custom_call.1} parent=59 // pred_check
          %p468 = pneg %p184
        $region74: #{tpu_custom_call.1} parent=59 // pred_check_branch
          %470 = sbr.rel (%p468) target = $region76
        $region75: #{tpu_custom_call.1} parent=59 // pred_region
          %471 = dma.done [#allocation7], 128
        $region76: #{tpu_custom_call.1} parent=59 // pred_fallthru
          _
        // Predicated region
        $region77: #{tpu_custom_call.1} parent=59 // pred_check
          %p472 = pneg %p205
        $region78: #{tpu_custom_call.1} parent=59 // pred_check_branch
          %474 = sbr.rel (%p472) target = $region80
        $region79: #{tpu_custom_call.1} parent=59 // pred_region
          %475 = dma.done [#allocation13], 128
        $region80: #{tpu_custom_call.1} parent=59 // pred_fallthru
          _
        // Predicated region
        $region81: #{tpu_custom_call.1} parent=59 // pred_check
          %p476 = pneg %p226
        $region82: #{tpu_custom_call.1} parent=59 // pred_check_branch
          %478 = sbr.rel (%p476) target = $region84
        $region83: #{tpu_custom_call.1} parent=59 // pred_region
          %479 = dma.done [#allocation13], 16
        $region84: #{tpu_custom_call.1} parent=59 // pred_fallthru
          _
        // Predicated region
        $region85: #{tpu_custom_call.1} parent=59 // pred_check
          %p480 = pneg %p247
        $region86: #{tpu_custom_call.1} parent=59 // pred_check_branch
          %482 = sbr.rel (%p480) target = $region88
        $region87: #{tpu_custom_call.1} parent=59 // pred_region
          %483 = dma.done [#allocation16], 16
        $region88: #{tpu_custom_call.1} parent=59 // pred_fallthru
          _
        %484 = sfence
        %s485 = sand.u32 %s54, 1
        %s486 = scalar_lea.sflag [#allocation5], %s485
        %s487 = sand.u32 %s54, 1
        %s488 = smul.addr %s487, 512
        %s489 = scalar_lea.vmem [#allocation4], %s488
        %p490 = pneg %p67
        %p491 = pneg %p64
        %s492 = sand.u32 %s34, 1
        %s493 = scalar_lea.sflag [#allocation9], %s492
        %s494 = sand.u32 %s80, 1
        %s495 = smul.addr %s494, 512
        %s496 = scalar_lea.vmem [#allocation8], %s495
        %p497 = pneg %p93
        %p498 = pneg %p90
        %s499 = sand.u32 %s34, 1
        %s500 = scalar_lea.sflag [#allocation9], %s499
        %s501 = sand.u32 %s108, 1
        %s502 = smul.addr %s501, 128
        %s503 = scalar_lea.vmem [#allocation10], %s502
        %p504 = pneg %p121
        %p505 = pneg %p118
        %p506 = pneg %p142
        %p507 = pneg %p139
        %p508 = pneg %p163
        %p509 = pneg %p160
        %p510 = pneg %p184
        %p511 = pneg %p181
        %p512 = pneg %p205
        %p513 = pneg %p202
        %p514 = pneg %p226
        %p515 = pneg %p223
        %p516 = pneg %p247
        %p517 = pneg %p244
        %p518 = pneg %p268
        %p519 = pneg %p265
        %p520 = pneg %p296
        %p521 = pneg %p293
        %s522 = sand.u32 %s283, 1
        %s523 = scalar_lea.sflag [#allocation6], %s522
        %s524 = sand.u32 %s283, 1
        %s525 = smul.addr %s524, 128
        %s526 = scalar_lea.vmem [#allocation17], %s525
        %s527 = smul.u32 4, %s39
        %s528 = smul.u32 4, %s39
        %s529 = smul.u32 0, 8
        %s530 = scalar_lea.vmem %s445, %s529 [#allocation4]
        %v531 = vld [vmem:[%s530] sm:$0xff]
        %v532 = vld [vmem:[%s530 + $0x8] sm:$0xff]
        %v533 = vld [vmem:[%s530 + $0x10] sm:$0xff]
        %v534 = vld [vmem:[%s530 + $0x18] sm:$0xff]
        %v535 = vld [vmem:[%s530 + $0x20] sm:$0xff]
        %v536 = vld [vmem:[%s530 + $0x28] sm:$0xff]
        %v537 = vld [vmem:[%s530 + $0x30] sm:$0xff]
        %v538 = vld [vmem:[%s530 + $0x38] sm:$0xff]
        %s539 = sld [smem:[#allocation11]]
        %v540 = vstv %s539
        %v541 = vmul.f32 %v531, %v540
        %v542 = vmul.f32 %v532, %v540
        %v543 = vmul.f32 %v533, %v540
        %v544 = vmul.f32 %v534, %v540
        %v545 = vmul.f32 %v535, %v540
        %v546 = vmul.f32 %v536, %v540
        %v547 = vmul.f32 %v537, %v540
        %v548 = vmul.f32 %v538, %v540
        %v549 = vadd.f32 %v541, 0.0
        %v550 = vadd.f32 %v542, 0.0
        %v551 = vadd.f32 %v543, 0.0
        %v552 = vadd.f32 %v544, 0.0
        %v553 = vadd.f32 %v545, 0.0
        %v554 = vadd.f32 %v546, 0.0
        %v555 = vadd.f32 %v547, 0.0
        %v556 = vadd.f32 %v548, 0.0
        %s557 = sadd.s32 %s529, 64
        %s558 = scalar_lea.vmem %s445, %s557 [#allocation4]
        %v559 = vld [vmem:[%s558] sm:$0xff]
        %v560 = vld [vmem:[%s558 + $0x8] sm:$0xff]
        %v561 = vld [vmem:[%s558 + $0x10] sm:$0xff]
        %v562 = vld [vmem:[%s558 + $0x18] sm:$0xff]
        %v563 = vld [vmem:[%s558 + $0x20] sm:$0xff]
        %v564 = vld [vmem:[%s558 + $0x28] sm:$0xff]
        %v565 = vld [vmem:[%s558 + $0x30] sm:$0xff]
        %v566 = vld [vmem:[%s558 + $0x38] sm:$0xff]
        %s567 = sld [smem:[#allocation11 + $0x1]]
        %v568 = vstv %s567
        %v569 = vmul.f32 %v559, %v568
        %v570 = vmul.f32 %v560, %v568
        %v571 = vmul.f32 %v561, %v568
        %v572 = vmul.f32 %v562, %v568
        %v573 = vmul.f32 %v563, %v568
        %v574 = vmul.f32 %v564, %v568
        %v575 = vmul.f32 %v565, %v568
        %v576 = vmul.f32 %v566, %v568
        %v577 = vadd.f32 %v549, %v569
        %v578 = vadd.f32 %v550, %v570
        %v579 = vadd.f32 %v551, %v571
        %v580 = vadd.f32 %v552, %v572
        %v581 = vadd.f32 %v553, %v573
        %v582 = vadd.f32 %v554, %v574
        %v583 = vadd.f32 %v555, %v575
        %v584 = vadd.f32 %v556, %v576
        %s585 = sadd.s32 %s529, 128
        %s586 = scalar_lea.vmem %s445, %s585 [#allocation4]
        %v587 = vld [vmem:[%s586] sm:$0xff]
        %v588 = vld [vmem:[%s586 + $0x8] sm:$0xff]
        %v589 = vld [vmem:[%s586 + $0x10] sm:$0xff]
        %v590 = vld [vmem:[%s586 + $0x18] sm:$0xff]
        %v591 = vld [vmem:[%s586 + $0x20] sm:$0xff]
        %v592 = vld [vmem:[%s586 + $0x28] sm:$0xff]
        %v593 = vld [vmem:[%s586 + $0x30] sm:$0xff]
        %v594 = vld [vmem:[%s586 + $0x38] sm:$0xff]
        %s595 = sld [smem:[#allocation11 + $0x2]]
        %v596 = vstv %s595
        %v597 = vmul.f32 %v587, %v596
        %v598 = vmul.f32 %v588, %v596
        %v599 = vmul.f32 %v589, %v596
        %v600 = vmul.f32 %v590, %v596
        %v601 = vmul.f32 %v591, %v596
        %v602 = vmul.f32 %v592, %v596
        %v603 = vmul.f32 %v593, %v596
        %v604 = vmul.f32 %v594, %v596
        %v605 = vadd.f32 %v577, %v597
        %v606 = vadd.f32 %v578, %v598
        %v607 = vadd.f32 %v579, %v599
        %v608 = vadd.f32 %v580, %v600
        %v609 = vadd.f32 %v581, %v601
        %v610 = vadd.f32 %v582, %v602
        %v611 = vadd.f32 %v583, %v603
        %v612 = vadd.f32 %v584, %v604
        %s613 = sadd.s32 %s529, 192
        %s614 = scalar_lea.vmem %s445, %s613 [#allocation4]
        %v615 = vld [vmem:[%s614] sm:$0xff]
        %v616 = vld [vmem:[%s614 + $0x8] sm:$0xff]
        %v617 = vld [vmem:[%s614 + $0x10] sm:$0xff]
        %v618 = vld [vmem:[%s614 + $0x18] sm:$0xff]
        %v619 = vld [vmem:[%s614 + $0x20] sm:$0xff]
        %v620 = vld [vmem:[%s614 + $0x28] sm:$0xff]
        %v621 = vld [vmem:[%s614 + $0x30] sm:$0xff]
        %v622 = vld [vmem:[%s614 + $0x38] sm:$0xff]
        %s623 = sld [smem:[#allocation11 + $0x3]]
        %v624 = vstv %s623
        %v625 = vmul.f32 %v615, %v624
        %v626 = vmul.f32 %v616, %v624
        %v627 = vmul.f32 %v617, %v624
        %v628 = vmul.f32 %v618, %v624
        %v629 = vmul.f32 %v619, %v624
        %v630 = vmul.f32 %v620, %v624
        %v631 = vmul.f32 %v621, %v624
        %v632 = vmul.f32 %v622, %v624
        %v633 = vadd.f32 %v605, %v625
        %v634 = vadd.f32 %v606, %v626
        %v635 = vadd.f32 %v607, %v627
        %v636 = vadd.f32 %v608, %v628
        %v637 = vadd.f32 %v609, %v629
        %v638 = vadd.f32 %v610, %v630
        %v639 = vadd.f32 %v611, %v631
        %v640 = vadd.f32 %v612, %v632
        %s641 = sadd.s32 %s529, 256
        %s642 = scalar_lea.vmem %s445, %s641 [#allocation4]
        %v643 = vld [vmem:[%s642] sm:$0xff]
        %v644 = vld [vmem:[%s642 + $0x8] sm:$0xff]
        %v645 = vld [vmem:[%s642 + $0x10] sm:$0xff]
        %v646 = vld [vmem:[%s642 + $0x18] sm:$0xff]
        %v647 = vld [vmem:[%s642 + $0x20] sm:$0xff]
        %v648 = vld [vmem:[%s642 + $0x28] sm:$0xff]
        %v649 = vld [vmem:[%s642 + $0x30] sm:$0xff]
        %v650 = vld [vmem:[%s642 + $0x38] sm:$0xff]
        %s651 = sld [smem:[#allocation11 + $0x4]]
        %v652 = vstv %s651
        %v653 = vmul.f32 %v643, %v652
        %v654 = vmul.f32 %v644, %v652
        %v655 = vmul.f32 %v645, %v652
        %v656 = vmul.f32 %v646, %v652
        %v657 = vmul.f32 %v647, %v652
        %v658 = vmul.f32 %v648, %v652
        %v659 = vmul.f32 %v649, %v652
        %v660 = vmul.f32 %v650, %v652
        %v661 = vadd.f32 %v633, %v653
        %v662 = vadd.f32 %v634, %v654
        %v663 = vadd.f32 %v635, %v655
        %v664 = vadd.f32 %v636, %v656
        %v665 = vadd.f32 %v637, %v657
        %v666 = vadd.f32 %v638, %v658
        %v667 = vadd.f32 %v639, %v659
        %v668 = vadd.f32 %v640, %v660
        %s669 = sadd.s32 %s529, 320
        %s670 = scalar_lea.vmem %s445, %s669 [#allocation4]
        %v671 = vld [vmem:[%s670] sm:$0xff]
        %v672 = vld [vmem:[%s670 + $0x8] sm:$0xff]
        %v673 = vld [vmem:[%s670 + $0x10] sm:$0xff]
        %v674 = vld [vmem:[%s670 + $0x18] sm:$0xff]
        %v675 = vld [vmem:[%s670 + $0x20] sm:$0xff]
        %v676 = vld [vmem:[%s670 + $0x28] sm:$0xff]
        %v677 = vld [vmem:[%s670 + $0x30] sm:$0xff]
        %v678 = vld [vmem:[%s670 + $0x38] sm:$0xff]
        %s679 = sld [smem:[#allocation11 + $0x5]]
        %v680 = vstv %s679
        %v681 = vmul.f32 %v671, %v680
        %v682 = vmul.f32 %v672, %v680
        %v683 = vmul.f32 %v673, %v680
        %v684 = vmul.f32 %v674, %v680
        %v685 = vmul.f32 %v675, %v680
        %v686 = vmul.f32 %v676, %v680
        %v687 = vmul.f32 %v677, %v680
        %v688 = vmul.f32 %v678, %v680
        %v689 = vadd.f32 %v661, %v681
        %v690 = vadd.f32 %v662, %v682
        %v691 = vadd.f32 %v663, %v683
        %v692 = vadd.f32 %v664, %v684
        %v693 = vadd.f32 %v665, %v685
        %v694 = vadd.f32 %v666, %v686
        %v695 = vadd.f32 %v667, %v687
        %v696 = vadd.f32 %v668, %v688
        %s697 = sadd.s32 %s529, 384
        %s698 = scalar_lea.vmem %s445, %s697 [#allocation4]
        %v699 = vld [vmem:[%s698] sm:$0xff]
        %v700 = vld [vmem:[%s698 + $0x8] sm:$0xff]
        %v701 = vld [vmem:[%s698 + $0x10] sm:$0xff]
        %v702 = vld [vmem:[%s698 + $0x18] sm:$0xff]
        %v703 = vld [vmem:[%s698 + $0x20] sm:$0xff]
        %v704 = vld [vmem:[%s698 + $0x28] sm:$0xff]
        %v705 = vld [vmem:[%s698 + $0x30] sm:$0xff]
        %v706 = vld [vmem:[%s698 + $0x38] sm:$0xff]
        %s707 = sld [smem:[#allocation11 + $0x6]]
        %v708 = vstv %s707
        %v709 = vmul.f32 %v699, %v708
        %v710 = vmul.f32 %v700, %v708
        %v711 = vmul.f32 %v701, %v708
        %v712 = vmul.f32 %v702, %v708
        %v713 = vmul.f32 %v703, %v708
        %v714 = vmul.f32 %v704, %v708
        %v715 = vmul.f32 %v705, %v708
        %v716 = vmul.f32 %v706, %v708
        %v717 = vadd.f32 %v689, %v709
        %v718 = vadd.f32 %v690, %v710
        %v719 = vadd.f32 %v691, %v711
        %v720 = vadd.f32 %v692, %v712
        %v721 = vadd.f32 %v693, %v713
        %v722 = vadd.f32 %v694, %v714
        %v723 = vadd.f32 %v695, %v715
        %v724 = vadd.f32 %v696, %v716
        %s725 = sadd.s32 %s529, 448
        %s726 = scalar_lea.vmem %s445, %s725 [#allocation4]
        %v727 = vld [vmem:[%s726] sm:$0xff]
        %v728 = vld [vmem:[%s726 + $0x8] sm:$0xff]
        %v729 = vld [vmem:[%s726 + $0x10] sm:$0xff]
        %v730 = vld [vmem:[%s726 + $0x18] sm:$0xff]
        %v731 = vld [vmem:[%s726 + $0x20] sm:$0xff]
        %v732 = vld [vmem:[%s726 + $0x28] sm:$0xff]
        %v733 = vld [vmem:[%s726 + $0x30] sm:$0xff]
        %v734 = vld [vmem:[%s726 + $0x38] sm:$0xff]
        %s735 = sld [smem:[#allocation11 + $0x7]]
        %v736 = vstv %s735
        %v737 = vmul.f32 %v727, %v736
        %v738 = vmul.f32 %v728, %v736
        %v739 = vmul.f32 %v729, %v736
        %v740 = vmul.f32 %v730, %v736
        %v741 = vmul.f32 %v731, %v736
        %v742 = vmul.f32 %v732, %v736
        %v743 = vmul.f32 %v733, %v736
        %v744 = vmul.f32 %v734, %v736
        %v745 = vadd.f32 %v717, %v737
        %v746 = vadd.f32 %v718, %v738
        %v747 = vadd.f32 %v719, %v739
        %v748 = vadd.f32 %v720, %v740
        %v749 = vadd.f32 %v721, %v741
        %v750 = vadd.f32 %v722, %v742
        %v751 = vadd.f32 %v723, %v743
        %v752 = vadd.f32 %v724, %v744
        %s753 = scalar_lea.vmem %s454, %s529 [#allocation8]
        %v754 = vld [vmem:[%s753] sm:$0xff]
        %v755 = vld [vmem:[%s753 + $0x8] sm:$0xff]
        %v756 = vld [vmem:[%s753 + $0x10] sm:$0xff]
        %v757 = vld [vmem:[%s753 + $0x18] sm:$0xff]
        %v758 = vld [vmem:[%s753 + $0x20] sm:$0xff]
        %v759 = vld [vmem:[%s753 + $0x28] sm:$0xff]
        %v760 = vld [vmem:[%s753 + $0x30] sm:$0xff]
        %v761 = vld [vmem:[%s753 + $0x38] sm:$0xff]
        %s762 = sld [smem:[#allocation12]]
        %v763 = vstv %s762
        %v764 = vmul.f32 %v754, %v763
        %v765 = vmul.f32 %v755, %v763
        %v766 = vmul.f32 %v756, %v763
        %v767 = vmul.f32 %v757, %v763
        %v768 = vmul.f32 %v758, %v763
        %v769 = vmul.f32 %v759, %v763
        %v770 = vmul.f32 %v760, %v763
        %v771 = vmul.f32 %v761, %v763
        %v772 = vadd.f32 %v745, %v764
        %v773 = vadd.f32 %v746, %v765
        %v774 = vadd.f32 %v747, %v766
        %v775 = vadd.f32 %v748, %v767
        %v776 = vadd.f32 %v749, %v768
        %v777 = vadd.f32 %v750, %v769
        %v778 = vadd.f32 %v751, %v770
        %v779 = vadd.f32 %v752, %v771
        %s780 = scalar_lea.vmem %s454, %s557 [#allocation8]
        %v781 = vld [vmem:[%s780] sm:$0xff]
        %v782 = vld [vmem:[%s780 + $0x8] sm:$0xff]
        %v783 = vld [vmem:[%s780 + $0x10] sm:$0xff]
        %v784 = vld [vmem:[%s780 + $0x18] sm:$0xff]
        %v785 = vld [vmem:[%s780 + $0x20] sm:$0xff]
        %v786 = vld [vmem:[%s780 + $0x28] sm:$0xff]
        %v787 = vld [vmem:[%s780 + $0x30] sm:$0xff]
        %v788 = vld [vmem:[%s780 + $0x38] sm:$0xff]
        %s789 = sld [smem:[#allocation12 + $0x1]]
        %v790 = vstv %s789
        %v791 = vmul.f32 %v781, %v790
        %v792 = vmul.f32 %v782, %v790
        %v793 = vmul.f32 %v783, %v790
        %v794 = vmul.f32 %v784, %v790
        %v795 = vmul.f32 %v785, %v790
        %v796 = vmul.f32 %v786, %v790
        %v797 = vmul.f32 %v787, %v790
        %v798 = vmul.f32 %v788, %v790
        %v799 = vadd.f32 %v772, %v791
        %v800 = vadd.f32 %v773, %v792
        %v801 = vadd.f32 %v774, %v793
        %v802 = vadd.f32 %v775, %v794
        %v803 = vadd.f32 %v776, %v795
        %v804 = vadd.f32 %v777, %v796
        %v805 = vadd.f32 %v778, %v797
        %v806 = vadd.f32 %v779, %v798
        %s807 = scalar_lea.vmem %s454, %s585 [#allocation8]
        %v808 = vld [vmem:[%s807] sm:$0xff]
        %v809 = vld [vmem:[%s807 + $0x8] sm:$0xff]
        %v810 = vld [vmem:[%s807 + $0x10] sm:$0xff]
        %v811 = vld [vmem:[%s807 + $0x18] sm:$0xff]
        %v812 = vld [vmem:[%s807 + $0x20] sm:$0xff]
        %v813 = vld [vmem:[%s807 + $0x28] sm:$0xff]
        %v814 = vld [vmem:[%s807 + $0x30] sm:$0xff]
        %v815 = vld [vmem:[%s807 + $0x38] sm:$0xff]
        %s816 = sld [smem:[#allocation12 + $0x2]]
        %v817 = vstv %s816
        %v818 = vmul.f32 %v808, %v817
        %v819 = vmul.f32 %v809, %v817
        %v820 = vmul.f32 %v810, %v817
        %v821 = vmul.f32 %v811, %v817
        %v822 = vmul.f32 %v812, %v817
        %v823 = vmul.f32 %v813, %v817
        %v824 = vmul.f32 %v814, %v817
        %v825 = vmul.f32 %v815, %v817
        %v826 = vadd.f32 %v799, %v818
        %v827 = vadd.f32 %v800, %v819
        %v828 = vadd.f32 %v801, %v820
        %v829 = vadd.f32 %v802, %v821
        %v830 = vadd.f32 %v803, %v822
        %v831 = vadd.f32 %v804, %v823
        %v832 = vadd.f32 %v805, %v824
        %v833 = vadd.f32 %v806, %v825
        %s834 = scalar_lea.vmem %s454, %s613 [#allocation8]
        %v835 = vld [vmem:[%s834] sm:$0xff]
        %v836 = vld [vmem:[%s834 + $0x8] sm:$0xff]
        %v837 = vld [vmem:[%s834 + $0x10] sm:$0xff]
        %v838 = vld [vmem:[%s834 + $0x18] sm:$0xff]
        %v839 = vld [vmem:[%s834 + $0x20] sm:$0xff]
        %v840 = vld [vmem:[%s834 + $0x28] sm:$0xff]
        %v841 = vld [vmem:[%s834 + $0x30] sm:$0xff]
        %v842 = vld [vmem:[%s834 + $0x38] sm:$0xff]
        %s843 = sld [smem:[#allocation12 + $0x3]]
        %v844 = vstv %s843
        %v845 = vmul.f32 %v835, %v844
        %v846 = vmul.f32 %v836, %v844
        %v847 = vmul.f32 %v837, %v844
        %v848 = vmul.f32 %v838, %v844
        %v849 = vmul.f32 %v839, %v844
        %v850 = vmul.f32 %v840, %v844
        %v851 = vmul.f32 %v841, %v844
        %v852 = vmul.f32 %v842, %v844
        %v853 = vadd.f32 %v826, %v845
        %v854 = vadd.f32 %v827, %v846
        %v855 = vadd.f32 %v828, %v847
        %v856 = vadd.f32 %v829, %v848
        %v857 = vadd.f32 %v830, %v849
        %v858 = vadd.f32 %v831, %v850
        %v859 = vadd.f32 %v832, %v851
        %v860 = vadd.f32 %v833, %v852
        %s861 = scalar_lea.vmem %s454, %s641 [#allocation8]
        %v862 = vld [vmem:[%s861] sm:$0xff]
        %v863 = vld [vmem:[%s861 + $0x8] sm:$0xff]
        %v864 = vld [vmem:[%s861 + $0x10] sm:$0xff]
        %v865 = vld [vmem:[%s861 + $0x18] sm:$0xff]
        %v866 = vld [vmem:[%s861 + $0x20] sm:$0xff]
        %v867 = vld [vmem:[%s861 + $0x28] sm:$0xff]
        %v868 = vld [vmem:[%s861 + $0x30] sm:$0xff]
        %v869 = vld [vmem:[%s861 + $0x38] sm:$0xff]
        %s870 = sld [smem:[#allocation12 + $0x4]]
        %v871 = vstv %s870
        %v872 = vmul.f32 %v862, %v871
        %v873 = vmul.f32 %v863, %v871
        %v874 = vmul.f32 %v864, %v871
        %v875 = vmul.f32 %v865, %v871
        %v876 = vmul.f32 %v866, %v871
        %v877 = vmul.f32 %v867, %v871
        %v878 = vmul.f32 %v868, %v871
        %v879 = vmul.f32 %v869, %v871
        %v880 = vadd.f32 %v853, %v872
        %v881 = vadd.f32 %v854, %v873
        %v882 = vadd.f32 %v855, %v874
        %v883 = vadd.f32 %v856, %v875
        %v884 = vadd.f32 %v857, %v876
        %v885 = vadd.f32 %v858, %v877
        %v886 = vadd.f32 %v859, %v878
        %v887 = vadd.f32 %v860, %v879
        %s888 = scalar_lea.vmem %s454, %s669 [#allocation8]
        %v889 = vld [vmem:[%s888] sm:$0xff]
        %v890 = vld [vmem:[%s888 + $0x8] sm:$0xff]
        %v891 = vld [vmem:[%s888 + $0x10] sm:$0xff]
        %v892 = vld [vmem:[%s888 + $0x18] sm:$0xff]
        %v893 = vld [vmem:[%s888 + $0x20] sm:$0xff]
        %v894 = vld [vmem:[%s888 + $0x28] sm:$0xff]
        %v895 = vld [vmem:[%s888 + $0x30] sm:$0xff]
        %v896 = vld [vmem:[%s888 + $0x38] sm:$0xff]
        %s897 = sld [smem:[#allocation12 + $0x5]]
        %v898 = vstv %s897
        %v899 = vmul.f32 %v889, %v898
        %v900 = vmul.f32 %v890, %v898
        %v901 = vmul.f32 %v891, %v898
        %v902 = vmul.f32 %v892, %v898
        %v903 = vmul.f32 %v893, %v898
        %v904 = vmul.f32 %v894, %v898
        %v905 = vmul.f32 %v895, %v898
        %v906 = vmul.f32 %v896, %v898
        %v907 = vadd.f32 %v880, %v899
        %v908 = vadd.f32 %v881, %v900
        %v909 = vadd.f32 %v882, %v901
        %v910 = vadd.f32 %v883, %v902
        %v911 = vadd.f32 %v884, %v903
        %v912 = vadd.f32 %v885, %v904
        %v913 = vadd.f32 %v886, %v905
        %v914 = vadd.f32 %v887, %v906
        %s915 = scalar_lea.vmem %s454, %s697 [#allocation8]
        %v916 = vld [vmem:[%s915] sm:$0xff]
        %v917 = vld [vmem:[%s915 + $0x8] sm:$0xff]
        %v918 = vld [vmem:[%s915 + $0x10] sm:$0xff]
        %v919 = vld [vmem:[%s915 + $0x18] sm:$0xff]
        %v920 = vld [vmem:[%s915 + $0x20] sm:$0xff]
        %v921 = vld [vmem:[%s915 + $0x28] sm:$0xff]
        %v922 = vld [vmem:[%s915 + $0x30] sm:$0xff]
        %v923 = vld [vmem:[%s915 + $0x38] sm:$0xff]
        %s924 = sld [smem:[#allocation12 + $0x6]]
        %v925 = vstv %s924
        %v926 = vmul.f32 %v916, %v925
        %v927 = vmul.f32 %v917, %v925
        %v928 = vmul.f32 %v918, %v925
        %v929 = vmul.f32 %v919, %v925
        %v930 = vmul.f32 %v920, %v925
        %v931 = vmul.f32 %v921, %v925
        %v932 = vmul.f32 %v922, %v925
        %v933 = vmul.f32 %v923, %v925
        %v934 = vadd.f32 %v907, %v926
        %v935 = vadd.f32 %v908, %v927
        %v936 = vadd.f32 %v909, %v928
        %v937 = vadd.f32 %v910, %v929
        %v938 = vadd.f32 %v911, %v930
        %v939 = vadd.f32 %v912, %v931
        %v940 = vadd.f32 %v913, %v932
        %v941 = vadd.f32 %v914, %v933
        %s942 = scalar_lea.vmem %s454, %s725 [#allocation8]
        %v943 = vld [vmem:[%s942] sm:$0xff]
        %v944 = vld [vmem:[%s942 + $0x8] sm:$0xff]
        %v945 = vld [vmem:[%s942 + $0x10] sm:$0xff]
        %v946 = vld [vmem:[%s942 + $0x18] sm:$0xff]
        %v947 = vld [vmem:[%s942 + $0x20] sm:$0xff]
        %v948 = vld [vmem:[%s942 + $0x28] sm:$0xff]
        %v949 = vld [vmem:[%s942 + $0x30] sm:$0xff]
        %v950 = vld [vmem:[%s942 + $0x38] sm:$0xff]
        %s951 = sld [smem:[#allocation12 + $0x7]]
        %v952 = vstv %s951
        %v953 = vmul.f32 %v943, %v952
        %v954 = vmul.f32 %v944, %v952
        %v955 = vmul.f32 %v945, %v952
        %v956 = vmul.f32 %v946, %v952
        %v957 = vmul.f32 %v947, %v952
        %v958 = vmul.f32 %v948, %v952
        %v959 = vmul.f32 %v949, %v952
        %v960 = vmul.f32 %v950, %v952
        %v961 = vadd.f32 %v934, %v953
        %v962 = vadd.f32 %v935, %v954
        %v963 = vadd.f32 %v936, %v955
        %v964 = vadd.f32 %v937, %v956
        %v965 = vadd.f32 %v938, %v957
        %v966 = vadd.f32 %v939, %v958
        %v967 = vadd.f32 %v940, %v959
        %v968 = vadd.f32 %v941, %v960
        %s969 = sld [smem:[#allocation14]]
        %v970 = vstv %s969
        %v971 = vadd.f32 %v961, %v970
        %v972 = vadd.f32 %v962, %v970
        %v973 = vadd.f32 %v963, %v970
        %v974 = vadd.f32 %v964, %v970
        %v975 = vadd.f32 %v965, %v970
        %v976 = vadd.f32 %v966, %v970
        %v977 = vadd.f32 %v967, %v970
        %v978 = vadd.f32 %v968, %v970
        %v979 = vmax.f32 %v971, 0.0
        %v980 = vmax.f32 %v972, 0.0
        %v981 = vmax.f32 %v973, 0.0
        %v982 = vmax.f32 %v974, 0.0
        %v983 = vmax.f32 %v975, 0.0
        %v984 = vmax.f32 %v976, 0.0
        %v985 = vmax.f32 %v977, 0.0
        %v986 = vmax.f32 %v978, 0.0
        %s987 = sld [smem:[#allocation15]]
        %v988 = vstv %s987
        %v989 = vmul.f32 %v979, %v988
        %v990 = vmul.f32 %v980, %v988
        %v991 = vmul.f32 %v981, %v988
        %v992 = vmul.f32 %v982, %v988
        %v993 = vmul.f32 %v983, %v988
        %v994 = vmul.f32 %v984, %v988
        %v995 = vmul.f32 %v985, %v988
        %v996 = vmul.f32 %v986, %v988
        %v997 = vadd.f32 %v989, 0.0
        %v998 = vadd.f32 %v990, 0.0
        %v999 = vadd.f32 %v991, 0.0
        %v1000 = vadd.f32 %v992, 0.0
        %v1001 = vadd.f32 %v993, 0.0
        %v1002 = vadd.f32 %v994, 0.0
        %v1003 = vadd.f32 %v995, 0.0
        %v1004 = vadd.f32 %v996, 0.0
        %s1005 = sld [smem:[#allocation11 + $0x80]]
        %v1006 = vstv %s1005
        %v1007 = vmul.f32 %v531, %v1006
        %v1008 = vmul.f32 %v532, %v1006
        %v1009 = vmul.f32 %v533, %v1006
        %v1010 = vmul.f32 %v534, %v1006
        %v1011 = vmul.f32 %v535, %v1006
        %v1012 = vmul.f32 %v536, %v1006
        %v1013 = vmul.f32 %v537, %v1006
        %v1014 = vmul.f32 %v538, %v1006
        %v1015 = vadd.f32 %v1007, 0.0
        %v1016 = vadd.f32 %v1008, 0.0
        %v1017 = vadd.f32 %v1009, 0.0
        %v1018 = vadd.f32 %v1010, 0.0
        %v1019 = vadd.f32 %v1011, 0.0
        %v1020 = vadd.f32 %v1012, 0.0
        %v1021 = vadd.f32 %v1013, 0.0
        %v1022 = vadd.f32 %v1014, 0.0
        %s1023 = sld [smem:[#allocation11 + $0x81]]
        %v1024 = vstv %s1023
        %v1025 = vmul.f32 %v559, %v1024
        %v1026 = vmul.f32 %v560, %v1024
        %v1027 = vmul.f32 %v561, %v1024
        %v1028 = vmul.f32 %v562, %v1024
        %v1029 = vmul.f32 %v563, %v1024
        %v1030 = vmul.f32 %v564, %v1024
        %v1031 = vmul.f32 %v565, %v1024
        %v1032 = vmul.f32 %v566, %v1024
        %v1033 = vadd.f32 %v1015, %v1025
        %v1034 = vadd.f32 %v1016, %v1026
        %v1035 = vadd.f32 %v1017, %v1027
        %v1036 = vadd.f32 %v1018, %v1028
        %v1037 = vadd.f32 %v1019, %v1029
        %v1038 = vadd.f32 %v1020, %v1030
        %v1039 = vadd.f32 %v1021, %v1031
        %v1040 = vadd.f32 %v1022, %v1032
        %s1041 = sld [smem:[#allocation11 + $0x82]]
        %v1042 = vstv %s1041
        %v1043 = vmul.f32 %v587, %v1042
        %v1044 = vmul.f32 %v588, %v1042
        %v1045 = vmul.f32 %v589, %v1042
        %v1046 = vmul.f32 %v590, %v1042
        %v1047 = vmul.f32 %v591, %v1042
        %v1048 = vmul.f32 %v592, %v1042
        %v1049 = vmul.f32 %v593, %v1042
        %v1050 = vmul.f32 %v594, %v1042
        %v1051 = vadd.f32 %v1033, %v1043
        %v1052 = vadd.f32 %v1034, %v1044
        %v1053 = vadd.f32 %v1035, %v1045
        %v1054 = vadd.f32 %v1036, %v1046
        %v1055 = vadd.f32 %v1037, %v1047
        %v1056 = vadd.f32 %v1038, %v1048
        %v1057 = vadd.f32 %v1039, %v1049
        %v1058 = vadd.f32 %v1040, %v1050
        %s1059 = sld [smem:[#allocation11 + $0x83]]
        %v1060 = vstv %s1059
        %v1061 = vmul.f32 %v615, %v1060
        %v1062 = vmul.f32 %v616, %v1060
        %v1063 = vmul.f32 %v617, %v1060
        %v1064 = vmul.f32 %v618, %v1060
        %v1065 = vmul.f32 %v619, %v1060
        %v1066 = vmul.f32 %v620, %v1060
        %v1067 = vmul.f32 %v621, %v1060
        %v1068 = vmul.f32 %v622, %v1060
        %v1069 = vadd.f32 %v1051, %v1061
        %v1070 = vadd.f32 %v1052, %v1062
        %v1071 = vadd.f32 %v1053, %v1063
        %v1072 = vadd.f32 %v1054, %v1064
        %v1073 = vadd.f32 %v1055, %v1065
        %v1074 = vadd.f32 %v1056, %v1066
        %v1075 = vadd.f32 %v1057, %v1067
        %v1076 = vadd.f32 %v1058, %v1068
        %s1077 = sld [smem:[#allocation11 + $0x84]]
        %v1078 = vstv %s1077
        %v1079 = vmul.f32 %v643, %v1078
        %v1080 = vmul.f32 %v644, %v1078
        %v1081 = vmul.f32 %v645, %v1078
        %v1082 = vmul.f32 %v646, %v1078
        %v1083 = vmul.f32 %v647, %v1078
        %v1084 = vmul.f32 %v648, %v1078
        %v1085 = vmul.f32 %v649, %v1078
        %v1086 = vmul.f32 %v650, %v1078
        %v1087 = vadd.f32 %v1069, %v1079
        %v1088 = vadd.f32 %v1070, %v1080
        %v1089 = vadd.f32 %v1071, %v1081
        %v1090 = vadd.f32 %v1072, %v1082
        %v1091 = vadd.f32 %v1073, %v1083
        %v1092 = vadd.f32 %v1074, %v1084
        %v1093 = vadd.f32 %v1075, %v1085
        %v1094 = vadd.f32 %v1076, %v1086
        %s1095 = sld [smem:[#allocation11 + $0x85]]
        %v1096 = vstv %s1095
        %v1097 = vmul.f32 %v671, %v1096
        %v1098 = vmul.f32 %v672, %v1096
        %v1099 = vmul.f32 %v673, %v1096
        %v1100 = vmul.f32 %v674, %v1096
        %v1101 = vmul.f32 %v675, %v1096
        %v1102 = vmul.f32 %v676, %v1096
        %v1103 = vmul.f32 %v677, %v1096
        %v1104 = vmul.f32 %v678, %v1096
        %v1105 = vadd.f32 %v1087, %v1097
        %v1106 = vadd.f32 %v1088, %v1098
        %v1107 = vadd.f32 %v1089, %v1099
        %v1108 = vadd.f32 %v1090, %v1100
        %v1109 = vadd.f32 %v1091, %v1101
        %v1110 = vadd.f32 %v1092, %v1102
        %v1111 = vadd.f32 %v1093, %v1103
        %v1112 = vadd.f32 %v1094, %v1104
        %s1113 = sld [smem:[#allocation11 + $0x86]]
        %v1114 = vstv %s1113
        %v1115 = vmul.f32 %v699, %v1114
        %v1116 = vmul.f32 %v700, %v1114
        %v1117 = vmul.f32 %v701, %v1114
        %v1118 = vmul.f32 %v702, %v1114
        %v1119 = vmul.f32 %v703, %v1114
        %v1120 = vmul.f32 %v704, %v1114
        %v1121 = vmul.f32 %v705, %v1114
        %v1122 = vmul.f32 %v706, %v1114
        %v1123 = vadd.f32 %v1105, %v1115
        %v1124 = vadd.f32 %v1106, %v1116
        %v1125 = vadd.f32 %v1107, %v1117
        %v1126 = vadd.f32 %v1108, %v1118
        %v1127 = vadd.f32 %v1109, %v1119
        %v1128 = vadd.f32 %v1110, %v1120
        %v1129 = vadd.f32 %v1111, %v1121
        %v1130 = vadd.f32 %v1112, %v1122
        %s1131 = sld [smem:[#allocation11 + $0x87]]
        %v1132 = vstv %s1131
        %v1133 = vmul.f32 %v727, %v1132
        %v1134 = vmul.f32 %v728, %v1132
        %v1135 = vmul.f32 %v729, %v1132
        %v1136 = vmul.f32 %v730, %v1132
        %v1137 = vmul.f32 %v731, %v1132
        %v1138 = vmul.f32 %v732, %v1132
        %v1139 = vmul.f32 %v733, %v1132
        %v1140 = vmul.f32 %v734, %v1132
        %v1141 = vadd.f32 %v1123, %v1133
        %v1142 = vadd.f32 %v1124, %v1134
        %v1143 = vadd.f32 %v1125, %v1135
        %v1144 = vadd.f32 %v1126, %v1136
        %v1145 = vadd.f32 %v1127, %v1137
        %v1146 = vadd.f32 %v1128, %v1138
        %v1147 = vadd.f32 %v1129, %v1139
        %v1148 = vadd.f32 %v1130, %v1140
        %s1149 = sld [smem:[#allocation12 + $0x80]]
        %v1150 = vstv %s1149
        %v1151 = vmul.f32 %v754, %v1150
        %v1152 = vmul.f32 %v755, %v1150
        %v1153 = vmul.f32 %v756, %v1150
        %v1154 = vmul.f32 %v757, %v1150
        %v1155 = vmul.f32 %v758, %v1150
        %v1156 = vmul.f32 %v759, %v1150
        %v1157 = vmul.f32 %v760, %v1150
        %v1158 = vmul.f32 %v761, %v1150
        %v1159 = vadd.f32 %v1141, %v1151
        %v1160 = vadd.f32 %v1142, %v1152
        %v1161 = vadd.f32 %v1143, %v1153
        %v1162 = vadd.f32 %v1144, %v1154
        %v1163 = vadd.f32 %v1145, %v1155
        %v1164 = vadd.f32 %v1146, %v1156
        %v1165 = vadd.f32 %v1147, %v1157
        %v1166 = vadd.f32 %v1148, %v1158
        %s1167 = sld [smem:[#allocation12 + $0x81]]
        %v1168 = vstv %s1167
        %v1169 = vmul.f32 %v781, %v1168
        %v1170 = vmul.f32 %v782, %v1168
        %v1171 = vmul.f32 %v783, %v1168
        %v1172 = vmul.f32 %v784, %v1168
        %v1173 = vmul.f32 %v785, %v1168
        %v1174 = vmul.f32 %v786, %v1168
        %v1175 = vmul.f32 %v787, %v1168
        %v1176 = vmul.f32 %v788, %v1168
        %v1177 = vadd.f32 %v1159, %v1169
        %v1178 = vadd.f32 %v1160, %v1170
        %v1179 = vadd.f32 %v1161, %v1171
        %v1180 = vadd.f32 %v1162, %v1172
        %v1181 = vadd.f32 %v1163, %v1173
        %v1182 = vadd.f32 %v1164, %v1174
        %v1183 = vadd.f32 %v1165, %v1175
        %v1184 = vadd.f32 %v1166, %v1176
        %s1185 = sld [smem:[#allocation12 + $0x82]]
        %v1186 = vstv %s1185
        %v1187 = vmul.f32 %v808, %v1186
        %v1188 = vmul.f32 %v809, %v1186
        %v1189 = vmul.f32 %v810, %v1186
        %v1190 = vmul.f32 %v811, %v1186
        %v1191 = vmul.f32 %v812, %v1186
        %v1192 = vmul.f32 %v813, %v1186
        %v1193 = vmul.f32 %v814, %v1186
        %v1194 = vmul.f32 %v815, %v1186
        %v1195 = vadd.f32 %v1177, %v1187
        %v1196 = vadd.f32 %v1178, %v1188
        %v1197 = vadd.f32 %v1179, %v1189
        %v1198 = vadd.f32 %v1180, %v1190
        %v1199 = vadd.f32 %v1181, %v1191
        %v1200 = vadd.f32 %v1182, %v1192
        %v1201 = vadd.f32 %v1183, %v1193
        %v1202 = vadd.f32 %v1184, %v1194
        %s1203 = sld [smem:[#allocation12 + $0x83]]
        %v1204 = vstv %s1203
        %v1205 = vmul.f32 %v835, %v1204
        %v1206 = vmul.f32 %v836, %v1204
        %v1207 = vmul.f32 %v837, %v1204
        %v1208 = vmul.f32 %v838, %v1204
        %v1209 = vmul.f32 %v839, %v1204
        %v1210 = vmul.f32 %v840, %v1204
        %v1211 = vmul.f32 %v841, %v1204
        %v1212 = vmul.f32 %v842, %v1204
        %v1213 = vadd.f32 %v1195, %v1205
        %v1214 = vadd.f32 %v1196, %v1206
        %v1215 = vadd.f32 %v1197, %v1207
        %v1216 = vadd.f32 %v1198, %v1208
        %v1217 = vadd.f32 %v1199, %v1209
        %v1218 = vadd.f32 %v1200, %v1210
        %v1219 = vadd.f32 %v1201, %v1211
        %v1220 = vadd.f32 %v1202, %v1212
        %s1221 = sld [smem:[#allocation12 + $0x84]]
        %v1222 = vstv %s1221
        %v1223 = vmul.f32 %v862, %v1222
        %v1224 = vmul.f32 %v863, %v1222
        %v1225 = vmul.f32 %v864, %v1222
        %v1226 = vmul.f32 %v865, %v1222
        %v1227 = vmul.f32 %v866, %v1222
        %v1228 = vmul.f32 %v867, %v1222
        %v1229 = vmul.f32 %v868, %v1222
        %v1230 = vmul.f32 %v869, %v1222
        %v1231 = vadd.f32 %v1213, %v1223
        %v1232 = vadd.f32 %v1214, %v1224
        %v1233 = vadd.f32 %v1215, %v1225
        %v1234 = vadd.f32 %v1216, %v1226
        %v1235 = vadd.f32 %v1217, %v1227
        %v1236 = vadd.f32 %v1218, %v1228
        %v1237 = vadd.f32 %v1219, %v1229
        %v1238 = vadd.f32 %v1220, %v1230
        %s1239 = sld [smem:[#allocation12 + $0x85]]
        %v1240 = vstv %s1239
        %v1241 = vmul.f32 %v889, %v1240
        %v1242 = vmul.f32 %v890, %v1240
        %v1243 = vmul.f32 %v891, %v1240
        %v1244 = vmul.f32 %v892, %v1240
        %v1245 = vmul.f32 %v893, %v1240
        %v1246 = vmul.f32 %v894, %v1240
        %v1247 = vmul.f32 %v895, %v1240
        %v1248 = vmul.f32 %v896, %v1240
        %v1249 = vadd.f32 %v1231, %v1241
        %v1250 = vadd.f32 %v1232, %v1242
        %v1251 = vadd.f32 %v1233, %v1243
        %v1252 = vadd.f32 %v1234, %v1244
        %v1253 = vadd.f32 %v1235, %v1245
        %v1254 = vadd.f32 %v1236, %v1246
        %v1255 = vadd.f32 %v1237, %v1247
        %v1256 = vadd.f32 %v1238, %v1248
        %s1257 = sld [smem:[#allocation12 + $0x86]]
        %v1258 = vstv %s1257
        %v1259 = vmul.f32 %v916, %v1258
        %v1260 = vmul.f32 %v917, %v1258
        %v1261 = vmul.f32 %v918, %v1258
        %v1262 = vmul.f32 %v919, %v1258
        %v1263 = vmul.f32 %v920, %v1258
        %v1264 = vmul.f32 %v921, %v1258
        %v1265 = vmul.f32 %v922, %v1258
        %v1266 = vmul.f32 %v923, %v1258
        %v1267 = vadd.f32 %v1249, %v1259
        %v1268 = vadd.f32 %v1250, %v1260
        %v1269 = vadd.f32 %v1251, %v1261
        %v1270 = vadd.f32 %v1252, %v1262
        %v1271 = vadd.f32 %v1253, %v1263
        %v1272 = vadd.f32 %v1254, %v1264
        %v1273 = vadd.f32 %v1255, %v1265
        %v1274 = vadd.f32 %v1256, %v1266
        %s1275 = sld [smem:[#allocation12 + $0x87]]
        %v1276 = vstv %s1275
        %v1277 = vmul.f32 %v943, %v1276
        %v1278 = vmul.f32 %v944, %v1276
        %v1279 = vmul.f32 %v945, %v1276
        %v1280 = vmul.f32 %v946, %v1276
        %v1281 = vmul.f32 %v947, %v1276
        %v1282 = vmul.f32 %v948, %v1276
        %v1283 = vmul.f32 %v949, %v1276
        %v1284 = vmul.f32 %v950, %v1276
        %v1285 = vadd.f32 %v1267, %v1277
        %v1286 = vadd.f32 %v1268, %v1278
        %v1287 = vadd.f32 %v1269, %v1279
        %v1288 = vadd.f32 %v1270, %v1280
        %v1289 = vadd.f32 %v1271, %v1281
        %v1290 = vadd.f32 %v1272, %v1282
        %v1291 = vadd.f32 %v1273, %v1283
        %v1292 = vadd.f32 %v1274, %v1284
        %s1293 = sld [smem:[#allocation14 + $0x1]]
        %v1294 = vstv %s1293
        %v1295 = vadd.f32 %v1285, %v1294
        %v1296 = vadd.f32 %v1286, %v1294
        %v1297 = vadd.f32 %v1287, %v1294
        %v1298 = vadd.f32 %v1288, %v1294
        %v1299 = vadd.f32 %v1289, %v1294
        %v1300 = vadd.f32 %v1290, %v1294
        %v1301 = vadd.f32 %v1291, %v1294
        %v1302 = vadd.f32 %v1292, %v1294
        %v1303 = vmax.f32 %v1295, 0.0
        %v1304 = vmax.f32 %v1296, 0.0
        %v1305 = vmax.f32 %v1297, 0.0
        %v1306 = vmax.f32 %v1298, 0.0
        %v1307 = vmax.f32 %v1299, 0.0
        %v1308 = vmax.f32 %v1300, 0.0
        %v1309 = vmax.f32 %v1301, 0.0
        %v1310 = vmax.f32 %v1302, 0.0
        %s1311 = sld [smem:[#allocation15 + $0x1]]
        %v1312 = vstv %s1311
        %v1313 = vmul.f32 %v1303, %v1312
        %v1314 = vmul.f32 %v1304, %v1312
        %v1315 = vmul.f32 %v1305, %v1312
        %v1316 = vmul.f32 %v1306, %v1312
        %v1317 = vmul.f32 %v1307, %v1312
        %v1318 = vmul.f32 %v1308, %v1312
        %v1319 = vmul.f32 %v1309, %v1312
        %v1320 = vmul.f32 %v1310, %v1312
        %v1321 = vadd.f32 %v997, %v1313
        %v1322 = vadd.f32 %v998, %v1314
        %v1323 = vadd.f32 %v999, %v1315
        %v1324 = vadd.f32 %v1000, %v1316
        %v1325 = vadd.f32 %v1001, %v1317
        %v1326 = vadd.f32 %v1002, %v1318
        %v1327 = vadd.f32 %v1003, %v1319
        %v1328 = vadd.f32 %v1004, %v1320
        %s1329 = sld [smem:[#allocation11 + $0x100]]
        %v1330 = vstv %s1329
        %v1331 = vmul.f32 %v531, %v1330
        %v1332 = vmul.f32 %v532, %v1330
        %v1333 = vmul.f32 %v533, %v1330
        %v1334 = vmul.f32 %v534, %v1330
        %v1335 = vmul.f32 %v535, %v1330
        %v1336 = vmul.f32 %v536, %v1330
        %v1337 = vmul.f32 %v537, %v1330
        %v1338 = vmul.f32 %v538, %v1330
        %v1339 = vadd.f32 %v1331, 0.0
        %v1340 = vadd.f32 %v1332, 0.0
        %v1341 = vadd.f32 %v1333, 0.0
        %v1342 = vadd.f32 %v1334, 0.0
        %v1343 = vadd.f32 %v1335, 0.0
        %v1344 = vadd.f32 %v1336, 0.0
        %v1345 = vadd.f32 %v1337, 0.0
        %v1346 = vadd.f32 %v1338, 0.0
        %s1347 = sld [smem:[#allocation11 + $0x101]]
        %v1348 = vstv %s1347
        %v1349 = vmul.f32 %v559, %v1348
        %v1350 = vmul.f32 %v560, %v1348
        %v1351 = vmul.f32 %v561, %v1348
        %v1352 = vmul.f32 %v562, %v1348
        %v1353 = vmul.f32 %v563, %v1348
        %v1354 = vmul.f32 %v564, %v1348
        %v1355 = vmul.f32 %v565, %v1348
        %v1356 = vmul.f32 %v566, %v1348
        %v1357 = vadd.f32 %v1339, %v1349
        %v1358 = vadd.f32 %v1340, %v1350
        %v1359 = vadd.f32 %v1341, %v1351
        %v1360 = vadd.f32 %v1342, %v1352
        %v1361 = vadd.f32 %v1343, %v1353
        %v1362 = vadd.f32 %v1344, %v1354
        %v1363 = vadd.f32 %v1345, %v1355
        %v1364 = vadd.f32 %v1346, %v1356
        %s1365 = sld [smem:[#allocation11 + $0x102]]
        %v1366 = vstv %s1365
        %v1367 = vmul.f32 %v587, %v1366
        %v1368 = vmul.f32 %v588, %v1366
        %v1369 = vmul.f32 %v589, %v1366
        %v1370 = vmul.f32 %v590, %v1366
        %v1371 = vmul.f32 %v591, %v1366
        %v1372 = vmul.f32 %v592, %v1366
        %v1373 = vmul.f32 %v593, %v1366
        %v1374 = vmul.f32 %v594, %v1366
        %v1375 = vadd.f32 %v1357, %v1367
        %v1376 = vadd.f32 %v1358, %v1368
        %v1377 = vadd.f32 %v1359, %v1369
        %v1378 = vadd.f32 %v1360, %v1370
        %v1379 = vadd.f32 %v1361, %v1371
        %v1380 = vadd.f32 %v1362, %v1372
        %v1381 = vadd.f32 %v1363, %v1373
        %v1382 = vadd.f32 %v1364, %v1374
        %s1383 = sld [smem:[#allocation11 + $0x103]]
        %v1384 = vstv %s1383
        %v1385 = vmul.f32 %v615, %v1384
        %v1386 = vmul.f32 %v616, %v1384
        %v1387 = vmul.f32 %v617, %v1384
        %v1388 = vmul.f32 %v618, %v1384
        %v1389 = vmul.f32 %v619, %v1384
        %v1390 = vmul.f32 %v620, %v1384
        %v1391 = vmul.f32 %v621, %v1384
        %v1392 = vmul.f32 %v622, %v1384
        %v1393 = vadd.f32 %v1375, %v1385
        %v1394 = vadd.f32 %v1376, %v1386
        %v1395 = vadd.f32 %v1377, %v1387
        %v1396 = vadd.f32 %v1378, %v1388
        %v1397 = vadd.f32 %v1379, %v1389
        %v1398 = vadd.f32 %v1380, %v1390
        %v1399 = vadd.f32 %v1381, %v1391
        %v1400 = vadd.f32 %v1382, %v1392
        %s1401 = sld [smem:[#allocation11 + $0x104]]
        %v1402 = vstv %s1401
        %v1403 = vmul.f32 %v643, %v1402
        %v1404 = vmul.f32 %v644, %v1402
        %v1405 = vmul.f32 %v645, %v1402
        %v1406 = vmul.f32 %v646, %v1402
        %v1407 = vmul.f32 %v647, %v1402
        %v1408 = vmul.f32 %v648, %v1402
        %v1409 = vmul.f32 %v649, %v1402
        %v1410 = vmul.f32 %v650, %v1402
        %v1411 = vadd.f32 %v1393, %v1403
        %v1412 = vadd.f32 %v1394, %v1404
        %v1413 = vadd.f32 %v1395, %v1405
        %v1414 = vadd.f32 %v1396, %v1406
        %v1415 = vadd.f32 %v1397, %v1407
        %v1416 = vadd.f32 %v1398, %v1408
        %v1417 = vadd.f32 %v1399, %v1409
        %v1418 = vadd.f32 %v1400, %v1410
        %s1419 = sld [smem:[#allocation11 + $0x105]]
        %v1420 = vstv %s1419
        %v1421 = vmul.f32 %v671, %v1420
        %v1422 = vmul.f32 %v672, %v1420
        %v1423 = vmul.f32 %v673, %v1420
        %v1424 = vmul.f32 %v674, %v1420
        %v1425 = vmul.f32 %v675, %v1420
        %v1426 = vmul.f32 %v676, %v1420
        %v1427 = vmul.f32 %v677, %v1420
        %v1428 = vmul.f32 %v678, %v1420
        %v1429 = vadd.f32 %v1411, %v1421
        %v1430 = vadd.f32 %v1412, %v1422
        %v1431 = vadd.f32 %v1413, %v1423
        %v1432 = vadd.f32 %v1414, %v1424
        %v1433 = vadd.f32 %v1415, %v1425
        %v1434 = vadd.f32 %v1416, %v1426
        %v1435 = vadd.f32 %v1417, %v1427
        %v1436 = vadd.f32 %v1418, %v1428
        %s1437 = sld [smem:[#allocation11 + $0x106]]
        %v1438 = vstv %s1437
        %v1439 = vmul.f32 %v699, %v1438
        %v1440 = vmul.f32 %v700, %v1438
        %v1441 = vmul.f32 %v701, %v1438
        %v1442 = vmul.f32 %v702, %v1438
        %v1443 = vmul.f32 %v703, %v1438
        %v1444 = vmul.f32 %v704, %v1438
        %v1445 = vmul.f32 %v705, %v1438
        %v1446 = vmul.f32 %v706, %v1438
        %v1447 = vadd.f32 %v1429, %v1439
        %v1448 = vadd.f32 %v1430, %v1440
        %v1449 = vadd.f32 %v1431, %v1441
        %v1450 = vadd.f32 %v1432, %v1442
        %v1451 = vadd.f32 %v1433, %v1443
        %v1452 = vadd.f32 %v1434, %v1444
        %v1453 = vadd.f32 %v1435, %v1445
        %v1454 = vadd.f32 %v1436, %v1446
        %s1455 = sld [smem:[#allocation11 + $0x107]]
        %v1456 = vstv %s1455
        %v1457 = vmul.f32 %v727, %v1456
        %v1458 = vmul.f32 %v728, %v1456
        %v1459 = vmul.f32 %v729, %v1456
        %v1460 = vmul.f32 %v730, %v1456
        %v1461 = vmul.f32 %v731, %v1456
        %v1462 = vmul.f32 %v732, %v1456
        %v1463 = vmul.f32 %v733, %v1456
        %v1464 = vmul.f32 %v734, %v1456
        %v1465 = vadd.f32 %v1447, %v1457
        %v1466 = vadd.f32 %v1448, %v1458
        %v1467 = vadd.f32 %v1449, %v1459
        %v1468 = vadd.f32 %v1450, %v1460
        %v1469 = vadd.f32 %v1451, %v1461
        %v1470 = vadd.f32 %v1452, %v1462
        %v1471 = vadd.f32 %v1453, %v1463
        %v1472 = vadd.f32 %v1454, %v1464
        %s1473 = sld [smem:[#allocation12 + $0x100]]
        %v1474 = vstv %s1473
        %v1475 = vmul.f32 %v754, %v1474
        %v1476 = vmul.f32 %v755, %v1474
        %v1477 = vmul.f32 %v756, %v1474
        %v1478 = vmul.f32 %v757, %v1474
        %v1479 = vmul.f32 %v758, %v1474
        %v1480 = vmul.f32 %v759, %v1474
        %v1481 = vmul.f32 %v760, %v1474
        %v1482 = vmul.f32 %v761, %v1474
        %v1483 = vadd.f32 %v1465, %v1475
        %v1484 = vadd.f32 %v1466, %v1476
        %v1485 = vadd.f32 %v1467, %v1477
        %v1486 = vadd.f32 %v1468, %v1478
        %v1487 = vadd.f32 %v1469, %v1479
        %v1488 = vadd.f32 %v1470, %v1480
        %v1489 = vadd.f32 %v1471, %v1481
        %v1490 = vadd.f32 %v1472, %v1482
        %s1491 = sld [smem:[#allocation12 + $0x101]]
        %v1492 = vstv %s1491
        %v1493 = vmul.f32 %v781, %v1492
        %v1494 = vmul.f32 %v782, %v1492
        %v1495 = vmul.f32 %v783, %v1492
        %v1496 = vmul.f32 %v784, %v1492
        %v1497 = vmul.f32 %v785, %v1492
        %v1498 = vmul.f32 %v786, %v1492
        %v1499 = vmul.f32 %v787, %v1492
        %v1500 = vmul.f32 %v788, %v1492
        %v1501 = vadd.f32 %v1483, %v1493
        %v1502 = vadd.f32 %v1484, %v1494
        %v1503 = vadd.f32 %v1485, %v1495
        %v1504 = vadd.f32 %v1486, %v1496
        %v1505 = vadd.f32 %v1487, %v1497
        %v1506 = vadd.f32 %v1488, %v1498
        %v1507 = vadd.f32 %v1489, %v1499
        %v1508 = vadd.f32 %v1490, %v1500
        %s1509 = sld [smem:[#allocation12 + $0x102]]
        %v1510 = vstv %s1509
        %v1511 = vmul.f32 %v808, %v1510
        %v1512 = vmul.f32 %v809, %v1510
        %v1513 = vmul.f32 %v810, %v1510
        %v1514 = vmul.f32 %v811, %v1510
        %v1515 = vmul.f32 %v812, %v1510
        %v1516 = vmul.f32 %v813, %v1510
        %v1517 = vmul.f32 %v814, %v1510
        %v1518 = vmul.f32 %v815, %v1510
        %v1519 = vadd.f32 %v1501, %v1511
        %v1520 = vadd.f32 %v1502, %v1512
        %v1521 = vadd.f32 %v1503, %v1513
        %v1522 = vadd.f32 %v1504, %v1514
        %v1523 = vadd.f32 %v1505, %v1515
        %v1524 = vadd.f32 %v1506, %v1516
        %v1525 = vadd.f32 %v1507, %v1517
        %v1526 = vadd.f32 %v1508, %v1518
        %s1527 = sld [smem:[#allocation12 + $0x103]]
        %v1528 = vstv %s1527
        %v1529 = vmul.f32 %v835, %v1528
        %v1530 = vmul.f32 %v836, %v1528
        %v1531 = vmul.f32 %v837, %v1528
        %v1532 = vmul.f32 %v838, %v1528
        %v1533 = vmul.f32 %v839, %v1528
        %v1534 = vmul.f32 %v840, %v1528
        %v1535 = vmul.f32 %v841, %v1528
        %v1536 = vmul.f32 %v842, %v1528
        %v1537 = vadd.f32 %v1519, %v1529
        %v1538 = vadd.f32 %v1520, %v1530
        %v1539 = vadd.f32 %v1521, %v1531
        %v1540 = vadd.f32 %v1522, %v1532
        %v1541 = vadd.f32 %v1523, %v1533
        %v1542 = vadd.f32 %v1524, %v1534
        %v1543 = vadd.f32 %v1525, %v1535
        %v1544 = vadd.f32 %v1526, %v1536
        %s1545 = sld [smem:[#allocation12 + $0x104]]
        %v1546 = vstv %s1545
        %v1547 = vmul.f32 %v862, %v1546
        %v1548 = vmul.f32 %v863, %v1546
        %v1549 = vmul.f32 %v864, %v1546
        %v1550 = vmul.f32 %v865, %v1546
        %v1551 = vmul.f32 %v866, %v1546
        %v1552 = vmul.f32 %v867, %v1546
        %v1553 = vmul.f32 %v868, %v1546
        %v1554 = vmul.f32 %v869, %v1546
        %v1555 = vadd.f32 %v1537, %v1547
        %v1556 = vadd.f32 %v1538, %v1548
        %v1557 = vadd.f32 %v1539, %v1549
        %v1558 = vadd.f32 %v1540, %v1550
        %v1559 = vadd.f32 %v1541, %v1551
        %v1560 = vadd.f32 %v1542, %v1552
        %v1561 = vadd.f32 %v1543, %v1553
        %v1562 = vadd.f32 %v1544, %v1554
        %s1563 = sld [smem:[#allocation12 + $0x105]]
        %v1564 = vstv %s1563
        %v1565 = vmul.f32 %v889, %v1564
        %v1566 = vmul.f32 %v890, %v1564
        %v1567 = vmul.f32 %v891, %v1564
        %v1568 = vmul.f32 %v892, %v1564
        %v1569 = vmul.f32 %v893, %v1564
        %v1570 = vmul.f32 %v894, %v1564
        %v1571 = vmul.f32 %v895, %v1564
        %v1572 = vmul.f32 %v896, %v1564
        %v1573 = vadd.f32 %v1555, %v1565
        %v1574 = vadd.f32 %v1556, %v1566
        %v1575 = vadd.f32 %v1557, %v1567
        %v1576 = vadd.f32 %v1558, %v1568
        %v1577 = vadd.f32 %v1559, %v1569
        %v1578 = vadd.f32 %v1560, %v1570
        %v1579 = vadd.f32 %v1561, %v1571
        %v1580 = vadd.f32 %v1562, %v1572
        %s1581 = sld [smem:[#allocation12 + $0x106]]
        %v1582 = vstv %s1581
        %v1583 = vmul.f32 %v916, %v1582
        %v1584 = vmul.f32 %v917, %v1582
        %v1585 = vmul.f32 %v918, %v1582
        %v1586 = vmul.f32 %v919, %v1582
        %v1587 = vmul.f32 %v920, %v1582
        %v1588 = vmul.f32 %v921, %v1582
        %v1589 = vmul.f32 %v922, %v1582
        %v1590 = vmul.f32 %v923, %v1582
        %v1591 = vadd.f32 %v1573, %v1583
        %v1592 = vadd.f32 %v1574, %v1584
        %v1593 = vadd.f32 %v1575, %v1585
        %v1594 = vadd.f32 %v1576, %v1586
        %v1595 = vadd.f32 %v1577, %v1587
        %v1596 = vadd.f32 %v1578, %v1588
        %v1597 = vadd.f32 %v1579, %v1589
        %v1598 = vadd.f32 %v1580, %v1590
        %s1599 = sld [smem:[#allocation12 + $0x107]]
        %v1600 = vstv %s1599
        %v1601 = vmul.f32 %v943, %v1600
        %v1602 = vmul.f32 %v944, %v1600
        %v1603 = vmul.f32 %v945, %v1600
        %v1604 = vmul.f32 %v946, %v1600
        %v1605 = vmul.f32 %v947, %v1600
        %v1606 = vmul.f32 %v948, %v1600
        %v1607 = vmul.f32 %v949, %v1600
        %v1608 = vmul.f32 %v950, %v1600
        %v1609 = vadd.f32 %v1591, %v1601
        %v1610 = vadd.f32 %v1592, %v1602
        %v1611 = vadd.f32 %v1593, %v1603
        %v1612 = vadd.f32 %v1594, %v1604
        %v1613 = vadd.f32 %v1595, %v1605
        %v1614 = vadd.f32 %v1596, %v1606
        %v1615 = vadd.f32 %v1597, %v1607
        %v1616 = vadd.f32 %v1598, %v1608
        %s1617 = sld [smem:[#allocation14 + $0x2]]
        %v1618 = vstv %s1617
        %v1619 = vadd.f32 %v1609, %v1618
        %v1620 = vadd.f32 %v1610, %v1618
        %v1621 = vadd.f32 %v1611, %v1618
        %v1622 = vadd.f32 %v1612, %v1618
        %v1623 = vadd.f32 %v1613, %v1618
        %v1624 = vadd.f32 %v1614, %v1618
        %v1625 = vadd.f32 %v1615, %v1618
        %v1626 = vadd.f32 %v1616, %v1618
        %v1627 = vmax.f32 %v1619, 0.0
        %v1628 = vmax.f32 %v1620, 0.0
        %v1629 = vmax.f32 %v1621, 0.0
        %v1630 = vmax.f32 %v1622, 0.0
        %v1631 = vmax.f32 %v1623, 0.0
        %v1632 = vmax.f32 %v1624, 0.0
        %v1633 = vmax.f32 %v1625, 0.0
        %v1634 = vmax.f32 %v1626, 0.0
        %s1635 = sld [smem:[#allocation15 + $0x2]]
        %v1636 = vstv %s1635
        %v1637 = vmul.f32 %v1627, %v1636
        %v1638 = vmul.f32 %v1628, %v1636
        %v1639 = vmul.f32 %v1629, %v1636
        %v1640 = vmul.f32 %v1630, %v1636
        %v1641 = vmul.f32 %v1631, %v1636
        %v1642 = vmul.f32 %v1632, %v1636
        %v1643 = vmul.f32 %v1633, %v1636
        %v1644 = vmul.f32 %v1634, %v1636
        %v1645 = vadd.f32 %v1321, %v1637
        %v1646 = vadd.f32 %v1322, %v1638
        %v1647 = vadd.f32 %v1323, %v1639
        %v1648 = vadd.f32 %v1324, %v1640
        %v1649 = vadd.f32 %v1325, %v1641
        %v1650 = vadd.f32 %v1326, %v1642
        %v1651 = vadd.f32 %v1327, %v1643
        %v1652 = vadd.f32 %v1328, %v1644
        %s1653 = sld [smem:[#allocation11 + $0x180]]
        %v1654 = vstv %s1653
        %v1655 = vmul.f32 %v531, %v1654
        %v1656 = vmul.f32 %v532, %v1654
        %v1657 = vmul.f32 %v533, %v1654
        %v1658 = vmul.f32 %v534, %v1654
        %v1659 = vmul.f32 %v535, %v1654
        %v1660 = vmul.f32 %v536, %v1654
        %v1661 = vmul.f32 %v537, %v1654
        %v1662 = vmul.f32 %v538, %v1654
        %v1663 = vadd.f32 %v1655, 0.0
        %v1664 = vadd.f32 %v1656, 0.0
        %v1665 = vadd.f32 %v1657, 0.0
        %v1666 = vadd.f32 %v1658, 0.0
        %v1667 = vadd.f32 %v1659, 0.0
        %v1668 = vadd.f32 %v1660, 0.0
        %v1669 = vadd.f32 %v1661, 0.0
        %v1670 = vadd.f32 %v1662, 0.0
        %s1671 = sld [smem:[#allocation11 + $0x181]]
        %v1672 = vstv %s1671
        %v1673 = vmul.f32 %v559, %v1672
        %v1674 = vmul.f32 %v560, %v1672
        %v1675 = vmul.f32 %v561, %v1672
        %v1676 = vmul.f32 %v562, %v1672
        %v1677 = vmul.f32 %v563, %v1672
        %v1678 = vmul.f32 %v564, %v1672
        %v1679 = vmul.f32 %v565, %v1672
        %v1680 = vmul.f32 %v566, %v1672
        %v1681 = vadd.f32 %v1663, %v1673
        %v1682 = vadd.f32 %v1664, %v1674
        %v1683 = vadd.f32 %v1665, %v1675
        %v1684 = vadd.f32 %v1666, %v1676
        %v1685 = vadd.f32 %v1667, %v1677
        %v1686 = vadd.f32 %v1668, %v1678
        %v1687 = vadd.f32 %v1669, %v1679
        %v1688 = vadd.f32 %v1670, %v1680
        %s1689 = sld [smem:[#allocation11 + $0x182]]
        %v1690 = vstv %s1689
        %v1691 = vmul.f32 %v587, %v1690
        %v1692 = vmul.f32 %v588, %v1690
        %v1693 = vmul.f32 %v589, %v1690
        %v1694 = vmul.f32 %v590, %v1690
        %v1695 = vmul.f32 %v591, %v1690
        %v1696 = vmul.f32 %v592, %v1690
        %v1697 = vmul.f32 %v593, %v1690
        %v1698 = vmul.f32 %v594, %v1690
        %v1699 = vadd.f32 %v1681, %v1691
        %v1700 = vadd.f32 %v1682, %v1692
        %v1701 = vadd.f32 %v1683, %v1693
        %v1702 = vadd.f32 %v1684, %v1694
        %v1703 = vadd.f32 %v1685, %v1695
        %v1704 = vadd.f32 %v1686, %v1696
        %v1705 = vadd.f32 %v1687, %v1697
        %v1706 = vadd.f32 %v1688, %v1698
        %s1707 = sld [smem:[#allocation11 + $0x183]]
        %v1708 = vstv %s1707
        %v1709 = vmul.f32 %v615, %v1708
        %v1710 = vmul.f32 %v616, %v1708
        %v1711 = vmul.f32 %v617, %v1708
        %v1712 = vmul.f32 %v618, %v1708
        %v1713 = vmul.f32 %v619, %v1708
        %v1714 = vmul.f32 %v620, %v1708
        %v1715 = vmul.f32 %v621, %v1708
        %v1716 = vmul.f32 %v622, %v1708
        %v1717 = vadd.f32 %v1699, %v1709
        %v1718 = vadd.f32 %v1700, %v1710
        %v1719 = vadd.f32 %v1701, %v1711
        %v1720 = vadd.f32 %v1702, %v1712
        %v1721 = vadd.f32 %v1703, %v1713
        %v1722 = vadd.f32 %v1704, %v1714
        %v1723 = vadd.f32 %v1705, %v1715
        %v1724 = vadd.f32 %v1706, %v1716
        %s1725 = sld [smem:[#allocation11 + $0x184]]
        %v1726 = vstv %s1725
        %v1727 = vmul.f32 %v643, %v1726
        %v1728 = vmul.f32 %v644, %v1726
        %v1729 = vmul.f32 %v645, %v1726
        %v1730 = vmul.f32 %v646, %v1726
        %v1731 = vmul.f32 %v647, %v1726
        %v1732 = vmul.f32 %v648, %v1726
        %v1733 = vmul.f32 %v649, %v1726
        %v1734 = vmul.f32 %v650, %v1726
        %v1735 = vadd.f32 %v1717, %v1727
        %v1736 = vadd.f32 %v1718, %v1728
        %v1737 = vadd.f32 %v1719, %v1729
        %v1738 = vadd.f32 %v1720, %v1730
        %v1739 = vadd.f32 %v1721, %v1731
        %v1740 = vadd.f32 %v1722, %v1732
        %v1741 = vadd.f32 %v1723, %v1733
        %v1742 = vadd.f32 %v1724, %v1734
        %s1743 = sld [smem:[#allocation11 + $0x185]]
        %v1744 = vstv %s1743
        %v1745 = vmul.f32 %v671, %v1744
        %v1746 = vmul.f32 %v672, %v1744
        %v1747 = vmul.f32 %v673, %v1744
        %v1748 = vmul.f32 %v674, %v1744
        %v1749 = vmul.f32 %v675, %v1744
        %v1750 = vmul.f32 %v676, %v1744
        %v1751 = vmul.f32 %v677, %v1744
        %v1752 = vmul.f32 %v678, %v1744
        %v1753 = vadd.f32 %v1735, %v1745
        %v1754 = vadd.f32 %v1736, %v1746
        %v1755 = vadd.f32 %v1737, %v1747
        %v1756 = vadd.f32 %v1738, %v1748
        %v1757 = vadd.f32 %v1739, %v1749
        %v1758 = vadd.f32 %v1740, %v1750
        %v1759 = vadd.f32 %v1741, %v1751
        %v1760 = vadd.f32 %v1742, %v1752
        %s1761 = sld [smem:[#allocation11 + $0x186]]
        %v1762 = vstv %s1761
        %v1763 = vmul.f32 %v699, %v1762
        %v1764 = vmul.f32 %v700, %v1762
        %v1765 = vmul.f32 %v701, %v1762
        %v1766 = vmul.f32 %v702, %v1762
        %v1767 = vmul.f32 %v703, %v1762
        %v1768 = vmul.f32 %v704, %v1762
        %v1769 = vmul.f32 %v705, %v1762
        %v1770 = vmul.f32 %v706, %v1762
        %v1771 = vadd.f32 %v1753, %v1763
        %v1772 = vadd.f32 %v1754, %v1764
        %v1773 = vadd.f32 %v1755, %v1765
        %v1774 = vadd.f32 %v1756, %v1766
        %v1775 = vadd.f32 %v1757, %v1767
        %v1776 = vadd.f32 %v1758, %v1768
        %v1777 = vadd.f32 %v1759, %v1769
        %v1778 = vadd.f32 %v1760, %v1770
        %s1779 = sld [smem:[#allocation11 + $0x187]]
        %v1780 = vstv %s1779
        %v1781 = vmul.f32 %v727, %v1780
        %v1782 = vmul.f32 %v728, %v1780
        %v1783 = vmul.f32 %v729, %v1780
        %v1784 = vmul.f32 %v730, %v1780
        %v1785 = vmul.f32 %v731, %v1780
        %v1786 = vmul.f32 %v732, %v1780
        %v1787 = vmul.f32 %v733, %v1780
        %v1788 = vmul.f32 %v734, %v1780
        %v1789 = vadd.f32 %v1771, %v1781
        %v1790 = vadd.f32 %v1772, %v1782
        %v1791 = vadd.f32 %v1773, %v1783
        %v1792 = vadd.f32 %v1774, %v1784
        %v1793 = vadd.f32 %v1775, %v1785
        %v1794 = vadd.f32 %v1776, %v1786
        %v1795 = vadd.f32 %v1777, %v1787
        %v1796 = vadd.f32 %v1778, %v1788
        %s1797 = sld [smem:[#allocation12 + $0x180]]
        %v1798 = vstv %s1797
        %v1799 = vmul.f32 %v754, %v1798
        %v1800 = vmul.f32 %v755, %v1798
        %v1801 = vmul.f32 %v756, %v1798
        %v1802 = vmul.f32 %v757, %v1798
        %v1803 = vmul.f32 %v758, %v1798
        %v1804 = vmul.f32 %v759, %v1798
        %v1805 = vmul.f32 %v760, %v1798
        %v1806 = vmul.f32 %v761, %v1798
        %v1807 = vadd.f32 %v1789, %v1799
        %v1808 = vadd.f32 %v1790, %v1800
        %v1809 = vadd.f32 %v1791, %v1801
        %v1810 = vadd.f32 %v1792, %v1802
        %v1811 = vadd.f32 %v1793, %v1803
        %v1812 = vadd.f32 %v1794, %v1804
        %v1813 = vadd.f32 %v1795, %v1805
        %v1814 = vadd.f32 %v1796, %v1806
        %s1815 = sld [smem:[#allocation12 + $0x181]]
        %v1816 = vstv %s1815
        %v1817 = vmul.f32 %v781, %v1816
        %v1818 = vmul.f32 %v782, %v1816
        %v1819 = vmul.f32 %v783, %v1816
        %v1820 = vmul.f32 %v784, %v1816
        %v1821 = vmul.f32 %v785, %v1816
        %v1822 = vmul.f32 %v786, %v1816
        %v1823 = vmul.f32 %v787, %v1816
        %v1824 = vmul.f32 %v788, %v1816
        %v1825 = vadd.f32 %v1807, %v1817
        %v1826 = vadd.f32 %v1808, %v1818
        %v1827 = vadd.f32 %v1809, %v1819
        %v1828 = vadd.f32 %v1810, %v1820
        %v1829 = vadd.f32 %v1811, %v1821
        %v1830 = vadd.f32 %v1812, %v1822
        %v1831 = vadd.f32 %v1813, %v1823
        %v1832 = vadd.f32 %v1814, %v1824
        %s1833 = sld [smem:[#allocation12 + $0x182]]
        %v1834 = vstv %s1833
        %v1835 = vmul.f32 %v808, %v1834
        %v1836 = vmul.f32 %v809, %v1834
        %v1837 = vmul.f32 %v810, %v1834
        %v1838 = vmul.f32 %v811, %v1834
        %v1839 = vmul.f32 %v812, %v1834
        %v1840 = vmul.f32 %v813, %v1834
        %v1841 = vmul.f32 %v814, %v1834
        %v1842 = vmul.f32 %v815, %v1834
        %v1843 = vadd.f32 %v1825, %v1835
        %v1844 = vadd.f32 %v1826, %v1836
        %v1845 = vadd.f32 %v1827, %v1837
        %v1846 = vadd.f32 %v1828, %v1838
        %v1847 = vadd.f32 %v1829, %v1839
        %v1848 = vadd.f32 %v1830, %v1840
        %v1849 = vadd.f32 %v1831, %v1841
        %v1850 = vadd.f32 %v1832, %v1842
        %s1851 = sld [smem:[#allocation12 + $0x183]]
        %v1852 = vstv %s1851
        %v1853 = vmul.f32 %v835, %v1852
        %v1854 = vmul.f32 %v836, %v1852
        %v1855 = vmul.f32 %v837, %v1852
        %v1856 = vmul.f32 %v838, %v1852
        %v1857 = vmul.f32 %v839, %v1852
        %v1858 = vmul.f32 %v840, %v1852
        %v1859 = vmul.f32 %v841, %v1852
        %v1860 = vmul.f32 %v842, %v1852
        %v1861 = vadd.f32 %v1843, %v1853
        %v1862 = vadd.f32 %v1844, %v1854
        %v1863 = vadd.f32 %v1845, %v1855
        %v1864 = vadd.f32 %v1846, %v1856
        %v1865 = vadd.f32 %v1847, %v1857
        %v1866 = vadd.f32 %v1848, %v1858
        %v1867 = vadd.f32 %v1849, %v1859
        %v1868 = vadd.f32 %v1850, %v1860
        %s1869 = sld [smem:[#allocation12 + $0x184]]
        %v1870 = vstv %s1869
        %v1871 = vmul.f32 %v862, %v1870
        %v1872 = vmul.f32 %v863, %v1870
        %v1873 = vmul.f32 %v864, %v1870
        %v1874 = vmul.f32 %v865, %v1870
        %v1875 = vmul.f32 %v866, %v1870
        %v1876 = vmul.f32 %v867, %v1870
        %v1877 = vmul.f32 %v868, %v1870
        %v1878 = vmul.f32 %v869, %v1870
        %v1879 = vadd.f32 %v1861, %v1871
        %v1880 = vadd.f32 %v1862, %v1872
        %v1881 = vadd.f32 %v1863, %v1873
        %v1882 = vadd.f32 %v1864, %v1874
        %v1883 = vadd.f32 %v1865, %v1875
        %v1884 = vadd.f32 %v1866, %v1876
        %v1885 = vadd.f32 %v1867, %v1877
        %v1886 = vadd.f32 %v1868, %v1878
        %s1887 = sld [smem:[#allocation12 + $0x185]]
        %v1888 = vstv %s1887
        %v1889 = vmul.f32 %v889, %v1888
        %v1890 = vmul.f32 %v890, %v1888
        %v1891 = vmul.f32 %v891, %v1888
        %v1892 = vmul.f32 %v892, %v1888
        %v1893 = vmul.f32 %v893, %v1888
        %v1894 = vmul.f32 %v894, %v1888
        %v1895 = vmul.f32 %v895, %v1888
        %v1896 = vmul.f32 %v896, %v1888
        %v1897 = vadd.f32 %v1879, %v1889
        %v1898 = vadd.f32 %v1880, %v1890
        %v1899 = vadd.f32 %v1881, %v1891
        %v1900 = vadd.f32 %v1882, %v1892
        %v1901 = vadd.f32 %v1883, %v1893
        %v1902 = vadd.f32 %v1884, %v1894
        %v1903 = vadd.f32 %v1885, %v1895
        %v1904 = vadd.f32 %v1886, %v1896
        %s1905 = sld [smem:[#allocation12 + $0x186]]
        %v1906 = vstv %s1905
        %v1907 = vmul.f32 %v916, %v1906
        %v1908 = vmul.f32 %v917, %v1906
        %v1909 = vmul.f32 %v918, %v1906
        %v1910 = vmul.f32 %v919, %v1906
        %v1911 = vmul.f32 %v920, %v1906
        %v1912 = vmul.f32 %v921, %v1906
        %v1913 = vmul.f32 %v922, %v1906
        %v1914 = vmul.f32 %v923, %v1906
        %v1915 = vadd.f32 %v1897, %v1907
        %v1916 = vadd.f32 %v1898, %v1908
        %v1917 = vadd.f32 %v1899, %v1909
        %v1918 = vadd.f32 %v1900, %v1910
        %v1919 = vadd.f32 %v1901, %v1911
        %v1920 = vadd.f32 %v1902, %v1912
        %v1921 = vadd.f32 %v1903, %v1913
        %v1922 = vadd.f32 %v1904, %v1914
        %s1923 = sld [smem:[#allocation12 + $0x187]]
        %v1924 = vstv %s1923
        %v1925 = vmul.f32 %v943, %v1924
        %v1926 = vmul.f32 %v944, %v1924
        %v1927 = vmul.f32 %v945, %v1924
        %v1928 = vmul.f32 %v946, %v1924
        %v1929 = vmul.f32 %v947, %v1924
        %v1930 = vmul.f32 %v948, %v1924
        %v1931 = vmul.f32 %v949, %v1924
        %v1932 = vmul.f32 %v950, %v1924
        %v1933 = vadd.f32 %v1915, %v1925
        %v1934 = vadd.f32 %v1916, %v1926
        %v1935 = vadd.f32 %v1917, %v1927
        %v1936 = vadd.f32 %v1918, %v1928
        %v1937 = vadd.f32 %v1919, %v1929
        %v1938 = vadd.f32 %v1920, %v1930
        %v1939 = vadd.f32 %v1921, %v1931
        %v1940 = vadd.f32 %v1922, %v1932
        %s1941 = sld [smem:[#allocation14 + $0x3]]
        %v1942 = vstv %s1941
        %v1943 = vadd.f32 %v1933, %v1942
        %v1944 = vadd.f32 %v1934, %v1942
        %v1945 = vadd.f32 %v1935, %v1942
        %v1946 = vadd.f32 %v1936, %v1942
        %v1947 = vadd.f32 %v1937, %v1942
        %v1948 = vadd.f32 %v1938, %v1942
        %v1949 = vadd.f32 %v1939, %v1942
        %v1950 = vadd.f32 %v1940, %v1942
        %v1951 = vmax.f32 %v1943, 0.0
        %v1952 = vmax.f32 %v1944, 0.0
        %v1953 = vmax.f32 %v1945, 0.0
        %v1954 = vmax.f32 %v1946, 0.0
        %v1955 = vmax.f32 %v1947, 0.0
        %v1956 = vmax.f32 %v1948, 0.0
        %v1957 = vmax.f32 %v1949, 0.0
        %v1958 = vmax.f32 %v1950, 0.0
        %s1959 = sld [smem:[#allocation15 + $0x3]]
        %v1960 = vstv %s1959
        %v1961 = vmul.f32 %v1951, %v1960
        %v1962 = vmul.f32 %v1952, %v1960
        %v1963 = vmul.f32 %v1953, %v1960
        %v1964 = vmul.f32 %v1954, %v1960
        %v1965 = vmul.f32 %v1955, %v1960
        %v1966 = vmul.f32 %v1956, %v1960
        %v1967 = vmul.f32 %v1957, %v1960
        %v1968 = vmul.f32 %v1958, %v1960
        %v1969 = vadd.f32 %v1645, %v1961
        %v1970 = vadd.f32 %v1646, %v1962
        %v1971 = vadd.f32 %v1647, %v1963
        %v1972 = vadd.f32 %v1648, %v1964
        %v1973 = vadd.f32 %v1649, %v1965
        %v1974 = vadd.f32 %v1650, %v1966
        %v1975 = vadd.f32 %v1651, %v1967
        %v1976 = vadd.f32 %v1652, %v1968
        %s1977 = sld [smem:[#allocation11 + $0x200]]
        %v1978 = vstv %s1977
        %v1979 = vmul.f32 %v531, %v1978
        %v1980 = vmul.f32 %v532, %v1978
        %v1981 = vmul.f32 %v533, %v1978
        %v1982 = vmul.f32 %v534, %v1978
        %v1983 = vmul.f32 %v535, %v1978
        %v1984 = vmul.f32 %v536, %v1978
        %v1985 = vmul.f32 %v537, %v1978
        %v1986 = vmul.f32 %v538, %v1978
        %v1987 = vadd.f32 %v1979, 0.0
        %v1988 = vadd.f32 %v1980, 0.0
        %v1989 = vadd.f32 %v1981, 0.0
        %v1990 = vadd.f32 %v1982, 0.0
        %v1991 = vadd.f32 %v1983, 0.0
        %v1992 = vadd.f32 %v1984, 0.0
        %v1993 = vadd.f32 %v1985, 0.0
        %v1994 = vadd.f32 %v1986, 0.0
        %s1995 = sld [smem:[#allocation11 + $0x201]]
        %v1996 = vstv %s1995
        %v1997 = vmul.f32 %v559, %v1996
        %v1998 = vmul.f32 %v560, %v1996
        %v1999 = vmul.f32 %v561, %v1996
        %v2000 = vmul.f32 %v562, %v1996
        %v2001 = vmul.f32 %v563, %v1996
        %v2002 = vmul.f32 %v564, %v1996
        %v2003 = vmul.f32 %v565, %v1996
        %v2004 = vmul.f32 %v566, %v1996
        %v2005 = vadd.f32 %v1987, %v1997
        %v2006 = vadd.f32 %v1988, %v1998
        %v2007 = vadd.f32 %v1989, %v1999
        %v2008 = vadd.f32 %v1990, %v2000
        %v2009 = vadd.f32 %v1991, %v2001
        %v2010 = vadd.f32 %v1992, %v2002
        %v2011 = vadd.f32 %v1993, %v2003
        %v2012 = vadd.f32 %v1994, %v2004
        %s2013 = sld [smem:[#allocation11 + $0x202]]
        %v2014 = vstv %s2013
        %v2015 = vmul.f32 %v587, %v2014
        %v2016 = vmul.f32 %v588, %v2014
        %v2017 = vmul.f32 %v589, %v2014
        %v2018 = vmul.f32 %v590, %v2014
        %v2019 = vmul.f32 %v591, %v2014
        %v2020 = vmul.f32 %v592, %v2014
        %v2021 = vmul.f32 %v593, %v2014
        %v2022 = vmul.f32 %v594, %v2014
        %v2023 = vadd.f32 %v2005, %v2015
        %v2024 = vadd.f32 %v2006, %v2016
        %v2025 = vadd.f32 %v2007, %v2017
        %v2026 = vadd.f32 %v2008, %v2018
        %v2027 = vadd.f32 %v2009, %v2019
        %v2028 = vadd.f32 %v2010, %v2020
        %v2029 = vadd.f32 %v2011, %v2021
        %v2030 = vadd.f32 %v2012, %v2022
        %s2031 = sld [smem:[#allocation11 + $0x203]]
        %v2032 = vstv %s2031
        %v2033 = vmul.f32 %v615, %v2032
        %v2034 = vmul.f32 %v616, %v2032
        %v2035 = vmul.f32 %v617, %v2032
        %v2036 = vmul.f32 %v618, %v2032
        %v2037 = vmul.f32 %v619, %v2032
        %v2038 = vmul.f32 %v620, %v2032
        %v2039 = vmul.f32 %v621, %v2032
        %v2040 = vmul.f32 %v622, %v2032
        %v2041 = vadd.f32 %v2023, %v2033
        %v2042 = vadd.f32 %v2024, %v2034
        %v2043 = vadd.f32 %v2025, %v2035
        %v2044 = vadd.f32 %v2026, %v2036
        %v2045 = vadd.f32 %v2027, %v2037
        %v2046 = vadd.f32 %v2028, %v2038
        %v2047 = vadd.f32 %v2029, %v2039
        %v2048 = vadd.f32 %v2030, %v2040
        %s2049 = sld [smem:[#allocation11 + $0x204]]
        %v2050 = vstv %s2049
        %v2051 = vmul.f32 %v643, %v2050
        %v2052 = vmul.f32 %v644, %v2050
        %v2053 = vmul.f32 %v645, %v2050
        %v2054 = vmul.f32 %v646, %v2050
        %v2055 = vmul.f32 %v647, %v2050
        %v2056 = vmul.f32 %v648, %v2050
        %v2057 = vmul.f32 %v649, %v2050
        %v2058 = vmul.f32 %v650, %v2050
        %v2059 = vadd.f32 %v2041, %v2051
        %v2060 = vadd.f32 %v2042, %v2052
        %v2061 = vadd.f32 %v2043, %v2053
        %v2062 = vadd.f32 %v2044, %v2054
        %v2063 = vadd.f32 %v2045, %v2055
        %v2064 = vadd.f32 %v2046, %v2056
        %v2065 = vadd.f32 %v2047, %v2057
        %v2066 = vadd.f32 %v2048, %v2058
        %s2067 = sld [smem:[#allocation11 + $0x205]]
        %v2068 = vstv %s2067
        %v2069 = vmul.f32 %v671, %v2068
        %v2070 = vmul.f32 %v672, %v2068
        %v2071 = vmul.f32 %v673, %v2068
        %v2072 = vmul.f32 %v674, %v2068
        %v2073 = vmul.f32 %v675, %v2068
        %v2074 = vmul.f32 %v676, %v2068
        %v2075 = vmul.f32 %v677, %v2068
        %v2076 = vmul.f32 %v678, %v2068
        %v2077 = vadd.f32 %v2059, %v2069
        %v2078 = vadd.f32 %v2060, %v2070
        %v2079 = vadd.f32 %v2061, %v2071
        %v2080 = vadd.f32 %v2062, %v2072
        %v2081 = vadd.f32 %v2063, %v2073
        %v2082 = vadd.f32 %v2064, %v2074
        %v2083 = vadd.f32 %v2065, %v2075
        %v2084 = vadd.f32 %v2066, %v2076
        %s2085 = sld [smem:[#allocation11 + $0x206]]
        %v2086 = vstv %s2085
        %v2087 = vmul.f32 %v699, %v2086
        %v2088 = vmul.f32 %v700, %v2086
        %v2089 = vmul.f32 %v701, %v2086
        %v2090 = vmul.f32 %v702, %v2086
        %v2091 = vmul.f32 %v703, %v2086
        %v2092 = vmul.f32 %v704, %v2086
        %v2093 = vmul.f32 %v705, %v2086
        %v2094 = vmul.f32 %v706, %v2086
        %v2095 = vadd.f32 %v2077, %v2087
        %v2096 = vadd.f32 %v2078, %v2088
        %v2097 = vadd.f32 %v2079, %v2089
        %v2098 = vadd.f32 %v2080, %v2090
        %v2099 = vadd.f32 %v2081, %v2091
        %v2100 = vadd.f32 %v2082, %v2092
        %v2101 = vadd.f32 %v2083, %v2093
        %v2102 = vadd.f32 %v2084, %v2094
        %s2103 = sld [smem:[#allocation11 + $0x207]]
        %v2104 = vstv %s2103
        %v2105 = vmul.f32 %v727, %v2104
        %v2106 = vmul.f32 %v728, %v2104
        %v2107 = vmul.f32 %v729, %v2104
        %v2108 = vmul.f32 %v730, %v2104
        %v2109 = vmul.f32 %v731, %v2104
        %v2110 = vmul.f32 %v732, %v2104
        %v2111 = vmul.f32 %v733, %v2104
        %v2112 = vmul.f32 %v734, %v2104
        %v2113 = vadd.f32 %v2095, %v2105
        %v2114 = vadd.f32 %v2096, %v2106
        %v2115 = vadd.f32 %v2097, %v2107
        %v2116 = vadd.f32 %v2098, %v2108
        %v2117 = vadd.f32 %v2099, %v2109
        %v2118 = vadd.f32 %v2100, %v2110
        %v2119 = vadd.f32 %v2101, %v2111
        %v2120 = vadd.f32 %v2102, %v2112
        %s2121 = sld [smem:[#allocation12 + $0x200]]
        %v2122 = vstv %s2121
        %v2123 = vmul.f32 %v754, %v2122
        %v2124 = vmul.f32 %v755, %v2122
        %v2125 = vmul.f32 %v756, %v2122
        %v2126 = vmul.f32 %v757, %v2122
        %v2127 = vmul.f32 %v758, %v2122
        %v2128 = vmul.f32 %v759, %v2122
        %v2129 = vmul.f32 %v760, %v2122
        %v2130 = vmul.f32 %v761, %v2122
        %v2131 = vadd.f32 %v2113, %v2123
        %v2132 = vadd.f32 %v2114, %v2124
        %v2133 = vadd.f32 %v2115, %v2125
        %v2134 = vadd.f32 %v2116, %v2126
        %v2135 = vadd.f32 %v2117, %v2127
        %v2136 = vadd.f32 %v2118, %v2128
        %v2137 = vadd.f32 %v2119, %v2129
        %v2138 = vadd.f32 %v2120, %v2130
        %s2139 = sld [smem:[#allocation12 + $0x201]]
        %v2140 = vstv %s2139
        %v2141 = vmul.f32 %v781, %v2140
        %v2142 = vmul.f32 %v782, %v2140
        %v2143 = vmul.f32 %v783, %v2140
        %v2144 = vmul.f32 %v784, %v2140
        %v2145 = vmul.f32 %v785, %v2140
        %v2146 = vmul.f32 %v786, %v2140
        %v2147 = vmul.f32 %v787, %v2140
        %v2148 = vmul.f32 %v788, %v2140
        %v2149 = vadd.f32 %v2131, %v2141
        %v2150 = vadd.f32 %v2132, %v2142
        %v2151 = vadd.f32 %v2133, %v2143
        %v2152 = vadd.f32 %v2134, %v2144
        %v2153 = vadd.f32 %v2135, %v2145
        %v2154 = vadd.f32 %v2136, %v2146
        %v2155 = vadd.f32 %v2137, %v2147
        %v2156 = vadd.f32 %v2138, %v2148
        %s2157 = sld [smem:[#allocation12 + $0x202]]
        %v2158 = vstv %s2157
        %v2159 = vmul.f32 %v808, %v2158
        %v2160 = vmul.f32 %v809, %v2158
        %v2161 = vmul.f32 %v810, %v2158
        %v2162 = vmul.f32 %v811, %v2158
        %v2163 = vmul.f32 %v812, %v2158
        %v2164 = vmul.f32 %v813, %v2158
        %v2165 = vmul.f32 %v814, %v2158
        %v2166 = vmul.f32 %v815, %v2158
        %v2167 = vadd.f32 %v2149, %v2159
        %v2168 = vadd.f32 %v2150, %v2160
        %v2169 = vadd.f32 %v2151, %v2161
        %v2170 = vadd.f32 %v2152, %v2162
        %v2171 = vadd.f32 %v2153, %v2163
        %v2172 = vadd.f32 %v2154, %v2164
        %v2173 = vadd.f32 %v2155, %v2165
        %v2174 = vadd.f32 %v2156, %v2166
        %s2175 = sld [smem:[#allocation12 + $0x203]]
        %v2176 = vstv %s2175
        %v2177 = vmul.f32 %v835, %v2176
        %v2178 = vmul.f32 %v836, %v2176
        %v2179 = vmul.f32 %v837, %v2176
        %v2180 = vmul.f32 %v838, %v2176
        %v2181 = vmul.f32 %v839, %v2176
        %v2182 = vmul.f32 %v840, %v2176
        %v2183 = vmul.f32 %v841, %v2176
        %v2184 = vmul.f32 %v842, %v2176
        %v2185 = vadd.f32 %v2167, %v2177
        %v2186 = vadd.f32 %v2168, %v2178
        %v2187 = vadd.f32 %v2169, %v2179
        %v2188 = vadd.f32 %v2170, %v2180
        %v2189 = vadd.f32 %v2171, %v2181
        %v2190 = vadd.f32 %v2172, %v2182
        %v2191 = vadd.f32 %v2173, %v2183
        %v2192 = vadd.f32 %v2174, %v2184
        %s2193 = sld [smem:[#allocation12 + $0x204]]
        %v2194 = vstv %s2193
        %v2195 = vmul.f32 %v862, %v2194
        %v2196 = vmul.f32 %v863, %v2194
        %v2197 = vmul.f32 %v864, %v2194
        %v2198 = vmul.f32 %v865, %v2194
        %v2199 = vmul.f32 %v866, %v2194
        %v2200 = vmul.f32 %v867, %v2194
        %v2201 = vmul.f32 %v868, %v2194
        %v2202 = vmul.f32 %v869, %v2194
        %v2203 = vadd.f32 %v2185, %v2195
        %v2204 = vadd.f32 %v2186, %v2196
        %v2205 = vadd.f32 %v2187, %v2197
        %v2206 = vadd.f32 %v2188, %v2198
        %v2207 = vadd.f32 %v2189, %v2199
        %v2208 = vadd.f32 %v2190, %v2200
        %v2209 = vadd.f32 %v2191, %v2201
        %v2210 = vadd.f32 %v2192, %v2202
        %s2211 = sld [smem:[#allocation12 + $0x205]]
        %v2212 = vstv %s2211
        %v2213 = vmul.f32 %v889, %v2212
        %v2214 = vmul.f32 %v890, %v2212
        %v2215 = vmul.f32 %v891, %v2212
        %v2216 = vmul.f32 %v892, %v2212
        %v2217 = vmul.f32 %v893, %v2212
        %v2218 = vmul.f32 %v894, %v2212
        %v2219 = vmul.f32 %v895, %v2212
        %v2220 = vmul.f32 %v896, %v2212
        %v2221 = vadd.f32 %v2203, %v2213
        %v2222 = vadd.f32 %v2204, %v2214
        %v2223 = vadd.f32 %v2205, %v2215
        %v2224 = vadd.f32 %v2206, %v2216
        %v2225 = vadd.f32 %v2207, %v2217
        %v2226 = vadd.f32 %v2208, %v2218
        %v2227 = vadd.f32 %v2209, %v2219
        %v2228 = vadd.f32 %v2210, %v2220
        %s2229 = sld [smem:[#allocation12 + $0x206]]
        %v2230 = vstv %s2229
        %v2231 = vmul.f32 %v916, %v2230
        %v2232 = vmul.f32 %v917, %v2230
        %v2233 = vmul.f32 %v918, %v2230
        %v2234 = vmul.f32 %v919, %v2230
        %v2235 = vmul.f32 %v920, %v2230
        %v2236 = vmul.f32 %v921, %v2230
        %v2237 = vmul.f32 %v922, %v2230
        %v2238 = vmul.f32 %v923, %v2230
        %v2239 = vadd.f32 %v2221, %v2231
        %v2240 = vadd.f32 %v2222, %v2232
        %v2241 = vadd.f32 %v2223, %v2233
        %v2242 = vadd.f32 %v2224, %v2234
        %v2243 = vadd.f32 %v2225, %v2235
        %v2244 = vadd.f32 %v2226, %v2236
        %v2245 = vadd.f32 %v2227, %v2237
        %v2246 = vadd.f32 %v2228, %v2238
        %s2247 = sld [smem:[#allocation12 + $0x207]]
        %v2248 = vstv %s2247
        %v2249 = vmul.f32 %v943, %v2248
        %v2250 = vmul.f32 %v944, %v2248
        %v2251 = vmul.f32 %v945, %v2248
        %v2252 = vmul.f32 %v946, %v2248
        %v2253 = vmul.f32 %v947, %v2248
        %v2254 = vmul.f32 %v948, %v2248
        %v2255 = vmul.f32 %v949, %v2248
        %v2256 = vmul.f32 %v950, %v2248
        %v2257 = vadd.f32 %v2239, %v2249
        %v2258 = vadd.f32 %v2240, %v2250
        %v2259 = vadd.f32 %v2241, %v2251
        %v2260 = vadd.f32 %v2242, %v2252
        %v2261 = vadd.f32 %v2243, %v2253
        %v2262 = vadd.f32 %v2244, %v2254
        %v2263 = vadd.f32 %v2245, %v2255
        %v2264 = vadd.f32 %v2246, %v2256
        %s2265 = sld [smem:[#allocation14 + $0x4]]
        %v2266 = vstv %s2265
        %v2267 = vadd.f32 %v2257, %v2266
        %v2268 = vadd.f32 %v2258, %v2266
        %v2269 = vadd.f32 %v2259, %v2266
        %v2270 = vadd.f32 %v2260, %v2266
        %v2271 = vadd.f32 %v2261, %v2266
        %v2272 = vadd.f32 %v2262, %v2266
        %v2273 = vadd.f32 %v2263, %v2266
        %v2274 = vadd.f32 %v2264, %v2266
        %v2275 = vmax.f32 %v2267, 0.0
        %v2276 = vmax.f32 %v2268, 0.0
        %v2277 = vmax.f32 %v2269, 0.0
        %v2278 = vmax.f32 %v2270, 0.0
        %v2279 = vmax.f32 %v2271, 0.0
        %v2280 = vmax.f32 %v2272, 0.0
        %v2281 = vmax.f32 %v2273, 0.0
        %v2282 = vmax.f32 %v2274, 0.0
        %s2283 = sld [smem:[#allocation15 + $0x4]]
        %v2284 = vstv %s2283
        %v2285 = vmul.f32 %v2275, %v2284
        %v2286 = vmul.f32 %v2276, %v2284
        %v2287 = vmul.f32 %v2277, %v2284
        %v2288 = vmul.f32 %v2278, %v2284
        %v2289 = vmul.f32 %v2279, %v2284
        %v2290 = vmul.f32 %v2280, %v2284
        %v2291 = vmul.f32 %v2281, %v2284
        %v2292 = vmul.f32 %v2282, %v2284
        %v2293 = vadd.f32 %v1969, %v2285
        %v2294 = vadd.f32 %v1970, %v2286
        %v2295 = vadd.f32 %v1971, %v2287
        %v2296 = vadd.f32 %v1972, %v2288
        %v2297 = vadd.f32 %v1973, %v2289
        %v2298 = vadd.f32 %v1974, %v2290
        %v2299 = vadd.f32 %v1975, %v2291
        %v2300 = vadd.f32 %v1976, %v2292
        %s2301 = sld [smem:[#allocation11 + $0x280]]
        %v2302 = vstv %s2301
        %v2303 = vmul.f32 %v531, %v2302
        %v2304 = vmul.f32 %v532, %v2302
        %v2305 = vmul.f32 %v533, %v2302
        %v2306 = vmul.f32 %v534, %v2302
        %v2307 = vmul.f32 %v535, %v2302
        %v2308 = vmul.f32 %v536, %v2302
        %v2309 = vmul.f32 %v537, %v2302
        %v2310 = vmul.f32 %v538, %v2302
        %v2311 = vadd.f32 %v2303, 0.0
        %v2312 = vadd.f32 %v2304, 0.0
        %v2313 = vadd.f32 %v2305, 0.0
        %v2314 = vadd.f32 %v2306, 0.0
        %v2315 = vadd.f32 %v2307, 0.0
        %v2316 = vadd.f32 %v2308, 0.0
        %v2317 = vadd.f32 %v2309, 0.0
        %v2318 = vadd.f32 %v2310, 0.0
        %s2319 = sld [smem:[#allocation11 + $0x281]]
        %v2320 = vstv %s2319
        %v2321 = vmul.f32 %v559, %v2320
        %v2322 = vmul.f32 %v560, %v2320
        %v2323 = vmul.f32 %v561, %v2320
        %v2324 = vmul.f32 %v562, %v2320
        %v2325 = vmul.f32 %v563, %v2320
        %v2326 = vmul.f32 %v564, %v2320
        %v2327 = vmul.f32 %v565, %v2320
        %v2328 = vmul.f32 %v566, %v2320
        %v2329 = vadd.f32 %v2311, %v2321
        %v2330 = vadd.f32 %v2312, %v2322
        %v2331 = vadd.f32 %v2313, %v2323
        %v2332 = vadd.f32 %v2314, %v2324
        %v2333 = vadd.f32 %v2315, %v2325
        %v2334 = vadd.f32 %v2316, %v2326
        %v2335 = vadd.f32 %v2317, %v2327
        %v2336 = vadd.f32 %v2318, %v2328
        %s2337 = sld [smem:[#allocation11 + $0x282]]
        %v2338 = vstv %s2337
        %v2339 = vmul.f32 %v587, %v2338
        %v2340 = vmul.f32 %v588, %v2338
        %v2341 = vmul.f32 %v589, %v2338
        %v2342 = vmul.f32 %v590, %v2338
        %v2343 = vmul.f32 %v591, %v2338
        %v2344 = vmul.f32 %v592, %v2338
        %v2345 = vmul.f32 %v593, %v2338
        %v2346 = vmul.f32 %v594, %v2338
        %v2347 = vadd.f32 %v2329, %v2339
        %v2348 = vadd.f32 %v2330, %v2340
        %v2349 = vadd.f32 %v2331, %v2341
        %v2350 = vadd.f32 %v2332, %v2342
        %v2351 = vadd.f32 %v2333, %v2343
        %v2352 = vadd.f32 %v2334, %v2344
        %v2353 = vadd.f32 %v2335, %v2345
        %v2354 = vadd.f32 %v2336, %v2346
        %s2355 = sld [smem:[#allocation11 + $0x283]]
        %v2356 = vstv %s2355
        %v2357 = vmul.f32 %v615, %v2356
        %v2358 = vmul.f32 %v616, %v2356
        %v2359 = vmul.f32 %v617, %v2356
        %v2360 = vmul.f32 %v618, %v2356
        %v2361 = vmul.f32 %v619, %v2356
        %v2362 = vmul.f32 %v620, %v2356
        %v2363 = vmul.f32 %v621, %v2356
        %v2364 = vmul.f32 %v622, %v2356
        %v2365 = vadd.f32 %v2347, %v2357
        %v2366 = vadd.f32 %v2348, %v2358
        %v2367 = vadd.f32 %v2349, %v2359
        %v2368 = vadd.f32 %v2350, %v2360
        %v2369 = vadd.f32 %v2351, %v2361
        %v2370 = vadd.f32 %v2352, %v2362
        %v2371 = vadd.f32 %v2353, %v2363
        %v2372 = vadd.f32 %v2354, %v2364
        %s2373 = sld [smem:[#allocation11 + $0x284]]
        %v2374 = vstv %s2373
        %v2375 = vmul.f32 %v643, %v2374
        %v2376 = vmul.f32 %v644, %v2374
        %v2377 = vmul.f32 %v645, %v2374
        %v2378 = vmul.f32 %v646, %v2374
        %v2379 = vmul.f32 %v647, %v2374
        %v2380 = vmul.f32 %v648, %v2374
        %v2381 = vmul.f32 %v649, %v2374
        %v2382 = vmul.f32 %v650, %v2374
        %v2383 = vadd.f32 %v2365, %v2375
        %v2384 = vadd.f32 %v2366, %v2376
        %v2385 = vadd.f32 %v2367, %v2377
        %v2386 = vadd.f32 %v2368, %v2378
        %v2387 = vadd.f32 %v2369, %v2379
        %v2388 = vadd.f32 %v2370, %v2380
        %v2389 = vadd.f32 %v2371, %v2381
        %v2390 = vadd.f32 %v2372, %v2382
        %s2391 = sld [smem:[#allocation11 + $0x285]]
        %v2392 = vstv %s2391
        %v2393 = vmul.f32 %v671, %v2392
        %v2394 = vmul.f32 %v672, %v2392
        %v2395 = vmul.f32 %v673, %v2392
        %v2396 = vmul.f32 %v674, %v2392
        %v2397 = vmul.f32 %v675, %v2392
        %v2398 = vmul.f32 %v676, %v2392
        %v2399 = vmul.f32 %v677, %v2392
        %v2400 = vmul.f32 %v678, %v2392
        %v2401 = vadd.f32 %v2383, %v2393
        %v2402 = vadd.f32 %v2384, %v2394
        %v2403 = vadd.f32 %v2385, %v2395
        %v2404 = vadd.f32 %v2386, %v2396
        %v2405 = vadd.f32 %v2387, %v2397
        %v2406 = vadd.f32 %v2388, %v2398
        %v2407 = vadd.f32 %v2389, %v2399
        %v2408 = vadd.f32 %v2390, %v2400
        %s2409 = sld [smem:[#allocation11 + $0x286]]
        %v2410 = vstv %s2409
        %v2411 = vmul.f32 %v699, %v2410
        %v2412 = vmul.f32 %v700, %v2410
        %v2413 = vmul.f32 %v701, %v2410
        %v2414 = vmul.f32 %v702, %v2410
        %v2415 = vmul.f32 %v703, %v2410
        %v2416 = vmul.f32 %v704, %v2410
        %v2417 = vmul.f32 %v705, %v2410
        %v2418 = vmul.f32 %v706, %v2410
        %v2419 = vadd.f32 %v2401, %v2411
        %v2420 = vadd.f32 %v2402, %v2412
        %v2421 = vadd.f32 %v2403, %v2413
        %v2422 = vadd.f32 %v2404, %v2414
        %v2423 = vadd.f32 %v2405, %v2415
        %v2424 = vadd.f32 %v2406, %v2416
        %v2425 = vadd.f32 %v2407, %v2417
        %v2426 = vadd.f32 %v2408, %v2418
        %s2427 = sld [smem:[#allocation11 + $0x287]]
        %v2428 = vstv %s2427
        %v2429 = vmul.f32 %v727, %v2428
        %v2430 = vmul.f32 %v728, %v2428
        %v2431 = vmul.f32 %v729, %v2428
        %v2432 = vmul.f32 %v730, %v2428
        %v2433 = vmul.f32 %v731, %v2428
        %v2434 = vmul.f32 %v732, %v2428
        %v2435 = vmul.f32 %v733, %v2428
        %v2436 = vmul.f32 %v734, %v2428
        %v2437 = vadd.f32 %v2419, %v2429
        %v2438 = vadd.f32 %v2420, %v2430
        %v2439 = vadd.f32 %v2421, %v2431
        %v2440 = vadd.f32 %v2422, %v2432
        %v2441 = vadd.f32 %v2423, %v2433
        %v2442 = vadd.f32 %v2424, %v2434
        %v2443 = vadd.f32 %v2425, %v2435
        %v2444 = vadd.f32 %v2426, %v2436
        %s2445 = sld [smem:[#allocation12 + $0x280]]
        %v2446 = vstv %s2445
        %v2447 = vmul.f32 %v754, %v2446
        %v2448 = vmul.f32 %v755, %v2446
        %v2449 = vmul.f32 %v756, %v2446
        %v2450 = vmul.f32 %v757, %v2446
        %v2451 = vmul.f32 %v758, %v2446
        %v2452 = vmul.f32 %v759, %v2446
        %v2453 = vmul.f32 %v760, %v2446
        %v2454 = vmul.f32 %v761, %v2446
        %v2455 = vadd.f32 %v2437, %v2447
        %v2456 = vadd.f32 %v2438, %v2448
        %v2457 = vadd.f32 %v2439, %v2449
        %v2458 = vadd.f32 %v2440, %v2450
        %v2459 = vadd.f32 %v2441, %v2451
        %v2460 = vadd.f32 %v2442, %v2452
        %v2461 = vadd.f32 %v2443, %v2453
        %v2462 = vadd.f32 %v2444, %v2454
        %s2463 = sld [smem:[#allocation12 + $0x281]]
        %v2464 = vstv %s2463
        %v2465 = vmul.f32 %v781, %v2464
        %v2466 = vmul.f32 %v782, %v2464
        %v2467 = vmul.f32 %v783, %v2464
        %v2468 = vmul.f32 %v784, %v2464
        %v2469 = vmul.f32 %v785, %v2464
        %v2470 = vmul.f32 %v786, %v2464
        %v2471 = vmul.f32 %v787, %v2464
        %v2472 = vmul.f32 %v788, %v2464
        %v2473 = vadd.f32 %v2455, %v2465
        %v2474 = vadd.f32 %v2456, %v2466
        %v2475 = vadd.f32 %v2457, %v2467
        %v2476 = vadd.f32 %v2458, %v2468
        %v2477 = vadd.f32 %v2459, %v2469
        %v2478 = vadd.f32 %v2460, %v2470
        %v2479 = vadd.f32 %v2461, %v2471
        %v2480 = vadd.f32 %v2462, %v2472
        %s2481 = sld [smem:[#allocation12 + $0x282]]
        %v2482 = vstv %s2481
        %v2483 = vmul.f32 %v808, %v2482
        %v2484 = vmul.f32 %v809, %v2482
        %v2485 = vmul.f32 %v810, %v2482
        %v2486 = vmul.f32 %v811, %v2482
        %v2487 = vmul.f32 %v812, %v2482
        %v2488 = vmul.f32 %v813, %v2482
        %v2489 = vmul.f32 %v814, %v2482
        %v2490 = vmul.f32 %v815, %v2482
        %v2491 = vadd.f32 %v2473, %v2483
        %v2492 = vadd.f32 %v2474, %v2484
        %v2493 = vadd.f32 %v2475, %v2485
        %v2494 = vadd.f32 %v2476, %v2486
        %v2495 = vadd.f32 %v2477, %v2487
        %v2496 = vadd.f32 %v2478, %v2488
        %v2497 = vadd.f32 %v2479, %v2489
        %v2498 = vadd.f32 %v2480, %v2490
        %s2499 = sld [smem:[#allocation12 + $0x283]]
        %v2500 = vstv %s2499
        %v2501 = vmul.f32 %v835, %v2500
        %v2502 = vmul.f32 %v836, %v2500
        %v2503 = vmul.f32 %v837, %v2500
        %v2504 = vmul.f32 %v838, %v2500
        %v2505 = vmul.f32 %v839, %v2500
        %v2506 = vmul.f32 %v840, %v2500
        %v2507 = vmul.f32 %v841, %v2500
        %v2508 = vmul.f32 %v842, %v2500
        %v2509 = vadd.f32 %v2491, %v2501
        %v2510 = vadd.f32 %v2492, %v2502
        %v2511 = vadd.f32 %v2493, %v2503
        %v2512 = vadd.f32 %v2494, %v2504
        %v2513 = vadd.f32 %v2495, %v2505
        %v2514 = vadd.f32 %v2496, %v2506
        %v2515 = vadd.f32 %v2497, %v2507
        %v2516 = vadd.f32 %v2498, %v2508
        %s2517 = sld [smem:[#allocation12 + $0x284]]
        %v2518 = vstv %s2517
        %v2519 = vmul.f32 %v862, %v2518
        %v2520 = vmul.f32 %v863, %v2518
        %v2521 = vmul.f32 %v864, %v2518
        %v2522 = vmul.f32 %v865, %v2518
        %v2523 = vmul.f32 %v866, %v2518
        %v2524 = vmul.f32 %v867, %v2518
        %v2525 = vmul.f32 %v868, %v2518
        %v2526 = vmul.f32 %v869, %v2518
        %v2527 = vadd.f32 %v2509, %v2519
        %v2528 = vadd.f32 %v2510, %v2520
        %v2529 = vadd.f32 %v2511, %v2521
        %v2530 = vadd.f32 %v2512, %v2522
        %v2531 = vadd.f32 %v2513, %v2523
        %v2532 = vadd.f32 %v2514, %v2524
        %v2533 = vadd.f32 %v2515, %v2525
        %v2534 = vadd.f32 %v2516, %v2526
        %s2535 = sld [smem:[#allocation12 + $0x285]]
        %v2536 = vstv %s2535
        %v2537 = vmul.f32 %v889, %v2536
        %v2538 = vmul.f32 %v890, %v2536
        %v2539 = vmul.f32 %v891, %v2536
        %v2540 = vmul.f32 %v892, %v2536
        %v2541 = vmul.f32 %v893, %v2536
        %v2542 = vmul.f32 %v894, %v2536
        %v2543 = vmul.f32 %v895, %v2536
        %v2544 = vmul.f32 %v896, %v2536
        %v2545 = vadd.f32 %v2527, %v2537
        %v2546 = vadd.f32 %v2528, %v2538
        %v2547 = vadd.f32 %v2529, %v2539
        %v2548 = vadd.f32 %v2530, %v2540
        %v2549 = vadd.f32 %v2531, %v2541
        %v2550 = vadd.f32 %v2532, %v2542
        %v2551 = vadd.f32 %v2533, %v2543
        %v2552 = vadd.f32 %v2534, %v2544
        %s2553 = sld [smem:[#allocation12 + $0x286]]
        %v2554 = vstv %s2553
        %v2555 = vmul.f32 %v916, %v2554
        %v2556 = vmul.f32 %v917, %v2554
        %v2557 = vmul.f32 %v918, %v2554
        %v2558 = vmul.f32 %v919, %v2554
        %v2559 = vmul.f32 %v920, %v2554
        %v2560 = vmul.f32 %v921, %v2554
        %v2561 = vmul.f32 %v922, %v2554
        %v2562 = vmul.f32 %v923, %v2554
        %v2563 = vadd.f32 %v2545, %v2555
        %v2564 = vadd.f32 %v2546, %v2556
        %v2565 = vadd.f32 %v2547, %v2557
        %v2566 = vadd.f32 %v2548, %v2558
        %v2567 = vadd.f32 %v2549, %v2559
        %v2568 = vadd.f32 %v2550, %v2560
        %v2569 = vadd.f32 %v2551, %v2561
        %v2570 = vadd.f32 %v2552, %v2562
        %s2571 = sld [smem:[#allocation12 + $0x287]]
        %v2572 = vstv %s2571
        %v2573 = vmul.f32 %v943, %v2572
        %v2574 = vmul.f32 %v944, %v2572
        %v2575 = vmul.f32 %v945, %v2572
        %v2576 = vmul.f32 %v946, %v2572
        %v2577 = vmul.f32 %v947, %v2572
        %v2578 = vmul.f32 %v948, %v2572
        %v2579 = vmul.f32 %v949, %v2572
        %v2580 = vmul.f32 %v950, %v2572
        %v2581 = vadd.f32 %v2563, %v2573
        %v2582 = vadd.f32 %v2564, %v2574
        %v2583 = vadd.f32 %v2565, %v2575
        %v2584 = vadd.f32 %v2566, %v2576
        %v2585 = vadd.f32 %v2567, %v2577
        %v2586 = vadd.f32 %v2568, %v2578
        %v2587 = vadd.f32 %v2569, %v2579
        %v2588 = vadd.f32 %v2570, %v2580
        %s2589 = sld [smem:[#allocation14 + $0x5]]
        %v2590 = vstv %s2589
        %v2591 = vadd.f32 %v2581, %v2590
        %v2592 = vadd.f32 %v2582, %v2590
        %v2593 = vadd.f32 %v2583, %v2590
        %v2594 = vadd.f32 %v2584, %v2590
        %v2595 = vadd.f32 %v2585, %v2590
        %v2596 = vadd.f32 %v2586, %v2590
        %v2597 = vadd.f32 %v2587, %v2590
        %v2598 = vadd.f32 %v2588, %v2590
        %v2599 = vmax.f32 %v2591, 0.0
        %v2600 = vmax.f32 %v2592, 0.0
        %v2601 = vmax.f32 %v2593, 0.0
        %v2602 = vmax.f32 %v2594, 0.0
        %v2603 = vmax.f32 %v2595, 0.0
        %v2604 = vmax.f32 %v2596, 0.0
        %v2605 = vmax.f32 %v2597, 0.0
        %v2606 = vmax.f32 %v2598, 0.0
        %s2607 = sld [smem:[#allocation15 + $0x5]]
        %v2608 = vstv %s2607
        %v2609 = vmul.f32 %v2599, %v2608
        %v2610 = vmul.f32 %v2600, %v2608
        %v2611 = vmul.f32 %v2601, %v2608
        %v2612 = vmul.f32 %v2602, %v2608
        %v2613 = vmul.f32 %v2603, %v2608
        %v2614 = vmul.f32 %v2604, %v2608
        %v2615 = vmul.f32 %v2605, %v2608
        %v2616 = vmul.f32 %v2606, %v2608
        %v2617 = vadd.f32 %v2293, %v2609
        %v2618 = vadd.f32 %v2294, %v2610
        %v2619 = vadd.f32 %v2295, %v2611
        %v2620 = vadd.f32 %v2296, %v2612
        %v2621 = vadd.f32 %v2297, %v2613
        %v2622 = vadd.f32 %v2298, %v2614
        %v2623 = vadd.f32 %v2299, %v2615
        %v2624 = vadd.f32 %v2300, %v2616
        %s2625 = sld [smem:[#allocation11 + $0x300]]
        %v2626 = vstv %s2625
        %v2627 = vmul.f32 %v531, %v2626
        %v2628 = vmul.f32 %v532, %v2626
        %v2629 = vmul.f32 %v533, %v2626
        %v2630 = vmul.f32 %v534, %v2626
        %v2631 = vmul.f32 %v535, %v2626
        %v2632 = vmul.f32 %v536, %v2626
        %v2633 = vmul.f32 %v537, %v2626
        %v2634 = vmul.f32 %v538, %v2626
        %v2635 = vadd.f32 %v2627, 0.0
        %v2636 = vadd.f32 %v2628, 0.0
        %v2637 = vadd.f32 %v2629, 0.0
        %v2638 = vadd.f32 %v2630, 0.0
        %v2639 = vadd.f32 %v2631, 0.0
        %v2640 = vadd.f32 %v2632, 0.0
        %v2641 = vadd.f32 %v2633, 0.0
        %v2642 = vadd.f32 %v2634, 0.0
        %s2643 = sld [smem:[#allocation11 + $0x301]]
        %v2644 = vstv %s2643
        %v2645 = vmul.f32 %v559, %v2644
        %v2646 = vmul.f32 %v560, %v2644
        %v2647 = vmul.f32 %v561, %v2644
        %v2648 = vmul.f32 %v562, %v2644
        %v2649 = vmul.f32 %v563, %v2644
        %v2650 = vmul.f32 %v564, %v2644
        %v2651 = vmul.f32 %v565, %v2644
        %v2652 = vmul.f32 %v566, %v2644
        %v2653 = vadd.f32 %v2635, %v2645
        %v2654 = vadd.f32 %v2636, %v2646
        %v2655 = vadd.f32 %v2637, %v2647
        %v2656 = vadd.f32 %v2638, %v2648
        %v2657 = vadd.f32 %v2639, %v2649
        %v2658 = vadd.f32 %v2640, %v2650
        %v2659 = vadd.f32 %v2641, %v2651
        %v2660 = vadd.f32 %v2642, %v2652
        %s2661 = sld [smem:[#allocation11 + $0x302]]
        %v2662 = vstv %s2661
        %v2663 = vmul.f32 %v587, %v2662
        %v2664 = vmul.f32 %v588, %v2662
        %v2665 = vmul.f32 %v589, %v2662
        %v2666 = vmul.f32 %v590, %v2662
        %v2667 = vmul.f32 %v591, %v2662
        %v2668 = vmul.f32 %v592, %v2662
        %v2669 = vmul.f32 %v593, %v2662
        %v2670 = vmul.f32 %v594, %v2662
        %v2671 = vadd.f32 %v2653, %v2663
        %v2672 = vadd.f32 %v2654, %v2664
        %v2673 = vadd.f32 %v2655, %v2665
        %v2674 = vadd.f32 %v2656, %v2666
        %v2675 = vadd.f32 %v2657, %v2667
        %v2676 = vadd.f32 %v2658, %v2668
        %v2677 = vadd.f32 %v2659, %v2669
        %v2678 = vadd.f32 %v2660, %v2670
        %s2679 = sld [smem:[#allocation11 + $0x303]]
        %v2680 = vstv %s2679
        %v2681 = vmul.f32 %v615, %v2680
        %v2682 = vmul.f32 %v616, %v2680
        %v2683 = vmul.f32 %v617, %v2680
        %v2684 = vmul.f32 %v618, %v2680
        %v2685 = vmul.f32 %v619, %v2680
        %v2686 = vmul.f32 %v620, %v2680
        %v2687 = vmul.f32 %v621, %v2680
        %v2688 = vmul.f32 %v622, %v2680
        %v2689 = vadd.f32 %v2671, %v2681
        %v2690 = vadd.f32 %v2672, %v2682
        %v2691 = vadd.f32 %v2673, %v2683
        %v2692 = vadd.f32 %v2674, %v2684
        %v2693 = vadd.f32 %v2675, %v2685
        %v2694 = vadd.f32 %v2676, %v2686
        %v2695 = vadd.f32 %v2677, %v2687
        %v2696 = vadd.f32 %v2678, %v2688
        %s2697 = sld [smem:[#allocation11 + $0x304]]
        %v2698 = vstv %s2697
        %v2699 = vmul.f32 %v643, %v2698
        %v2700 = vmul.f32 %v644, %v2698
        %v2701 = vmul.f32 %v645, %v2698
        %v2702 = vmul.f32 %v646, %v2698
        %v2703 = vmul.f32 %v647, %v2698
        %v2704 = vmul.f32 %v648, %v2698
        %v2705 = vmul.f32 %v649, %v2698
        %v2706 = vmul.f32 %v650, %v2698
        %v2707 = vadd.f32 %v2689, %v2699
        %v2708 = vadd.f32 %v2690, %v2700
        %v2709 = vadd.f32 %v2691, %v2701
        %v2710 = vadd.f32 %v2692, %v2702
        %v2711 = vadd.f32 %v2693, %v2703
        %v2712 = vadd.f32 %v2694, %v2704
        %v2713 = vadd.f32 %v2695, %v2705
        %v2714 = vadd.f32 %v2696, %v2706
        %s2715 = sld [smem:[#allocation11 + $0x305]]
        %v2716 = vstv %s2715
        %v2717 = vmul.f32 %v671, %v2716
        %v2718 = vmul.f32 %v672, %v2716
        %v2719 = vmul.f32 %v673, %v2716
        %v2720 = vmul.f32 %v674, %v2716
        %v2721 = vmul.f32 %v675, %v2716
        %v2722 = vmul.f32 %v676, %v2716
        %v2723 = vmul.f32 %v677, %v2716
        %v2724 = vmul.f32 %v678, %v2716
        %v2725 = vadd.f32 %v2707, %v2717
        %v2726 = vadd.f32 %v2708, %v2718
        %v2727 = vadd.f32 %v2709, %v2719
        %v2728 = vadd.f32 %v2710, %v2720
        %v2729 = vadd.f32 %v2711, %v2721
        %v2730 = vadd.f32 %v2712, %v2722
        %v2731 = vadd.f32 %v2713, %v2723
        %v2732 = vadd.f32 %v2714, %v2724
        %s2733 = sld [smem:[#allocation11 + $0x306]]
        %v2734 = vstv %s2733
        %v2735 = vmul.f32 %v699, %v2734
        %v2736 = vmul.f32 %v700, %v2734
        %v2737 = vmul.f32 %v701, %v2734
        %v2738 = vmul.f32 %v702, %v2734
        %v2739 = vmul.f32 %v703, %v2734
        %v2740 = vmul.f32 %v704, %v2734
        %v2741 = vmul.f32 %v705, %v2734
        %v2742 = vmul.f32 %v706, %v2734
        %v2743 = vadd.f32 %v2725, %v2735
        %v2744 = vadd.f32 %v2726, %v2736
        %v2745 = vadd.f32 %v2727, %v2737
        %v2746 = vadd.f32 %v2728, %v2738
        %v2747 = vadd.f32 %v2729, %v2739
        %v2748 = vadd.f32 %v2730, %v2740
        %v2749 = vadd.f32 %v2731, %v2741
        %v2750 = vadd.f32 %v2732, %v2742
        %s2751 = sld [smem:[#allocation11 + $0x307]]
        %v2752 = vstv %s2751
        %v2753 = vmul.f32 %v727, %v2752
        %v2754 = vmul.f32 %v728, %v2752
        %v2755 = vmul.f32 %v729, %v2752
        %v2756 = vmul.f32 %v730, %v2752
        %v2757 = vmul.f32 %v731, %v2752
        %v2758 = vmul.f32 %v732, %v2752
        %v2759 = vmul.f32 %v733, %v2752
        %v2760 = vmul.f32 %v734, %v2752
        %v2761 = vadd.f32 %v2743, %v2753
        %v2762 = vadd.f32 %v2744, %v2754
        %v2763 = vadd.f32 %v2745, %v2755
        %v2764 = vadd.f32 %v2746, %v2756
        %v2765 = vadd.f32 %v2747, %v2757
        %v2766 = vadd.f32 %v2748, %v2758
        %v2767 = vadd.f32 %v2749, %v2759
        %v2768 = vadd.f32 %v2750, %v2760
        %s2769 = sld [smem:[#allocation12 + $0x300]]
        %v2770 = vstv %s2769
        %v2771 = vmul.f32 %v754, %v2770
        %v2772 = vmul.f32 %v755, %v2770
        %v2773 = vmul.f32 %v756, %v2770
        %v2774 = vmul.f32 %v757, %v2770
        %v2775 = vmul.f32 %v758, %v2770
        %v2776 = vmul.f32 %v759, %v2770
        %v2777 = vmul.f32 %v760, %v2770
        %v2778 = vmul.f32 %v761, %v2770
        %v2779 = vadd.f32 %v2761, %v2771
        %v2780 = vadd.f32 %v2762, %v2772
        %v2781 = vadd.f32 %v2763, %v2773
        %v2782 = vadd.f32 %v2764, %v2774
        %v2783 = vadd.f32 %v2765, %v2775
        %v2784 = vadd.f32 %v2766, %v2776
        %v2785 = vadd.f32 %v2767, %v2777
        %v2786 = vadd.f32 %v2768, %v2778
        %s2787 = sld [smem:[#allocation12 + $0x301]]
        %v2788 = vstv %s2787
        %v2789 = vmul.f32 %v781, %v2788
        %v2790 = vmul.f32 %v782, %v2788
        %v2791 = vmul.f32 %v783, %v2788
        %v2792 = vmul.f32 %v784, %v2788
        %v2793 = vmul.f32 %v785, %v2788
        %v2794 = vmul.f32 %v786, %v2788
        %v2795 = vmul.f32 %v787, %v2788
        %v2796 = vmul.f32 %v788, %v2788
        %v2797 = vadd.f32 %v2779, %v2789
        %v2798 = vadd.f32 %v2780, %v2790
        %v2799 = vadd.f32 %v2781, %v2791
        %v2800 = vadd.f32 %v2782, %v2792
        %v2801 = vadd.f32 %v2783, %v2793
        %v2802 = vadd.f32 %v2784, %v2794
        %v2803 = vadd.f32 %v2785, %v2795
        %v2804 = vadd.f32 %v2786, %v2796
        %s2805 = sld [smem:[#allocation12 + $0x302]]
        %v2806 = vstv %s2805
        %v2807 = vmul.f32 %v808, %v2806
        %v2808 = vmul.f32 %v809, %v2806
        %v2809 = vmul.f32 %v810, %v2806
        %v2810 = vmul.f32 %v811, %v2806
        %v2811 = vmul.f32 %v812, %v2806
        %v2812 = vmul.f32 %v813, %v2806
        %v2813 = vmul.f32 %v814, %v2806
        %v2814 = vmul.f32 %v815, %v2806
        %v2815 = vadd.f32 %v2797, %v2807
        %v2816 = vadd.f32 %v2798, %v2808
        %v2817 = vadd.f32 %v2799, %v2809
        %v2818 = vadd.f32 %v2800, %v2810
        %v2819 = vadd.f32 %v2801, %v2811
        %v2820 = vadd.f32 %v2802, %v2812
        %v2821 = vadd.f32 %v2803, %v2813
        %v2822 = vadd.f32 %v2804, %v2814
        %s2823 = sld [smem:[#allocation12 + $0x303]]
        %v2824 = vstv %s2823
        %v2825 = vmul.f32 %v835, %v2824
        %v2826 = vmul.f32 %v836, %v2824
        %v2827 = vmul.f32 %v837, %v2824
        %v2828 = vmul.f32 %v838, %v2824
        %v2829 = vmul.f32 %v839, %v2824
        %v2830 = vmul.f32 %v840, %v2824
        %v2831 = vmul.f32 %v841, %v2824
        %v2832 = vmul.f32 %v842, %v2824
        %v2833 = vadd.f32 %v2815, %v2825
        %v2834 = vadd.f32 %v2816, %v2826
        %v2835 = vadd.f32 %v2817, %v2827
        %v2836 = vadd.f32 %v2818, %v2828
        %v2837 = vadd.f32 %v2819, %v2829
        %v2838 = vadd.f32 %v2820, %v2830
        %v2839 = vadd.f32 %v2821, %v2831
        %v2840 = vadd.f32 %v2822, %v2832
        %s2841 = sld [smem:[#allocation12 + $0x304]]
        %v2842 = vstv %s2841
        %v2843 = vmul.f32 %v862, %v2842
        %v2844 = vmul.f32 %v863, %v2842
        %v2845 = vmul.f32 %v864, %v2842
        %v2846 = vmul.f32 %v865, %v2842
        %v2847 = vmul.f32 %v866, %v2842
        %v2848 = vmul.f32 %v867, %v2842
        %v2849 = vmul.f32 %v868, %v2842
        %v2850 = vmul.f32 %v869, %v2842
        %v2851 = vadd.f32 %v2833, %v2843
        %v2852 = vadd.f32 %v2834, %v2844
        %v2853 = vadd.f32 %v2835, %v2845
        %v2854 = vadd.f32 %v2836, %v2846
        %v2855 = vadd.f32 %v2837, %v2847
        %v2856 = vadd.f32 %v2838, %v2848
        %v2857 = vadd.f32 %v2839, %v2849
        %v2858 = vadd.f32 %v2840, %v2850
        %s2859 = sld [smem:[#allocation12 + $0x305]]
        %v2860 = vstv %s2859
        %v2861 = vmul.f32 %v889, %v2860
        %v2862 = vmul.f32 %v890, %v2860
        %v2863 = vmul.f32 %v891, %v2860
        %v2864 = vmul.f32 %v892, %v2860
        %v2865 = vmul.f32 %v893, %v2860
        %v2866 = vmul.f32 %v894, %v2860
        %v2867 = vmul.f32 %v895, %v2860
        %v2868 = vmul.f32 %v896, %v2860
        %v2869 = vadd.f32 %v2851, %v2861
        %v2870 = vadd.f32 %v2852, %v2862
        %v2871 = vadd.f32 %v2853, %v2863
        %v2872 = vadd.f32 %v2854, %v2864
        %v2873 = vadd.f32 %v2855, %v2865
        %v2874 = vadd.f32 %v2856, %v2866
        %v2875 = vadd.f32 %v2857, %v2867
        %v2876 = vadd.f32 %v2858, %v2868
        %s2877 = sld [smem:[#allocation12 + $0x306]]
        %v2878 = vstv %s2877
        %v2879 = vmul.f32 %v916, %v2878
        %v2880 = vmul.f32 %v917, %v2878
        %v2881 = vmul.f32 %v918, %v2878
        %v2882 = vmul.f32 %v919, %v2878
        %v2883 = vmul.f32 %v920, %v2878
        %v2884 = vmul.f32 %v921, %v2878
        %v2885 = vmul.f32 %v922, %v2878
        %v2886 = vmul.f32 %v923, %v2878
        %v2887 = vadd.f32 %v2869, %v2879
        %v2888 = vadd.f32 %v2870, %v2880
        %v2889 = vadd.f32 %v2871, %v2881
        %v2890 = vadd.f32 %v2872, %v2882
        %v2891 = vadd.f32 %v2873, %v2883
        %v2892 = vadd.f32 %v2874, %v2884
        %v2893 = vadd.f32 %v2875, %v2885
        %v2894 = vadd.f32 %v2876, %v2886
        %s2895 = sld [smem:[#allocation12 + $0x307]]
        %v2896 = vstv %s2895
        %v2897 = vmul.f32 %v943, %v2896
        %v2898 = vmul.f32 %v944, %v2896
        %v2899 = vmul.f32 %v945, %v2896
        %v2900 = vmul.f32 %v946, %v2896
        %v2901 = vmul.f32 %v947, %v2896
        %v2902 = vmul.f32 %v948, %v2896
        %v2903 = vmul.f32 %v949, %v2896
        %v2904 = vmul.f32 %v950, %v2896
        %v2905 = vadd.f32 %v2887, %v2897
        %v2906 = vadd.f32 %v2888, %v2898
        %v2907 = vadd.f32 %v2889, %v2899
        %v2908 = vadd.f32 %v2890, %v2900
        %v2909 = vadd.f32 %v2891, %v2901
        %v2910 = vadd.f32 %v2892, %v2902
        %v2911 = vadd.f32 %v2893, %v2903
        %v2912 = vadd.f32 %v2894, %v2904
        %s2913 = sld [smem:[#allocation14 + $0x6]]
        %v2914 = vstv %s2913
        %v2915 = vadd.f32 %v2905, %v2914
        %v2916 = vadd.f32 %v2906, %v2914
        %v2917 = vadd.f32 %v2907, %v2914
        %v2918 = vadd.f32 %v2908, %v2914
        %v2919 = vadd.f32 %v2909, %v2914
        %v2920 = vadd.f32 %v2910, %v2914
        %v2921 = vadd.f32 %v2911, %v2914
        %v2922 = vadd.f32 %v2912, %v2914
        %v2923 = vmax.f32 %v2915, 0.0
        %v2924 = vmax.f32 %v2916, 0.0
        %v2925 = vmax.f32 %v2917, 0.0
        %v2926 = vmax.f32 %v2918, 0.0
        %v2927 = vmax.f32 %v2919, 0.0
        %v2928 = vmax.f32 %v2920, 0.0
        %v2929 = vmax.f32 %v2921, 0.0
        %v2930 = vmax.f32 %v2922, 0.0
        %s2931 = sld [smem:[#allocation15 + $0x6]]
        %v2932 = vstv %s2931
        %v2933 = vmul.f32 %v2923, %v2932
        %v2934 = vmul.f32 %v2924, %v2932
        %v2935 = vmul.f32 %v2925, %v2932
        %v2936 = vmul.f32 %v2926, %v2932
        %v2937 = vmul.f32 %v2927, %v2932
        %v2938 = vmul.f32 %v2928, %v2932
        %v2939 = vmul.f32 %v2929, %v2932
        %v2940 = vmul.f32 %v2930, %v2932
        %v2941 = vadd.f32 %v2617, %v2933
        %v2942 = vadd.f32 %v2618, %v2934
        %v2943 = vadd.f32 %v2619, %v2935
        %v2944 = vadd.f32 %v2620, %v2936
        %v2945 = vadd.f32 %v2621, %v2937
        %v2946 = vadd.f32 %v2622, %v2938
        %v2947 = vadd.f32 %v2623, %v2939
        %v2948 = vadd.f32 %v2624, %v2940
        %s2949 = sld [smem:[#allocation11 + $0x380]]
        %v2950 = vstv %s2949
        %v2951 = vmul.f32 %v531, %v2950
        %v2952 = vmul.f32 %v532, %v2950
        %v2953 = vmul.f32 %v533, %v2950
        %v2954 = vmul.f32 %v534, %v2950
        %v2955 = vmul.f32 %v535, %v2950
        %v2956 = vmul.f32 %v536, %v2950
        %v2957 = vmul.f32 %v537, %v2950
        %v2958 = vmul.f32 %v538, %v2950
        %v2959 = vadd.f32 %v2951, 0.0
        %v2960 = vadd.f32 %v2952, 0.0
        %v2961 = vadd.f32 %v2953, 0.0
        %v2962 = vadd.f32 %v2954, 0.0
        %v2963 = vadd.f32 %v2955, 0.0
        %v2964 = vadd.f32 %v2956, 0.0
        %v2965 = vadd.f32 %v2957, 0.0
        %v2966 = vadd.f32 %v2958, 0.0
        %s2967 = sld [smem:[#allocation11 + $0x381]]
        %v2968 = vstv %s2967
        %v2969 = vmul.f32 %v559, %v2968
        %v2970 = vmul.f32 %v560, %v2968
        %v2971 = vmul.f32 %v561, %v2968
        %v2972 = vmul.f32 %v562, %v2968
        %v2973 = vmul.f32 %v563, %v2968
        %v2974 = vmul.f32 %v564, %v2968
        %v2975 = vmul.f32 %v565, %v2968
        %v2976 = vmul.f32 %v566, %v2968
        %v2977 = vadd.f32 %v2959, %v2969
        %v2978 = vadd.f32 %v2960, %v2970
        %v2979 = vadd.f32 %v2961, %v2971
        %v2980 = vadd.f32 %v2962, %v2972
        %v2981 = vadd.f32 %v2963, %v2973
        %v2982 = vadd.f32 %v2964, %v2974
        %v2983 = vadd.f32 %v2965, %v2975
        %v2984 = vadd.f32 %v2966, %v2976
        %s2985 = sld [smem:[#allocation11 + $0x382]]
        %v2986 = vstv %s2985
        %v2987 = vmul.f32 %v587, %v2986
        %v2988 = vmul.f32 %v588, %v2986
        %v2989 = vmul.f32 %v589, %v2986
        %v2990 = vmul.f32 %v590, %v2986
        %v2991 = vmul.f32 %v591, %v2986
        %v2992 = vmul.f32 %v592, %v2986
        %v2993 = vmul.f32 %v593, %v2986
        %v2994 = vmul.f32 %v594, %v2986
        %v2995 = vadd.f32 %v2977, %v2987
        %v2996 = vadd.f32 %v2978, %v2988
        %v2997 = vadd.f32 %v2979, %v2989
        %v2998 = vadd.f32 %v2980, %v2990
        %v2999 = vadd.f32 %v2981, %v2991
        %v3000 = vadd.f32 %v2982, %v2992
        %v3001 = vadd.f32 %v2983, %v2993
        %v3002 = vadd.f32 %v2984, %v2994
        %s3003 = sld [smem:[#allocation11 + $0x383]]
        %v3004 = vstv %s3003
        %v3005 = vmul.f32 %v615, %v3004
        %v3006 = vmul.f32 %v616, %v3004
        %v3007 = vmul.f32 %v617, %v3004
        %v3008 = vmul.f32 %v618, %v3004
        %v3009 = vmul.f32 %v619, %v3004
        %v3010 = vmul.f32 %v620, %v3004
        %v3011 = vmul.f32 %v621, %v3004
        %v3012 = vmul.f32 %v622, %v3004
        %v3013 = vadd.f32 %v2995, %v3005
        %v3014 = vadd.f32 %v2996, %v3006
        %v3015 = vadd.f32 %v2997, %v3007
        %v3016 = vadd.f32 %v2998, %v3008
        %v3017 = vadd.f32 %v2999, %v3009
        %v3018 = vadd.f32 %v3000, %v3010
        %v3019 = vadd.f32 %v3001, %v3011
        %v3020 = vadd.f32 %v3002, %v3012
        %s3021 = sld [smem:[#allocation11 + $0x384]]
        %v3022 = vstv %s3021
        %v3023 = vmul.f32 %v643, %v3022
        %v3024 = vmul.f32 %v644, %v3022
        %v3025 = vmul.f32 %v645, %v3022
        %v3026 = vmul.f32 %v646, %v3022
        %v3027 = vmul.f32 %v647, %v3022
        %v3028 = vmul.f32 %v648, %v3022
        %v3029 = vmul.f32 %v649, %v3022
        %v3030 = vmul.f32 %v650, %v3022
        %v3031 = vadd.f32 %v3013, %v3023
        %v3032 = vadd.f32 %v3014, %v3024
        %v3033 = vadd.f32 %v3015, %v3025
        %v3034 = vadd.f32 %v3016, %v3026
        %v3035 = vadd.f32 %v3017, %v3027
        %v3036 = vadd.f32 %v3018, %v3028
        %v3037 = vadd.f32 %v3019, %v3029
        %v3038 = vadd.f32 %v3020, %v3030
        %s3039 = sld [smem:[#allocation11 + $0x385]]
        %v3040 = vstv %s3039
        %v3041 = vmul.f32 %v671, %v3040
        %v3042 = vmul.f32 %v672, %v3040
        %v3043 = vmul.f32 %v673, %v3040
        %v3044 = vmul.f32 %v674, %v3040
        %v3045 = vmul.f32 %v675, %v3040
        %v3046 = vmul.f32 %v676, %v3040
        %v3047 = vmul.f32 %v677, %v3040
        %v3048 = vmul.f32 %v678, %v3040
        %v3049 = vadd.f32 %v3031, %v3041
        %v3050 = vadd.f32 %v3032, %v3042
        %v3051 = vadd.f32 %v3033, %v3043
        %v3052 = vadd.f32 %v3034, %v3044
        %v3053 = vadd.f32 %v3035, %v3045
        %v3054 = vadd.f32 %v3036, %v3046
        %v3055 = vadd.f32 %v3037, %v3047
        %v3056 = vadd.f32 %v3038, %v3048
        %s3057 = sld [smem:[#allocation11 + $0x386]]
        %v3058 = vstv %s3057
        %v3059 = vmul.f32 %v699, %v3058
        %v3060 = vmul.f32 %v700, %v3058
        %v3061 = vmul.f32 %v701, %v3058
        %v3062 = vmul.f32 %v702, %v3058
        %v3063 = vmul.f32 %v703, %v3058
        %v3064 = vmul.f32 %v704, %v3058
        %v3065 = vmul.f32 %v705, %v3058
        %v3066 = vmul.f32 %v706, %v3058
        %v3067 = vadd.f32 %v3049, %v3059
        %v3068 = vadd.f32 %v3050, %v3060
        %v3069 = vadd.f32 %v3051, %v3061
        %v3070 = vadd.f32 %v3052, %v3062
        %v3071 = vadd.f32 %v3053, %v3063
        %v3072 = vadd.f32 %v3054, %v3064
        %v3073 = vadd.f32 %v3055, %v3065
        %v3074 = vadd.f32 %v3056, %v3066
        %s3075 = sld [smem:[#allocation11 + $0x387]]
        %v3076 = vstv %s3075
        %v3077 = vmul.f32 %v727, %v3076
        %v3078 = vmul.f32 %v728, %v3076
        %v3079 = vmul.f32 %v729, %v3076
        %v3080 = vmul.f32 %v730, %v3076
        %v3081 = vmul.f32 %v731, %v3076
        %v3082 = vmul.f32 %v732, %v3076
        %v3083 = vmul.f32 %v733, %v3076
        %v3084 = vmul.f32 %v734, %v3076
        %v3085 = vadd.f32 %v3067, %v3077
        %v3086 = vadd.f32 %v3068, %v3078
        %v3087 = vadd.f32 %v3069, %v3079
        %v3088 = vadd.f32 %v3070, %v3080
        %v3089 = vadd.f32 %v3071, %v3081
        %v3090 = vadd.f32 %v3072, %v3082
        %v3091 = vadd.f32 %v3073, %v3083
        %v3092 = vadd.f32 %v3074, %v3084
        %s3093 = sld [smem:[#allocation12 + $0x380]]
        %v3094 = vstv %s3093
        %v3095 = vmul.f32 %v754, %v3094
        %v3096 = vmul.f32 %v755, %v3094
        %v3097 = vmul.f32 %v756, %v3094
        %v3098 = vmul.f32 %v757, %v3094
        %v3099 = vmul.f32 %v758, %v3094
        %v3100 = vmul.f32 %v759, %v3094
        %v3101 = vmul.f32 %v760, %v3094
        %v3102 = vmul.f32 %v761, %v3094
        %v3103 = vadd.f32 %v3085, %v3095
        %v3104 = vadd.f32 %v3086, %v3096
        %v3105 = vadd.f32 %v3087, %v3097
        %v3106 = vadd.f32 %v3088, %v3098
        %v3107 = vadd.f32 %v3089, %v3099
        %v3108 = vadd.f32 %v3090, %v3100
        %v3109 = vadd.f32 %v3091, %v3101
        %v3110 = vadd.f32 %v3092, %v3102
        %s3111 = sld [smem:[#allocation12 + $0x381]]
        %v3112 = vstv %s3111
        %v3113 = vmul.f32 %v781, %v3112
        %v3114 = vmul.f32 %v782, %v3112
        %v3115 = vmul.f32 %v783, %v3112
        %v3116 = vmul.f32 %v784, %v3112
        %v3117 = vmul.f32 %v785, %v3112
        %v3118 = vmul.f32 %v786, %v3112
        %v3119 = vmul.f32 %v787, %v3112
        %v3120 = vmul.f32 %v788, %v3112
        %v3121 = vadd.f32 %v3103, %v3113
        %v3122 = vadd.f32 %v3104, %v3114
        %v3123 = vadd.f32 %v3105, %v3115
        %v3124 = vadd.f32 %v3106, %v3116
        %v3125 = vadd.f32 %v3107, %v3117
        %v3126 = vadd.f32 %v3108, %v3118
        %v3127 = vadd.f32 %v3109, %v3119
        %v3128 = vadd.f32 %v3110, %v3120
        %s3129 = sld [smem:[#allocation12 + $0x382]]
        %v3130 = vstv %s3129
        %v3131 = vmul.f32 %v808, %v3130
        %v3132 = vmul.f32 %v809, %v3130
        %v3133 = vmul.f32 %v810, %v3130
        %v3134 = vmul.f32 %v811, %v3130
        %v3135 = vmul.f32 %v812, %v3130
        %v3136 = vmul.f32 %v813, %v3130
        %v3137 = vmul.f32 %v814, %v3130
        %v3138 = vmul.f32 %v815, %v3130
        %v3139 = vadd.f32 %v3121, %v3131
        %v3140 = vadd.f32 %v3122, %v3132
        %v3141 = vadd.f32 %v3123, %v3133
        %v3142 = vadd.f32 %v3124, %v3134
        %v3143 = vadd.f32 %v3125, %v3135
        %v3144 = vadd.f32 %v3126, %v3136
        %v3145 = vadd.f32 %v3127, %v3137
        %v3146 = vadd.f32 %v3128, %v3138
        %s3147 = sld [smem:[#allocation12 + $0x383]]
        %v3148 = vstv %s3147
        %v3149 = vmul.f32 %v835, %v3148
        %v3150 = vmul.f32 %v836, %v3148
        %v3151 = vmul.f32 %v837, %v3148
        %v3152 = vmul.f32 %v838, %v3148
        %v3153 = vmul.f32 %v839, %v3148
        %v3154 = vmul.f32 %v840, %v3148
        %v3155 = vmul.f32 %v841, %v3148
        %v3156 = vmul.f32 %v842, %v3148
        %v3157 = vadd.f32 %v3139, %v3149
        %v3158 = vadd.f32 %v3140, %v3150
        %v3159 = vadd.f32 %v3141, %v3151
        %v3160 = vadd.f32 %v3142, %v3152
        %v3161 = vadd.f32 %v3143, %v3153
        %v3162 = vadd.f32 %v3144, %v3154
        %v3163 = vadd.f32 %v3145, %v3155
        %v3164 = vadd.f32 %v3146, %v3156
        %s3165 = sld [smem:[#allocation12 + $0x384]]
        %v3166 = vstv %s3165
        %v3167 = vmul.f32 %v862, %v3166
        %v3168 = vmul.f32 %v863, %v3166
        %v3169 = vmul.f32 %v864, %v3166
        %v3170 = vmul.f32 %v865, %v3166
        %v3171 = vmul.f32 %v866, %v3166
        %v3172 = vmul.f32 %v867, %v3166
        %v3173 = vmul.f32 %v868, %v3166
        %v3174 = vmul.f32 %v869, %v3166
        %v3175 = vadd.f32 %v3157, %v3167
        %v3176 = vadd.f32 %v3158, %v3168
        %v3177 = vadd.f32 %v3159, %v3169
        %v3178 = vadd.f32 %v3160, %v3170
        %v3179 = vadd.f32 %v3161, %v3171
        %v3180 = vadd.f32 %v3162, %v3172
        %v3181 = vadd.f32 %v3163, %v3173
        %v3182 = vadd.f32 %v3164, %v3174
        %s3183 = sld [smem:[#allocation12 + $0x385]]
        %v3184 = vstv %s3183
        %v3185 = vmul.f32 %v889, %v3184
        %v3186 = vmul.f32 %v890, %v3184
        %v3187 = vmul.f32 %v891, %v3184
        %v3188 = vmul.f32 %v892, %v3184
        %v3189 = vmul.f32 %v893, %v3184
        %v3190 = vmul.f32 %v894, %v3184
        %v3191 = vmul.f32 %v895, %v3184
        %v3192 = vmul.f32 %v896, %v3184
        %v3193 = vadd.f32 %v3175, %v3185
        %v3194 = vadd.f32 %v3176, %v3186
        %v3195 = vadd.f32 %v3177, %v3187
        %v3196 = vadd.f32 %v3178, %v3188
        %v3197 = vadd.f32 %v3179, %v3189
        %v3198 = vadd.f32 %v3180, %v3190
        %v3199 = vadd.f32 %v3181, %v3191
        %v3200 = vadd.f32 %v3182, %v3192
        %s3201 = sld [smem:[#allocation12 + $0x386]]
        %v3202 = vstv %s3201
        %v3203 = vmul.f32 %v916, %v3202
        %v3204 = vmul.f32 %v917, %v3202
        %v3205 = vmul.f32 %v918, %v3202
        %v3206 = vmul.f32 %v919, %v3202
        %v3207 = vmul.f32 %v920, %v3202
        %v3208 = vmul.f32 %v921, %v3202
        %v3209 = vmul.f32 %v922, %v3202
        %v3210 = vmul.f32 %v923, %v3202
        %v3211 = vadd.f32 %v3193, %v3203
        %v3212 = vadd.f32 %v3194, %v3204
        %v3213 = vadd.f32 %v3195, %v3205
        %v3214 = vadd.f32 %v3196, %v3206
        %v3215 = vadd.f32 %v3197, %v3207
        %v3216 = vadd.f32 %v3198, %v3208
        %v3217 = vadd.f32 %v3199, %v3209
        %v3218 = vadd.f32 %v3200, %v3210
        %s3219 = sld [smem:[#allocation12 + $0x387]]
        %v3220 = vstv %s3219
        %v3221 = vmul.f32 %v943, %v3220
        %v3222 = vmul.f32 %v944, %v3220
        %v3223 = vmul.f32 %v945, %v3220
        %v3224 = vmul.f32 %v946, %v3220
        %v3225 = vmul.f32 %v947, %v3220
        %v3226 = vmul.f32 %v948, %v3220
        %v3227 = vmul.f32 %v949, %v3220
        %v3228 = vmul.f32 %v950, %v3220
        %v3229 = vadd.f32 %v3211, %v3221
        %v3230 = vadd.f32 %v3212, %v3222
        %v3231 = vadd.f32 %v3213, %v3223
        %v3232 = vadd.f32 %v3214, %v3224
        %v3233 = vadd.f32 %v3215, %v3225
        %v3234 = vadd.f32 %v3216, %v3226
        %v3235 = vadd.f32 %v3217, %v3227
        %v3236 = vadd.f32 %v3218, %v3228
        %s3237 = sld [smem:[#allocation14 + $0x7]]
        %v3238 = vstv %s3237
        %v3239 = vadd.f32 %v3229, %v3238
        %v3240 = vadd.f32 %v3230, %v3238
        %v3241 = vadd.f32 %v3231, %v3238
        %v3242 = vadd.f32 %v3232, %v3238
        %v3243 = vadd.f32 %v3233, %v3238
        %v3244 = vadd.f32 %v3234, %v3238
        %v3245 = vadd.f32 %v3235, %v3238
        %v3246 = vadd.f32 %v3236, %v3238
        %v3247 = vmax.f32 %v3239, 0.0
        %v3248 = vmax.f32 %v3240, 0.0
        %v3249 = vmax.f32 %v3241, 0.0
        %v3250 = vmax.f32 %v3242, 0.0
        %v3251 = vmax.f32 %v3243, 0.0
        %v3252 = vmax.f32 %v3244, 0.0
        %v3253 = vmax.f32 %v3245, 0.0
        %v3254 = vmax.f32 %v3246, 0.0
        %s3255 = sld [smem:[#allocation15 + $0x7]]
        %v3256 = vstv %s3255
        %v3257 = vmul.f32 %v3247, %v3256
        %v3258 = vmul.f32 %v3248, %v3256
        %v3259 = vmul.f32 %v3249, %v3256
        %v3260 = vmul.f32 %v3250, %v3256
        %v3261 = vmul.f32 %v3251, %v3256
        %v3262 = vmul.f32 %v3252, %v3256
        %v3263 = vmul.f32 %v3253, %v3256
        %v3264 = vmul.f32 %v3254, %v3256
        %v3265 = vadd.f32 %v2941, %v3257
        %v3266 = vadd.f32 %v2942, %v3258
        %v3267 = vadd.f32 %v2943, %v3259
        %v3268 = vadd.f32 %v2944, %v3260
        %v3269 = vadd.f32 %v2945, %v3261
        %v3270 = vadd.f32 %v2946, %v3262
        %v3271 = vadd.f32 %v2947, %v3263
        %v3272 = vadd.f32 %v2948, %v3264
        %s3273 = sld [smem:[#allocation3]]
        %v3274 = vstv %s3273
        %v3275 = vadd.f32 %v3265, %v3274
        %v3276 = vadd.f32 %v3266, %v3274
        %v3277 = vadd.f32 %v3267, %v3274
        %v3278 = vadd.f32 %v3268, %v3274
        %v3279 = vadd.f32 %v3269, %v3274
        %v3280 = vadd.f32 %v3270, %v3274
        %v3281 = vadd.f32 %v3271, %v3274
        %v3282 = vadd.f32 %v3272, %v3274
        %v3283 = vxor.u32 %v3275, 2147483648
        %v3284 = vxor.u32 %v3276, 2147483648
        %v3285 = vxor.u32 %v3277, 2147483648
        %v3286 = vxor.u32 %v3278, 2147483648
        %v3287 = vxor.u32 %v3279, 2147483648
        %v3288 = vxor.u32 %v3280, 2147483648
        %v3289 = vxor.u32 %v3281, 2147483648
        %v3290 = vxor.u32 %v3282, 2147483648
        %v3291 = vmul.f32 %v3283, 1.442695
        %v3292 = vpow.pop %v3291
        %v3293 = vmul.f32 %v3284, 1.442695
        %v3294 = vpow.pop %v3293
        %v3295 = vmul.f32 %v3285, 1.442695
        %v3296 = vpow.pop %v3295
        %v3297 = vmul.f32 %v3286, 1.442695
        %v3298 = vpow.pop %v3297
        %v3299 = vmul.f32 %v3287, 1.442695
        %v3300 = vpow.pop %v3299
        %v3301 = vmul.f32 %v3288, 1.442695
        %v3302 = vpow.pop %v3301
        %v3303 = vmul.f32 %v3289, 1.442695
        %v3304 = vpow.pop %v3303
        %v3305 = vmul.f32 %v3290, 1.442695
        %v3306 = vpow.pop %v3305
        %v3307 = vadd.f32 %v3292, 1.0
        %v3308 = vadd.f32 %v3294, 1.0
        %v3309 = vadd.f32 %v3296, 1.0
        %v3310 = vadd.f32 %v3298, 1.0
        %v3311 = vadd.f32 %v3300, 1.0
        %v3312 = vadd.f32 %v3302, 1.0
        %v3313 = vadd.f32 %v3304, 1.0
        %v3314 = vadd.f32 %v3306, 1.0
        %v3315 = vrcp.pop %v3307
        %v3316 = vmul.f32 1.0, %v3315
        %v3317 = vrcp.pop %v3308
        %v3318 = vmul.f32 1.0, %v3317
        %v3319 = vrcp.pop %v3309
        %v3320 = vmul.f32 1.0, %v3319
        %v3321 = vrcp.pop %v3310
        %v3322 = vmul.f32 1.0, %v3321
        %v3323 = vrcp.pop %v3311
        %v3324 = vmul.f32 1.0, %v3323
        %v3325 = vrcp.pop %v3312
        %v3326 = vmul.f32 1.0, %v3325
        %v3327 = vrcp.pop %v3313
        %v3328 = vmul.f32 1.0, %v3327
        %v3329 = vrcp.pop %v3314
        %v3330 = vmul.f32 1.0, %v3329
        %s3331 = scalar_lea.vmem [#allocation2], %s529
        %vm3332 = vcmask 64512
        %3333 = vst.msk [vmem:[%s3331] sm:$0xff] %vm3332, %v3316
        %3334 = vst.msk [vmem:[%s3331 + $0x8] sm:$0xff] %vm3332, %v3318
        %3335 = vst.msk [vmem:[%s3331 + $0x10] sm:$0xff] %vm3332, %v3320
        %3336 = vst.msk [vmem:[%s3331 + $0x18] sm:$0xff] %vm3332, %v3322
        %3337 = vst.msk [vmem:[%s3331 + $0x20] sm:$0xff] %vm3332, %v3324
        %3338 = vst.msk [vmem:[%s3331 + $0x28] sm:$0xff] %vm3332, %v3326
        %3339 = vst.msk [vmem:[%s3331 + $0x30] sm:$0xff] %vm3332, %v3328
        %3340 = vst.msk [vmem:[%s3331 + $0x38] sm:$0xff] %vm3332, %v3330
        %v3341 = vld [vmem:[%s3] sm:$0xff]
        %v3342 = vld [vmem:[#allocation2] sm:$0x1]
        %v3343 = vld [vmem:[#allocation2 + $0x8] sm:$0x1]
        %v3344 = vld [vmem:[#allocation2 + $0x10] sm:$0x1]
        %v3345 = vld [vmem:[#allocation2 + $0x18] sm:$0x1]
        %v3346 = vld [vmem:[#allocation2 + $0x20] sm:$0x1]
        %v3347 = vld [vmem:[#allocation2 + $0x28] sm:$0x1]
        %v3348 = vld [vmem:[#allocation2 + $0x30] sm:$0x1]
        %v3349 = vld [vmem:[#allocation2 + $0x38] sm:$0x1]
        %v3358 = vrot.slane %v3343, 7
        %vm3359 = vcmask 1041409
        %v3360 = vsel %vm3359, %v3358, %v3342
        %v3361 = vrot.slane %v3344, 6
        %vm3362 = vcmask 1042434
        %v3363 = vsel %vm3362, %v3361, %v3360
        %v3364 = vrot.slane %v3345, 5
        %vm3365 = vcmask 1043459
        %v3366 = vsel %vm3365, %v3364, %v3363
        %v3367 = vrot.slane %v3346, 4
        %vm3368 = vcmask 1044484
        %v3369 = vsel %vm3368, %v3367, %v3366
        %v3370 = vrot.slane %v3347, 3
        %vm3371 = vcmask 1045509
        %v3372 = vsel %vm3371, %v3370, %v3369
        %v3373 = vrot.slane %v3348, 2
        %vm3374 = vcmask 1046534
        %v3375 = vsel %vm3374, %v3373, %v3372
        %v3376 = vrot.slane %v3349, 1
        %vm3377 = vcmask 1047559
        %v3378 = vsel %vm3377, %v3376, %v3375
        %v3379 = vsel %vm3332, %v3378, 0
        %3381 = vmatprep.subr.mxu0 0.0
        %3382 = vmatpush1.msra.mxu0 %v3341
        %3383 = vmatprep.subr.mxu0 0.0
        %3384 = vmatpush1.msra.mxu0 0.0
        %3385 = vmatprep.subr.mxu0 0.0
        %3386 = vmatpush1.msra.mxu0 0.0
        %3387 = vmatprep.subr.mxu0 0.0
        %3388 = vmatpush1.msra.mxu0 0.0
        %3389 = vmatprep.subr.mxu0 0.0
        %3390 = vmatpush1.msra.mxu0 0.0
        %3391 = vmatprep.subr.mxu0 0.0
        %3392 = vmatpush1.msra.mxu0 0.0
        %3393 = vmatprep.subr.mxu0 0.0
        %3394 = vmatpush1.msra.mxu0 0.0
        %3395 = vmatprep.subr.mxu0 0.0
        %3396 = vmatpush1.msra.mxu0 0.0
        %3397 = vmatprep.subr.mxu0 0.0
        %3398 = vmatpush1.msra.mxu0 0.0
        %3399 = vmatprep.subr.mxu0 0.0
        %3400 = vmatpush1.msra.mxu0 0.0
        %3401 = vmatprep.subr.mxu0 0.0
        %3402 = vmatpush1.msra.mxu0 0.0
        %3403 = vmatprep.subr.mxu0 0.0
        %3404 = vmatpush1.msra.mxu0 0.0
        %3405 = vmatprep.subr.mxu0 0.0
        %3406 = vmatpush1.msra.mxu0 0.0
        %3407 = vmatprep.subr.mxu0 0.0
        %3408 = vmatpush1.msra.mxu0 0.0
        %3409 = vmatprep.subr.mxu0 0.0
        %3410 = vmatpush1.msra.mxu0 0.0
        %3411 = vmatprep.subr.mxu0 0.0
        %3412 = vmatpush1.msra.mxu0 0.0
        %3413 = vmatprep.subr.mxu0 0.0
        %3414 = vmatpush1.msra.mxu0 0.0
        %3415 = vmatprep.subr.mxu0 0.0
        %3416 = vmatpush1.msra.mxu0 0.0
        %3417 = vmatprep.subr.mxu0 0.0
        %3418 = vmatpush1.msra.mxu0 0.0
        %3419 = vmatprep.subr.mxu0 0.0
        %3420 = vmatpush1.msra.mxu0 0.0
        %3421 = vmatprep.subr.mxu0 0.0
        %3422 = vmatpush1.msra.mxu0 0.0
        %3423 = vmatprep.subr.mxu0 0.0
        %3424 = vmatpush1.msra.mxu0 0.0
        %3425 = vmatprep.subr.mxu0 0.0
        %3426 = vmatpush1.msra.mxu0 0.0
        %3427 = vmatprep.subr.mxu0 0.0
        %3428 = vmatpush1.msra.mxu0 0.0
        %3429 = vmatprep.subr.mxu0 0.0
        %3430 = vmatpush1.msra.mxu0 0.0
        %3431 = vmatprep.subr.mxu0 0.0
        %3432 = vmatpush1.msra.mxu0 0.0
        %3433 = vmatprep.subr.mxu0 0.0
        %3434 = vmatpush1.msra.mxu0 0.0
        %3435 = vmatprep.subr.mxu0 0.0
        %3436 = vmatpush1.msra.mxu0 0.0
        %3437 = vmatprep.subr.mxu0 0.0
        %3438 = vmatpush1.msra.mxu0 0.0
        %3439 = vmatprep.subr.mxu0 0.0
        %3440 = vmatpush1.msra.mxu0 0.0
        %3441 = vmatprep.subr.mxu0 0.0
        %3442 = vmatpush1.msra.mxu0 0.0
        %3443 = vmatprep.subr.mxu0 0.0
        %3444 = vmatpush1.msra.mxu0 0.0
        %3445 = vmatprep.mubr.f32.mxu0 0.0
        %3446 = vmatmul.mubr.f32.gmra.mrb[0].mxu0 %v3379
        %v3447 = vpop.f32.mrb[0].mxu0
        %v3448 = vadd.f32 0.0, %v3447
        %v3449 = vpop.f32.mrb[0].mxu0
        %3450 = vdwg.mxu0
        %v3451 = vmul.f32 %v3342, 0.75
        %v3452 = vmul.f32 %v3343, 0.75
        %v3453 = vmul.f32 %v3344, 0.75
        %v3454 = vmul.f32 %v3345, 0.75
        %v3455 = vmul.f32 %v3346, 0.75
        %v3456 = vmul.f32 %v3347, 0.75
        %v3457 = vmul.f32 %v3348, 0.75
        %v3458 = vmul.f32 %v3349, 0.75
        %v3459 = vld [vmem:[#allocation2 + $0x1] sm:$0x1]
        %v3460 = vld [vmem:[#allocation2 + $0x9] sm:$0x1]
        %v3461 = vld [vmem:[#allocation2 + $0x11] sm:$0x1]
        %v3462 = vld [vmem:[#allocation2 + $0x19] sm:$0x1]
        %v3463 = vld [vmem:[#allocation2 + $0x21] sm:$0x1]
        %v3464 = vld [vmem:[#allocation2 + $0x29] sm:$0x1]
        %v3465 = vld [vmem:[#allocation2 + $0x31] sm:$0x1]
        %v3466 = vld [vmem:[#allocation2 + $0x39] sm:$0x1]
        %v3467 = vmul.f32 %v3459, 0.25
        %v3468 = vmul.f32 %v3460, 0.25
        %v3469 = vmul.f32 %v3461, 0.25
        %v3470 = vmul.f32 %v3462, 0.25
        %v3471 = vmul.f32 %v3463, 0.25
        %v3472 = vmul.f32 %v3464, 0.25
        %v3473 = vmul.f32 %v3465, 0.25
        %v3474 = vmul.f32 %v3466, 0.25
        %v3475 = vadd.f32 %v3451, %v3467
        %v3476 = vadd.f32 %v3452, %v3468
        %v3477 = vadd.f32 %v3453, %v3469
        %v3478 = vadd.f32 %v3454, %v3470
        %v3479 = vadd.f32 %v3455, %v3471
        %v3480 = vadd.f32 %v3456, %v3472
        %v3481 = vadd.f32 %v3457, %v3473
        %v3482 = vadd.f32 %v3458, %v3474
        %v3491 = vrot.slane %v3476, 7
        %v3492 = vsel %vm3359, %v3491, %v3475
        %v3493 = vrot.slane %v3477, 6
        %v3494 = vsel %vm3362, %v3493, %v3492
        %v3495 = vrot.slane %v3478, 5
        %v3496 = vsel %vm3365, %v3495, %v3494
        %v3497 = vrot.slane %v3479, 4
        %v3498 = vsel %vm3368, %v3497, %v3496
        %v3499 = vrot.slane %v3480, 3
        %v3500 = vsel %vm3371, %v3499, %v3498
        %v3501 = vrot.slane %v3481, 2
        %v3502 = vsel %vm3374, %v3501, %v3500
        %v3503 = vrot.slane %v3482, 1
        %v3504 = vsel %vm3377, %v3503, %v3502
        %v3505 = vsel %vm3332, %v3504, 0
        %3507 = vmatprep.subr.mxu0 0.0
        %3508 = vmatpush1.msra.mxu0 %v3341
        %3509 = vmatprep.subr.mxu0 0.0
        %3510 = vmatpush1.msra.mxu0 0.0
        %3511 = vmatprep.subr.mxu0 0.0
        %3512 = vmatpush1.msra.mxu0 0.0
        %3513 = vmatprep.subr.mxu0 0.0
        %3514 = vmatpush1.msra.mxu0 0.0
        %3515 = vmatprep.subr.mxu0 0.0
        %3516 = vmatpush1.msra.mxu0 0.0
        %3517 = vmatprep.subr.mxu0 0.0
        %3518 = vmatpush1.msra.mxu0 0.0
        %3519 = vmatprep.subr.mxu0 0.0
        %3520 = vmatpush1.msra.mxu0 0.0
        %3521 = vmatprep.subr.mxu0 0.0
        %3522 = vmatpush1.msra.mxu0 0.0
        %3523 = vmatprep.subr.mxu0 0.0
        %3524 = vmatpush1.msra.mxu0 0.0
        %3525 = vmatprep.subr.mxu0 0.0
        %3526 = vmatpush1.msra.mxu0 0.0
        %3527 = vmatprep.subr.mxu0 0.0
        %3528 = vmatpush1.msra.mxu0 0.0
        %3529 = vmatprep.subr.mxu0 0.0
        %3530 = vmatpush1.msra.mxu0 0.0
        %3531 = vmatprep.subr.mxu0 0.0
        %3532 = vmatpush1.msra.mxu0 0.0
        %3533 = vmatprep.subr.mxu0 0.0
        %3534 = vmatpush1.msra.mxu0 0.0
        %3535 = vmatprep.subr.mxu0 0.0
        %3536 = vmatpush1.msra.mxu0 0.0
        %3537 = vmatprep.subr.mxu0 0.0
        %3538 = vmatpush1.msra.mxu0 0.0
        %3539 = vmatprep.subr.mxu0 0.0
        %3540 = vmatpush1.msra.mxu0 0.0
        %3541 = vmatprep.subr.mxu0 0.0
        %3542 = vmatpush1.msra.mxu0 0.0
        %3543 = vmatprep.subr.mxu0 0.0
        %3544 = vmatpush1.msra.mxu0 0.0
        %3545 = vmatprep.subr.mxu0 0.0
        %3546 = vmatpush1.msra.mxu0 0.0
        %3547 = vmatprep.subr.mxu0 0.0
        %3548 = vmatpush1.msra.mxu0 0.0
        %3549 = vmatprep.subr.mxu0 0.0
        %3550 = vmatpush1.msra.mxu0 0.0
        %3551 = vmatprep.subr.mxu0 0.0
        %3552 = vmatpush1.msra.mxu0 0.0
        %3553 = vmatprep.subr.mxu0 0.0
        %3554 = vmatpush1.msra.mxu0 0.0
        %3555 = vmatprep.subr.mxu0 0.0
        %3556 = vmatpush1.msra.mxu0 0.0
        %3557 = vmatprep.subr.mxu0 0.0
        %3558 = vmatpush1.msra.mxu0 0.0
        %3559 = vmatprep.subr.mxu0 0.0
        %3560 = vmatpush1.msra.mxu0 0.0
        %3561 = vmatprep.subr.mxu0 0.0
        %3562 = vmatpush1.msra.mxu0 0.0
        %3563 = vmatprep.subr.mxu0 0.0
        %3564 = vmatpush1.msra.mxu0 0.0
        %3565 = vmatprep.subr.mxu0 0.0
        %3566 = vmatpush1.msra.mxu0 0.0
        %3567 = vmatprep.subr.mxu0 0.0
        %3568 = vmatpush1.msra.mxu0 0.0
        %3569 = vmatprep.subr.mxu0 0.0
        %3570 = vmatpush1.msra.mxu0 0.0
        %3571 = vmatprep.mubr.f32.mxu0 0.0
        %3572 = vmatmul.mubr.f32.gmra.mrb[0].mxu0 %v3505
        %v3573 = vpop.f32.mrb[0].mxu0
        %v3574 = vadd.f32 0.0, %v3573
        %v3575 = vpop.f32.mrb[0].mxu0
        %3576 = vdwg.mxu0
        %v3577 = vmul.f32 %v3342, 0.25
        %v3578 = vmul.f32 %v3343, 0.25
        %v3579 = vmul.f32 %v3344, 0.25
        %v3580 = vmul.f32 %v3345, 0.25
        %v3581 = vmul.f32 %v3346, 0.25
        %v3582 = vmul.f32 %v3347, 0.25
        %v3583 = vmul.f32 %v3348, 0.25
        %v3584 = vmul.f32 %v3349, 0.25
        %v3585 = vmul.f32 %v3459, 0.75
        %v3586 = vmul.f32 %v3460, 0.75
        %v3587 = vmul.f32 %v3461, 0.75
        %v3588 = vmul.f32 %v3462, 0.75
        %v3589 = vmul.f32 %v3463, 0.75
        %v3590 = vmul.f32 %v3464, 0.75
        %v3591 = vmul.f32 %v3465, 0.75
        %v3592 = vmul.f32 %v3466, 0.75
        %v3593 = vadd.f32 %v3577, %v3585
        %v3594 = vadd.f32 %v3578, %v3586
        %v3595 = vadd.f32 %v3579, %v3587
        %v3596 = vadd.f32 %v3580, %v3588
        %v3597 = vadd.f32 %v3581, %v3589
        %v3598 = vadd.f32 %v3582, %v3590
        %v3599 = vadd.f32 %v3583, %v3591
        %v3600 = vadd.f32 %v3584, %v3592
        %v3609 = vrot.slane %v3594, 7
        %v3610 = vsel %vm3359, %v3609, %v3593
        %v3611 = vrot.slane %v3595, 6
        %v3612 = vsel %vm3362, %v3611, %v3610
        %v3613 = vrot.slane %v3596, 5
        %v3614 = vsel %vm3365, %v3613, %v3612
        %v3615 = vrot.slane %v3597, 4
        %v3616 = vsel %vm3368, %v3615, %v3614
        %v3617 = vrot.slane %v3598, 3
        %v3618 = vsel %vm3371, %v3617, %v3616
        %v3619 = vrot.slane %v3599, 2
        %v3620 = vsel %vm3374, %v3619, %v3618
        %v3621 = vrot.slane %v3600, 1
        %v3622 = vsel %vm3377, %v3621, %v3620
        %v3623 = vsel %vm3332, %v3622, 0
        %3625 = vmatprep.subr.mxu0 0.0
        %3626 = vmatpush1.msra.mxu0 %v3341
        %3627 = vmatprep.subr.mxu0 0.0
        %3628 = vmatpush1.msra.mxu0 0.0
        %3629 = vmatprep.subr.mxu0 0.0
        %3630 = vmatpush1.msra.mxu0 0.0
        %3631 = vmatprep.subr.mxu0 0.0
        %3632 = vmatpush1.msra.mxu0 0.0
        %3633 = vmatprep.subr.mxu0 0.0
        %3634 = vmatpush1.msra.mxu0 0.0
        %3635 = vmatprep.subr.mxu0 0.0
        %3636 = vmatpush1.msra.mxu0 0.0
        %3637 = vmatprep.subr.mxu0 0.0
        %3638 = vmatpush1.msra.mxu0 0.0
        %3639 = vmatprep.subr.mxu0 0.0
        %3640 = vmatpush1.msra.mxu0 0.0
        %3641 = vmatprep.subr.mxu0 0.0
        %3642 = vmatpush1.msra.mxu0 0.0
        %3643 = vmatprep.subr.mxu0 0.0
        %3644 = vmatpush1.msra.mxu0 0.0
        %3645 = vmatprep.subr.mxu0 0.0
        %3646 = vmatpush1.msra.mxu0 0.0
        %3647 = vmatprep.subr.mxu0 0.0
        %3648 = vmatpush1.msra.mxu0 0.0
        %3649 = vmatprep.subr.mxu0 0.0
        %3650 = vmatpush1.msra.mxu0 0.0
        %3651 = vmatprep.subr.mxu0 0.0
        %3652 = vmatpush1.msra.mxu0 0.0
        %3653 = vmatprep.subr.mxu0 0.0
        %3654 = vmatpush1.msra.mxu0 0.0
        %3655 = vmatprep.subr.mxu0 0.0
        %3656 = vmatpush1.msra.mxu0 0.0
        %3657 = vmatprep.subr.mxu0 0.0
        %3658 = vmatpush1.msra.mxu0 0.0
        %3659 = vmatprep.subr.mxu0 0.0
        %3660 = vmatpush1.msra.mxu0 0.0
        %3661 = vmatprep.subr.mxu0 0.0
        %3662 = vmatpush1.msra.mxu0 0.0
        %3663 = vmatprep.subr.mxu0 0.0
        %3664 = vmatpush1.msra.mxu0 0.0
        %3665 = vmatprep.subr.mxu0 0.0
        %3666 = vmatpush1.msra.mxu0 0.0
        %3667 = vmatprep.subr.mxu0 0.0
        %3668 = vmatpush1.msra.mxu0 0.0
        %3669 = vmatprep.subr.mxu0 0.0
        %3670 = vmatpush1.msra.mxu0 0.0
        %3671 = vmatprep.subr.mxu0 0.0
        %3672 = vmatpush1.msra.mxu0 0.0
        %3673 = vmatprep.subr.mxu0 0.0
        %3674 = vmatpush1.msra.mxu0 0.0
        %3675 = vmatprep.subr.mxu0 0.0
        %3676 = vmatpush1.msra.mxu0 0.0
        %3677 = vmatprep.subr.mxu0 0.0
        %3678 = vmatpush1.msra.mxu0 0.0
        %3679 = vmatprep.subr.mxu0 0.0
        %3680 = vmatpush1.msra.mxu0 0.0
        %3681 = vmatprep.subr.mxu0 0.0
        %3682 = vmatpush1.msra.mxu0 0.0
        %3683 = vmatprep.subr.mxu0 0.0
        %3684 = vmatpush1.msra.mxu0 0.0
        %3685 = vmatprep.subr.mxu0 0.0
        %3686 = vmatpush1.msra.mxu0 0.0
        %3687 = vmatprep.subr.mxu0 0.0
        %3688 = vmatpush1.msra.mxu0 0.0
        %3689 = vmatprep.mubr.f32.mxu0 0.0
        %3690 = vmatmul.mubr.f32.gmra.mrb[0].mxu0 %v3623
        %v3691 = vpop.f32.mrb[0].mxu0
        %v3692 = vadd.f32 0.0, %v3691
        %v3693 = vpop.f32.mrb[0].mxu0
        %3694 = vdwg.mxu0
        %v3695 = vld [vmem:[#allocation2 + $0x2] sm:$0x1]
        %v3696 = vld [vmem:[#allocation2 + $0xa] sm:$0x1]
        %v3697 = vld [vmem:[#allocation2 + $0x12] sm:$0x1]
        %v3698 = vld [vmem:[#allocation2 + $0x1a] sm:$0x1]
        %v3699 = vld [vmem:[#allocation2 + $0x22] sm:$0x1]
        %v3700 = vld [vmem:[#allocation2 + $0x2a] sm:$0x1]
        %v3701 = vld [vmem:[#allocation2 + $0x32] sm:$0x1]
        %v3702 = vld [vmem:[#allocation2 + $0x3a] sm:$0x1]
        %v3703 = vmul.f32 %v3695, 0.25
        %v3704 = vmul.f32 %v3696, 0.25
        %v3705 = vmul.f32 %v3697, 0.25
        %v3706 = vmul.f32 %v3698, 0.25
        %v3707 = vmul.f32 %v3699, 0.25
        %v3708 = vmul.f32 %v3700, 0.25
        %v3709 = vmul.f32 %v3701, 0.25
        %v3710 = vmul.f32 %v3702, 0.25
        %v3711 = vadd.f32 %v3585, %v3703
        %v3712 = vadd.f32 %v3586, %v3704
        %v3713 = vadd.f32 %v3587, %v3705
        %v3714 = vadd.f32 %v3588, %v3706
        %v3715 = vadd.f32 %v3589, %v3707
        %v3716 = vadd.f32 %v3590, %v3708
        %v3717 = vadd.f32 %v3591, %v3709
        %v3718 = vadd.f32 %v3592, %v3710
        %v3727 = vrot.slane %v3712, 7
        %v3728 = vsel %vm3359, %v3727, %v3711
        %v3729 = vrot.slane %v3713, 6
        %v3730 = vsel %vm3362, %v3729, %v3728
        %v3731 = vrot.slane %v3714, 5
        %v3732 = vsel %vm3365, %v3731, %v3730
        %v3733 = vrot.slane %v3715, 4
        %v3734 = vsel %vm3368, %v3733, %v3732
        %v3735 = vrot.slane %v3716, 3
        %v3736 = vsel %vm3371, %v3735, %v3734
        %v3737 = vrot.slane %v3717, 2
        %v3738 = vsel %vm3374, %v3737, %v3736
        %v3739 = vrot.slane %v3718, 1
        %v3740 = vsel %vm3377, %v3739, %v3738
        %v3741 = vsel %vm3332, %v3740, 0
        %3743 = vmatprep.subr.mxu0 0.0
        %3744 = vmatpush1.msra.mxu0 %v3341
        %3745 = vmatprep.subr.mxu0 0.0
        %3746 = vmatpush1.msra.mxu0 0.0
        %3747 = vmatprep.subr.mxu0 0.0
        %3748 = vmatpush1.msra.mxu0 0.0
        %3749 = vmatprep.subr.mxu0 0.0
        %3750 = vmatpush1.msra.mxu0 0.0
        %3751 = vmatprep.subr.mxu0 0.0
        %3752 = vmatpush1.msra.mxu0 0.0
        %3753 = vmatprep.subr.mxu0 0.0
        %3754 = vmatpush1.msra.mxu0 0.0
        %3755 = vmatprep.subr.mxu0 0.0
        %3756 = vmatpush1.msra.mxu0 0.0
        %3757 = vmatprep.subr.mxu0 0.0
        %3758 = vmatpush1.msra.mxu0 0.0
        %3759 = vmatprep.subr.mxu0 0.0
        %3760 = vmatpush1.msra.mxu0 0.0
        %3761 = vmatprep.subr.mxu0 0.0
        %3762 = vmatpush1.msra.mxu0 0.0
        %3763 = vmatprep.subr.mxu0 0.0
        %3764 = vmatpush1.msra.mxu0 0.0
        %3765 = vmatprep.subr.mxu0 0.0
        %3766 = vmatpush1.msra.mxu0 0.0
        %3767 = vmatprep.subr.mxu0 0.0
        %3768 = vmatpush1.msra.mxu0 0.0
        %3769 = vmatprep.subr.mxu0 0.0
        %3770 = vmatpush1.msra.mxu0 0.0
        %3771 = vmatprep.subr.mxu0 0.0
        %3772 = vmatpush1.msra.mxu0 0.0
        %3773 = vmatprep.subr.mxu0 0.0
        %3774 = vmatpush1.msra.mxu0 0.0
        %3775 = vmatprep.subr.mxu0 0.0
        %3776 = vmatpush1.msra.mxu0 0.0
        %3777 = vmatprep.subr.mxu0 0.0
        %3778 = vmatpush1.msra.mxu0 0.0
        %3779 = vmatprep.subr.mxu0 0.0
        %3780 = vmatpush1.msra.mxu0 0.0
        %3781 = vmatprep.subr.mxu0 0.0
        %3782 = vmatpush1.msra.mxu0 0.0
        %3783 = vmatprep.subr.mxu0 0.0
        %3784 = vmatpush1.msra.mxu0 0.0
        %3785 = vmatprep.subr.mxu0 0.0
        %3786 = vmatpush1.msra.mxu0 0.0
        %3787 = vmatprep.subr.mxu0 0.0
        %3788 = vmatpush1.msra.mxu0 0.0
        %3789 = vmatprep.subr.mxu0 0.0
        %3790 = vmatpush1.msra.mxu0 0.0
        %3791 = vmatprep.subr.mxu0 0.0
        %3792 = vmatpush1.msra.mxu0 0.0
        %3793 = vmatprep.subr.mxu0 0.0
        %3794 = vmatpush1.msra.mxu0 0.0
        %3795 = vmatprep.subr.mxu0 0.0
        %3796 = vmatpush1.msra.mxu0 0.0
        %3797 = vmatprep.subr.mxu0 0.0
        %3798 = vmatpush1.msra.mxu0 0.0
        %3799 = vmatprep.subr.mxu0 0.0
        %3800 = vmatpush1.msra.mxu0 0.0
        %3801 = vmatprep.subr.mxu0 0.0
        %3802 = vmatpush1.msra.mxu0 0.0
        %3803 = vmatprep.subr.mxu0 0.0
        %3804 = vmatpush1.msra.mxu0 0.0
        %3805 = vmatprep.subr.mxu0 0.0
        %3806 = vmatpush1.msra.mxu0 0.0
        %3807 = vmatprep.mubr.f32.mxu0 0.0
        %3808 = vmatmul.mubr.f32.gmra.mrb[0].mxu0 %v3741
        %v3809 = vpop.f32.mrb[0].mxu0
        %v3810 = vadd.f32 0.0, %v3809
        %v3811 = vpop.f32.mrb[0].mxu0
        %3812 = vdwg.mxu0
        %v3813 = vmul.f32 %v3695, 0.75
        %v3814 = vmul.f32 %v3696, 0.75
        %v3815 = vmul.f32 %v3697, 0.75
        %v3816 = vmul.f32 %v3698, 0.75
        %v3817 = vmul.f32 %v3699, 0.75
        %v3818 = vmul.f32 %v3700, 0.75
        %v3819 = vmul.f32 %v3701, 0.75
        %v3820 = vmul.f32 %v3702, 0.75
        %v3821 = vadd.f32 %v3467, %v3813
        %v3822 = vadd.f32 %v3468, %v3814
        %v3823 = vadd.f32 %v3469, %v3815
        %v3824 = vadd.f32 %v3470, %v3816
        %v3825 = vadd.f32 %v3471, %v3817
        %v3826 = vadd.f32 %v3472, %v3818
        %v3827 = vadd.f32 %v3473, %v3819
        %v3828 = vadd.f32 %v3474, %v3820
        %v3837 = vrot.slane %v3822, 7
        %v3838 = vsel %vm3359, %v3837, %v3821
        %v3839 = vrot.slane %v3823, 6
        %v3840 = vsel %vm3362, %v3839, %v3838
        %v3841 = vrot.slane %v3824, 5
        %v3842 = vsel %vm3365, %v3841, %v3840
        %v3843 = vrot.slane %v3825, 4
        %v3844 = vsel %vm3368, %v3843, %v3842
        %v3845 = vrot.slane %v3826, 3
        %v3846 = vsel %vm3371, %v3845, %v3844
        %v3847 = vrot.slane %v3827, 2
        %v3848 = vsel %vm3374, %v3847, %v3846
        %v3849 = vrot.slane %v3828, 1
        %v3850 = vsel %vm3377, %v3849, %v3848
        %v3851 = vsel %vm3332, %v3850, 0
        %3853 = vmatprep.subr.mxu0 0.0
        %3854 = vmatpush1.msra.mxu0 %v3341
        %3855 = vmatprep.subr.mxu0 0.0
        %3856 = vmatpush1.msra.mxu0 0.0
        %3857 = vmatprep.subr.mxu0 0.0
        %3858 = vmatpush1.msra.mxu0 0.0
        %3859 = vmatprep.subr.mxu0 0.0
        %3860 = vmatpush1.msra.mxu0 0.0
        %3861 = vmatprep.subr.mxu0 0.0
        %3862 = vmatpush1.msra.mxu0 0.0
        %3863 = vmatprep.subr.mxu0 0.0
        %3864 = vmatpush1.msra.mxu0 0.0
        %3865 = vmatprep.subr.mxu0 0.0
        %3866 = vmatpush1.msra.mxu0 0.0
        %3867 = vmatprep.subr.mxu0 0.0
        %3868 = vmatpush1.msra.mxu0 0.0
        %3869 = vmatprep.subr.mxu0 0.0
        %3870 = vmatpush1.msra.mxu0 0.0
        %3871 = vmatprep.subr.mxu0 0.0
        %3872 = vmatpush1.msra.mxu0 0.0
        %3873 = vmatprep.subr.mxu0 0.0
        %3874 = vmatpush1.msra.mxu0 0.0
        %3875 = vmatprep.subr.mxu0 0.0
        %3876 = vmatpush1.msra.mxu0 0.0
        %3877 = vmatprep.subr.mxu0 0.0
        %3878 = vmatpush1.msra.mxu0 0.0
        %3879 = vmatprep.subr.mxu0 0.0
        %3880 = vmatpush1.msra.mxu0 0.0
        %3881 = vmatprep.subr.mxu0 0.0
        %3882 = vmatpush1.msra.mxu0 0.0
        %3883 = vmatprep.subr.mxu0 0.0
        %3884 = vmatpush1.msra.mxu0 0.0
        %3885 = vmatprep.subr.mxu0 0.0
        %3886 = vmatpush1.msra.mxu0 0.0
        %3887 = vmatprep.subr.mxu0 0.0
        %3888 = vmatpush1.msra.mxu0 0.0
        %3889 = vmatprep.subr.mxu0 0.0
        %3890 = vmatpush1.msra.mxu0 0.0
        %3891 = vmatprep.subr.mxu0 0.0
        %3892 = vmatpush1.msra.mxu0 0.0
        %3893 = vmatprep.subr.mxu0 0.0
        %3894 = vmatpush1.msra.mxu0 0.0
        %3895 = vmatprep.subr.mxu0 0.0
        %3896 = vmatpush1.msra.mxu0 0.0
        %3897 = vmatprep.subr.mxu0 0.0
        %3898 = vmatpush1.msra.mxu0 0.0
        %3899 = vmatprep.subr.mxu0 0.0
        %3900 = vmatpush1.msra.mxu0 0.0
        %3901 = vmatprep.subr.mxu0 0.0
        %3902 = vmatpush1.msra.mxu0 0.0
        %3903 = vmatprep.subr.mxu0 0.0
        %3904 = vmatpush1.msra.mxu0 0.0
        %3905 = vmatprep.subr.mxu0 0.0
        %3906 = vmatpush1.msra.mxu0 0.0
        %3907 = vmatprep.subr.mxu0 0.0
        %3908 = vmatpush1.msra.mxu0 0.0
        %3909 = vmatprep.subr.mxu0 0.0
        %3910 = vmatpush1.msra.mxu0 0.0
        %3911 = vmatprep.subr.mxu0 0.0
        %3912 = vmatpush1.msra.mxu0 0.0
        %3913 = vmatprep.subr.mxu0 0.0
        %3914 = vmatpush1.msra.mxu0 0.0
        %3915 = vmatprep.subr.mxu0 0.0
        %3916 = vmatpush1.msra.mxu0 0.0
        %3917 = vmatprep.mubr.f32.mxu0 0.0
        %3918 = vmatmul.mubr.f32.gmra.mrb[0].mxu0 %v3851
        %v3919 = vpop.f32.mrb[0].mxu0
        %v3920 = vadd.f32 0.0, %v3919
        %v3921 = vpop.f32.mrb[0].mxu0
        %3922 = vdwg.mxu0
        %v3923 = vld [vmem:[#allocation2 + $0x3] sm:$0x1]
        %v3924 = vld [vmem:[#allocation2 + $0xb] sm:$0x1]
        %v3925 = vld [vmem:[#allocation2 + $0x13] sm:$0x1]
        %v3926 = vld [vmem:[#allocation2 + $0x1b] sm:$0x1]
        %v3927 = vld [vmem:[#allocation2 + $0x23] sm:$0x1]
        %v3928 = vld [vmem:[#allocation2 + $0x2b] sm:$0x1]
        %v3929 = vld [vmem:[#allocation2 + $0x33] sm:$0x1]
        %v3930 = vld [vmem:[#allocation2 + $0x3b] sm:$0x1]
        %v3931 = vmul.f32 %v3923, 0.25
        %v3932 = vmul.f32 %v3924, 0.25
        %v3933 = vmul.f32 %v3925, 0.25
        %v3934 = vmul.f32 %v3926, 0.25
        %v3935 = vmul.f32 %v3927, 0.25
        %v3936 = vmul.f32 %v3928, 0.25
        %v3937 = vmul.f32 %v3929, 0.25
        %v3938 = vmul.f32 %v3930, 0.25
        %v3939 = vadd.f32 %v3813, %v3931
        %v3940 = vadd.f32 %v3814, %v3932
        %v3941 = vadd.f32 %v3815, %v3933
        %v3942 = vadd.f32 %v3816, %v3934
        %v3943 = vadd.f32 %v3817, %v3935
        %v3944 = vadd.f32 %v3818, %v3936
        %v3945 = vadd.f32 %v3819, %v3937
        %v3946 = vadd.f32 %v3820, %v3938
        %v3955 = vrot.slane %v3940, 7
        %v3956 = vsel %vm3359, %v3955, %v3939
        %v3957 = vrot.slane %v3941, 6
        %v3958 = vsel %vm3362, %v3957, %v3956
        %v3959 = vrot.slane %v3942, 5
        %v3960 = vsel %vm3365, %v3959, %v3958
        %v3961 = vrot.slane %v3943, 4
        %v3962 = vsel %vm3368, %v3961, %v3960
        %v3963 = vrot.slane %v3944, 3
        %v3964 = vsel %vm3371, %v3963, %v3962
        %v3965 = vrot.slane %v3945, 2
        %v3966 = vsel %vm3374, %v3965, %v3964
        %v3967 = vrot.slane %v3946, 1
        %v3968 = vsel %vm3377, %v3967, %v3966
        %v3969 = vsel %vm3332, %v3968, 0
        %3971 = vmatprep.subr.mxu0 0.0
        %3972 = vmatpush1.msra.mxu0 %v3341
        %3973 = vmatprep.subr.mxu0 0.0
        %3974 = vmatpush1.msra.mxu0 0.0
        %3975 = vmatprep.subr.mxu0 0.0
        %3976 = vmatpush1.msra.mxu0 0.0
        %3977 = vmatprep.subr.mxu0 0.0
        %3978 = vmatpush1.msra.mxu0 0.0
        %3979 = vmatprep.subr.mxu0 0.0
        %3980 = vmatpush1.msra.mxu0 0.0
        %3981 = vmatprep.subr.mxu0 0.0
        %3982 = vmatpush1.msra.mxu0 0.0
        %3983 = vmatprep.subr.mxu0 0.0
        %3984 = vmatpush1.msra.mxu0 0.0
        %3985 = vmatprep.subr.mxu0 0.0
        %3986 = vmatpush1.msra.mxu0 0.0
        %3987 = vmatprep.subr.mxu0 0.0
        %3988 = vmatpush1.msra.mxu0 0.0
        %3989 = vmatprep.subr.mxu0 0.0
        %3990 = vmatpush1.msra.mxu0 0.0
        %3991 = vmatprep.subr.mxu0 0.0
        %3992 = vmatpush1.msra.mxu0 0.0
        %3993 = vmatprep.subr.mxu0 0.0
        %3994 = vmatpush1.msra.mxu0 0.0
        %3995 = vmatprep.subr.mxu0 0.0
        %3996 = vmatpush1.msra.mxu0 0.0
        %3997 = vmatprep.subr.mxu0 0.0
        %3998 = vmatpush1.msra.mxu0 0.0
        %3999 = vmatprep.subr.mxu0 0.0
        %4000 = vmatpush1.msra.mxu0 0.0
        %4001 = vmatprep.subr.mxu0 0.0
        %4002 = vmatpush1.msra.mxu0 0.0
        %4003 = vmatprep.subr.mxu0 0.0
        %4004 = vmatpush1.msra.mxu0 0.0
        %4005 = vmatprep.subr.mxu0 0.0
        %4006 = vmatpush1.msra.mxu0 0.0
        %4007 = vmatprep.subr.mxu0 0.0
        %4008 = vmatpush1.msra.mxu0 0.0
        %4009 = vmatprep.subr.mxu0 0.0
        %4010 = vmatpush1.msra.mxu0 0.0
        %4011 = vmatprep.subr.mxu0 0.0
        %4012 = vmatpush1.msra.mxu0 0.0
        %4013 = vmatprep.subr.mxu0 0.0
        %4014 = vmatpush1.msra.mxu0 0.0
        %4015 = vmatprep.subr.mxu0 0.0
        %4016 = vmatpush1.msra.mxu0 0.0
        %4017 = vmatprep.subr.mxu0 0.0
        %4018 = vmatpush1.msra.mxu0 0.0
        %4019 = vmatprep.subr.mxu0 0.0
        %4020 = vmatpush1.msra.mxu0 0.0
        %4021 = vmatprep.subr.mxu0 0.0
        %4022 = vmatpush1.msra.mxu0 0.0
        %4023 = vmatprep.subr.mxu0 0.0
        %4024 = vmatpush1.msra.mxu0 0.0
        %4025 = vmatprep.subr.mxu0 0.0
        %4026 = vmatpush1.msra.mxu0 0.0
        %4027 = vmatprep.subr.mxu0 0.0
        %4028 = vmatpush1.msra.mxu0 0.0
        %4029 = vmatprep.subr.mxu0 0.0
        %4030 = vmatpush1.msra.mxu0 0.0
        %4031 = vmatprep.subr.mxu0 0.0
        %4032 = vmatpush1.msra.mxu0 0.0
        %4033 = vmatprep.subr.mxu0 0.0
        %4034 = vmatpush1.msra.mxu0 0.0
        %4035 = vmatprep.mubr.f32.mxu0 0.0
        %4036 = vmatmul.mubr.f32.gmra.mrb[0].mxu0 %v3969
        %v4037 = vpop.f32.mrb[0].mxu0
        %v4038 = vadd.f32 0.0, %v4037
        %v4039 = vpop.f32.mrb[0].mxu0
        %4040 = vdwg.mxu0
        %v4041 = vmul.f32 %v3923, 0.75
        %v4042 = vmul.f32 %v3924, 0.75
        %v4043 = vmul.f32 %v3925, 0.75
        %v4044 = vmul.f32 %v3926, 0.75
        %v4045 = vmul.f32 %v3927, 0.75
        %v4046 = vmul.f32 %v3928, 0.75
        %v4047 = vmul.f32 %v3929, 0.75
        %v4048 = vmul.f32 %v3930, 0.75
        %v4049 = vadd.f32 %v3703, %v4041
        %v4050 = vadd.f32 %v3704, %v4042
        %v4051 = vadd.f32 %v3705, %v4043
        %v4052 = vadd.f32 %v3706, %v4044
        %v4053 = vadd.f32 %v3707, %v4045
        %v4054 = vadd.f32 %v3708, %v4046
        %v4055 = vadd.f32 %v3709, %v4047
        %v4056 = vadd.f32 %v3710, %v4048
        %v4065 = vrot.slane %v4050, 7
        %v4066 = vsel %vm3359, %v4065, %v4049
        %v4067 = vrot.slane %v4051, 6
        %v4068 = vsel %vm3362, %v4067, %v4066
        %v4069 = vrot.slane %v4052, 5
        %v4070 = vsel %vm3365, %v4069, %v4068
        %v4071 = vrot.slane %v4053, 4
        %v4072 = vsel %vm3368, %v4071, %v4070
        %v4073 = vrot.slane %v4054, 3
        %v4074 = vsel %vm3371, %v4073, %v4072
        %v4075 = vrot.slane %v4055, 2
        %v4076 = vsel %vm3374, %v4075, %v4074
        %v4077 = vrot.slane %v4056, 1
        %v4078 = vsel %vm3377, %v4077, %v4076
        %v4079 = vsel %vm3332, %v4078, 0
        %4081 = vmatprep.subr.mxu0 0.0
        %4082 = vmatpush1.msra.mxu0 %v3341
        %4083 = vmatprep.subr.mxu0 0.0
        %4084 = vmatpush1.msra.mxu0 0.0
        %4085 = vmatprep.subr.mxu0 0.0
        %4086 = vmatpush1.msra.mxu0 0.0
        %4087 = vmatprep.subr.mxu0 0.0
        %4088 = vmatpush1.msra.mxu0 0.0
        %4089 = vmatprep.subr.mxu0 0.0
        %4090 = vmatpush1.msra.mxu0 0.0
        %4091 = vmatprep.subr.mxu0 0.0
        %4092 = vmatpush1.msra.mxu0 0.0
        %4093 = vmatprep.subr.mxu0 0.0
        %4094 = vmatpush1.msra.mxu0 0.0
        %4095 = vmatprep.subr.mxu0 0.0
        %4096 = vmatpush1.msra.mxu0 0.0
        %4097 = vmatprep.subr.mxu0 0.0
        %4098 = vmatpush1.msra.mxu0 0.0
        %4099 = vmatprep.subr.mxu0 0.0
        %4100 = vmatpush1.msra.mxu0 0.0
        %4101 = vmatprep.subr.mxu0 0.0
        %4102 = vmatpush1.msra.mxu0 0.0
        %4103 = vmatprep.subr.mxu0 0.0
        %4104 = vmatpush1.msra.mxu0 0.0
        %4105 = vmatprep.subr.mxu0 0.0
        %4106 = vmatpush1.msra.mxu0 0.0
        %4107 = vmatprep.subr.mxu0 0.0
        %4108 = vmatpush1.msra.mxu0 0.0
        %4109 = vmatprep.subr.mxu0 0.0
        %4110 = vmatpush1.msra.mxu0 0.0
        %4111 = vmatprep.subr.mxu0 0.0
        %4112 = vmatpush1.msra.mxu0 0.0
        %4113 = vmatprep.subr.mxu0 0.0
        %4114 = vmatpush1.msra.mxu0 0.0
        %4115 = vmatprep.subr.mxu0 0.0
        %4116 = vmatpush1.msra.mxu0 0.0
        %4117 = vmatprep.subr.mxu0 0.0
        %4118 = vmatpush1.msra.mxu0 0.0
        %4119 = vmatprep.subr.mxu0 0.0
        %4120 = vmatpush1.msra.mxu0 0.0
        %4121 = vmatprep.subr.mxu0 0.0
        %4122 = vmatpush1.msra.mxu0 0.0
        %4123 = vmatprep.subr.mxu0 0.0
        %4124 = vmatpush1.msra.mxu0 0.0
        %4125 = vmatprep.subr.mxu0 0.0
        %4126 = vmatpush1.msra.mxu0 0.0
        %4127 = vmatprep.subr.mxu0 0.0
        %4128 = vmatpush1.msra.mxu0 0.0
        %4129 = vmatprep.subr.mxu0 0.0
        %4130 = vmatpush1.msra.mxu0 0.0
        %4131 = vmatprep.subr.mxu0 0.0
        %4132 = vmatpush1.msra.mxu0 0.0
        %4133 = vmatprep.subr.mxu0 0.0
        %4134 = vmatpush1.msra.mxu0 0.0
        %4135 = vmatprep.subr.mxu0 0.0
        %4136 = vmatpush1.msra.mxu0 0.0
        %4137 = vmatprep.subr.mxu0 0.0
        %4138 = vmatpush1.msra.mxu0 0.0
        %4139 = vmatprep.subr.mxu0 0.0
        %4140 = vmatpush1.msra.mxu0 0.0
        %4141 = vmatprep.subr.mxu0 0.0
        %4142 = vmatpush1.msra.mxu0 0.0
        %4143 = vmatprep.subr.mxu0 0.0
        %4144 = vmatpush1.msra.mxu0 0.0
        %4145 = vmatprep.mubr.f32.mxu0 0.0
        %4146 = vmatmul.mubr.f32.gmra.mrb[0].mxu0 %v4079
        %v4147 = vpop.f32.mrb[0].mxu0
        %v4148 = vadd.f32 0.0, %v4147
        %v4149 = vpop.f32.mrb[0].mxu0
        %4150 = vdwg.mxu0
        %v4151 = vld [vmem:[#allocation2 + $0x4] sm:$0x1]
        %v4152 = vld [vmem:[#allocation2 + $0xc] sm:$0x1]
        %v4153 = vld [vmem:[#allocation2 + $0x14] sm:$0x1]
        %v4154 = vld [vmem:[#allocation2 + $0x1c] sm:$0x1]
        %v4155 = vld [vmem:[#allocation2 + $0x24] sm:$0x1]
        %v4156 = vld [vmem:[#allocation2 + $0x2c] sm:$0x1]
        %v4157 = vld [vmem:[#allocation2 + $0x34] sm:$0x1]
        %v4158 = vld [vmem:[#allocation2 + $0x3c] sm:$0x1]
        %v4159 = vmul.f32 %v4151, 0.25
        %v4160 = vmul.f32 %v4152, 0.25
        %v4161 = vmul.f32 %v4153, 0.25
        %v4162 = vmul.f32 %v4154, 0.25
        %v4163 = vmul.f32 %v4155, 0.25
        %v4164 = vmul.f32 %v4156, 0.25
        %v4165 = vmul.f32 %v4157, 0.25
        %v4166 = vmul.f32 %v4158, 0.25
        %v4167 = vadd.f32 %v4041, %v4159
        %v4168 = vadd.f32 %v4042, %v4160
        %v4169 = vadd.f32 %v4043, %v4161
        %v4170 = vadd.f32 %v4044, %v4162
        %v4171 = vadd.f32 %v4045, %v4163
        %v4172 = vadd.f32 %v4046, %v4164
        %v4173 = vadd.f32 %v4047, %v4165
        %v4174 = vadd.f32 %v4048, %v4166
        %v4183 = vrot.slane %v4168, 7
        %v4184 = vsel %vm3359, %v4183, %v4167
        %v4185 = vrot.slane %v4169, 6
        %v4186 = vsel %vm3362, %v4185, %v4184
        %v4187 = vrot.slane %v4170, 5
        %v4188 = vsel %vm3365, %v4187, %v4186
        %v4189 = vrot.slane %v4171, 4
        %v4190 = vsel %vm3368, %v4189, %v4188
        %v4191 = vrot.slane %v4172, 3
        %v4192 = vsel %vm3371, %v4191, %v4190
        %v4193 = vrot.slane %v4173, 2
        %v4194 = vsel %vm3374, %v4193, %v4192
        %v4195 = vrot.slane %v4174, 1
        %v4196 = vsel %vm3377, %v4195, %v4194
        %v4197 = vsel %vm3332, %v4196, 0
        %4199 = vmatprep.subr.mxu0 0.0
        %4200 = vmatpush1.msra.mxu0 %v3341
        %4201 = vmatprep.subr.mxu0 0.0
        %4202 = vmatpush1.msra.mxu0 0.0
        %4203 = vmatprep.subr.mxu0 0.0
        %4204 = vmatpush1.msra.mxu0 0.0
        %4205 = vmatprep.subr.mxu0 0.0
        %4206 = vmatpush1.msra.mxu0 0.0
        %4207 = vmatprep.subr.mxu0 0.0
        %4208 = vmatpush1.msra.mxu0 0.0
        %4209 = vmatprep.subr.mxu0 0.0
        %4210 = vmatpush1.msra.mxu0 0.0
        %4211 = vmatprep.subr.mxu0 0.0
        %4212 = vmatpush1.msra.mxu0 0.0
        %4213 = vmatprep.subr.mxu0 0.0
        %4214 = vmatpush1.msra.mxu0 0.0
        %4215 = vmatprep.subr.mxu0 0.0
        %4216 = vmatpush1.msra.mxu0 0.0
        %4217 = vmatprep.subr.mxu0 0.0
        %4218 = vmatpush1.msra.mxu0 0.0
        %4219 = vmatprep.subr.mxu0 0.0
        %4220 = vmatpush1.msra.mxu0 0.0
        %4221 = vmatprep.subr.mxu0 0.0
        %4222 = vmatpush1.msra.mxu0 0.0
        %4223 = vmatprep.subr.mxu0 0.0
        %4224 = vmatpush1.msra.mxu0 0.0
        %4225 = vmatprep.subr.mxu0 0.0
        %4226 = vmatpush1.msra.mxu0 0.0
        %4227 = vmatprep.subr.mxu0 0.0
        %4228 = vmatpush1.msra.mxu0 0.0
        %4229 = vmatprep.subr.mxu0 0.0
        %4230 = vmatpush1.msra.mxu0 0.0
        %4231 = vmatprep.subr.mxu0 0.0
        %4232 = vmatpush1.msra.mxu0 0.0
        %4233 = vmatprep.subr.mxu0 0.0
        %4234 = vmatpush1.msra.mxu0 0.0
        %4235 = vmatprep.subr.mxu0 0.0
        %4236 = vmatpush1.msra.mxu0 0.0
        %4237 = vmatprep.subr.mxu0 0.0
        %4238 = vmatpush1.msra.mxu0 0.0
        %4239 = vmatprep.subr.mxu0 0.0
        %4240 = vmatpush1.msra.mxu0 0.0
        %4241 = vmatprep.subr.mxu0 0.0
        %4242 = vmatpush1.msra.mxu0 0.0
        %4243 = vmatprep.subr.mxu0 0.0
        %4244 = vmatpush1.msra.mxu0 0.0
        %4245 = vmatprep.subr.mxu0 0.0
        %4246 = vmatpush1.msra.mxu0 0.0
        %4247 = vmatprep.subr.mxu0 0.0
        %4248 = vmatpush1.msra.mxu0 0.0
        %4249 = vmatprep.subr.mxu0 0.0
        %4250 = vmatpush1.msra.mxu0 0.0
        %4251 = vmatprep.subr.mxu0 0.0
        %4252 = vmatpush1.msra.mxu0 0.0
        %4253 = vmatprep.subr.mxu0 0.0
        %4254 = vmatpush1.msra.mxu0 0.0
        %4255 = vmatprep.subr.mxu0 0.0
        %4256 = vmatpush1.msra.mxu0 0.0
        %4257 = vmatprep.subr.mxu0 0.0
        %4258 = vmatpush1.msra.mxu0 0.0
        %4259 = vmatprep.subr.mxu0 0.0
        %4260 = vmatpush1.msra.mxu0 0.0
        %4261 = vmatprep.subr.mxu0 0.0
        %4262 = vmatpush1.msra.mxu0 0.0
        %4263 = vmatprep.mubr.f32.mxu0 0.0
        %4264 = vmatmul.mubr.f32.gmra.mrb[0].mxu0 %v4197
        %v4265 = vpop.f32.mrb[0].mxu0
        %v4266 = vadd.f32 0.0, %v4265
        %v4267 = vpop.f32.mrb[0].mxu0
        %4268 = vdwg.mxu0
        %v4269 = vmul.f32 %v4151, 0.75
        %v4270 = vmul.f32 %v4152, 0.75
        %v4271 = vmul.f32 %v4153, 0.75
        %v4272 = vmul.f32 %v4154, 0.75
        %v4273 = vmul.f32 %v4155, 0.75
        %v4274 = vmul.f32 %v4156, 0.75
        %v4275 = vmul.f32 %v4157, 0.75
        %v4276 = vmul.f32 %v4158, 0.75
        %v4277 = vadd.f32 %v3931, %v4269
        %v4278 = vadd.f32 %v3932, %v4270
        %v4279 = vadd.f32 %v3933, %v4271
        %v4280 = vadd.f32 %v3934, %v4272
        %v4281 = vadd.f32 %v3935, %v4273
        %v4282 = vadd.f32 %v3936, %v4274
        %v4283 = vadd.f32 %v3937, %v4275
        %v4284 = vadd.f32 %v3938, %v4276
        %v4293 = vrot.slane %v4278, 7
        %v4294 = vsel %vm3359, %v4293, %v4277
        %v4295 = vrot.slane %v4279, 6
        %v4296 = vsel %vm3362, %v4295, %v4294
        %v4297 = vrot.slane %v4280, 5
        %v4298 = vsel %vm3365, %v4297, %v4296
        %v4299 = vrot.slane %v4281, 4
        %v4300 = vsel %vm3368, %v4299, %v4298
        %v4301 = vrot.slane %v4282, 3
        %v4302 = vsel %vm3371, %v4301, %v4300
        %v4303 = vrot.slane %v4283, 2
        %v4304 = vsel %vm3374, %v4303, %v4302
        %v4305 = vrot.slane %v4284, 1
        %v4306 = vsel %vm3377, %v4305, %v4304
        %v4307 = vsel %vm3332, %v4306, 0
        %4309 = vmatprep.subr.mxu0 0.0
        %4310 = vmatpush1.msra.mxu0 %v3341
        %4311 = vmatprep.subr.mxu0 0.0
        %4312 = vmatpush1.msra.mxu0 0.0
        %4313 = vmatprep.subr.mxu0 0.0
        %4314 = vmatpush1.msra.mxu0 0.0
        %4315 = vmatprep.subr.mxu0 0.0
        %4316 = vmatpush1.msra.mxu0 0.0
        %4317 = vmatprep.subr.mxu0 0.0
        %4318 = vmatpush1.msra.mxu0 0.0
        %4319 = vmatprep.subr.mxu0 0.0
        %4320 = vmatpush1.msra.mxu0 0.0
        %4321 = vmatprep.subr.mxu0 0.0
        %4322 = vmatpush1.msra.mxu0 0.0
        %4323 = vmatprep.subr.mxu0 0.0
        %4324 = vmatpush1.msra.mxu0 0.0
        %4325 = vmatprep.subr.mxu0 0.0
        %4326 = vmatpush1.msra.mxu0 0.0
        %4327 = vmatprep.subr.mxu0 0.0
        %4328 = vmatpush1.msra.mxu0 0.0
        %4329 = vmatprep.subr.mxu0 0.0
        %4330 = vmatpush1.msra.mxu0 0.0
        %4331 = vmatprep.subr.mxu0 0.0
        %4332 = vmatpush1.msra.mxu0 0.0
        %4333 = vmatprep.subr.mxu0 0.0
        %4334 = vmatpush1.msra.mxu0 0.0
        %4335 = vmatprep.subr.mxu0 0.0
        %4336 = vmatpush1.msra.mxu0 0.0
        %4337 = vmatprep.subr.mxu0 0.0
        %4338 = vmatpush1.msra.mxu0 0.0
        %4339 = vmatprep.subr.mxu0 0.0
        %4340 = vmatpush1.msra.mxu0 0.0
        %4341 = vmatprep.subr.mxu0 0.0
        %4342 = vmatpush1.msra.mxu0 0.0
        %4343 = vmatprep.subr.mxu0 0.0
        %4344 = vmatpush1.msra.mxu0 0.0
        %4345 = vmatprep.subr.mxu0 0.0
        %4346 = vmatpush1.msra.mxu0 0.0
        %4347 = vmatprep.subr.mxu0 0.0
        %4348 = vmatpush1.msra.mxu0 0.0
        %4349 = vmatprep.subr.mxu0 0.0
        %4350 = vmatpush1.msra.mxu0 0.0
        %4351 = vmatprep.subr.mxu0 0.0
        %4352 = vmatpush1.msra.mxu0 0.0
        %4353 = vmatprep.subr.mxu0 0.0
        %4354 = vmatpush1.msra.mxu0 0.0
        %4355 = vmatprep.subr.mxu0 0.0
        %4356 = vmatpush1.msra.mxu0 0.0
        %4357 = vmatprep.subr.mxu0 0.0
        %4358 = vmatpush1.msra.mxu0 0.0
        %4359 = vmatprep.subr.mxu0 0.0
        %4360 = vmatpush1.msra.mxu0 0.0
        %4361 = vmatprep.subr.mxu0 0.0
        %4362 = vmatpush1.msra.mxu0 0.0
        %4363 = vmatprep.subr.mxu0 0.0
        %4364 = vmatpush1.msra.mxu0 0.0
        %4365 = vmatprep.subr.mxu0 0.0
        %4366 = vmatpush1.msra.mxu0 0.0
        %4367 = vmatprep.subr.mxu0 0.0
        %4368 = vmatpush1.msra.mxu0 0.0
        %4369 = vmatprep.subr.mxu0 0.0
        %4370 = vmatpush1.msra.mxu0 0.0
        %4371 = vmatprep.subr.mxu0 0.0
        %4372 = vmatpush1.msra.mxu0 0.0
        %4373 = vmatprep.mubr.f32.mxu0 0.0
        %4374 = vmatmul.mubr.f32.gmra.mrb[0].mxu0 %v4307
        %v4375 = vpop.f32.mrb[0].mxu0
        %v4376 = vadd.f32 0.0, %v4375
        %v4377 = vpop.f32.mrb[0].mxu0
        %4378 = vdwg.mxu0
        %v4379 = vld [vmem:[#allocation2 + $0x5] sm:$0x1]
        %v4380 = vld [vmem:[#allocation2 + $0xd] sm:$0x1]
        %v4381 = vld [vmem:[#allocation2 + $0x15] sm:$0x1]
        %v4382 = vld [vmem:[#allocation2 + $0x1d] sm:$0x1]
        %v4383 = vld [vmem:[#allocation2 + $0x25] sm:$0x1]
        %v4384 = vld [vmem:[#allocation2 + $0x2d] sm:$0x1]
        %v4385 = vld [vmem:[#allocation2 + $0x35] sm:$0x1]
        %v4386 = vld [vmem:[#allocation2 + $0x3d] sm:$0x1]
        %v4387 = vmul.f32 %v4379, 0.25
        %v4388 = vmul.f32 %v4380, 0.25
        %v4389 = vmul.f32 %v4381, 0.25
        %v4390 = vmul.f32 %v4382, 0.25
        %v4391 = vmul.f32 %v4383, 0.25
        %v4392 = vmul.f32 %v4384, 0.25
        %v4393 = vmul.f32 %v4385, 0.25
        %v4394 = vmul.f32 %v4386, 0.25
        %v4395 = vadd.f32 %v4269, %v4387
        %v4396 = vadd.f32 %v4270, %v4388
        %v4397 = vadd.f32 %v4271, %v4389
        %v4398 = vadd.f32 %v4272, %v4390
        %v4399 = vadd.f32 %v4273, %v4391
        %v4400 = vadd.f32 %v4274, %v4392
        %v4401 = vadd.f32 %v4275, %v4393
        %v4402 = vadd.f32 %v4276, %v4394
        %v4411 = vrot.slane %v4396, 7
        %v4412 = vsel %vm3359, %v4411, %v4395
        %v4413 = vrot.slane %v4397, 6
        %v4414 = vsel %vm3362, %v4413, %v4412
        %v4415 = vrot.slane %v4398, 5
        %v4416 = vsel %vm3365, %v4415, %v4414
        %v4417 = vrot.slane %v4399, 4
        %v4418 = vsel %vm3368, %v4417, %v4416
        %v4419 = vrot.slane %v4400, 3
        %v4420 = vsel %vm3371, %v4419, %v4418
        %v4421 = vrot.slane %v4401, 2
        %v4422 = vsel %vm3374, %v4421, %v4420
        %v4423 = vrot.slane %v4402, 1
        %v4424 = vsel %vm3377, %v4423, %v4422
        %v4425 = vsel %vm3332, %v4424, 0
        %4427 = vmatprep.subr.mxu0 0.0
        %4428 = vmatpush1.msra.mxu0 %v3341
        %4429 = vmatprep.subr.mxu0 0.0
        %4430 = vmatpush1.msra.mxu0 0.0
        %4431 = vmatprep.subr.mxu0 0.0
        %4432 = vmatpush1.msra.mxu0 0.0
        %4433 = vmatprep.subr.mxu0 0.0
        %4434 = vmatpush1.msra.mxu0 0.0
        %4435 = vmatprep.subr.mxu0 0.0
        %4436 = vmatpush1.msra.mxu0 0.0
        %4437 = vmatprep.subr.mxu0 0.0
        %4438 = vmatpush1.msra.mxu0 0.0
        %4439 = vmatprep.subr.mxu0 0.0
        %4440 = vmatpush1.msra.mxu0 0.0
        %4441 = vmatprep.subr.mxu0 0.0
        %4442 = vmatpush1.msra.mxu0 0.0
        %4443 = vmatprep.subr.mxu0 0.0
        %4444 = vmatpush1.msra.mxu0 0.0
        %4445 = vmatprep.subr.mxu0 0.0
        %4446 = vmatpush1.msra.mxu0 0.0
        %4447 = vmatprep.subr.mxu0 0.0
        %4448 = vmatpush1.msra.mxu0 0.0
        %4449 = vmatprep.subr.mxu0 0.0
        %4450 = vmatpush1.msra.mxu0 0.0
        %4451 = vmatprep.subr.mxu0 0.0
        %4452 = vmatpush1.msra.mxu0 0.0
        %4453 = vmatprep.subr.mxu0 0.0
        %4454 = vmatpush1.msra.mxu0 0.0
        %4455 = vmatprep.subr.mxu0 0.0
        %4456 = vmatpush1.msra.mxu0 0.0
        %4457 = vmatprep.subr.mxu0 0.0
        %4458 = vmatpush1.msra.mxu0 0.0
        %4459 = vmatprep.subr.mxu0 0.0
        %4460 = vmatpush1.msra.mxu0 0.0
        %4461 = vmatprep.subr.mxu0 0.0
        %4462 = vmatpush1.msra.mxu0 0.0
        %4463 = vmatprep.subr.mxu0 0.0
        %4464 = vmatpush1.msra.mxu0 0.0
        %4465 = vmatprep.subr.mxu0 0.0
        %4466 = vmatpush1.msra.mxu0 0.0
        %4467 = vmatprep.subr.mxu0 0.0
        %4468 = vmatpush1.msra.mxu0 0.0
        %4469 = vmatprep.subr.mxu0 0.0
        %4470 = vmatpush1.msra.mxu0 0.0
        %4471 = vmatprep.subr.mxu0 0.0
        %4472 = vmatpush1.msra.mxu0 0.0
        %4473 = vmatprep.subr.mxu0 0.0
        %4474 = vmatpush1.msra.mxu0 0.0
        %4475 = vmatprep.subr.mxu0 0.0
        %4476 = vmatpush1.msra.mxu0 0.0
        %4477 = vmatprep.subr.mxu0 0.0
        %4478 = vmatpush1.msra.mxu0 0.0
        %4479 = vmatprep.subr.mxu0 0.0
        %4480 = vmatpush1.msra.mxu0 0.0
        %4481 = vmatprep.subr.mxu0 0.0
        %4482 = vmatpush1.msra.mxu0 0.0
        %4483 = vmatprep.subr.mxu0 0.0
        %4484 = vmatpush1.msra.mxu0 0.0
        %4485 = vmatprep.subr.mxu0 0.0
        %4486 = vmatpush1.msra.mxu0 0.0
        %4487 = vmatprep.subr.mxu0 0.0
        %4488 = vmatpush1.msra.mxu0 0.0
        %4489 = vmatprep.subr.mxu0 0.0
        %4490 = vmatpush1.msra.mxu0 0.0
        %4491 = vmatprep.mubr.f32.mxu0 0.0
        %4492 = vmatmul.mubr.f32.gmra.mrb[0].mxu0 %v4425
        %v4493 = vpop.f32.mrb[0].mxu0
        %v4494 = vadd.f32 0.0, %v4493
        %v4495 = vpop.f32.mrb[0].mxu0
        %4496 = vdwg.mxu0
        %v4497 = vmul.f32 %v4379, 0.75
        %v4498 = vmul.f32 %v4380, 0.75
        %v4499 = vmul.f32 %v4381, 0.75
        %v4500 = vmul.f32 %v4382, 0.75
        %v4501 = vmul.f32 %v4383, 0.75
        %v4502 = vmul.f32 %v4384, 0.75
        %v4503 = vmul.f32 %v4385, 0.75
        %v4504 = vmul.f32 %v4386, 0.75
        %v4505 = vadd.f32 %v4159, %v4497
        %v4506 = vadd.f32 %v4160, %v4498
        %v4507 = vadd.f32 %v4161, %v4499
        %v4508 = vadd.f32 %v4162, %v4500
        %v4509 = vadd.f32 %v4163, %v4501
        %v4510 = vadd.f32 %v4164, %v4502
        %v4511 = vadd.f32 %v4165, %v4503
        %v4512 = vadd.f32 %v4166, %v4504
        %v4521 = vrot.slane %v4506, 7
        %v4522 = vsel %vm3359, %v4521, %v4505
        %v4523 = vrot.slane %v4507, 6
        %v4524 = vsel %vm3362, %v4523, %v4522
        %v4525 = vrot.slane %v4508, 5
        %v4526 = vsel %vm3365, %v4525, %v4524
        %v4527 = vrot.slane %v4509, 4
        %v4528 = vsel %vm3368, %v4527, %v4526
        %v4529 = vrot.slane %v4510, 3
        %v4530 = vsel %vm3371, %v4529, %v4528
        %v4531 = vrot.slane %v4511, 2
        %v4532 = vsel %vm3374, %v4531, %v4530
        %v4533 = vrot.slane %v4512, 1
        %v4534 = vsel %vm3377, %v4533, %v4532
        %v4535 = vsel %vm3332, %v4534, 0
        %4537 = vmatprep.subr.mxu0 0.0
        %4538 = vmatpush1.msra.mxu0 %v3341
        %4539 = vmatprep.subr.mxu0 0.0
        %4540 = vmatpush1.msra.mxu0 0.0
        %4541 = vmatprep.subr.mxu0 0.0
        %4542 = vmatpush1.msra.mxu0 0.0
        %4543 = vmatprep.subr.mxu0 0.0
        %4544 = vmatpush1.msra.mxu0 0.0
        %4545 = vmatprep.subr.mxu0 0.0
        %4546 = vmatpush1.msra.mxu0 0.0
        %4547 = vmatprep.subr.mxu0 0.0
        %4548 = vmatpush1.msra.mxu0 0.0
        %4549 = vmatprep.subr.mxu0 0.0
        %4550 = vmatpush1.msra.mxu0 0.0
        %4551 = vmatprep.subr.mxu0 0.0
        %4552 = vmatpush1.msra.mxu0 0.0
        %4553 = vmatprep.subr.mxu0 0.0
        %4554 = vmatpush1.msra.mxu0 0.0
        %4555 = vmatprep.subr.mxu0 0.0
        %4556 = vmatpush1.msra.mxu0 0.0
        %4557 = vmatprep.subr.mxu0 0.0
        %4558 = vmatpush1.msra.mxu0 0.0
        %4559 = vmatprep.subr.mxu0 0.0
        %4560 = vmatpush1.msra.mxu0 0.0
        %4561 = vmatprep.subr.mxu0 0.0
        %4562 = vmatpush1.msra.mxu0 0.0
        %4563 = vmatprep.subr.mxu0 0.0
        %4564 = vmatpush1.msra.mxu0 0.0
        %4565 = vmatprep.subr.mxu0 0.0
        %4566 = vmatpush1.msra.mxu0 0.0
        %4567 = vmatprep.subr.mxu0 0.0
        %4568 = vmatpush1.msra.mxu0 0.0
        %4569 = vmatprep.subr.mxu0 0.0
        %4570 = vmatpush1.msra.mxu0 0.0
        %4571 = vmatprep.subr.mxu0 0.0
        %4572 = vmatpush1.msra.mxu0 0.0
        %4573 = vmatprep.subr.mxu0 0.0
        %4574 = vmatpush1.msra.mxu0 0.0
        %4575 = vmatprep.subr.mxu0 0.0
        %4576 = vmatpush1.msra.mxu0 0.0
        %4577 = vmatprep.subr.mxu0 0.0
        %4578 = vmatpush1.msra.mxu0 0.0
        %4579 = vmatprep.subr.mxu0 0.0
        %4580 = vmatpush1.msra.mxu0 0.0
        %4581 = vmatprep.subr.mxu0 0.0
        %4582 = vmatpush1.msra.mxu0 0.0
        %4583 = vmatprep.subr.mxu0 0.0
        %4584 = vmatpush1.msra.mxu0 0.0
        %4585 = vmatprep.subr.mxu0 0.0
        %4586 = vmatpush1.msra.mxu0 0.0
        %4587 = vmatprep.subr.mxu0 0.0
        %4588 = vmatpush1.msra.mxu0 0.0
        %4589 = vmatprep.subr.mxu0 0.0
        %4590 = vmatpush1.msra.mxu0 0.0
        %4591 = vmatprep.subr.mxu0 0.0
        %4592 = vmatpush1.msra.mxu0 0.0
        %4593 = vmatprep.subr.mxu0 0.0
        %4594 = vmatpush1.msra.mxu0 0.0
        %4595 = vmatprep.subr.mxu0 0.0
        %4596 = vmatpush1.msra.mxu0 0.0
        %4597 = vmatprep.subr.mxu0 0.0
        %4598 = vmatpush1.msra.mxu0 0.0
        %4599 = vmatprep.subr.mxu0 0.0
        %4600 = vmatpush1.msra.mxu0 0.0
        %4601 = vmatprep.mubr.f32.mxu0 0.0
        %4602 = vmatmul.mubr.f32.gmra.mrb[0].mxu0 %v4535
        %v4603 = vpop.f32.mrb[0].mxu0
        %v4604 = vadd.f32 0.0, %v4603
        %v4605 = vpop.f32.mrb[0].mxu0
        %4606 = vdwg.mxu0
        %v4607 = vld [vmem:[#allocation2 + $0x6] sm:$0x1]
        %v4608 = vld [vmem:[#allocation2 + $0xe] sm:$0x1]
        %v4609 = vld [vmem:[#allocation2 + $0x16] sm:$0x1]
        %v4610 = vld [vmem:[#allocation2 + $0x1e] sm:$0x1]
        %v4611 = vld [vmem:[#allocation2 + $0x26] sm:$0x1]
        %v4612 = vld [vmem:[#allocation2 + $0x2e] sm:$0x1]
        %v4613 = vld [vmem:[#allocation2 + $0x36] sm:$0x1]
        %v4614 = vld [vmem:[#allocation2 + $0x3e] sm:$0x1]
        %v4615 = vmul.f32 %v4607, 0.25
        %v4616 = vmul.f32 %v4608, 0.25
        %v4617 = vmul.f32 %v4609, 0.25
        %v4618 = vmul.f32 %v4610, 0.25
        %v4619 = vmul.f32 %v4611, 0.25
        %v4620 = vmul.f32 %v4612, 0.25
        %v4621 = vmul.f32 %v4613, 0.25
        %v4622 = vmul.f32 %v4614, 0.25
        %v4623 = vadd.f32 %v4497, %v4615
        %v4624 = vadd.f32 %v4498, %v4616
        %v4625 = vadd.f32 %v4499, %v4617
        %v4626 = vadd.f32 %v4500, %v4618
        %v4627 = vadd.f32 %v4501, %v4619
        %v4628 = vadd.f32 %v4502, %v4620
        %v4629 = vadd.f32 %v4503, %v4621
        %v4630 = vadd.f32 %v4504, %v4622
        %v4639 = vrot.slane %v4624, 7
        %v4640 = vsel %vm3359, %v4639, %v4623
        %v4641 = vrot.slane %v4625, 6
        %v4642 = vsel %vm3362, %v4641, %v4640
        %v4643 = vrot.slane %v4626, 5
        %v4644 = vsel %vm3365, %v4643, %v4642
        %v4645 = vrot.slane %v4627, 4
        %v4646 = vsel %vm3368, %v4645, %v4644
        %v4647 = vrot.slane %v4628, 3
        %v4648 = vsel %vm3371, %v4647, %v4646
        %v4649 = vrot.slane %v4629, 2
        %v4650 = vsel %vm3374, %v4649, %v4648
        %v4651 = vrot.slane %v4630, 1
        %v4652 = vsel %vm3377, %v4651, %v4650
        %v4653 = vsel %vm3332, %v4652, 0
        %4655 = vmatprep.subr.mxu0 0.0
        %4656 = vmatpush1.msra.mxu0 %v3341
        %4657 = vmatprep.subr.mxu0 0.0
        %4658 = vmatpush1.msra.mxu0 0.0
        %4659 = vmatprep.subr.mxu0 0.0
        %4660 = vmatpush1.msra.mxu0 0.0
        %4661 = vmatprep.subr.mxu0 0.0
        %4662 = vmatpush1.msra.mxu0 0.0
        %4663 = vmatprep.subr.mxu0 0.0
        %4664 = vmatpush1.msra.mxu0 0.0
        %4665 = vmatprep.subr.mxu0 0.0
        %4666 = vmatpush1.msra.mxu0 0.0
        %4667 = vmatprep.subr.mxu0 0.0
        %4668 = vmatpush1.msra.mxu0 0.0
        %4669 = vmatprep.subr.mxu0 0.0
        %4670 = vmatpush1.msra.mxu0 0.0
        %4671 = vmatprep.subr.mxu0 0.0
        %4672 = vmatpush1.msra.mxu0 0.0
        %4673 = vmatprep.subr.mxu0 0.0
        %4674 = vmatpush1.msra.mxu0 0.0
        %4675 = vmatprep.subr.mxu0 0.0
        %4676 = vmatpush1.msra.mxu0 0.0
        %4677 = vmatprep.subr.mxu0 0.0
        %4678 = vmatpush1.msra.mxu0 0.0
        %4679 = vmatprep.subr.mxu0 0.0
        %4680 = vmatpush1.msra.mxu0 0.0
        %4681 = vmatprep.subr.mxu0 0.0
        %4682 = vmatpush1.msra.mxu0 0.0
        %4683 = vmatprep.subr.mxu0 0.0
        %4684 = vmatpush1.msra.mxu0 0.0
        %4685 = vmatprep.subr.mxu0 0.0
        %4686 = vmatpush1.msra.mxu0 0.0
        %4687 = vmatprep.subr.mxu0 0.0
        %4688 = vmatpush1.msra.mxu0 0.0
        %4689 = vmatprep.subr.mxu0 0.0
        %4690 = vmatpush1.msra.mxu0 0.0
        %4691 = vmatprep.subr.mxu0 0.0
        %4692 = vmatpush1.msra.mxu0 0.0
        %4693 = vmatprep.subr.mxu0 0.0
        %4694 = vmatpush1.msra.mxu0 0.0
        %4695 = vmatprep.subr.mxu0 0.0
        %4696 = vmatpush1.msra.mxu0 0.0
        %4697 = vmatprep.subr.mxu0 0.0
        %4698 = vmatpush1.msra.mxu0 0.0
        %4699 = vmatprep.subr.mxu0 0.0
        %4700 = vmatpush1.msra.mxu0 0.0
        %4701 = vmatprep.subr.mxu0 0.0
        %4702 = vmatpush1.msra.mxu0 0.0
        %4703 = vmatprep.subr.mxu0 0.0
        %4704 = vmatpush1.msra.mxu0 0.0
        %4705 = vmatprep.subr.mxu0 0.0
        %4706 = vmatpush1.msra.mxu0 0.0
        %4707 = vmatprep.subr.mxu0 0.0
        %4708 = vmatpush1.msra.mxu0 0.0
        %4709 = vmatprep.subr.mxu0 0.0
        %4710 = vmatpush1.msra.mxu0 0.0
        %4711 = vmatprep.subr.mxu0 0.0
        %4712 = vmatpush1.msra.mxu0 0.0
        %4713 = vmatprep.subr.mxu0 0.0
        %4714 = vmatpush1.msra.mxu0 0.0
        %4715 = vmatprep.subr.mxu0 0.0
        %4716 = vmatpush1.msra.mxu0 0.0
        %4717 = vmatprep.subr.mxu0 0.0
        %4718 = vmatpush1.msra.mxu0 0.0
        %4719 = vmatprep.mubr.f32.mxu0 0.0
        %4720 = vmatmul.mubr.f32.gmra.mrb[0].mxu0 %v4653
        %v4721 = vpop.f32.mrb[0].mxu0
        %v4722 = vadd.f32 0.0, %v4721
        %v4723 = vpop.f32.mrb[0].mxu0
        %4724 = vdwg.mxu0
        %v4725 = vmul.f32 %v4607, 0.75
        %v4726 = vmul.f32 %v4608, 0.75
        %v4727 = vmul.f32 %v4609, 0.75
        %v4728 = vmul.f32 %v4610, 0.75
        %v4729 = vmul.f32 %v4611, 0.75
        %v4730 = vmul.f32 %v4612, 0.75
        %v4731 = vmul.f32 %v4613, 0.75
        %v4732 = vmul.f32 %v4614, 0.75
        %v4733 = vadd.f32 %v4387, %v4725
        %v4734 = vadd.f32 %v4388, %v4726
        %v4735 = vadd.f32 %v4389, %v4727
        %v4736 = vadd.f32 %v4390, %v4728
        %v4737 = vadd.f32 %v4391, %v4729
        %v4738 = vadd.f32 %v4392, %v4730
        %v4739 = vadd.f32 %v4393, %v4731
        %v4740 = vadd.f32 %v4394, %v4732
        %v4749 = vrot.slane %v4734, 7
        %v4750 = vsel %vm3359, %v4749, %v4733
        %v4751 = vrot.slane %v4735, 6
        %v4752 = vsel %vm3362, %v4751, %v4750
        %v4753 = vrot.slane %v4736, 5
        %v4754 = vsel %vm3365, %v4753, %v4752
        %v4755 = vrot.slane %v4737, 4
        %v4756 = vsel %vm3368, %v4755, %v4754
        %v4757 = vrot.slane %v4738, 3
        %v4758 = vsel %vm3371, %v4757, %v4756
        %v4759 = vrot.slane %v4739, 2
        %v4760 = vsel %vm3374, %v4759, %v4758
        %v4761 = vrot.slane %v4740, 1
        %v4762 = vsel %vm3377, %v4761, %v4760
        %v4763 = vsel %vm3332, %v4762, 0
        %4765 = vmatprep.subr.mxu0 0.0
        %4766 = vmatpush1.msra.mxu0 %v3341
        %4767 = vmatprep.subr.mxu0 0.0
        %4768 = vmatpush1.msra.mxu0 0.0
        %4769 = vmatprep.subr.mxu0 0.0
        %4770 = vmatpush1.msra.mxu0 0.0
        %4771 = vmatprep.subr.mxu0 0.0
        %4772 = vmatpush1.msra.mxu0 0.0
        %4773 = vmatprep.subr.mxu0 0.0
        %4774 = vmatpush1.msra.mxu0 0.0
        %4775 = vmatprep.subr.mxu0 0.0
        %4776 = vmatpush1.msra.mxu0 0.0
        %4777 = vmatprep.subr.mxu0 0.0
        %4778 = vmatpush1.msra.mxu0 0.0
        %4779 = vmatprep.subr.mxu0 0.0
        %4780 = vmatpush1.msra.mxu0 0.0
        %4781 = vmatprep.subr.mxu0 0.0
        %4782 = vmatpush1.msra.mxu0 0.0
        %4783 = vmatprep.subr.mxu0 0.0
        %4784 = vmatpush1.msra.mxu0 0.0
        %4785 = vmatprep.subr.mxu0 0.0
        %4786 = vmatpush1.msra.mxu0 0.0
        %4787 = vmatprep.subr.mxu0 0.0
        %4788 = vmatpush1.msra.mxu0 0.0
        %4789 = vmatprep.subr.mxu0 0.0
        %4790 = vmatpush1.msra.mxu0 0.0
        %4791 = vmatprep.subr.mxu0 0.0
        %4792 = vmatpush1.msra.mxu0 0.0
        %4793 = vmatprep.subr.mxu0 0.0
        %4794 = vmatpush1.msra.mxu0 0.0
        %4795 = vmatprep.subr.mxu0 0.0
        %4796 = vmatpush1.msra.mxu0 0.0
        %4797 = vmatprep.subr.mxu0 0.0
        %4798 = vmatpush1.msra.mxu0 0.0
        %4799 = vmatprep.subr.mxu0 0.0
        %4800 = vmatpush1.msra.mxu0 0.0
        %4801 = vmatprep.subr.mxu0 0.0
        %4802 = vmatpush1.msra.mxu0 0.0
        %4803 = vmatprep.subr.mxu0 0.0
        %4804 = vmatpush1.msra.mxu0 0.0
        %4805 = vmatprep.subr.mxu0 0.0
        %4806 = vmatpush1.msra.mxu0 0.0
        %4807 = vmatprep.subr.mxu0 0.0
        %4808 = vmatpush1.msra.mxu0 0.0
        %4809 = vmatprep.subr.mxu0 0.0
        %4810 = vmatpush1.msra.mxu0 0.0
        %4811 = vmatprep.subr.mxu0 0.0
        %4812 = vmatpush1.msra.mxu0 0.0
        %4813 = vmatprep.subr.mxu0 0.0
        %4814 = vmatpush1.msra.mxu0 0.0
        %4815 = vmatprep.subr.mxu0 0.0
        %4816 = vmatpush1.msra.mxu0 0.0
        %4817 = vmatprep.subr.mxu0 0.0
        %4818 = vmatpush1.msra.mxu0 0.0
        %4819 = vmatprep.subr.mxu0 0.0
        %4820 = vmatpush1.msra.mxu0 0.0
        %4821 = vmatprep.subr.mxu0 0.0
        %4822 = vmatpush1.msra.mxu0 0.0
        %4823 = vmatprep.subr.mxu0 0.0
        %4824 = vmatpush1.msra.mxu0 0.0
        %4825 = vmatprep.subr.mxu0 0.0
        %4826 = vmatpush1.msra.mxu0 0.0
        %4827 = vmatprep.subr.mxu0 0.0
        %4828 = vmatpush1.msra.mxu0 0.0
        %4829 = vmatprep.mubr.f32.mxu0 0.0
        %4830 = vmatmul.mubr.f32.gmra.mrb[0].mxu0 %v4763
        %v4831 = vpop.f32.mrb[0].mxu0
        %v4832 = vadd.f32 0.0, %v4831
        %v4833 = vpop.f32.mrb[0].mxu0
        %4834 = vdwg.mxu0
        %v4835 = vld [vmem:[#allocation2 + $0x7] sm:$0x1]
        %v4836 = vld [vmem:[#allocation2 + $0xf] sm:$0x1]
        %v4837 = vld [vmem:[#allocation2 + $0x17] sm:$0x1]
        %v4838 = vld [vmem:[#allocation2 + $0x1f] sm:$0x1]
        %v4839 = vld [vmem:[#allocation2 + $0x27] sm:$0x1]
        %v4840 = vld [vmem:[#allocation2 + $0x2f] sm:$0x1]
        %v4841 = vld [vmem:[#allocation2 + $0x37] sm:$0x1]
        %v4842 = vld [vmem:[#allocation2 + $0x3f] sm:$0x1]
        %v4843 = vmul.f32 %v4835, 0.25
        %v4844 = vmul.f32 %v4836, 0.25
        %v4845 = vmul.f32 %v4837, 0.25
        %v4846 = vmul.f32 %v4838, 0.25
        %v4847 = vmul.f32 %v4839, 0.25
        %v4848 = vmul.f32 %v4840, 0.25
        %v4849 = vmul.f32 %v4841, 0.25
        %v4850 = vmul.f32 %v4842, 0.25
        %v4851 = vadd.f32 %v4725, %v4843
        %v4852 = vadd.f32 %v4726, %v4844
        %v4853 = vadd.f32 %v4727, %v4845
        %v4854 = vadd.f32 %v4728, %v4846
        %v4855 = vadd.f32 %v4729, %v4847
        %v4856 = vadd.f32 %v4730, %v4848
        %v4857 = vadd.f32 %v4731, %v4849
        %v4858 = vadd.f32 %v4732, %v4850
        %v4867 = vrot.slane %v4852, 7
        %v4868 = vsel %vm3359, %v4867, %v4851
        %v4869 = vrot.slane %v4853, 6
        %v4870 = vsel %vm3362, %v4869, %v4868
        %v4871 = vrot.slane %v4854, 5
        %v4872 = vsel %vm3365, %v4871, %v4870
        %v4873 = vrot.slane %v4855, 4
        %v4874 = vsel %vm3368, %v4873, %v4872
        %v4875 = vrot.slane %v4856, 3
        %v4876 = vsel %vm3371, %v4875, %v4874
        %v4877 = vrot.slane %v4857, 2
        %v4878 = vsel %vm3374, %v4877, %v4876
        %v4879 = vrot.slane %v4858, 1
        %v4880 = vsel %vm3377, %v4879, %v4878
        %v4881 = vsel %vm3332, %v4880, 0
        %4883 = vmatprep.subr.mxu0 0.0
        %4884 = vmatpush1.msra.mxu0 %v3341
        %4885 = vmatprep.subr.mxu0 0.0
        %4886 = vmatpush1.msra.mxu0 0.0
        %4887 = vmatprep.subr.mxu0 0.0
        %4888 = vmatpush1.msra.mxu0 0.0
        %4889 = vmatprep.subr.mxu0 0.0
        %4890 = vmatpush1.msra.mxu0 0.0
        %4891 = vmatprep.subr.mxu0 0.0
        %4892 = vmatpush1.msra.mxu0 0.0
        %4893 = vmatprep.subr.mxu0 0.0
        %4894 = vmatpush1.msra.mxu0 0.0
        %4895 = vmatprep.subr.mxu0 0.0
        %4896 = vmatpush1.msra.mxu0 0.0
        %4897 = vmatprep.subr.mxu0 0.0
        %4898 = vmatpush1.msra.mxu0 0.0
        %4899 = vmatprep.subr.mxu0 0.0
        %4900 = vmatpush1.msra.mxu0 0.0
        %4901 = vmatprep.subr.mxu0 0.0
        %4902 = vmatpush1.msra.mxu0 0.0
        %4903 = vmatprep.subr.mxu0 0.0
        %4904 = vmatpush1.msra.mxu0 0.0
        %4905 = vmatprep.subr.mxu0 0.0
        %4906 = vmatpush1.msra.mxu0 0.0
        %4907 = vmatprep.subr.mxu0 0.0
        %4908 = vmatpush1.msra.mxu0 0.0
        %4909 = vmatprep.subr.mxu0 0.0
        %4910 = vmatpush1.msra.mxu0 0.0
        %4911 = vmatprep.subr.mxu0 0.0
        %4912 = vmatpush1.msra.mxu0 0.0
        %4913 = vmatprep.subr.mxu0 0.0
        %4914 = vmatpush1.msra.mxu0 0.0
        %4915 = vmatprep.subr.mxu0 0.0
        %4916 = vmatpush1.msra.mxu0 0.0
        %4917 = vmatprep.subr.mxu0 0.0
        %4918 = vmatpush1.msra.mxu0 0.0
        %4919 = vmatprep.subr.mxu0 0.0
        %4920 = vmatpush1.msra.mxu0 0.0
        %4921 = vmatprep.subr.mxu0 0.0
        %4922 = vmatpush1.msra.mxu0 0.0
        %4923 = vmatprep.subr.mxu0 0.0
        %4924 = vmatpush1.msra.mxu0 0.0
        %4925 = vmatprep.subr.mxu0 0.0
        %4926 = vmatpush1.msra.mxu0 0.0
        %4927 = vmatprep.subr.mxu0 0.0
        %4928 = vmatpush1.msra.mxu0 0.0
        %4929 = vmatprep.subr.mxu0 0.0
        %4930 = vmatpush1.msra.mxu0 0.0
        %4931 = vmatprep.subr.mxu0 0.0
        %4932 = vmatpush1.msra.mxu0 0.0
        %4933 = vmatprep.subr.mxu0 0.0
        %4934 = vmatpush1.msra.mxu0 0.0
        %4935 = vmatprep.subr.mxu0 0.0
        %4936 = vmatpush1.msra.mxu0 0.0
        %4937 = vmatprep.subr.mxu0 0.0
        %4938 = vmatpush1.msra.mxu0 0.0
        %4939 = vmatprep.subr.mxu0 0.0
        %4940 = vmatpush1.msra.mxu0 0.0
        %4941 = vmatprep.subr.mxu0 0.0
        %4942 = vmatpush1.msra.mxu0 0.0
        %4943 = vmatprep.subr.mxu0 0.0
        %4944 = vmatpush1.msra.mxu0 0.0
        %4945 = vmatprep.subr.mxu0 0.0
        %4946 = vmatpush1.msra.mxu0 0.0
        %4947 = vmatprep.mubr.f32.mxu0 0.0
        %4948 = vmatmul.mubr.f32.gmra.mrb[0].mxu0 %v4881
        %v4949 = vpop.f32.mrb[0].mxu0
        %v4950 = vadd.f32 0.0, %v4949
        %v4951 = vpop.f32.mrb[0].mxu0
        %4952 = vdwg.mxu0
        %v4953 = vmul.f32 %v4835, 0.75
        %v4954 = vmul.f32 %v4836, 0.75
        %v4955 = vmul.f32 %v4837, 0.75
        %v4956 = vmul.f32 %v4838, 0.75
        %v4957 = vmul.f32 %v4839, 0.75
        %v4958 = vmul.f32 %v4840, 0.75
        %v4959 = vmul.f32 %v4841, 0.75
        %v4960 = vmul.f32 %v4842, 0.75
        %v4961 = vadd.f32 %v4615, %v4953
        %v4962 = vadd.f32 %v4616, %v4954
        %v4963 = vadd.f32 %v4617, %v4955
        %v4964 = vadd.f32 %v4618, %v4956
        %v4965 = vadd.f32 %v4619, %v4957
        %v4966 = vadd.f32 %v4620, %v4958
        %v4967 = vadd.f32 %v4621, %v4959
        %v4968 = vadd.f32 %v4622, %v4960
        %v4977 = vrot.slane %v4962, 7
        %v4978 = vsel %vm3359, %v4977, %v4961
        %v4979 = vrot.slane %v4963, 6
        %v4980 = vsel %vm3362, %v4979, %v4978
        %v4981 = vrot.slane %v4964, 5
        %v4982 = vsel %vm3365, %v4981, %v4980
        %v4983 = vrot.slane %v4965, 4
        %v4984 = vsel %vm3368, %v4983, %v4982
        %v4985 = vrot.slane %v4966, 3
        %v4986 = vsel %vm3371, %v4985, %v4984
        %v4987 = vrot.slane %v4967, 2
        %v4988 = vsel %vm3374, %v4987, %v4986
        %v4989 = vrot.slane %v4968, 1
        %v4990 = vsel %vm3377, %v4989, %v4988
        %v4991 = vsel %vm3332, %v4990, 0
        %4993 = vmatprep.subr.mxu0 0.0
        %4994 = vmatpush1.msra.mxu0 %v3341
        %4995 = vmatprep.subr.mxu0 0.0
        %4996 = vmatpush1.msra.mxu0 0.0
        %4997 = vmatprep.subr.mxu0 0.0
        %4998 = vmatpush1.msra.mxu0 0.0
        %4999 = vmatprep.subr.mxu0 0.0
        %5000 = vmatpush1.msra.mxu0 0.0
        %5001 = vmatprep.subr.mxu0 0.0
        %5002 = vmatpush1.msra.mxu0 0.0
        %5003 = vmatprep.subr.mxu0 0.0
        %5004 = vmatpush1.msra.mxu0 0.0
        %5005 = vmatprep.subr.mxu0 0.0
        %5006 = vmatpush1.msra.mxu0 0.0
        %5007 = vmatprep.subr.mxu0 0.0
        %5008 = vmatpush1.msra.mxu0 0.0
        %5009 = vmatprep.subr.mxu0 0.0
        %5010 = vmatpush1.msra.mxu0 0.0
        %5011 = vmatprep.subr.mxu0 0.0
        %5012 = vmatpush1.msra.mxu0 0.0
        %5013 = vmatprep.subr.mxu0 0.0
        %5014 = vmatpush1.msra.mxu0 0.0
        %5015 = vmatprep.subr.mxu0 0.0
        %5016 = vmatpush1.msra.mxu0 0.0
        %5017 = vmatprep.subr.mxu0 0.0
        %5018 = vmatpush1.msra.mxu0 0.0
        %5019 = vmatprep.subr.mxu0 0.0
        %5020 = vmatpush1.msra.mxu0 0.0
        %5021 = vmatprep.subr.mxu0 0.0
        %5022 = vmatpush1.msra.mxu0 0.0
        %5023 = vmatprep.subr.mxu0 0.0
        %5024 = vmatpush1.msra.mxu0 0.0
        %5025 = vmatprep.subr.mxu0 0.0
        %5026 = vmatpush1.msra.mxu0 0.0
        %5027 = vmatprep.subr.mxu0 0.0
        %5028 = vmatpush1.msra.mxu0 0.0
        %5029 = vmatprep.subr.mxu0 0.0
        %5030 = vmatpush1.msra.mxu0 0.0
        %5031 = vmatprep.subr.mxu0 0.0
        %5032 = vmatpush1.msra.mxu0 0.0
        %5033 = vmatprep.subr.mxu0 0.0
        %5034 = vmatpush1.msra.mxu0 0.0
        %5035 = vmatprep.subr.mxu0 0.0
        %5036 = vmatpush1.msra.mxu0 0.0
        %5037 = vmatprep.subr.mxu0 0.0
        %5038 = vmatpush1.msra.mxu0 0.0
        %5039 = vmatprep.subr.mxu0 0.0
        %5040 = vmatpush1.msra.mxu0 0.0
        %5041 = vmatprep.subr.mxu0 0.0
        %5042 = vmatpush1.msra.mxu0 0.0
        %5043 = vmatprep.subr.mxu0 0.0
        %5044 = vmatpush1.msra.mxu0 0.0
        %5045 = vmatprep.subr.mxu0 0.0
        %5046 = vmatpush1.msra.mxu0 0.0
        %5047 = vmatprep.subr.mxu0 0.0
        %5048 = vmatpush1.msra.mxu0 0.0
        %5049 = vmatprep.subr.mxu0 0.0
        %5050 = vmatpush1.msra.mxu0 0.0
        %5051 = vmatprep.subr.mxu0 0.0
        %5052 = vmatpush1.msra.mxu0 0.0
        %5053 = vmatprep.subr.mxu0 0.0
        %5054 = vmatpush1.msra.mxu0 0.0
        %5055 = vmatprep.subr.mxu0 0.0
        %5056 = vmatpush1.msra.mxu0 0.0
        %5057 = vmatprep.mubr.f32.mxu0 0.0
        %5058 = vmatmul.mubr.f32.gmra.mrb[0].mxu0 %v4991
        %v5059 = vpop.f32.mrb[0].mxu0
        %v5060 = vadd.f32 0.0, %v5059
        %v5061 = vpop.f32.mrb[0].mxu0
        %5062 = vdwg.mxu0
        %v5071 = vrot.slane %v4836, 7
        %v5072 = vsel %vm3359, %v5071, %v4835
        %v5073 = vrot.slane %v4837, 6
        %v5074 = vsel %vm3362, %v5073, %v5072
        %v5075 = vrot.slane %v4838, 5
        %v5076 = vsel %vm3365, %v5075, %v5074
        %v5077 = vrot.slane %v4839, 4
        %v5078 = vsel %vm3368, %v5077, %v5076
        %v5079 = vrot.slane %v4840, 3
        %v5080 = vsel %vm3371, %v5079, %v5078
        %v5081 = vrot.slane %v4841, 2
        %v5082 = vsel %vm3374, %v5081, %v5080
        %v5083 = vrot.slane %v4842, 1
        %v5084 = vsel %vm3377, %v5083, %v5082
        %v5085 = vsel %vm3332, %v5084, 0
        %5087 = vmatprep.subr.mxu0 0.0
        %5088 = vmatpush1.msra.mxu0 %v3341
        %5089 = vmatprep.subr.mxu0 0.0
        %5090 = vmatpush1.msra.mxu0 0.0
        %5091 = vmatprep.subr.mxu0 0.0
        %5092 = vmatpush1.msra.mxu0 0.0
        %5093 = vmatprep.subr.mxu0 0.0
        %5094 = vmatpush1.msra.mxu0 0.0
        %5095 = vmatprep.subr.mxu0 0.0
        %5096 = vmatpush1.msra.mxu0 0.0
        %5097 = vmatprep.subr.mxu0 0.0
        %5098 = vmatpush1.msra.mxu0 0.0
        %5099 = vmatprep.subr.mxu0 0.0
        %5100 = vmatpush1.msra.mxu0 0.0
        %5101 = vmatprep.subr.mxu0 0.0
        %5102 = vmatpush1.msra.mxu0 0.0
        %5103 = vmatprep.subr.mxu0 0.0
        %5104 = vmatpush1.msra.mxu0 0.0
        %5105 = vmatprep.subr.mxu0 0.0
        %5106 = vmatpush1.msra.mxu0 0.0
        %5107 = vmatprep.subr.mxu0 0.0
        %5108 = vmatpush1.msra.mxu0 0.0
        %5109 = vmatprep.subr.mxu0 0.0
        %5110 = vmatpush1.msra.mxu0 0.0
        %5111 = vmatprep.subr.mxu0 0.0
        %5112 = vmatpush1.msra.mxu0 0.0
        %5113 = vmatprep.subr.mxu0 0.0
        %5114 = vmatpush1.msra.mxu0 0.0
        %5115 = vmatprep.subr.mxu0 0.0
        %5116 = vmatpush1.msra.mxu0 0.0
        %5117 = vmatprep.subr.mxu0 0.0
        %5118 = vmatpush1.msra.mxu0 0.0
        %5119 = vmatprep.subr.mxu0 0.0
        %5120 = vmatpush1.msra.mxu0 0.0
        %5121 = vmatprep.subr.mxu0 0.0
        %5122 = vmatpush1.msra.mxu0 0.0
        %5123 = vmatprep.subr.mxu0 0.0
        %5124 = vmatpush1.msra.mxu0 0.0
        %5125 = vmatprep.subr.mxu0 0.0
        %5126 = vmatpush1.msra.mxu0 0.0
        %5127 = vmatprep.subr.mxu0 0.0
        %5128 = vmatpush1.msra.mxu0 0.0
        %5129 = vmatprep.subr.mxu0 0.0
        %5130 = vmatpush1.msra.mxu0 0.0
        %5131 = vmatprep.subr.mxu0 0.0
        %5132 = vmatpush1.msra.mxu0 0.0
        %5133 = vmatprep.subr.mxu0 0.0
        %5134 = vmatpush1.msra.mxu0 0.0
        %5135 = vmatprep.subr.mxu0 0.0
        %5136 = vmatpush1.msra.mxu0 0.0
        %5137 = vmatprep.subr.mxu0 0.0
        %5138 = vmatpush1.msra.mxu0 0.0
        %5139 = vmatprep.subr.mxu0 0.0
        %5140 = vmatpush1.msra.mxu0 0.0
        %5141 = vmatprep.subr.mxu0 0.0
        %5142 = vmatpush1.msra.mxu0 0.0
        %5143 = vmatprep.subr.mxu0 0.0
        %5144 = vmatpush1.msra.mxu0 0.0
        %5145 = vmatprep.subr.mxu0 0.0
        %5146 = vmatpush1.msra.mxu0 0.0
        %5147 = vmatprep.subr.mxu0 0.0
        %5148 = vmatpush1.msra.mxu0 0.0
        %5149 = vmatprep.subr.mxu0 0.0
        %5150 = vmatpush1.msra.mxu0 0.0
        %5151 = vmatprep.mubr.f32.mxu0 0.0
        %5152 = vmatmul.mubr.f32.gmra.mrb[0].mxu0 %v5085
        %v5153 = vpop.f32.mrb[0].mxu0
        %v5154 = vadd.f32 0.0, %v5153
        %v5155 = vpop.f32.mrb[0].mxu0
        %5156 = vdwg.mxu0
        %5158 = vrot.lane.b32.xlu0 %v3574, 16
        %v5159 = vpop.permute.xlu0 %5158
        %5162 = vrot.lane.b32.xlu0 %v3692, 32
        %v5163 = vpop.permute.xlu0 %5162
        %5166 = vrot.lane.b32.xlu0 %v3810, 48
        %v5167 = vpop.permute.xlu0 %5166
        %5170 = vrot.lane.b32.xlu0 %v3920, 64
        %v5171 = vpop.permute.xlu0 %5170
        %5174 = vrot.lane.b32.xlu0 %v4038, 80
        %v5175 = vpop.permute.xlu0 %5174
        %5178 = vrot.lane.b32.xlu0 %v4148, 96
        %v5179 = vpop.permute.xlu0 %5178
        %5182 = vrot.lane.b32.xlu0 %v4266, 112
        %v5183 = vpop.permute.xlu0 %5182
        %5186 = vrot.lane.b32.xlu0 %v4494, 16
        %v5187 = vpop.permute.xlu0 %5186
        %5190 = vrot.lane.b32.xlu0 %v4604, 32
        %v5191 = vpop.permute.xlu0 %5190
        %5194 = vrot.lane.b32.xlu0 %v4722, 48
        %v5195 = vpop.permute.xlu0 %5194
        %5198 = vrot.lane.b32.xlu0 %v4832, 64
        %v5199 = vpop.permute.xlu0 %5198
        %5202 = vrot.lane.b32.xlu0 %v4950, 80
        %v5203 = vpop.permute.xlu0 %5202
        %5206 = vrot.lane.b32.xlu0 %v5060, 96
        %v5207 = vpop.permute.xlu0 %5206
        %5210 = vrot.lane.b32.xlu0 %v5154, 112
        %v5211 = vpop.permute.xlu0 %5210
        %vm5213 = vcmask 130048
        %v5214 = vsel %vm5213, %v3448, %v5159
        %vm5215 = vcmask 261120
        %v5216 = vsel %vm5215, %v5214, %v5163
        %vm5217 = vcmask 392192
        %v5218 = vsel %vm5217, %v5216, %v5167
        %vm5219 = vcmask 523264
        %v5220 = vsel %vm5219, %v5218, %v5171
        %vm5221 = vcmask 654336
        %v5222 = vsel %vm5221, %v5220, %v5175
        %vm5223 = vcmask 785408
        %v5224 = vsel %vm5223, %v5222, %v5179
        %vm5225 = vcmask 916480
        %v5226 = vsel %vm5225, %v5224, %v5183
        %v5227 = vsel %vm5213, %v4376, %v5187
        %v5228 = vsel %vm5215, %v5227, %v5191
        %v5229 = vsel %vm5217, %v5228, %v5195
        %v5230 = vsel %vm5219, %v5229, %v5199
        %v5231 = vsel %vm5221, %v5230, %v5203
        %v5232 = vsel %vm5223, %v5231, %v5207
        %v5233 = vsel %vm5225, %v5232, %v5211
        %v5234 = vld [vmem:[%s4] sm:$0xff]
        %v5235 = vld [vmem:[%s4 + $0x8] sm:$0xff]
        %v5237 = vsel %vm3332, %v5234, 0
        %v5240 = vsel %vm3332, %v5235, 0
        %5242 = vmatprep.subr.mxu0 %v5233
        %5243 = vmatpush1.msra.mxu0 %v5226
        %5244 = vmatprep.subr.mxu0 0.0
        %5245 = vmatpush1.msra.mxu0 0.0
        %5246 = vmatprep.subr.mxu0 0.0
        %5247 = vmatpush1.msra.mxu0 0.0
        %5248 = vmatprep.subr.mxu0 0.0
        %5249 = vmatpush1.msra.mxu0 0.0
        %5250 = vmatprep.subr.mxu0 0.0
        %5251 = vmatpush1.msra.mxu0 0.0
        %5252 = vmatprep.subr.mxu0 0.0
        %5253 = vmatpush1.msra.mxu0 0.0
        %5254 = vmatprep.subr.mxu0 0.0
        %5255 = vmatpush1.msra.mxu0 0.0
        %5256 = vmatprep.subr.mxu0 0.0
        %5257 = vmatpush1.msra.mxu0 0.0
        %5258 = vmatprep.subr.mxu0 0.0
        %5259 = vmatpush1.msra.mxu0 0.0
        %5260 = vmatprep.subr.mxu0 0.0
        %5261 = vmatpush1.msra.mxu0 0.0
        %5262 = vmatprep.subr.mxu0 0.0
        %5263 = vmatpush1.msra.mxu0 0.0
        %5264 = vmatprep.subr.mxu0 0.0
        %5265 = vmatpush1.msra.mxu0 0.0
        %5266 = vmatprep.subr.mxu0 0.0
        %5267 = vmatpush1.msra.mxu0 0.0
        %5268 = vmatprep.subr.mxu0 0.0
        %5269 = vmatpush1.msra.mxu0 0.0
        %5270 = vmatprep.subr.mxu0 0.0
        %5271 = vmatpush1.msra.mxu0 0.0
        %5272 = vmatprep.subr.mxu0 0.0
        %5273 = vmatpush1.msra.mxu0 0.0
        %5274 = vmatprep.subr.mxu0 0.0
        %5275 = vmatpush1.msra.mxu0 0.0
        %5276 = vmatprep.subr.mxu0 0.0
        %5277 = vmatpush1.msra.mxu0 0.0
        %5278 = vmatprep.subr.mxu0 0.0
        %5279 = vmatpush1.msra.mxu0 0.0
        %5280 = vmatprep.subr.mxu0 0.0
        %5281 = vmatpush1.msra.mxu0 0.0
        %5282 = vmatprep.subr.mxu0 0.0
        %5283 = vmatpush1.msra.mxu0 0.0
        %5284 = vmatprep.subr.mxu0 0.0
        %5285 = vmatpush1.msra.mxu0 0.0
        %5286 = vmatprep.subr.mxu0 0.0
        %5287 = vmatpush1.msra.mxu0 0.0
        %5288 = vmatprep.subr.mxu0 0.0
        %5289 = vmatpush1.msra.mxu0 0.0
        %5290 = vmatprep.subr.mxu0 0.0
        %5291 = vmatpush1.msra.mxu0 0.0
        %5292 = vmatprep.subr.mxu0 0.0
        %5293 = vmatpush1.msra.mxu0 0.0
        %5294 = vmatprep.subr.mxu0 0.0
        %5295 = vmatpush1.msra.mxu0 0.0
        %5296 = vmatprep.subr.mxu0 0.0
        %5297 = vmatpush1.msra.mxu0 0.0
        %5298 = vmatprep.subr.mxu0 0.0
        %5299 = vmatpush1.msra.mxu0 0.0
        %5300 = vmatprep.subr.mxu0 0.0
        %5301 = vmatpush1.msra.mxu0 0.0
        %5302 = vmatprep.subr.mxu0 0.0
        %5303 = vmatpush1.msra.mxu0 0.0
        %5304 = vmatprep.subr.mxu0 0.0
        %5305 = vmatpush1.msra.mxu0 0.0
        %5306 = vmatprep.mubr.f32.mxu0 0.0
        %5307 = vmatmul.mubr.f32.gmra.mrb[0].mxu0 %v5237
        %v5308 = vpop.f32.mrb[0].mxu0
        %v5309 = vadd.f32 0.0, %v5308
        %v5310 = vpop.f32.mrb[0].mxu0
        %v5311 = vadd.f32 0.0, %v5310
        %5312 = vmatprep.mubr.f32.mxu0 0.0
        %5313 = vmatmul.mubr.f32.gmra.mrb[0].mxu0 %v5240
        %v5314 = vpop.f32.mrb[0].mxu0
        %v5315 = vadd.f32 0.0, %v5314
        %v5316 = vpop.f32.mrb[0].mxu0
        %v5317 = vadd.f32 0.0, %v5316
        %5318 = vdwg.mxu0
        %v5319 = vld [vmem:[%s463] sm:$0xff]
        %v5320 = vld [vmem:[%s463 + $0x8] sm:$0xff]
        %v5321 = vld [vmem:[%s463 + $0x10] sm:$0xff]
        %v5322 = vld [vmem:[%s463 + $0x18] sm:$0xff]
        %v5323 = vld [vmem:[%s463 + $0x20] sm:$0xff]
        %v5324 = vld [vmem:[%s463 + $0x28] sm:$0xff]
        %v5325 = vld [vmem:[%s463 + $0x30] sm:$0xff]
        %v5326 = vld [vmem:[%s463 + $0x38] sm:$0xff]
        %v5327 = vld [vmem:[%s463 + $0x40] sm:$0xff]
        %v5328 = vld [vmem:[%s463 + $0x48] sm:$0xff]
        %v5329 = vld [vmem:[%s463 + $0x50] sm:$0xff]
        %v5330 = vld [vmem:[%s463 + $0x58] sm:$0xff]
        %v5331 = vld [vmem:[%s463 + $0x60] sm:$0xff]
        %v5332 = vld [vmem:[%s463 + $0x68] sm:$0xff]
        %v5333 = vld [vmem:[%s463 + $0x70] sm:$0xff]
        %v5334 = vld [vmem:[%s463 + $0x78] sm:$0xff]
        %v5335 = vmul.f32 %v5319, %v5309
        %v5336 = vmul.f32 %v5320, %v5311
        %v5337 = vmul.f32 %v5321, %v5315
        %v5338 = vmul.f32 %v5322, %v5317
        %v5339 = vmul.f32 %v5323, %v5309
        %v5340 = vmul.f32 %v5324, %v5311
        %v5341 = vmul.f32 %v5325, %v5315
        %v5342 = vmul.f32 %v5326, %v5317
        %v5343 = vmul.f32 %v5327, %v5309
        %v5344 = vmul.f32 %v5328, %v5311
        %v5345 = vmul.f32 %v5329, %v5315
        %v5346 = vmul.f32 %v5330, %v5317
        %v5347 = vmul.f32 %v5331, %v5309
        %v5348 = vmul.f32 %v5332, %v5311
        %v5349 = vmul.f32 %v5333, %v5315
        %v5350 = vmul.f32 %v5334, %v5317
        %5351 = vst [vmem:[%s526] sm:$0xff] %v5335
        %5352 = vst [vmem:[%s526 + $0x8] sm:$0xff] %v5336
        %5353 = vst [vmem:[%s526 + $0x10] sm:$0xff] %v5337
        %5354 = vst [vmem:[%s526 + $0x18] sm:$0xff] %v5338
        %5355 = vst [vmem:[%s526 + $0x20] sm:$0xff] %v5339
        %5356 = vst [vmem:[%s526 + $0x28] sm:$0xff] %v5340
        %5357 = vst [vmem:[%s526 + $0x30] sm:$0xff] %v5341
        %5358 = vst [vmem:[%s526 + $0x38] sm:$0xff] %v5342
        %5359 = vst [vmem:[%s526 + $0x40] sm:$0xff] %v5343
        %5360 = vst [vmem:[%s526 + $0x48] sm:$0xff] %v5344
        %5361 = vst [vmem:[%s526 + $0x50] sm:$0xff] %v5345
        %5362 = vst [vmem:[%s526 + $0x58] sm:$0xff] %v5346
        %5363 = vst [vmem:[%s526 + $0x60] sm:$0xff] %v5347
        %5364 = vst [vmem:[%s526 + $0x68] sm:$0xff] %v5348
        %5365 = vst [vmem:[%s526 + $0x70] sm:$0xff] %v5349
        %5366 = vst [vmem:[%s526 + $0x78] sm:$0xff] %v5350
        %s5367 = sand.u32 %s283, 1
        %s5368 = scalar_lea.sflag [#allocation6], %s5367
        %s5369 = sand.u32 %s283, 1
        %s5370 = smul.addr %s5369, 128
        %s5371 = scalar_lea.vmem [#allocation17], %s5370
        // Predicated region
        $region89: #{tpu_custom_call.1} parent=59 // pred_check
          %p5372 = pneg %p293
        $region90: #{tpu_custom_call.1} parent=59 // pred_check_branch
          %5374 = sbr.rel (%p5372) target = $region92
        $region91: #{tpu_custom_call.1} parent=59 // pred_region
          %s5375 = smul.u32 4, %s39
          %s5377 = ssub.s32 2048, 2048
          %5378 = vsyncadd %s5368, %s5377
          %s5379 = smul.addr %s5375, 4
          %s5380 = smul.addr %s38, 32
          %s5381 = sadd.s32 %s5379, %s5380
          %s5382 = smul.addr %s5381, 128
          %s5383 = scalar_lea.hbm %s10, %s5382
          %s5384 = sshll.u32 %s5371, 4
          %s5385 = int_to_ptr.vmem [resolvable:$true] %s5384
          %5390 = dma.vmem_to_hbm [thread:$0]  %s5385, 2048, %s5383, %s5368, 256, 256, 16
        $region92: #{tpu_custom_call.1} parent=59 // pred_fallthru
          _
      $region60: #{tpu_custom_call.1} parent=5 // pred_fallthru
        _
      %p5391 = scmp.le.s32.totalorder 2, %s29
      // Predicated region
      $region93: #{tpu_custom_call.1} parent=5 // pred_check
        %p5392 = pneg %p5391
      $region94: #{tpu_custom_call.1} parent=5 // pred_check_branch
        %5394 = sbr.rel (%p5392) target = $region96
      $region95: #{tpu_custom_call.1} parent=5 // pred_region
        %s5395 = ssub.s32 %s29, 2
        // Predicated region
        $region97: #{tpu_custom_call.1} parent=95 // pred_check
          %p5396 = pneg %p299
        $region98: #{tpu_custom_call.1} parent=95 // pred_check_branch
          %5398 = sbr.rel (%p5396) target = $region100
        $region99: #{tpu_custom_call.1} parent=95 // pred_region
          %s5399 = sand.u32 %s284, 1
          %s5400 = scalar_lea.sflag [#allocation6], %s5399
          %s5401 = sand.u32 %s284, 1
          %s5402 = smul.addr %s5401, 128
          %s5403 = scalar_lea.vmem [#allocation17], %s5402
          %5404 = dma.done %s5400, 2048
        $region100: #{tpu_custom_call.1} parent=95 // pred_fallthru
          _
      $region96: #{tpu_custom_call.1} parent=5 // pred_fallthru
        _
    $region6: #{tpu_custom_call.1} parent=1 // loop_footer
      %s33 = sadd.s32 1, %s29
    $region7: #{tpu_custom_call.1} parent=1 // loop_footer_branch
      %28 = sbr.rel target = $region3
    $region8: #{tpu_custom_call.1} parent=1 // loop_exit
      _
    %5405 = vsyncpa [#allocation5], 1
    %s5406 = scalar_lea.sflag [#allocation5], 1
    %5407 = vsyncpa %s5406, 1
    %5408 = vsyncpa [#allocation9], 1
    %s5409 = scalar_lea.sflag [#allocation9], 1
    %5410 = vsyncpa %s5409, 1
    %5411 = vsyncpa [#allocation6], 1
    %s5412 = scalar_lea.sflag [#allocation6], 1
    %5413 = vsyncpa %s5412, 1
    %5414 = vsyncpa [#allocation7], 1
    %s5415 = scalar_lea.sflag [#allocation7], 1
    %5416 = vsyncpa %s5415, 1
    %5417 = vsyncpa [#allocation13], 1
    %5418 = vsyncpa [#allocation16], 1

</llo_original>
